<compile_context>
chip_gen: v7x
topology: tpu7x:2x2x1
jax: 0.10.0
libtpu: 0.0.40
codegen_flags: <defaults>
</compile_context>

<pallas_src>
import numpy as np
import jax
import jax.numpy as jnp
from jax import lax
from jax.experimental import pallas as pl
from jax.experimental.pallas import tpu as pltpu

# ---------------------------------------------------------------------------
# Net geometry (input fixed to 3x64x64 by fc1's 16*13*13 flatten)
# ---------------------------------------------------------------------------
K = 5
C_IN, H_IN, W_IN = 3, 64, 64
C1, H1, W1 = 6, 60, 60            # conv1 output
HP1, WP1 = 30, 30                 # pool1 output
C2, H2, W2 = 16, 26, 26           # conv2 output
HP2, WP2 = 13, 13                 # pool2 output
B0 = 64                           # lane block per channel: input / conv1 output
B1 = 32                           # lane block per channel: pool1 / conv2 output
B2 = 16                           # lane block per channel: pool2 output


# ---------------------------------------------------------------------------
# One-time host-side parameter preparation (hoisted out of the forward pass)
# ---------------------------------------------------------------------------
def _conv_band_matrices(w, b_in, b_out, w_out):
    """w: (Cout,Cin,K,K) -> (K, Cin, b_in, Cout*b_out) band matrices.

    m[kh, ci, x+kw, co*b_out + x] = w[co, ci, kh, kw]   (x < w_out),
    so that  sum_kh  input_rows[y+kh] @ m[kh]  equals the valid conv at row y,
    with the output lane-packed per output channel.
    """
    cout, cin, k, _ = w.shape
    m = np.zeros((k, cin, b_in, cout * b_out), np.float32)
    xs = np.arange(w_out)
    for kh in range(k):
        for kw in range(k):
            for co in range(cout):
                for ci in range(cin):
                    m[kh, ci, xs + kw, co * b_out + xs] = w[co, ci, kh, kw]
    return m


def _packed_bias(b, block, w_valid):
    cout = b.shape[0]
    v = np.zeros((1, cout * block), np.float32)
    for co in range(cout):
        v[0, co * block: co * block + w_valid] = b[co]
    return v


def _pool_lane_select(c, b_in, b_out, n_out):
    """(c*b_in - 1, c*b_out) 0/1 matrix: column c*b_out+j picks lane c*b_in+2j."""
    s = np.zeros((c * b_in - 1, c * b_out), np.float32)
    j = np.arange(n_out)
    for ch in range(c):
        s[ch * b_in + 2 * j, ch * b_out + j] = 1.0
    return s


def _pool_row_select(h_in):
    """(h_in//2, h_in - 1) 0/1 matrix: row i picks input row 2i."""
    h_out = h_in // 2
    s = np.zeros((h_out, h_in - 1), np.float32)
    i = np.arange(h_out)
    s[i, 2 * i] = 1.0
    return s


def prepare_params(raw):
    """One-time re-layout of PyTorch-style params into kernel-ready tensors."""
    w1 = np.asarray(raw["conv1_w"], np.float32)
    w2 = np.asarray(raw["conv2_w"], np.float32)
    prep = {
        "m1": _conv_band_matrices(w1, B0, B0, W1),                        # (5,3,64,384)
        "b1": _packed_bias(np.asarray(raw["conv1_b"]), B0, W1),           # (1,384)
        "m2": _conv_band_matrices(w2, B1, B1, W2).reshape(K, C1 * B1, C2 * B1),  # (5,192,512)
        "b2": _packed_bias(np.asarray(raw["conv2_b"]), B1, W2),           # (1,512)
        "scol1": _pool_lane_select(C1, B0, B1, WP1),                      # (383,192)
        "srow1": _pool_row_select(H1),                                    # (30,59)
        "scol2": _pool_lane_select(C2, B1, B2, WP2),                      # (511,256)
        "srow2": _pool_row_select(H2),                                    # (13,25)
        # fc weights stored as (in,out): transpose a PyTorch (out,in) checkpoint on load.
        "fc1_w": np.asarray(raw["fc1_w"], np.float32),
        "fc1_b": np.asarray(raw["fc1_b"], np.float32).reshape(1, -1),
        "fc2_w": np.asarray(raw["fc2_w"], np.float32),
        "fc2_b": np.asarray(raw["fc2_b"], np.float32).reshape(1, -1),
        "fc3_w": np.asarray(raw["fc3_w"], np.float32),
        "fc3_b": np.asarray(raw["fc3_b"], np.float32).reshape(1, -1),
    }
    return {k: jnp.asarray(v) for k, v in prep.items()}


# ---------------------------------------------------------------------------
# Kernel A: fused conv1+ReLU+pool1+conv2+ReLU+pool2 for one image
# ---------------------------------------------------------------------------
def _conv_stack_kernel(x_ref, m1_ref, b1_ref, m2_ref, b2_ref,
                       sc1_ref, sr1_ref, sc2_ref, sr2_ref, o_ref):
    # ---- conv1: 5x3 band matmuls; output lane-packed (60, 6*64) ----
    acc = None
    for kh in range(K):
        for ci in range(C_IN):
            rows = x_ref[0, ci, kh:kh + H1, :]                     # (60, 64)
            part = jnp.dot(rows, m1_ref[kh, ci],
                           preferred_element_type=jnp.float32)    # (60, 384)
            acc = part if acc is None else acc + part
    c1 = jnp.maximum(acc + b1_ref[...], 0.0)                      # (60, 384)

    # ---- pool1: pair-max along lanes & sublanes, then 0/1 selection matmuls ----
    hm = jnp.maximum(c1[:, :-1], c1[:, 1:])                        # (60, 383)
    vm = jnp.maximum(hm[:-1, :], hm[1:, :])                        # (59, 383)
    p1 = jnp.dot(sr1_ref[...],
                 jnp.dot(vm, sc1_ref[...], preferred_element_type=jnp.float32),
                 preferred_element_type=jnp.float32)               # (30, 6*32)

    # ---- conv2: 5 band matmuls on the packed pool1 output ----
    acc = None
    for kh in range(K):
        part = jnp.dot(p1[kh:kh + H2, :], m2_ref[kh],
                       preferred_element_type=jnp.float32)         # (26, 512)
        acc = part if acc is None else acc + part
    c2 = jnp.maximum(acc + b2_ref[...], 0.0)                       # (26, 16*32)

    # ---- pool2 ----
    hm2 = jnp.maximum(c2[:, :-1], c2[:, 1:])                       # (26, 511)
    vm2 = jnp.maximum(hm2[:-1, :], hm2[1:, :])                     # (25, 511)
    p2 = jnp.dot(sr2_ref[...],
                 jnp.dot(vm2, sc2_ref[...], preferred_element_type=jnp.float32),
                 preferred_element_type=jnp.float32)               # (13, 16*16)

    # ---- unpack lane-packed channels into the NCHW output block ----
    for co in range(C2):
        o_ref[0, co, :, :] = p2[:, co * B2: co * B2 + WP2]


def conv_stack(x, prep):
    n = x.shape[0]
    return pl.pallas_call(
        _conv_stack_kernel,
        out_shape=jax.ShapeDtypeStruct((n, C2, HP2, WP2), jnp.float32),
        grid=(n,),
        in_specs=[
            pl.BlockSpec((1, C_IN, H_IN, W_IN), lambda i: (i, 0, 0, 0)),
            pl.BlockSpec((K, C_IN, B0, C1 * B0), lambda i: (0, 0, 0, 0)),
            pl.BlockSpec((1, C1 * B0), lambda i: (0, 0)),
            pl.BlockSpec((K, C1 * B1, C2 * B1), lambda i: (0, 0, 0)),
            pl.BlockSpec((1, C2 * B1), lambda i: (0, 0)),
            pl.BlockSpec((C1 * B0 - 1, C1 * B1), lambda i: (0, 0)),
            pl.BlockSpec((HP1, H1 - 1), lambda i: (0, 0)),
            pl.BlockSpec((C2 * B1 - 1, C2 * B2), lambda i: (0, 0)),
            pl.BlockSpec((HP2, H2 - 1), lambda i: (0, 0)),
        ],
        out_specs=pl.BlockSpec((1, C2, HP2, WP2), lambda i: (i, 0, 0, 0)),
        compiler_params=pltpu.CompilerParams(dimension_semantics=("parallel",)),
    )(x, prep["m1"], prep["b1"], prep["m2"], prep["b2"],
      prep["scol1"], prep["srow1"], prep["scol2"], prep["srow2"])


# ---------------------------------------------------------------------------
# Kernel B: fused fc1+ReLU+fc2+ReLU+fc3 over the whole batch
# ---------------------------------------------------------------------------
def _fc_stack_kernel(x_ref, w1_ref, b1_ref, w2_ref, b2_ref, w3_ref, b3_ref, o_ref):
    h = jnp.dot(x_ref[...], w1_ref[...], preferred_element_type=jnp.float32)
    h = jnp.maximum(h + b1_ref[...], 0.0)
    h = jnp.dot(h, w2_ref[...], preferred_element_type=jnp.float32)
    h = jnp.maximum(h + b2_ref[...], 0.0)
    o = jnp.dot(h, w3_ref[...], preferred_element_type=jnp.float32) + b3_ref[...]
    o_ref[...] = o.astype(o_ref.dtype)


def fc_stack(x, prep):
    n, d = x.shape
    d1 = prep["fc1_w"].shape[1]
    d2 = prep["fc2_w"].shape[1]
    d3 = prep["fc3_w"].shape[1]
    return pl.pallas_call(
        _fc_stack_kernel,
        out_shape=jax.ShapeDtypeStruct((n, d3), jnp.float32),
        grid=(1,),
        in_specs=[
            pl.BlockSpec((n, d), lambda i: (0, 0)),
            pl.BlockSpec((d, d1), lambda i: (0, 0)),
            pl.BlockSpec((1, d1), lambda i: (0, 0)),
            pl.BlockSpec((d1, d2), lambda i: (0, 0)),
            pl.BlockSpec((1, d2), lambda i: (0, 0)),
            pl.BlockSpec((d2, d3), lambda i: (0, 0)),
            pl.BlockSpec((1, d3), lambda i: (0, 0)),
        ],
        out_specs=pl.BlockSpec((n, d3), lambda i: (0, 0)),
    )(x, prep["fc1_w"], prep["fc1_b"], prep["fc2_w"], prep["fc2_b"],
      prep["fc3_w"], prep["fc3_b"])


# ---------------------------------------------------------------------------
# Full forward pass (2 pallas_calls + one free reshape)
# ---------------------------------------------------------------------------
def net_forward(x, prep):
    feats = conv_stack(x, prep)                        # (N,16,13,13) NCHW
    flat = feats.reshape(x.shape[0], C2 * HP2 * WP2)   # == x.view(-1, 16*13*13), free
    return fc_stack(flat, prep)                        # (N,10)


# ---------------------------------------------------------------------------
# Raw (PyTorch-layout) params + pure-XLA reference for a correctness check
# ---------------------------------------------------------------------------
def init_raw_params(key):
    ks = jax.random.split(key, 10)
    s = 0.1
    return {
        "conv1_w": s * jax.random.normal(ks[0], (6, 3, 5, 5), jnp.float32),
        "conv1_b": s * jax.random.normal(ks[1], (6,), jnp.float32),
        "conv2_w": s * jax.random.normal(ks[2], (16, 6, 5, 5), jnp.float32),
        "conv2_b": s * jax.random.normal(ks[3], (16,), jnp.float32),
        "fc1_w": s * jax.random.normal(ks[4], (16 * 13 * 13, 120), jnp.float32),
        "fc1_b": s * jax.random.normal(ks[5], (120,), jnp.float32),
        "fc2_w": s * jax.random.normal(ks[6], (120, 84), jnp.float32),
        "fc2_b": s * jax.random.normal(ks[7], (84,), jnp.float32),
        "fc3_w": s * jax.random.normal(ks[8], (84, 10), jnp.float32),
        "fc3_b": s * jax.random.normal(ks[9], (10,), jnp.float32),
    }


def reference_forward(x, raw):
    hi = lax.Precision.HIGHEST
    y = lax.conv_general_dilated(x, raw["conv1_w"], (1, 1), "VALID",
                                 dimension_numbers=("NCHW", "OIHW", "NCHW"),
                                 precision=hi)
    y = jnp.maximum(y + raw["conv1_b"].reshape(1, -1, 1, 1), 0.0)
    y = lax.reduce_window(y, -jnp.inf, lax.max, (1, 1, 2, 2), (1, 1, 2, 2), "VALID")
    y = lax.conv_general_dilated(y, raw["conv2_w"], (1, 1), "VALID",
                                 dimension_numbers=("NCHW", "OIHW", "NCHW"),
                                 precision=hi)
    y = jnp.maximum(y + raw["conv2_b"].reshape(1, -1, 1, 1), 0.0)
    y = lax.reduce_window(y, -jnp.inf, lax.max, (1, 1, 2, 2), (1, 1, 2, 2), "VALID")
    y = y.reshape(y.shape[0], -1)
    y = jnp.maximum(jnp.dot(y, raw["fc1_w"], precision=hi) + raw["fc1_b"], 0.0)
    y = jnp.maximum(jnp.dot(y, raw["fc2_w"], precision=hi) + raw["fc2_b"], 0.0)
    return jnp.dot(y, raw["fc3_w"], precision=hi) + raw["fc3_b"]


if __name__ == "__main__":
    key = jax.random.PRNGKey(0)
    kx, kp = jax.random.split(key)
    # Input spatial size is fixed to 64x64 by fc1's 16*13*13 flatten; batch kept small.
    x = jax.random.normal(kx, (2, 3, 64, 64), jnp.float32)   # NCHW, like PyTorch
    raw = init_raw_params(kp)
    prep = prepare_params(raw)                               # one-time weight re-layout

    out = jax.jit(net_forward)(x, prep)
    out = jax.block_until_ready(out)
    assert out.shape == (2, 10), out.shape

    ref = jax.block_until_ready(reference_forward(x, raw))
    np.testing.assert_allclose(np.asarray(out), np.asarray(ref), rtol=1e-2, atol=1e-2)

    print("KERNEL_OK")
</pallas_src>

<mosaic_0001>
module attributes {stable_mosaic.version = 11 : i64} {
  func.func @_conv_stack_kernel(%arg0: i32, %arg1: memref<1x3x64x64xf32, #tpu.memory_space<vmem>>, %arg2: memref<5x3x64x384xf32, #tpu.memory_space<vmem>>, %arg3: memref<1x384xf32, #tpu.memory_space<vmem>>, %arg4: memref<5x192x512xf32, #tpu.memory_space<vmem>>, %arg5: memref<1x512xf32, #tpu.memory_space<vmem>>, %arg6: memref<383x192xf32, #tpu.memory_space<vmem>>, %arg7: memref<30x59xf32, #tpu.memory_space<vmem>>, %arg8: memref<511x256xf32, #tpu.memory_space<vmem>>, %arg9: memref<13x25xf32, #tpu.memory_space<vmem>>, %arg10: memref<1x16x13x13xf32, #tpu.memory_space<vmem>>) attributes {dimension_semantics = [#tpu.dimension_semantics<parallel>], iteration_bounds = array<i64: 2>, scalar_prefetch = 0 : i64, scratch_operands = 0 : i64, tpu.core_type = #tpu.core_type<tc>, window_params = [{transform_indices = @transform_0, window_bounds = array<i64: 1, 3, 64, 64>}, {pipeline_mode = #tpu.pipeline_mode<synchronous>, transform_indices = @transform_1, window_bounds = array<i64: 5, 3, 64, 384>}, {pipeline_mode = #tpu.pipeline_mode<synchronous>, transform_indices = @transform_2, window_bounds = array<i64: 1, 384>}, {pipeline_mode = #tpu.pipeline_mode<synchronous>, transform_indices = @transform_3, window_bounds = array<i64: 5, 192, 512>}, {pipeline_mode = #tpu.pipeline_mode<synchronous>, transform_indices = @transform_4, window_bounds = array<i64: 1, 512>}, {pipeline_mode = #tpu.pipeline_mode<synchronous>, transform_indices = @transform_5, window_bounds = array<i64: 383, 192>}, {pipeline_mode = #tpu.pipeline_mode<synchronous>, transform_indices = @transform_6, window_bounds = array<i64: 30, 59>}, {pipeline_mode = #tpu.pipeline_mode<synchronous>, transform_indices = @transform_7, window_bounds = array<i64: 511, 256>}, {pipeline_mode = #tpu.pipeline_mode<synchronous>, transform_indices = @transform_8, window_bounds = array<i64: 13, 25>}, {transform_indices = @transform_9, window_bounds = array<i64: 1, 16, 13, 13>}]} {
    %c0 = arith.constant 0 : index
    %c0_0 = arith.constant 0 : index
    %c0_1 = arith.constant 0 : index
    %c0_2 = arith.constant 0 : index
    %0 = vector.load %arg1[%c0, %c0_0, %c0_1, %c0_2] : memref<1x3x64x64xf32, #tpu.memory_space<vmem>>, vector<1x1x60x64xf32>
    %1 = vector.shape_cast %0 : vector<1x1x60x64xf32> to vector<60x64xf32>
    %c0_3 = arith.constant 0 : index
    %c0_4 = arith.constant 0 : index
    %c0_5 = arith.constant 0 : index
    %c0_6 = arith.constant 0 : index
    %2 = vector.load %arg2[%c0_3, %c0_4, %c0_5, %c0_6] : memref<5x3x64x384xf32, #tpu.memory_space<vmem>>, vector<1x1x64x384xf32>
    %3 = vector.shape_cast %2 : vector<1x1x64x384xf32> to vector<64x384xf32>
    %cst = arith.constant dense<0.000000e+00> : vector<60x384xf32>
    %4 = tpu.matmul %1, %3, %cst {dimension_numbers = #tpu.dot_dimension_numbers<[1], [0], [0], [1], [0, 0, 1, 1], [], []>} : vector<60x64xf32>, vector<64x384xf32>, vector<60x384xf32> -> vector<60x384xf32>
    %c0_7 = arith.constant 0 : index
    %c1 = arith.constant 1 : index
    %c0_8 = arith.constant 0 : index
    %c0_9 = arith.constant 0 : index
    %5 = vector.load %arg1[%c0_7, %c1, %c0_8, %c0_9] : memref<1x3x64x64xf32, #tpu.memory_space<vmem>>, vector<1x1x60x64xf32>
    %6 = vector.shape_cast %5 : vector<1x1x60x64xf32> to vector<60x64xf32>
    %c0_10 = arith.constant 0 : index
    %c1_11 = arith.constant 1 : index
    %c0_12 = arith.constant 0 : index
    %c0_13 = arith.constant 0 : index
    %7 = vector.load %arg2[%c0_10, %c1_11, %c0_12, %c0_13] : memref<5x3x64x384xf32, #tpu.memory_space<vmem>>, vector<1x1x64x384xf32>
    %8 = vector.shape_cast %7 : vector<1x1x64x384xf32> to vector<64x384xf32>
    %cst_14 = arith.constant dense<0.000000e+00> : vector<60x384xf32>
    %9 = tpu.matmul %6, %8, %cst_14 {dimension_numbers = #tpu.dot_dimension_numbers<[1], [0], [0], [1], [0, 0, 1, 1], [], []>} : vector<60x64xf32>, vector<64x384xf32>, vector<60x384xf32> -> vector<60x384xf32>
    %10 = arith.addf %4, %9 : vector<60x384xf32>
    %c0_15 = arith.constant 0 : index
    %c2 = arith.constant 2 : index
    %c0_16 = arith.constant 0 : index
    %c0_17 = arith.constant 0 : index
    %11 = vector.load %arg1[%c0_15, %c2, %c0_16, %c0_17] : memref<1x3x64x64xf32, #tpu.memory_space<vmem>>, vector<1x1x60x64xf32>
    %12 = vector.shape_cast %11 : vector<1x1x60x64xf32> to vector<60x64xf32>
    %c0_18 = arith.constant 0 : index
    %c2_19 = arith.constant 2 : index
    %c0_20 = arith.constant 0 : index
    %c0_21 = arith.constant 0 : index
    %13 = vector.load %arg2[%c0_18, %c2_19, %c0_20, %c0_21] : memref<5x3x64x384xf32, #tpu.memory_space<vmem>>, vector<1x1x64x384xf32>
    %14 = vector.shape_cast %13 : vector<1x1x64x384xf32> to vector<64x384xf32>
    %cst_22 = arith.constant dense<0.000000e+00> : vector<60x384xf32>
    %15 = tpu.matmul %12, %14, %cst_22 {dimension_numbers = #tpu.dot_dimension_numbers<[1], [0], [0], [1], [0, 0, 1, 1], [], []>} : vector<60x64xf32>, vector<64x384xf32>, vector<60x384xf32> -> vector<60x384xf32>
    %16 = arith.addf %10, %15 : vector<60x384xf32>
    %c0_23 = arith.constant 0 : index
    %c0_24 = arith.constant 0 : index
    %c1_25 = arith.constant 1 : index
    %c0_26 = arith.constant 0 : index
    %17 = vector.load %arg1[%c0_23, %c0_24, %c1_25, %c0_26] : memref<1x3x64x64xf32, #tpu.memory_space<vmem>>, vector<1x1x60x64xf32>
    %18 = vector.shape_cast %17 : vector<1x1x60x64xf32> to vector<60x64xf32>
    %c1_27 = arith.constant 1 : index
    %c0_28 = arith.constant 0 : index
    %c0_29 = arith.constant 0 : index
    %c0_30 = arith.constant 0 : index
    %19 = vector.load %arg2[%c1_27, %c0_28, %c0_29, %c0_30] : memref<5x3x64x384xf32, #tpu.memory_space<vmem>>, vector<1x1x64x384xf32>
    %20 = vector.shape_cast %19 : vector<1x1x64x384xf32> to vector<64x384xf32>
    %cst_31 = arith.constant dense<0.000000e+00> : vector<60x384xf32>
    %21 = tpu.matmul %18, %20, %cst_31 {dimension_numbers = #tpu.dot_dimension_numbers<[1], [0], [0], [1], [0, 0, 1, 1], [], []>} : vector<60x64xf32>, vector<64x384xf32>, vector<60x384xf32> -> vector<60x384xf32>
    %22 = arith.addf %16, %21 : vector<60x384xf32>
    %c0_32 = arith.constant 0 : index
    %c1_33 = arith.constant 1 : index
    %c1_34 = arith.constant 1 : index
    %c0_35 = arith.constant 0 : index
    %23 = vector.load %arg1[%c0_32, %c1_33, %c1_34, %c0_35] : memref<1x3x64x64xf32, #tpu.memory_space<vmem>>, vector<1x1x60x64xf32>
    %24 = vector.shape_cast %23 : vector<1x1x60x64xf32> to vector<60x64xf32>
    %c1_36 = arith.constant 1 : index
    %c1_37 = arith.constant 1 : index
    %c0_38 = arith.constant 0 : index
    %c0_39 = arith.constant 0 : index
    %25 = vector.load %arg2[%c1_36, %c1_37, %c0_38, %c0_39] : memref<5x3x64x384xf32, #tpu.memory_space<vmem>>, vector<1x1x64x384xf32>
    %26 = vector.shape_cast %25 : vector<1x1x64x384xf32> to vector<64x384xf32>
    %cst_40 = arith.constant dense<0.000000e+00> : vector<60x384xf32>
    %27 = tpu.matmul %24, %26, %cst_40 {dimension_numbers = #tpu.dot_dimension_numbers<[1], [0], [0], [1], [0, 0, 1, 1], [], []>} : vector<60x64xf32>, vector<64x384xf32>, vector<60x384xf32> -> vector<60x384xf32>
    %28 = arith.addf %22, %27 : vector<60x384xf32>
    %c0_41 = arith.constant 0 : index
    %c2_42 = arith.constant 2 : index
    %c1_43 = arith.constant 1 : index
    %c0_44 = arith.constant 0 : index
    %29 = vector.load %arg1[%c0_41, %c2_42, %c1_43, %c0_44] : memref<1x3x64x64xf32, #tpu.memory_space<vmem>>, vector<1x1x60x64xf32>
    %30 = vector.shape_cast %29 : vector<1x1x60x64xf32> to vector<60x64xf32>
    %c1_45 = arith.constant 1 : index
    %c2_46 = arith.constant 2 : index
    %c0_47 = arith.constant 0 : index
    %c0_48 = arith.constant 0 : index
    %31 = vector.load %arg2[%c1_45, %c2_46, %c0_47, %c0_48] : memref<5x3x64x384xf32, #tpu.memory_space<vmem>>, vector<1x1x64x384xf32>
    %32 = vector.shape_cast %31 : vector<1x1x64x384xf32> to vector<64x384xf32>
    %cst_49 = arith.constant dense<0.000000e+00> : vector<60x384xf32>
    %33 = tpu.matmul %30, %32, %cst_49 {dimension_numbers = #tpu.dot_dimension_numbers<[1], [0], [0], [1], [0, 0, 1, 1], [], []>} : vector<60x64xf32>, vector<64x384xf32>, vector<60x384xf32> -> vector<60x384xf32>
    %34 = arith.addf %28, %33 : vector<60x384xf32>
    %c0_50 = arith.constant 0 : index
    %c0_51 = arith.constant 0 : index
    %c2_52 = arith.constant 2 : index
    %c0_53 = arith.constant 0 : index
    %35 = vector.load %arg1[%c0_50, %c0_51, %c2_52, %c0_53] : memref<1x3x64x64xf32, #tpu.memory_space<vmem>>, vector<1x1x60x64xf32>
    %36 = vector.shape_cast %35 : vector<1x1x60x64xf32> to vector<60x64xf32>
    %c2_54 = arith.constant 2 : index
    %c0_55 = arith.constant 0 : index
    %c0_56 = arith.constant 0 : index
    %c0_57 = arith.constant 0 : index
    %37 = vector.load %arg2[%c2_54, %c0_55, %c0_56, %c0_57] : memref<5x3x64x384xf32, #tpu.memory_space<vmem>>, vector<1x1x64x384xf32>
    %38 = vector.shape_cast %37 : vector<1x1x64x384xf32> to vector<64x384xf32>
    %cst_58 = arith.constant dense<0.000000e+00> : vector<60x384xf32>
    %39 = tpu.matmul %36, %38, %cst_58 {dimension_numbers = #tpu.dot_dimension_numbers<[1], [0], [0], [1], [0, 0, 1, 1], [], []>} : vector<60x64xf32>, vector<64x384xf32>, vector<60x384xf32> -> vector<60x384xf32>
    %40 = arith.addf %34, %39 : vector<60x384xf32>
    %c0_59 = arith.constant 0 : index
    %c1_60 = arith.constant 1 : index
    %c2_61 = arith.constant 2 : index
    %c0_62 = arith.constant 0 : index
    %41 = vector.load %arg1[%c0_59, %c1_60, %c2_61, %c0_62] : memref<1x3x64x64xf32, #tpu.memory_space<vmem>>, vector<1x1x60x64xf32>
    %42 = vector.shape_cast %41 : vector<1x1x60x64xf32> to vector<60x64xf32>
    %c2_63 = arith.constant 2 : index
    %c1_64 = arith.constant 1 : index
    %c0_65 = arith.constant 0 : index
    %c0_66 = arith.constant 0 : index
    %43 = vector.load %arg2[%c2_63, %c1_64, %c0_65, %c0_66] : memref<5x3x64x384xf32, #tpu.memory_space<vmem>>, vector<1x1x64x384xf32>
    %44 = vector.shape_cast %43 : vector<1x1x64x384xf32> to vector<64x384xf32>
    %cst_67 = arith.constant dense<0.000000e+00> : vector<60x384xf32>
    %45 = tpu.matmul %42, %44, %cst_67 {dimension_numbers = #tpu.dot_dimension_numbers<[1], [0], [0], [1], [0, 0, 1, 1], [], []>} : vector<60x64xf32>, vector<64x384xf32>, vector<60x384xf32> -> vector<60x384xf32>
    %46 = arith.addf %40, %45 : vector<60x384xf32>
    %c0_68 = arith.constant 0 : index
    %c2_69 = arith.constant 2 : index
    %c2_70 = arith.constant 2 : index
    %c0_71 = arith.constant 0 : index
    %47 = vector.load %arg1[%c0_68, %c2_69, %c2_70, %c0_71] : memref<1x3x64x64xf32, #tpu.memory_space<vmem>>, vector<1x1x60x64xf32>
    %48 = vector.shape_cast %47 : vector<1x1x60x64xf32> to vector<60x64xf32>
    %c2_72 = arith.constant 2 : index
    %c2_73 = arith.constant 2 : index
    %c0_74 = arith.constant 0 : index
    %c0_75 = arith.constant 0 : index
    %49 = vector.load %arg2[%c2_72, %c2_73, %c0_74, %c0_75] : memref<5x3x64x384xf32, #tpu.memory_space<vmem>>, vector<1x1x64x384xf32>
    %50 = vector.shape_cast %49 : vector<1x1x64x384xf32> to vector<64x384xf32>
    %cst_76 = arith.constant dense<0.000000e+00> : vector<60x384xf32>
    %51 = tpu.matmul %48, %50, %cst_76 {dimension_numbers = #tpu.dot_dimension_numbers<[1], [0], [0], [1], [0, 0, 1, 1], [], []>} : vector<60x64xf32>, vector<64x384xf32>, vector<60x384xf32> -> vector<60x384xf32>
    %52 = arith.addf %46, %51 : vector<60x384xf32>
    %c0_77 = arith.constant 0 : index
    %c0_78 = arith.constant 0 : index
    %c3 = arith.constant 3 : index
    %c0_79 = arith.constant 0 : index
    %53 = vector.load %arg1[%c0_77, %c0_78, %c3, %c0_79] : memref<1x3x64x64xf32, #tpu.memory_space<vmem>>, vector<1x1x60x64xf32>
    %54 = vector.shape_cast %53 : vector<1x1x60x64xf32> to vector<60x64xf32>
    %c3_80 = arith.constant 3 : index
    %c0_81 = arith.constant 0 : index
    %c0_82 = arith.constant 0 : index
    %c0_83 = arith.constant 0 : index
    %55 = vector.load %arg2[%c3_80, %c0_81, %c0_82, %c0_83] : memref<5x3x64x384xf32, #tpu.memory_space<vmem>>, vector<1x1x64x384xf32>
    %56 = vector.shape_cast %55 : vector<1x1x64x384xf32> to vector<64x384xf32>
    %cst_84 = arith.constant dense<0.000000e+00> : vector<60x384xf32>
    %57 = tpu.matmul %54, %56, %cst_84 {dimension_numbers = #tpu.dot_dimension_numbers<[1], [0], [0], [1], [0, 0, 1, 1], [], []>} : vector<60x64xf32>, vector<64x384xf32>, vector<60x384xf32> -> vector<60x384xf32>
    %58 = arith.addf %52, %57 : vector<60x384xf32>
    %c0_85 = arith.constant 0 : index
    %c1_86 = arith.constant 1 : index
    %c3_87 = arith.constant 3 : index
    %c0_88 = arith.constant 0 : index
    %59 = vector.load %arg1[%c0_85, %c1_86, %c3_87, %c0_88] : memref<1x3x64x64xf32, #tpu.memory_space<vmem>>, vector<1x1x60x64xf32>
    %60 = vector.shape_cast %59 : vector<1x1x60x64xf32> to vector<60x64xf32>
    %c3_89 = arith.constant 3 : index
    %c1_90 = arith.constant 1 : index
    %c0_91 = arith.constant 0 : index
    %c0_92 = arith.constant 0 : index
    %61 = vector.load %arg2[%c3_89, %c1_90, %c0_91, %c0_92] : memref<5x3x64x384xf32, #tpu.memory_space<vmem>>, vector<1x1x64x384xf32>
    %62 = vector.shape_cast %61 : vector<1x1x64x384xf32> to vector<64x384xf32>
    %cst_93 = arith.constant dense<0.000000e+00> : vector<60x384xf32>
    %63 = tpu.matmul %60, %62, %cst_93 {dimension_numbers = #tpu.dot_dimension_numbers<[1], [0], [0], [1], [0, 0, 1, 1], [], []>} : vector<60x64xf32>, vector<64x384xf32>, vector<60x384xf32> -> vector<60x384xf32>
    %64 = arith.addf %58, %63 : vector<60x384xf32>
    %c0_94 = arith.constant 0 : index
    %c2_95 = arith.constant 2 : index
    %c3_96 = arith.constant 3 : index
    %c0_97 = arith.constant 0 : index
    %65 = vector.load %arg1[%c0_94, %c2_95, %c3_96, %c0_97] : memref<1x3x64x64xf32, #tpu.memory_space<vmem>>, vector<1x1x60x64xf32>
    %66 = vector.shape_cast %65 : vector<1x1x60x64xf32> to vector<60x64xf32>
    %c3_98 = arith.constant 3 : index
    %c2_99 = arith.constant 2 : index
    %c0_100 = arith.constant 0 : index
    %c0_101 = arith.constant 0 : index
    %67 = vector.load %arg2[%c3_98, %c2_99, %c0_100, %c0_101] : memref<5x3x64x384xf32, #tpu.memory_space<vmem>>, vector<1x1x64x384xf32>
    %68 = vector.shape_cast %67 : vector<1x1x64x384xf32> to vector<64x384xf32>
    %cst_102 = arith.constant dense<0.000000e+00> : vector<60x384xf32>
    %69 = tpu.matmul %66, %68, %cst_102 {dimension_numbers = #tpu.dot_dimension_numbers<[1], [0], [0], [1], [0, 0, 1, 1], [], []>} : vector<60x64xf32>, vector<64x384xf32>, vector<60x384xf32> -> vector<60x384xf32>
    %70 = arith.addf %64, %69 : vector<60x384xf32>
    %c0_103 = arith.constant 0 : index
    %c0_104 = arith.constant 0 : index
    %c4 = arith.constant 4 : index
    %c0_105 = arith.constant 0 : index
    %71 = vector.load %arg1[%c0_103, %c0_104, %c4, %c0_105] : memref<1x3x64x64xf32, #tpu.memory_space<vmem>>, vector<1x1x60x64xf32>
    %72 = vector.shape_cast %71 : vector<1x1x60x64xf32> to vector<60x64xf32>
    %c4_106 = arith.constant 4 : index
    %c0_107 = arith.constant 0 : index
    %c0_108 = arith.constant 0 : index
    %c0_109 = arith.constant 0 : index
    %73 = vector.load %arg2[%c4_106, %c0_107, %c0_108, %c0_109] : memref<5x3x64x384xf32, #tpu.memory_space<vmem>>, vector<1x1x64x384xf32>
    %74 = vector.shape_cast %73 : vector<1x1x64x384xf32> to vector<64x384xf32>
    %cst_110 = arith.constant dense<0.000000e+00> : vector<60x384xf32>
    %75 = tpu.matmul %72, %74, %cst_110 {dimension_numbers = #tpu.dot_dimension_numbers<[1], [0], [0], [1], [0, 0, 1, 1], [], []>} : vector<60x64xf32>, vector<64x384xf32>, vector<60x384xf32> -> vector<60x384xf32>
    %76 = arith.addf %70, %75 : vector<60x384xf32>
    %c0_111 = arith.constant 0 : index
    %c1_112 = arith.constant 1 : index
    %c4_113 = arith.constant 4 : index
    %c0_114 = arith.constant 0 : index
    %77 = vector.load %arg1[%c0_111, %c1_112, %c4_113, %c0_114] : memref<1x3x64x64xf32, #tpu.memory_space<vmem>>, vector<1x1x60x64xf32>
    %78 = vector.shape_cast %77 : vector<1x1x60x64xf32> to vector<60x64xf32>
    %c4_115 = arith.constant 4 : index
    %c1_116 = arith.constant 1 : index
    %c0_117 = arith.constant 0 : index
    %c0_118 = arith.constant 0 : index
    %79 = vector.load %arg2[%c4_115, %c1_116, %c0_117, %c0_118] : memref<5x3x64x384xf32, #tpu.memory_space<vmem>>, vector<1x1x64x384xf32>
    %80 = vector.shape_cast %79 : vector<1x1x64x384xf32> to vector<64x384xf32>
    %cst_119 = arith.constant dense<0.000000e+00> : vector<60x384xf32>
    %81 = tpu.matmul %78, %80, %cst_119 {dimension_numbers = #tpu.dot_dimension_numbers<[1], [0], [0], [1], [0, 0, 1, 1], [], []>} : vector<60x64xf32>, vector<64x384xf32>, vector<60x384xf32> -> vector<60x384xf32>
    %82 = arith.addf %76, %81 : vector<60x384xf32>
    %c0_120 = arith.constant 0 : index
    %c2_121 = arith.constant 2 : index
    %c4_122 = arith.constant 4 : index
    %c0_123 = arith.constant 0 : index
    %83 = vector.load %arg1[%c0_120, %c2_121, %c4_122, %c0_123] : memref<1x3x64x64xf32, #tpu.memory_space<vmem>>, vector<1x1x60x64xf32>
    %84 = vector.shape_cast %83 : vector<1x1x60x64xf32> to vector<60x64xf32>
    %c4_124 = arith.constant 4 : index
    %c2_125 = arith.constant 2 : index
    %c0_126 = arith.constant 0 : index
    %c0_127 = arith.constant 0 : index
    %85 = vector.load %arg2[%c4_124, %c2_125, %c0_126, %c0_127] : memref<5x3x64x384xf32, #tpu.memory_space<vmem>>, vector<1x1x64x384xf32>
    %86 = vector.shape_cast %85 : vector<1x1x64x384xf32> to vector<64x384xf32>
    %cst_128 = arith.constant dense<0.000000e+00> : vector<60x384xf32>
    %87 = tpu.matmul %84, %86, %cst_128 {dimension_numbers = #tpu.dot_dimension_numbers<[1], [0], [0], [1], [0, 0, 1, 1], [], []>} : vector<60x64xf32>, vector<64x384xf32>, vector<60x384xf32> -> vector<60x384xf32>
    %88 = arith.addf %82, %87 : vector<60x384xf32>
    %c0_129 = arith.constant 0 : index
    %c0_130 = arith.constant 0 : index
    %89 = vector.load %arg3[%c0_129, %c0_130] : memref<1x384xf32, #tpu.memory_space<vmem>>, vector<1x384xf32>
    %90 = vector.broadcast %89 : vector<1x384xf32> to vector<60x384xf32>
    %91 = arith.addf %88, %90 : vector<60x384xf32>
    %cst_131 = arith.constant 0.000000e+00 : f32
    %92 = vector.broadcast %cst_131 : f32 to vector<60x384xf32>
    %93 = arith.maximumf %91, %92 : vector<60x384xf32>
    %94 = vector.extract_strided_slice %93 {offsets = [0, 0], sizes = [60, 383], strides = [1, 1]} : vector<60x384xf32> to vector<60x383xf32>
    %95 = vector.extract_strided_slice %93 {offsets = [0, 1], sizes = [60, 383], strides = [1, 1]} : vector<60x384xf32> to vector<60x383xf32>
    %96 = arith.maximumf %94, %95 : vector<60x383xf32>
    %97 = vector.extract_strided_slice %96 {offsets = [0, 0], sizes = [59, 383], strides = [1, 1]} : vector<60x383xf32> to vector<59x383xf32>
    %98 = vector.extract_strided_slice %96 {offsets = [1, 0], sizes = [59, 383], strides = [1, 1]} : vector<60x383xf32> to vector<59x383xf32>
    %99 = arith.maximumf %97, %98 : vector<59x383xf32>
    %c0_132 = arith.constant 0 : index
    %c0_133 = arith.constant 0 : index
    %100 = vector.load %arg7[%c0_132, %c0_133] : memref<30x59xf32, #tpu.memory_space<vmem>>, vector<30x59xf32>
    %c0_134 = arith.constant 0 : index
    %c0_135 = arith.constant 0 : index
    %101 = vector.load %arg6[%c0_134, %c0_135] : memref<383x192xf32, #tpu.memory_space<vmem>>, vector<383x192xf32>
    %cst_136 = arith.constant dense<0.000000e+00> : vector<59x192xf32>
    %102 = tpu.matmul %99, %101, %cst_136 {dimension_numbers = #tpu.dot_dimension_numbers<[1], [0], [0], [1], [0, 0, 1, 1], [], []>} : vector<59x383xf32>, vector<383x192xf32>, vector<59x192xf32> -> vector<59x192xf32>
    %cst_137 = arith.constant dense<0.000000e+00> : vector<30x192xf32>
    %103 = tpu.matmul %100, %102, %cst_137 {dimension_numbers = #tpu.dot_dimension_numbers<[1], [0], [0], [1], [0, 0, 1, 1], [], []>} : vector<30x59xf32>, vector<59x192xf32>, vector<30x192xf32> -> vector<30x192xf32>
    %104 = vector.extract_strided_slice %103 {offsets = [0, 0], sizes = [26, 192], strides = [1, 1]} : vector<30x192xf32> to vector<26x192xf32>
    %c0_138 = arith.constant 0 : index
    %c0_139 = arith.constant 0 : index
    %c0_140 = arith.constant 0 : index
    %105 = vector.load %arg4[%c0_138, %c0_139, %c0_140] : memref<5x192x512xf32, #tpu.memory_space<vmem>>, vector<1x192x512xf32>
    %106 = vector.shape_cast %105 : vector<1x192x512xf32> to vector<192x512xf32>
    %cst_141 = arith.constant dense<0.000000e+00> : vector<26x512xf32>
    %107 = tpu.matmul %104, %106, %cst_141 {dimension_numbers = #tpu.dot_dimension_numbers<[1], [0], [0], [1], [0, 0, 1, 1], [], []>} : vector<26x192xf32>, vector<192x512xf32>, vector<26x512xf32> -> vector<26x512xf32>
    %108 = vector.extract_strided_slice %103 {offsets = [1, 0], sizes = [26, 192], strides = [1, 1]} : vector<30x192xf32> to vector<26x192xf32>
    %c1_142 = arith.constant 1 : index
    %c0_143 = arith.constant 0 : index
    %c0_144 = arith.constant 0 : index
    %109 = vector.load %arg4[%c1_142, %c0_143, %c0_144] : memref<5x192x512xf32, #tpu.memory_space<vmem>>, vector<1x192x512xf32>
    %110 = vector.shape_cast %109 : vector<1x192x512xf32> to vector<192x512xf32>
    %cst_145 = arith.constant dense<0.000000e+00> : vector<26x512xf32>
    %111 = tpu.matmul %108, %110, %cst_145 {dimension_numbers = #tpu.dot_dimension_numbers<[1], [0], [0], [1], [0, 0, 1, 1], [], []>} : vector<26x192xf32>, vector<192x512xf32>, vector<26x512xf32> -> vector<26x512xf32>
    %112 = arith.addf %107, %111 : vector<26x512xf32>
    %113 = vector.extract_strided_slice %103 {offsets = [2, 0], sizes = [26, 192], strides = [1, 1]} : vector<30x192xf32> to vector<26x192xf32>
    %c2_146 = arith.constant 2 : index
    %c0_147 = arith.constant 0 : index
    %c0_148 = arith.constant 0 : index
    %114 = vector.load %arg4[%c2_146, %c0_147, %c0_148] : memref<5x192x512xf32, #tpu.memory_space<vmem>>, vector<1x192x512xf32>
    %115 = vector.shape_cast %114 : vector<1x192x512xf32> to vector<192x512xf32>
    %cst_149 = arith.constant dense<0.000000e+00> : vector<26x512xf32>
    %116 = tpu.matmul %113, %115, %cst_149 {dimension_numbers = #tpu.dot_dimension_numbers<[1], [0], [0], [1], [0, 0, 1, 1], [], []>} : vector<26x192xf32>, vector<192x512xf32>, vector<26x512xf32> -> vector<26x512xf32>
    %117 = arith.addf %112, %116 : vector<26x512xf32>
    %118 = vector.extract_strided_slice %103 {offsets = [3, 0], sizes = [26, 192], strides = [1, 1]} : vector<30x192xf32> to vector<26x192xf32>
    %c3_150 = arith.constant 3 : index
    %c0_151 = arith.constant 0 : index
    %c0_152 = arith.constant 0 : index
    %119 = vector.load %arg4[%c3_150, %c0_151, %c0_152] : memref<5x192x512xf32, #tpu.memory_space<vmem>>, vector<1x192x512xf32>
    %120 = vector.shape_cast %119 : vector<1x192x512xf32> to vector<192x512xf32>
    %cst_153 = arith.constant dense<0.000000e+00> : vector<26x512xf32>
    %121 = tpu.matmul %118, %120, %cst_153 {dimension_numbers = #tpu.dot_dimension_numbers<[1], [0], [0], [1], [0, 0, 1, 1], [], []>} : vector<26x192xf32>, vector<192x512xf32>, vector<26x512xf32> -> vector<26x512xf32>
    %122 = arith.addf %117, %121 : vector<26x512xf32>
    %123 = vector.extract_strided_slice %103 {offsets = [4, 0], sizes = [26, 192], strides = [1, 1]} : vector<30x192xf32> to vector<26x192xf32>
    %c4_154 = arith.constant 4 : index
    %c0_155 = arith.constant 0 : index
    %c0_156 = arith.constant 0 : index
    %124 = vector.load %arg4[%c4_154, %c0_155, %c0_156] : memref<5x192x512xf32, #tpu.memory_space<vmem>>, vector<1x192x512xf32>
    %125 = vector.shape_cast %124 : vector<1x192x512xf32> to vector<192x512xf32>
    %cst_157 = arith.constant dense<0.000000e+00> : vector<26x512xf32>
    %126 = tpu.matmul %123, %125, %cst_157 {dimension_numbers = #tpu.dot_dimension_numbers<[1], [0], [0], [1], [0, 0, 1, 1], [], []>} : vector<26x192xf32>, vector<192x512xf32>, vector<26x512xf32> -> vector<26x512xf32>
    %127 = arith.addf %122, %126 : vector<26x512xf32>
    %c0_158 = arith.constant 0 : index
    %c0_159 = arith.constant 0 : index
    %128 = vector.load %arg5[%c0_158, %c0_159] : memref<1x512xf32, #tpu.memory_space<vmem>>, vector<1x512xf32>
    %129 = vector.broadcast %128 : vector<1x512xf32> to vector<26x512xf32>
    %130 = arith.addf %127, %129 : vector<26x512xf32>
    %cst_160 = arith.constant 0.000000e+00 : f32
    %131 = vector.broadcast %cst_160 : f32 to vector<26x512xf32>
    %132 = arith.maximumf %130, %131 : vector<26x512xf32>
    %133 = vector.extract_strided_slice %132 {offsets = [0, 0], sizes = [26, 511], strides = [1, 1]} : vector<26x512xf32> to vector<26x511xf32>
    %134 = vector.extract_strided_slice %132 {offsets = [0, 1], sizes = [26, 511], strides = [1, 1]} : vector<26x512xf32> to vector<26x511xf32>
    %135 = arith.maximumf %133, %134 : vector<26x511xf32>
    %136 = vector.extract_strided_slice %135 {offsets = [0, 0], sizes = [25, 511], strides = [1, 1]} : vector<26x511xf32> to vector<25x511xf32>
    %137 = vector.extract_strided_slice %135 {offsets = [1, 0], sizes = [25, 511], strides = [1, 1]} : vector<26x511xf32> to vector<25x511xf32>
    %138 = arith.maximumf %136, %137 : vector<25x511xf32>
    %c0_161 = arith.constant 0 : index
    %c0_162 = arith.constant 0 : index
    %139 = vector.load %arg9[%c0_161, %c0_162] : memref<13x25xf32, #tpu.memory_space<vmem>>, vector<13x25xf32>
    %c0_163 = arith.constant 0 : index
    %c0_164 = arith.constant 0 : index
    %140 = vector.load %arg8[%c0_163, %c0_164] : memref<511x256xf32, #tpu.memory_space<vmem>>, vector<511x256xf32>
    %cst_165 = arith.constant dense<0.000000e+00> : vector<25x256xf32>
    %141 = tpu.matmul %138, %140, %cst_165 {dimension_numbers = #tpu.dot_dimension_numbers<[1], [0], [0], [1], [0, 0, 1, 1], [], []>} : vector<25x511xf32>, vector<511x256xf32>, vector<25x256xf32> -> vector<25x256xf32>
    %cst_166 = arith.constant dense<0.000000e+00> : vector<13x256xf32>
    %142 = tpu.matmul %139, %141, %cst_166 {dimension_numbers = #tpu.dot_dimension_numbers<[1], [0], [0], [1], [0, 0, 1, 1], [], []>} : vector<13x25xf32>, vector<25x256xf32>, vector<13x256xf32> -> vector<13x256xf32>
    %143 = vector.extract_strided_slice %142 {offsets = [0, 0], sizes = [13, 13], strides = [1, 1]} : vector<13x256xf32> to vector<13x13xf32>
    %c0_167 = arith.constant 0 : index
    %c0_168 = arith.constant 0 : index
    %c0_169 = arith.constant 0 : index
    %c0_170 = arith.constant 0 : index
    %144 = vector.load %arg10[%c0_167, %c0_168, %c0_169, %c0_170] : memref<1x16x13x13xf32, #tpu.memory_space<vmem>>, vector<1x1x13x13xf32>
    %145 = vector.shape_cast %144 : vector<1x1x13x13xf32> to vector<13x13xf32>
    %146 = vector.shape_cast %143 : vector<13x13xf32> to vector<1x1x13x13xf32>
    tpu.vector_store %arg10[%c0_167, %c0_168, %c0_169, %c0_170], %146 {strides = array<i32>} : memref<1x16x13x13xf32, #tpu.memory_space<vmem>>, vector<1x1x13x13xf32>,
    %147 = vector.extract_strided_slice %142 {offsets = [0, 16], sizes = [13, 13], strides = [1, 1]} : vector<13x256xf32> to vector<13x13xf32>
    %c0_171 = arith.constant 0 : index
    %c1_172 = arith.constant 1 : index
    %c0_173 = arith.constant 0 : index
    %c0_174 = arith.constant 0 : index
    %148 = vector.load %arg10[%c0_171, %c1_172, %c0_173, %c0_174] : memref<1x16x13x13xf32, #tpu.memory_space<vmem>>, vector<1x1x13x13xf32>
    %149 = vector.shape_cast %148 : vector<1x1x13x13xf32> to vector<13x13xf32>
    %150 = vector.shape_cast %147 : vector<13x13xf32> to vector<1x1x13x13xf32>
    tpu.vector_store %arg10[%c0_171, %c1_172, %c0_173, %c0_174], %150 {strides = array<i32>} : memref<1x16x13x13xf32, #tpu.memory_space<vmem>>, vector<1x1x13x13xf32>,
    %151 = vector.extract_strided_slice %142 {offsets = [0, 32], sizes = [13, 13], strides = [1, 1]} : vector<13x256xf32> to vector<13x13xf32>
    %c0_175 = arith.constant 0 : index
    %c2_176 = arith.constant 2 : index
    %c0_177 = arith.constant 0 : index
    %c0_178 = arith.constant 0 : index
    %152 = vector.load %arg10[%c0_175, %c2_176, %c0_177, %c0_178] : memref<1x16x13x13xf32, #tpu.memory_space<vmem>>, vector<1x1x13x13xf32>
    %153 = vector.shape_cast %152 : vector<1x1x13x13xf32> to vector<13x13xf32>
    %154 = vector.shape_cast %151 : vector<13x13xf32> to vector<1x1x13x13xf32>
    tpu.vector_store %arg10[%c0_175, %c2_176, %c0_177, %c0_178], %154 {strides = array<i32>} : memref<1x16x13x13xf32, #tpu.memory_space<vmem>>, vector<1x1x13x13xf32>,
    %155 = vector.extract_strided_slice %142 {offsets = [0, 48], sizes = [13, 13], strides = [1, 1]} : vector<13x256xf32> to vector<13x13xf32>
    %c0_179 = arith.constant 0 : index
    %c3_180 = arith.constant 3 : index
    %c0_181 = arith.constant 0 : index
    %c0_182 = arith.constant 0 : index
    %156 = vector.load %arg10[%c0_179, %c3_180, %c0_181, %c0_182] : memref<1x16x13x13xf32, #tpu.memory_space<vmem>>, vector<1x1x13x13xf32>
    %157 = vector.shape_cast %156 : vector<1x1x13x13xf32> to vector<13x13xf32>
    %158 = vector.shape_cast %155 : vector<13x13xf32> to vector<1x1x13x13xf32>
    tpu.vector_store %arg10[%c0_179, %c3_180, %c0_181, %c0_182], %158 {strides = array<i32>} : memref<1x16x13x13xf32, #tpu.memory_space<vmem>>, vector<1x1x13x13xf32>,
    %159 = vector.extract_strided_slice %142 {offsets = [0, 64], sizes = [13, 13], strides = [1, 1]} : vector<13x256xf32> to vector<13x13xf32>
    %c0_183 = arith.constant 0 : index
    %c4_184 = arith.constant 4 : index
    %c0_185 = arith.constant 0 : index
    %c0_186 = arith.constant 0 : index
    %160 = vector.load %arg10[%c0_183, %c4_184, %c0_185, %c0_186] : memref<1x16x13x13xf32, #tpu.memory_space<vmem>>, vector<1x1x13x13xf32>
    %161 = vector.shape_cast %160 : vector<1x1x13x13xf32> to vector<13x13xf32>
    %162 = vector.shape_cast %159 : vector<13x13xf32> to vector<1x1x13x13xf32>
    tpu.vector_store %arg10[%c0_183, %c4_184, %c0_185, %c0_186], %162 {strides = array<i32>} : memref<1x16x13x13xf32, #tpu.memory_space<vmem>>, vector<1x1x13x13xf32>,
    %163 = vector.extract_strided_slice %142 {offsets = [0, 80], sizes = [13, 13], strides = [1, 1]} : vector<13x256xf32> to vector<13x13xf32>
    %c0_187 = arith.constant 0 : index
    %c5 = arith.constant 5 : index
    %c0_188 = arith.constant 0 : index
    %c0_189 = arith.constant 0 : index
    %164 = vector.load %arg10[%c0_187, %c5, %c0_188, %c0_189] : memref<1x16x13x13xf32, #tpu.memory_space<vmem>>, vector<1x1x13x13xf32>
    %165 = vector.shape_cast %164 : vector<1x1x13x13xf32> to vector<13x13xf32>
    %166 = vector.shape_cast %163 : vector<13x13xf32> to vector<1x1x13x13xf32>
    tpu.vector_store %arg10[%c0_187, %c5, %c0_188, %c0_189], %166 {strides = array<i32>} : memref<1x16x13x13xf32, #tpu.memory_space<vmem>>, vector<1x1x13x13xf32>,
    %167 = vector.extract_strided_slice %142 {offsets = [0, 96], sizes = [13, 13], strides = [1, 1]} : vector<13x256xf32> to vector<13x13xf32>
    %c0_190 = arith.constant 0 : index
    %c6 = arith.constant 6 : index
    %c0_191 = arith.constant 0 : index
    %c0_192 = arith.constant 0 : index
    %168 = vector.load %arg10[%c0_190, %c6, %c0_191, %c0_192] : memref<1x16x13x13xf32, #tpu.memory_space<vmem>>, vector<1x1x13x13xf32>
    %169 = vector.shape_cast %168 : vector<1x1x13x13xf32> to vector<13x13xf32>
    %170 = vector.shape_cast %167 : vector<13x13xf32> to vector<1x1x13x13xf32>
    tpu.vector_store %arg10[%c0_190, %c6, %c0_191, %c0_192], %170 {strides = array<i32>} : memref<1x16x13x13xf32, #tpu.memory_space<vmem>>, vector<1x1x13x13xf32>,
    %171 = vector.extract_strided_slice %142 {offsets = [0, 112], sizes = [13, 13], strides = [1, 1]} : vector<13x256xf32> to vector<13x13xf32>
    %c0_193 = arith.constant 0 : index
    %c7 = arith.constant 7 : index
    %c0_194 = arith.constant 0 : index
    %c0_195 = arith.constant 0 : index
    %172 = vector.load %arg10[%c0_193, %c7, %c0_194, %c0_195] : memref<1x16x13x13xf32, #tpu.memory_space<vmem>>, vector<1x1x13x13xf32>
    %173 = vector.shape_cast %172 : vector<1x1x13x13xf32> to vector<13x13xf32>
    %174 = vector.shape_cast %171 : vector<13x13xf32> to vector<1x1x13x13xf32>
    tpu.vector_store %arg10[%c0_193, %c7, %c0_194, %c0_195], %174 {strides = array<i32>} : memref<1x16x13x13xf32, #tpu.memory_space<vmem>>, vector<1x1x13x13xf32>,
    %175 = vector.extract_strided_slice %142 {offsets = [0, 128], sizes = [13, 13], strides = [1, 1]} : vector<13x256xf32> to vector<13x13xf32>
    %c0_196 = arith.constant 0 : index
    %c8 = arith.constant 8 : index
    %c0_197 = arith.constant 0 : index
    %c0_198 = arith.constant 0 : index
    %176 = vector.load %arg10[%c0_196, %c8, %c0_197, %c0_198] : memref<1x16x13x13xf32, #tpu.memory_space<vmem>>, vector<1x1x13x13xf32>
    %177 = vector.shape_cast %176 : vector<1x1x13x13xf32> to vector<13x13xf32>
    %178 = vector.shape_cast %175 : vector<13x13xf32> to vector<1x1x13x13xf32>
    tpu.vector_store %arg10[%c0_196, %c8, %c0_197, %c0_198], %178 {strides = array<i32>} : memref<1x16x13x13xf32, #tpu.memory_space<vmem>>, vector<1x1x13x13xf32>,
    %179 = vector.extract_strided_slice %142 {offsets = [0, 144], sizes = [13, 13], strides = [1, 1]} : vector<13x256xf32> to vector<13x13xf32>
    %c0_199 = arith.constant 0 : index
    %c9 = arith.constant 9 : index
    %c0_200 = arith.constant 0 : index
    %c0_201 = arith.constant 0 : index
    %180 = vector.load %arg10[%c0_199, %c9, %c0_200, %c0_201] : memref<1x16x13x13xf32, #tpu.memory_space<vmem>>, vector<1x1x13x13xf32>
    %181 = vector.shape_cast %180 : vector<1x1x13x13xf32> to vector<13x13xf32>
    %182 = vector.shape_cast %179 : vector<13x13xf32> to vector<1x1x13x13xf32>
    tpu.vector_store %arg10[%c0_199, %c9, %c0_200, %c0_201], %182 {strides = array<i32>} : memref<1x16x13x13xf32, #tpu.memory_space<vmem>>, vector<1x1x13x13xf32>,
    %183 = vector.extract_strided_slice %142 {offsets = [0, 160], sizes = [13, 13], strides = [1, 1]} : vector<13x256xf32> to vector<13x13xf32>
    %c0_202 = arith.constant 0 : index
    %c10 = arith.constant 10 : index
    %c0_203 = arith.constant 0 : index
    %c0_204 = arith.constant 0 : index
    %184 = vector.load %arg10[%c0_202, %c10, %c0_203, %c0_204] : memref<1x16x13x13xf32, #tpu.memory_space<vmem>>, vector<1x1x13x13xf32>
    %185 = vector.shape_cast %184 : vector<1x1x13x13xf32> to vector<13x13xf32>
    %186 = vector.shape_cast %183 : vector<13x13xf32> to vector<1x1x13x13xf32>
    tpu.vector_store %arg10[%c0_202, %c10, %c0_203, %c0_204], %186 {strides = array<i32>} : memref<1x16x13x13xf32, #tpu.memory_space<vmem>>, vector<1x1x13x13xf32>,
    %187 = vector.extract_strided_slice %142 {offsets = [0, 176], sizes = [13, 13], strides = [1, 1]} : vector<13x256xf32> to vector<13x13xf32>
    %c0_205 = arith.constant 0 : index
    %c11 = arith.constant 11 : index
    %c0_206 = arith.constant 0 : index
    %c0_207 = arith.constant 0 : index
    %188 = vector.load %arg10[%c0_205, %c11, %c0_206, %c0_207] : memref<1x16x13x13xf32, #tpu.memory_space<vmem>>, vector<1x1x13x13xf32>
    %189 = vector.shape_cast %188 : vector<1x1x13x13xf32> to vector<13x13xf32>
    %190 = vector.shape_cast %187 : vector<13x13xf32> to vector<1x1x13x13xf32>
    tpu.vector_store %arg10[%c0_205, %c11, %c0_206, %c0_207], %190 {strides = array<i32>} : memref<1x16x13x13xf32, #tpu.memory_space<vmem>>, vector<1x1x13x13xf32>,
    %191 = vector.extract_strided_slice %142 {offsets = [0, 192], sizes = [13, 13], strides = [1, 1]} : vector<13x256xf32> to vector<13x13xf32>
    %c0_208 = arith.constant 0 : index
    %c12 = arith.constant 12 : index
    %c0_209 = arith.constant 0 : index
    %c0_210 = arith.constant 0 : index
    %192 = vector.load %arg10[%c0_208, %c12, %c0_209, %c0_210] : memref<1x16x13x13xf32, #tpu.memory_space<vmem>>, vector<1x1x13x13xf32>
    %193 = vector.shape_cast %192 : vector<1x1x13x13xf32> to vector<13x13xf32>
    %194 = vector.shape_cast %191 : vector<13x13xf32> to vector<1x1x13x13xf32>
    tpu.vector_store %arg10[%c0_208, %c12, %c0_209, %c0_210], %194 {strides = array<i32>} : memref<1x16x13x13xf32, #tpu.memory_space<vmem>>, vector<1x1x13x13xf32>,
    %195 = vector.extract_strided_slice %142 {offsets = [0, 208], sizes = [13, 13], strides = [1, 1]} : vector<13x256xf32> to vector<13x13xf32>
    %c0_211 = arith.constant 0 : index
    %c13 = arith.constant 13 : index
    %c0_212 = arith.constant 0 : index
    %c0_213 = arith.constant 0 : index
    %196 = vector.load %arg10[%c0_211, %c13, %c0_212, %c0_213] : memref<1x16x13x13xf32, #tpu.memory_space<vmem>>, vector<1x1x13x13xf32>
    %197 = vector.shape_cast %196 : vector<1x1x13x13xf32> to vector<13x13xf32>
    %198 = vector.shape_cast %195 : vector<13x13xf32> to vector<1x1x13x13xf32>
    tpu.vector_store %arg10[%c0_211, %c13, %c0_212, %c0_213], %198 {strides = array<i32>} : memref<1x16x13x13xf32, #tpu.memory_space<vmem>>, vector<1x1x13x13xf32>,
    %199 = vector.extract_strided_slice %142 {offsets = [0, 224], sizes = [13, 13], strides = [1, 1]} : vector<13x256xf32> to vector<13x13xf32>
    %c0_214 = arith.constant 0 : index
    %c14 = arith.constant 14 : index
    %c0_215 = arith.constant 0 : index
    %c0_216 = arith.constant 0 : index
    %200 = vector.load %arg10[%c0_214, %c14, %c0_215, %c0_216] : memref<1x16x13x13xf32, #tpu.memory_space<vmem>>, vector<1x1x13x13xf32>
    %201 = vector.shape_cast %200 : vector<1x1x13x13xf32> to vector<13x13xf32>
    %202 = vector.shape_cast %199 : vector<13x13xf32> to vector<1x1x13x13xf32>
    tpu.vector_store %arg10[%c0_214, %c14, %c0_215, %c0_216], %202 {strides = array<i32>} : memref<1x16x13x13xf32, #tpu.memory_space<vmem>>, vector<1x1x13x13xf32>,
    %203 = vector.extract_strided_slice %142 {offsets = [0, 240], sizes = [13, 13], strides = [1, 1]} : vector<13x256xf32> to vector<13x13xf32>
    %c0_217 = arith.constant 0 : index
    %c15 = arith.constant 15 : index
    %c0_218 = arith.constant 0 : index
    %c0_219 = arith.constant 0 : index
    %204 = vector.load %arg10[%c0_217, %c15, %c0_218, %c0_219] : memref<1x16x13x13xf32, #tpu.memory_space<vmem>>, vector<1x1x13x13xf32>
    %205 = vector.shape_cast %204 : vector<1x1x13x13xf32> to vector<13x13xf32>
    %206 = vector.shape_cast %203 : vector<13x13xf32> to vector<1x1x13x13xf32>
    tpu.vector_store %arg10[%c0_217, %c15, %c0_218, %c0_219], %206 {strides = array<i32>} : memref<1x16x13x13xf32, #tpu.memory_space<vmem>>, vector<1x1x13x13xf32>,
    return
  }
  func.func @transform_0(%arg0: i32) -> (i32, i32, i32, i32) {
    %c0_i32 = arith.constant 0 : i32
    %c0_i32_0 = arith.constant 0 : i32
    %c0_i32_1 = arith.constant 0 : i32
    %c0_i32_2 = arith.constant 0 : i32
    return %arg0, %c0_i32, %c0_i32_0, %c0_i32_1 : i32, i32, i32, i32
  }
  func.func @transform_1(%arg0: i32) -> (i32, i32, i32, i32) {
    %c0_i32 = arith.constant 0 : i32
    %c0_i32_0 = arith.constant 0 : i32
    %c0_i32_1 = arith.constant 0 : i32
    %c0_i32_2 = arith.constant 0 : i32
    %c0_i32_3 = arith.constant 0 : i32
    return %c0_i32, %c0_i32_0, %c0_i32_1, %c0_i32_2 : i32, i32, i32, i32
  }
  func.func @transform_2(%arg0: i32) -> (i32, i32) {
    %c0_i32 = arith.constant 0 : i32
    %c0_i32_0 = arith.constant 0 : i32
    %c0_i32_1 = arith.constant 0 : i32
    return %c0_i32, %c0_i32_0 : i32, i32
  }
  func.func @transform_3(%arg0: i32) -> (i32, i32, i32) {
    %c0_i32 = arith.constant 0 : i32
    %c0_i32_0 = arith.constant 0 : i32
    %c0_i32_1 = arith.constant 0 : i32
    %c0_i32_2 = arith.constant 0 : i32
    return %c0_i32, %c0_i32_0, %c0_i32_1 : i32, i32, i32
  }
  func.func @transform_4(%arg0: i32) -> (i32, i32) {
    %c0_i32 = arith.constant 0 : i32
    %c0_i32_0 = arith.constant 0 : i32
    %c0_i32_1 = arith.constant 0 : i32
    return %c0_i32, %c0_i32_0 : i32, i32
  }
  func.func @transform_5(%arg0: i32) -> (i32, i32) {
    %c0_i32 = arith.constant 0 : i32
    %c0_i32_0 = arith.constant 0 : i32
    %c0_i32_1 = arith.constant 0 : i32
    return %c0_i32, %c0_i32_0 : i32, i32
  }
  func.func @transform_6(%arg0: i32) -> (i32, i32) {
    %c0_i32 = arith.constant 0 : i32
    %c0_i32_0 = arith.constant 0 : i32
    %c0_i32_1 = arith.constant 0 : i32
    return %c0_i32, %c0_i32_0 : i32, i32
  }
  func.func @transform_7(%arg0: i32) -> (i32, i32) {
    %c0_i32 = arith.constant 0 : i32
    %c0_i32_0 = arith.constant 0 : i32
    %c0_i32_1 = arith.constant 0 : i32
    return %c0_i32, %c0_i32_0 : i32, i32
  }
  func.func @transform_8(%arg0: i32) -> (i32, i32) {
    %c0_i32 = arith.constant 0 : i32
    %c0_i32_0 = arith.constant 0 : i32
    %c0_i32_1 = arith.constant 0 : i32
    return %c0_i32, %c0_i32_0 : i32, i32
  }
  func.func @transform_9(%arg0: i32) -> (i32, i32, i32, i32) {
    %c0_i32 = arith.constant 0 : i32
    %c0_i32_0 = arith.constant 0 : i32
    %c0_i32_1 = arith.constant 0 : i32
    %c0_i32_2 = arith.constant 0 : i32
    return %arg0, %c0_i32, %c0_i32_0, %c0_i32_1 : i32, i32, i32, i32
  }
}

module attributes {stable_mosaic.version = 11 : i64} {
  func.func @_fc_stack_kernel(%arg0: i32, %arg1: memref<2x2704xf32, #tpu.memory_space<vmem>>, %arg2: memref<2704x120xf32, #tpu.memory_space<vmem>>, %arg3: memref<1x120xf32, #tpu.memory_space<vmem>>, %arg4: memref<120x84xf32, #tpu.memory_space<vmem>>, %arg5: memref<1x84xf32, #tpu.memory_space<vmem>>, %arg6: memref<84x10xf32, #tpu.memory_space<vmem>>, %arg7: memref<1x10xf32, #tpu.memory_space<vmem>>, %arg8: memref<2x10xf32, #tpu.memory_space<vmem>>) attributes {dimension_semantics = [#tpu.dimension_semantics<arbitrary>], iteration_bounds = array<i64: 1>, scalar_prefetch = 0 : i64, scratch_operands = 0 : i64, tpu.core_type = #tpu.core_type<tc>, window_params = [{pipeline_mode = #tpu.pipeline_mode<synchronous>, transform_indices = @transform_0, window_bounds = array<i64: 2, 2704>}, {pipeline_mode = #tpu.pipeline_mode<synchronous>, transform_indices = @transform_1, window_bounds = array<i64: 2704, 120>}, {pipeline_mode = #tpu.pipeline_mode<synchronous>, transform_indices = @transform_2, window_bounds = array<i64: 1, 120>}, {pipeline_mode = #tpu.pipeline_mode<synchronous>, transform_indices = @transform_3, window_bounds = array<i64: 120, 84>}, {pipeline_mode = #tpu.pipeline_mode<synchronous>, transform_indices = @transform_4, window_bounds = array<i64: 1, 84>}, {pipeline_mode = #tpu.pipeline_mode<synchronous>, transform_indices = @transform_5, window_bounds = array<i64: 84, 10>}, {pipeline_mode = #tpu.pipeline_mode<synchronous>, transform_indices = @transform_6, window_bounds = array<i64: 1, 10>}, {pipeline_mode = #tpu.pipeline_mode<synchronous>, transform_indices = @transform_7, window_bounds = array<i64: 2, 10>}]} {
    %c0 = arith.constant 0 : index
    %c0_0 = arith.constant 0 : index
    %0 = vector.load %arg1[%c0, %c0_0] : memref<2x2704xf32, #tpu.memory_space<vmem>>, vector<2x2704xf32>
    %c0_1 = arith.constant 0 : index
    %c0_2 = arith.constant 0 : index
    %1 = vector.load %arg2[%c0_1, %c0_2] : memref<2704x120xf32, #tpu.memory_space<vmem>>, vector<2704x120xf32>
    %cst = arith.constant dense<0.000000e+00> : vector<2x120xf32>
    %2 = tpu.matmul %0, %1, %cst {dimension_numbers = #tpu.dot_dimension_numbers<[1], [0], [0], [1], [0, 0, 1, 1], [], []>} : vector<2x2704xf32>, vector<2704x120xf32>, vector<2x120xf32> -> vector<2x120xf32>
    %c0_3 = arith.constant 0 : index
    %c0_4 = arith.constant 0 : index
    %3 = vector.load %arg3[%c0_3, %c0_4] : memref<1x120xf32, #tpu.memory_space<vmem>>, vector<1x120xf32>
    %4 = vector.broadcast %3 : vector<1x120xf32> to vector<2x120xf32>
    %5 = arith.addf %2, %4 : vector<2x120xf32>
    %cst_5 = arith.constant 0.000000e+00 : f32
    %6 = vector.broadcast %cst_5 : f32 to vector<2x120xf32>
    %7 = arith.maximumf %5, %6 : vector<2x120xf32>
    %c0_6 = arith.constant 0 : index
    %c0_7 = arith.constant 0 : index
    %8 = vector.load %arg4[%c0_6, %c0_7] : memref<120x84xf32, #tpu.memory_space<vmem>>, vector<120x84xf32>
    %cst_8 = arith.constant dense<0.000000e+00> : vector<2x84xf32>
    %9 = tpu.matmul %7, %8, %cst_8 {dimension_numbers = #tpu.dot_dimension_numbers<[1], [0], [0], [1], [0, 0, 1, 1], [], []>} : vector<2x120xf32>, vector<120x84xf32>, vector<2x84xf32> -> vector<2x84xf32>
    %c0_9 = arith.constant 0 : index
    %c0_10 = arith.constant 0 : index
    %10 = vector.load %arg5[%c0_9, %c0_10] : memref<1x84xf32, #tpu.memory_space<vmem>>, vector<1x84xf32>
    %11 = vector.broadcast %10 : vector<1x84xf32> to vector<2x84xf32>
    %12 = arith.addf %9, %11 : vector<2x84xf32>
    %cst_11 = arith.constant 0.000000e+00 : f32
    %13 = vector.broadcast %cst_11 : f32 to vector<2x84xf32>
    %14 = arith.maximumf %12, %13 : vector<2x84xf32>
    %c0_12 = arith.constant 0 : index
    %c0_13 = arith.constant 0 : index
    %15 = vector.load %arg6[%c0_12, %c0_13] : memref<84x10xf32, #tpu.memory_space<vmem>>, vector<84x10xf32>
    %cst_14 = arith.constant dense<0.000000e+00> : vector<2x10xf32>
    %16 = tpu.matmul %14, %15, %cst_14 {dimension_numbers = #tpu.dot_dimension_numbers<[1], [0], [0], [1], [0, 0, 1, 1], [], []>} : vector<2x84xf32>, vector<84x10xf32>, vector<2x10xf32> -> vector<2x10xf32>
    %c0_15 = arith.constant 0 : index
    %c0_16 = arith.constant 0 : index
    %17 = vector.load %arg7[%c0_15, %c0_16] : memref<1x10xf32, #tpu.memory_space<vmem>>, vector<1x10xf32>
    %18 = vector.broadcast %17 : vector<1x10xf32> to vector<2x10xf32>
    %19 = arith.addf %16, %18 : vector<2x10xf32>
    %c0_17 = arith.constant 0 : index
    %c0_18 = arith.constant 0 : index
    %20 = vector.load %arg8[%c0_17, %c0_18] : memref<2x10xf32, #tpu.memory_space<vmem>>, vector<2x10xf32>
    tpu.vector_store %arg8[%c0_17, %c0_18], %19 {strides = array<i32>} : memref<2x10xf32, #tpu.memory_space<vmem>>, vector<2x10xf32>,
    return
  }
  func.func @transform_0(%arg0: i32) -> (i32, i32) {
    %c0_i32 = arith.constant 0 : i32
    %c0_i32_0 = arith.constant 0 : i32
    %c0_i32_1 = arith.constant 0 : i32
    return %c0_i32, %c0_i32_0 : i32, i32
  }
  func.func @transform_1(%arg0: i32) -> (i32, i32) {
    %c0_i32 = arith.constant 0 : i32
    %c0_i32_0 = arith.constant 0 : i32
    %c0_i32_1 = arith.constant 0 : i32
    return %c0_i32, %c0_i32_0 : i32, i32
  }
  func.func @transform_2(%arg0: i32) -> (i32, i32) {
    %c0_i32 = arith.constant 0 : i32
    %c0_i32_0 = arith.constant 0 : i32
    %c0_i32_1 = arith.constant 0 : i32
    return %c0_i32, %c0_i32_0 : i32, i32
  }
  func.func @transform_3(%arg0: i32) -> (i32, i32) {
    %c0_i32 = arith.constant 0 : i32
    %c0_i32_0 = arith.constant 0 : i32
    %c0_i32_1 = arith.constant 0 : i32
    return %c0_i32, %c0_i32_0 : i32, i32
  }
  func.func @transform_4(%arg0: i32) -> (i32, i32) {
    %c0_i32 = arith.constant 0 : i32
    %c0_i32_0 = arith.constant 0 : i32
    %c0_i32_1 = arith.constant 0 : i32
    return %c0_i32, %c0_i32_0 : i32, i32
  }
  func.func @transform_5(%arg0: i32) -> (i32, i32) {
    %c0_i32 = arith.constant 0 : i32
    %c0_i32_0 = arith.constant 0 : i32
    %c0_i32_1 = arith.constant 0 : i32
    return %c0_i32, %c0_i32_0 : i32, i32
  }
  func.func @transform_6(%arg0: i32) -> (i32, i32) {
    %c0_i32 = arith.constant 0 : i32
    %c0_i32_0 = arith.constant 0 : i32
    %c0_i32_1 = arith.constant 0 : i32
    return %c0_i32, %c0_i32_0 : i32, i32
  }
  func.func @transform_7(%arg0: i32) -> (i32, i32) {
    %c0_i32 = arith.constant 0 : i32
    %c0_i32_0 = arith.constant 0 : i32
    %c0_i32_1 = arith.constant 0 : i32
    return %c0_i32, %c0_i32_0 : i32, i32
  }
}

</mosaic_0001>

<llo_original>
// kernel: net_forward.3
$region0: #{net_forward.3}
  #allocation0 [shape = 'u32[]', space=smem, size = 0x4, offset = 0x4, fixed_abs, tag = 'smem constant byte address 0x4 - core index']
  #allocation1 [shape = 'u32[144,128]{1,0:T(1,128)}', space=vmem, size = 0x12000, scoped, tag = 'internal scratch']
  %s0 = inlined_call_operand.vmem [shape: f32[2,2704], index: 0, kind: input, shape index: {}]
  %s1 = inlined_call_operand.vmem [shape: f32[2704,120], index: 1, kind: input, shape index: {}]
  %s2 = inlined_call_operand.vmem [shape: f32[1,120], index: 2, kind: input, shape index: {}]
  %s3 = inlined_call_operand.vmem [shape: f32[120,84], index: 3, kind: input, shape index: {}]
  %s4 = inlined_call_operand.vmem [shape: f32[1,84], index: 4, kind: input, shape index: {}]
  %s5 = inlined_call_operand.vmem [shape: f32[84,10], index: 5, kind: input, shape index: {}]
  %s6 = inlined_call_operand.vmem [shape: f32[1,10], index: 6, kind: input, shape index: {}]
  %s7 = inlined_call_operand.hbm [shape: f32[2,10], index: 7, kind: output, shape index: {}]
  %s8 = sld [smem:[#allocation0]]
  $region38: #{net_forward.3} parent=0
    _
  %s10 = ssub.s32 1, %s8
  %s11 = scalar_select 0, %s10, %s8
  $region1: #{net_forward.3} parent=0
    #allocation2 [shape = 'u8[1024]{0}', space=vmem, size = 0x400, scoped, tag = 'output window, operand 0, single buffered']
    #allocation3 [shape = 's32[1]{0}', space=sflag, size = 0x4, scoped, tag = 'scoped memory for net_forward.3']
    %12 = vsyncpa [#allocation3], 0
    // Predicated region
    $region2: #{net_forward.3} parent=1 // pred_check
      _
    $region3: #{net_forward.3} parent=1 // pred_check_branch
      %14 = sbr.rel (0) target = $region5
    $region4: #{net_forward.3} parent=1 // pred_region
      _
    $region5: #{net_forward.3} parent=1 // pred_fallthru
      _
    // Predicated region
    $region6: #{net_forward.3} parent=1 // pred_check
      _
    $region7: #{net_forward.3} parent=1 // pred_check_branch
      %16 = sbr.rel (0) target = $region9
    $region8: #{net_forward.3} parent=1 // pred_region
      _
    $region9: #{net_forward.3} parent=1 // pred_fallthru
      _
    // Predicated region
    $region10: #{net_forward.3} parent=1 // pred_check
      _
    $region11: #{net_forward.3} parent=1 // pred_check_branch
      %18 = sbr.rel (0) target = $region13
    $region12: #{net_forward.3} parent=1 // pred_region
      _
    $region13: #{net_forward.3} parent=1 // pred_fallthru
      _
    // Predicated region
    $region14: #{net_forward.3} parent=1 // pred_check
      _
    $region15: #{net_forward.3} parent=1 // pred_check_branch
      %20 = sbr.rel (0) target = $region17
    $region16: #{net_forward.3} parent=1 // pred_region
      _
    $region17: #{net_forward.3} parent=1 // pred_fallthru
      _
    // Predicated region
    $region18: #{net_forward.3} parent=1 // pred_check
      _
    $region19: #{net_forward.3} parent=1 // pred_check_branch
      %22 = sbr.rel (0) target = $region21
    $region20: #{net_forward.3} parent=1 // pred_region
      _
    $region21: #{net_forward.3} parent=1 // pred_fallthru
      _
    // Predicated region
    $region22: #{net_forward.3} parent=1 // pred_check
      _
    $region23: #{net_forward.3} parent=1 // pred_check_branch
      %24 = sbr.rel (0) target = $region25
    $region24: #{net_forward.3} parent=1 // pred_region
      _
    $region25: #{net_forward.3} parent=1 // pred_fallthru
      _
    // Predicated region
    $region26: #{net_forward.3} parent=1 // pred_check
      _
    $region27: #{net_forward.3} parent=1 // pred_check_branch
      %26 = sbr.rel (0) target = $region29
    $region28: #{net_forward.3} parent=1 // pred_region
      _
    $region29: #{net_forward.3} parent=1 // pred_fallthru
      _
    %v27 = vld [vmem:[%s0] sm:$0xff]
    %v28 = vld [vmem:[%s0 + $0x8] sm:$0xff]
    %v29 = vld [vmem:[%s0 + $0x10] sm:$0xff]
    %v30 = vld [vmem:[%s0 + $0x18] sm:$0xff]
    %v31 = vld [vmem:[%s0 + $0x20] sm:$0xff]
    %v32 = vld [vmem:[%s0 + $0x28] sm:$0xf]
    %v33 = vld [vmem:[%s1] sm:$0xff]
    %v34 = vld [vmem:[%s1 + $0x8] sm:$0xff]
    %v35 = vld [vmem:[%s1 + $0x10] sm:$0xff]
    %v36 = vld [vmem:[%s1 + $0x18] sm:$0xff]
    %v37 = vld [vmem:[%s1 + $0x20] sm:$0xff]
    %v38 = vld [vmem:[%s1 + $0x28] sm:$0xff]
    %v39 = vld [vmem:[%s1 + $0x30] sm:$0xff]
    %v40 = vld [vmem:[%s1 + $0x38] sm:$0xff]
    %v41 = vld [vmem:[%s1 + $0x40] sm:$0xff]
    %v42 = vld [vmem:[%s1 + $0x48] sm:$0xff]
    %v43 = vld [vmem:[%s1 + $0x50] sm:$0xff]
    %v44 = vld [vmem:[%s1 + $0x58] sm:$0xff]
    %v45 = vld [vmem:[%s1 + $0x60] sm:$0xff]
    %v46 = vld [vmem:[%s1 + $0x68] sm:$0xff]
    %v47 = vld [vmem:[%s1 + $0x70] sm:$0xff]
    %v48 = vld [vmem:[%s1 + $0x78] sm:$0xff]
    %v49 = vld [vmem:[%s1 + $0x80] sm:$0xff]
    %v50 = vld [vmem:[%s1 + $0x88] sm:$0xff]
    %v51 = vld [vmem:[%s1 + $0x90] sm:$0xff]
    %v52 = vld [vmem:[%s1 + $0x98] sm:$0xff]
    %v53 = vld [vmem:[%s1 + $0xa0] sm:$0xff]
    %v54 = vld [vmem:[%s1 + $0xa8] sm:$0xff]
    %v55 = vld [vmem:[%s1 + $0xb0] sm:$0xff]
    %v56 = vld [vmem:[%s1 + $0xb8] sm:$0xff]
    %v57 = vld [vmem:[%s1 + $0xc0] sm:$0xff]
    %v58 = vld [vmem:[%s1 + $0xc8] sm:$0xff]
    %v59 = vld [vmem:[%s1 + $0xd0] sm:$0xff]
    %v60 = vld [vmem:[%s1 + $0xd8] sm:$0xff]
    %v61 = vld [vmem:[%s1 + $0xe0] sm:$0xff]
    %v62 = vld [vmem:[%s1 + $0xe8] sm:$0xff]
    %v63 = vld [vmem:[%s1 + $0xf0] sm:$0xff]
    %v64 = vld [vmem:[%s1 + $0xf8] sm:$0xff]
    %v65 = vld [vmem:[%s1 + $0x100] sm:$0xff]
    %v66 = vld [vmem:[%s1 + $0x108] sm:$0xff]
    %v67 = vld [vmem:[%s1 + $0x110] sm:$0xff]
    %v68 = vld [vmem:[%s1 + $0x118] sm:$0xff]
    %v69 = vld [vmem:[%s1 + $0x120] sm:$0xff]
    %v70 = vld [vmem:[%s1 + $0x128] sm:$0xff]
    %v71 = vld [vmem:[%s1 + $0x130] sm:$0xff]
    %v72 = vld [vmem:[%s1 + $0x138] sm:$0xff]
    %v73 = vld [vmem:[%s1 + $0x140] sm:$0xff]
    %v74 = vld [vmem:[%s1 + $0x148] sm:$0xff]
    %v75 = vld [vmem:[%s1 + $0x150] sm:$0xff]
    %v76 = vld [vmem:[%s1 + $0x158] sm:$0xff]
    %v77 = vld [vmem:[%s1 + $0x160] sm:$0xff]
    %v78 = vld [vmem:[%s1 + $0x168] sm:$0xff]
    %v79 = vld [vmem:[%s1 + $0x170] sm:$0xff]
    %v80 = vld [vmem:[%s1 + $0x178] sm:$0xff]
    %v81 = vld [vmem:[%s1 + $0x180] sm:$0xff]
    %v82 = vld [vmem:[%s1 + $0x188] sm:$0xff]
    %v83 = vld [vmem:[%s1 + $0x190] sm:$0xff]
    %v84 = vld [vmem:[%s1 + $0x198] sm:$0xff]
    %v85 = vld [vmem:[%s1 + $0x1a0] sm:$0xff]
    %v86 = vld [vmem:[%s1 + $0x1a8] sm:$0xff]
    %v87 = vld [vmem:[%s1 + $0x1b0] sm:$0xff]
    %v88 = vld [vmem:[%s1 + $0x1b8] sm:$0xff]
    %v89 = vld [vmem:[%s1 + $0x1c0] sm:$0xff]
    %v90 = vld [vmem:[%s1 + $0x1c8] sm:$0xff]
    %v91 = vld [vmem:[%s1 + $0x1d0] sm:$0xff]
    %v92 = vld [vmem:[%s1 + $0x1d8] sm:$0xff]
    %v93 = vld [vmem:[%s1 + $0x1e0] sm:$0xff]
    %v94 = vld [vmem:[%s1 + $0x1e8] sm:$0xff]
    %v95 = vld [vmem:[%s1 + $0x1f0] sm:$0xff]
    %v96 = vld [vmem:[%s1 + $0x1f8] sm:$0xff]
    %v97 = vld [vmem:[%s1 + $0x200] sm:$0xff]
    %v98 = vld [vmem:[%s1 + $0x208] sm:$0xff]
    %v99 = vld [vmem:[%s1 + $0x210] sm:$0xff]
    %v100 = vld [vmem:[%s1 + $0x218] sm:$0xff]
    %v101 = vld [vmem:[%s1 + $0x220] sm:$0xff]
    %v102 = vld [vmem:[%s1 + $0x228] sm:$0xff]
    %v103 = vld [vmem:[%s1 + $0x230] sm:$0xff]
    %v104 = vld [vmem:[%s1 + $0x238] sm:$0xff]
    %v105 = vld [vmem:[%s1 + $0x240] sm:$0xff]
    %v106 = vld [vmem:[%s1 + $0x248] sm:$0xff]
    %v107 = vld [vmem:[%s1 + $0x250] sm:$0xff]
    %v108 = vld [vmem:[%s1 + $0x258] sm:$0xff]
    %v109 = vld [vmem:[%s1 + $0x260] sm:$0xff]
    %v110 = vld [vmem:[%s1 + $0x268] sm:$0xff]
    %v111 = vld [vmem:[%s1 + $0x270] sm:$0xff]
    %v112 = vld [vmem:[%s1 + $0x278] sm:$0xff]
    %v113 = vld [vmem:[%s1 + $0x280] sm:$0xff]
    %v114 = vld [vmem:[%s1 + $0x288] sm:$0xff]
    %v115 = vld [vmem:[%s1 + $0x290] sm:$0xff]
    %v116 = vld [vmem:[%s1 + $0x298] sm:$0xff]
    %v117 = vld [vmem:[%s1 + $0x2a0] sm:$0xff]
    %v118 = vld [vmem:[%s1 + $0x2a8] sm:$0xff]
    %v119 = vld [vmem:[%s1 + $0x2b0] sm:$0xff]
    %v120 = vld [vmem:[%s1 + $0x2b8] sm:$0xff]
    %v121 = vld [vmem:[%s1 + $0x2c0] sm:$0xff]
    %v122 = vld [vmem:[%s1 + $0x2c8] sm:$0xff]
    %v123 = vld [vmem:[%s1 + $0x2d0] sm:$0xff]
    %v124 = vld [vmem:[%s1 + $0x2d8] sm:$0xff]
    %v125 = vld [vmem:[%s1 + $0x2e0] sm:$0xff]
    %v126 = vld [vmem:[%s1 + $0x2e8] sm:$0xff]
    %v127 = vld [vmem:[%s1 + $0x2f0] sm:$0xff]
    %v128 = vld [vmem:[%s1 + $0x2f8] sm:$0xff]
    %v129 = vld [vmem:[%s1 + $0x300] sm:$0xff]
    %v130 = vld [vmem:[%s1 + $0x308] sm:$0xff]
    %v131 = vld [vmem:[%s1 + $0x310] sm:$0xff]
    %v132 = vld [vmem:[%s1 + $0x318] sm:$0xff]
    %v133 = vld [vmem:[%s1 + $0x320] sm:$0xff]
    %v134 = vld [vmem:[%s1 + $0x328] sm:$0xff]
    %v135 = vld [vmem:[%s1 + $0x330] sm:$0xff]
    %v136 = vld [vmem:[%s1 + $0x338] sm:$0xff]
    %v137 = vld [vmem:[%s1 + $0x340] sm:$0xff]
    %v138 = vld [vmem:[%s1 + $0x348] sm:$0xff]
    %v139 = vld [vmem:[%s1 + $0x350] sm:$0xff]
    %v140 = vld [vmem:[%s1 + $0x358] sm:$0xff]
    %v141 = vld [vmem:[%s1 + $0x360] sm:$0xff]
    %v142 = vld [vmem:[%s1 + $0x368] sm:$0xff]
    %v143 = vld [vmem:[%s1 + $0x370] sm:$0xff]
    %v144 = vld [vmem:[%s1 + $0x378] sm:$0xff]
    %v145 = vld [vmem:[%s1 + $0x380] sm:$0xff]
    %v146 = vld [vmem:[%s1 + $0x388] sm:$0xff]
    %v147 = vld [vmem:[%s1 + $0x390] sm:$0xff]
    %v148 = vld [vmem:[%s1 + $0x398] sm:$0xff]
    %v149 = vld [vmem:[%s1 + $0x3a0] sm:$0xff]
    %v150 = vld [vmem:[%s1 + $0x3a8] sm:$0xff]
    %v151 = vld [vmem:[%s1 + $0x3b0] sm:$0xff]
    %v152 = vld [vmem:[%s1 + $0x3b8] sm:$0xff]
    %v153 = vld [vmem:[%s1 + $0x3c0] sm:$0xff]
    %v154 = vld [vmem:[%s1 + $0x3c8] sm:$0xff]
    %v155 = vld [vmem:[%s1 + $0x3d0] sm:$0xff]
    %v156 = vld [vmem:[%s1 + $0x3d8] sm:$0xff]
    %v157 = vld [vmem:[%s1 + $0x3e0] sm:$0xff]
    %v158 = vld [vmem:[%s1 + $0x3e8] sm:$0xff]
    %v159 = vld [vmem:[%s1 + $0x3f0] sm:$0xff]
    %v160 = vld [vmem:[%s1 + $0x3f8] sm:$0xff]
    %v161 = vld [vmem:[%s1 + $0x400] sm:$0xff]
    %v162 = vld [vmem:[%s1 + $0x408] sm:$0xff]
    %v163 = vld [vmem:[%s1 + $0x410] sm:$0xff]
    %v164 = vld [vmem:[%s1 + $0x418] sm:$0xff]
    %v165 = vld [vmem:[%s1 + $0x420] sm:$0xff]
    %v166 = vld [vmem:[%s1 + $0x428] sm:$0xff]
    %v167 = vld [vmem:[%s1 + $0x430] sm:$0xff]
    %v168 = vld [vmem:[%s1 + $0x438] sm:$0xff]
    %v169 = vld [vmem:[%s1 + $0x440] sm:$0xff]
    %v170 = vld [vmem:[%s1 + $0x448] sm:$0xff]
    %v171 = vld [vmem:[%s1 + $0x450] sm:$0xff]
    %v172 = vld [vmem:[%s1 + $0x458] sm:$0xff]
    %v173 = vld [vmem:[%s1 + $0x460] sm:$0xff]
    %v174 = vld [vmem:[%s1 + $0x468] sm:$0xff]
    %v175 = vld [vmem:[%s1 + $0x470] sm:$0xff]
    %v176 = vld [vmem:[%s1 + $0x478] sm:$0xff]
    %v177 = vld [vmem:[%s1 + $0x480] sm:$0xff]
    %v178 = vld [vmem:[%s1 + $0x488] sm:$0xff]
    %v179 = vld [vmem:[%s1 + $0x490] sm:$0xff]
    %v180 = vld [vmem:[%s1 + $0x498] sm:$0xff]
    %v181 = vld [vmem:[%s1 + $0x4a0] sm:$0xff]
    %v182 = vld [vmem:[%s1 + $0x4a8] sm:$0xff]
    %v183 = vld [vmem:[%s1 + $0x4b0] sm:$0xff]
    %v184 = vld [vmem:[%s1 + $0x4b8] sm:$0xff]
    %v185 = vld [vmem:[%s1 + $0x4c0] sm:$0xff]
    %v186 = vld [vmem:[%s1 + $0x4c8] sm:$0xff]
    %v187 = vld [vmem:[%s1 + $0x4d0] sm:$0xff]
    %v188 = vld [vmem:[%s1 + $0x4d8] sm:$0xff]
    %v189 = vld [vmem:[%s1 + $0x4e0] sm:$0xff]
    %v190 = vld [vmem:[%s1 + $0x4e8] sm:$0xff]
    %v191 = vld [vmem:[%s1 + $0x4f0] sm:$0xff]
    %v192 = vld [vmem:[%s1 + $0x4f8] sm:$0xff]
    %v193 = vld [vmem:[%s1 + $0x500] sm:$0xff]
    %v194 = vld [vmem:[%s1 + $0x508] sm:$0xff]
    %v195 = vld [vmem:[%s1 + $0x510] sm:$0xff]
    %v196 = vld [vmem:[%s1 + $0x518] sm:$0xff]
    %v197 = vld [vmem:[%s1 + $0x520] sm:$0xff]
    %v198 = vld [vmem:[%s1 + $0x528] sm:$0xff]
    %v199 = vld [vmem:[%s1 + $0x530] sm:$0xff]
    %v200 = vld [vmem:[%s1 + $0x538] sm:$0xff]
    %v201 = vld [vmem:[%s1 + $0x540] sm:$0xff]
    %v202 = vld [vmem:[%s1 + $0x548] sm:$0xff]
    %v203 = vld [vmem:[%s1 + $0x550] sm:$0xff]
    %v204 = vld [vmem:[%s1 + $0x558] sm:$0xff]
    %v205 = vld [vmem:[%s1 + $0x560] sm:$0xff]
    %v206 = vld [vmem:[%s1 + $0x568] sm:$0xff]
    %v207 = vld [vmem:[%s1 + $0x570] sm:$0xff]
    %v208 = vld [vmem:[%s1 + $0x578] sm:$0xff]
    %v209 = vld [vmem:[%s1 + $0x580] sm:$0xff]
    %v210 = vld [vmem:[%s1 + $0x588] sm:$0xff]
    %v211 = vld [vmem:[%s1 + $0x590] sm:$0xff]
    %v212 = vld [vmem:[%s1 + $0x598] sm:$0xff]
    %v213 = vld [vmem:[%s1 + $0x5a0] sm:$0xff]
    %v214 = vld [vmem:[%s1 + $0x5a8] sm:$0xff]
    %v215 = vld [vmem:[%s1 + $0x5b0] sm:$0xff]
    %v216 = vld [vmem:[%s1 + $0x5b8] sm:$0xff]
    %v217 = vld [vmem:[%s1 + $0x5c0] sm:$0xff]
    %v218 = vld [vmem:[%s1 + $0x5c8] sm:$0xff]
    %v219 = vld [vmem:[%s1 + $0x5d0] sm:$0xff]
    %v220 = vld [vmem:[%s1 + $0x5d8] sm:$0xff]
    %v221 = vld [vmem:[%s1 + $0x5e0] sm:$0xff]
    %v222 = vld [vmem:[%s1 + $0x5e8] sm:$0xff]
    %v223 = vld [vmem:[%s1 + $0x5f0] sm:$0xff]
    %v224 = vld [vmem:[%s1 + $0x5f8] sm:$0xff]
    %v225 = vld [vmem:[%s1 + $0x600] sm:$0xff]
    %v226 = vld [vmem:[%s1 + $0x608] sm:$0xff]
    %v227 = vld [vmem:[%s1 + $0x610] sm:$0xff]
    %v228 = vld [vmem:[%s1 + $0x618] sm:$0xff]
    %v229 = vld [vmem:[%s1 + $0x620] sm:$0xff]
    %v230 = vld [vmem:[%s1 + $0x628] sm:$0xff]
    %v231 = vld [vmem:[%s1 + $0x630] sm:$0xff]
    %v232 = vld [vmem:[%s1 + $0x638] sm:$0xff]
    %v233 = vld [vmem:[%s1 + $0x640] sm:$0xff]
    %v234 = vld [vmem:[%s1 + $0x648] sm:$0xff]
    %v235 = vld [vmem:[%s1 + $0x650] sm:$0xff]
    %v236 = vld [vmem:[%s1 + $0x658] sm:$0xff]
    %v237 = vld [vmem:[%s1 + $0x660] sm:$0xff]
    %v238 = vld [vmem:[%s1 + $0x668] sm:$0xff]
    %v239 = vld [vmem:[%s1 + $0x670] sm:$0xff]
    %v240 = vld [vmem:[%s1 + $0x678] sm:$0xff]
    %v241 = vld [vmem:[%s1 + $0x680] sm:$0xff]
    %v242 = vld [vmem:[%s1 + $0x688] sm:$0xff]
    %v243 = vld [vmem:[%s1 + $0x690] sm:$0xff]
    %v244 = vld [vmem:[%s1 + $0x698] sm:$0xff]
    %v245 = vld [vmem:[%s1 + $0x6a0] sm:$0xff]
    %v246 = vld [vmem:[%s1 + $0x6a8] sm:$0xff]
    %v247 = vld [vmem:[%s1 + $0x6b0] sm:$0xff]
    %v248 = vld [vmem:[%s1 + $0x6b8] sm:$0xff]
    %v249 = vld [vmem:[%s1 + $0x6c0] sm:$0xff]
    %v250 = vld [vmem:[%s1 + $0x6c8] sm:$0xff]
    %v251 = vld [vmem:[%s1 + $0x6d0] sm:$0xff]
    %v252 = vld [vmem:[%s1 + $0x6d8] sm:$0xff]
    %v253 = vld [vmem:[%s1 + $0x6e0] sm:$0xff]
    %v254 = vld [vmem:[%s1 + $0x6e8] sm:$0xff]
    %v255 = vld [vmem:[%s1 + $0x6f0] sm:$0xff]
    %v256 = vld [vmem:[%s1 + $0x6f8] sm:$0xff]
    %v257 = vld [vmem:[%s1 + $0x700] sm:$0xff]
    %v258 = vld [vmem:[%s1 + $0x708] sm:$0xff]
    %v259 = vld [vmem:[%s1 + $0x710] sm:$0xff]
    %v260 = vld [vmem:[%s1 + $0x718] sm:$0xff]
    %v261 = vld [vmem:[%s1 + $0x720] sm:$0xff]
    %v262 = vld [vmem:[%s1 + $0x728] sm:$0xff]
    %v263 = vld [vmem:[%s1 + $0x730] sm:$0xff]
    %v264 = vld [vmem:[%s1 + $0x738] sm:$0xff]
    %v265 = vld [vmem:[%s1 + $0x740] sm:$0xff]
    %v266 = vld [vmem:[%s1 + $0x748] sm:$0xff]
    %v267 = vld [vmem:[%s1 + $0x750] sm:$0xff]
    %v268 = vld [vmem:[%s1 + $0x758] sm:$0xff]
    %v269 = vld [vmem:[%s1 + $0x760] sm:$0xff]
    %v270 = vld [vmem:[%s1 + $0x768] sm:$0xff]
    %v271 = vld [vmem:[%s1 + $0x770] sm:$0xff]
    %v272 = vld [vmem:[%s1 + $0x778] sm:$0xff]
    %v273 = vld [vmem:[%s1 + $0x780] sm:$0xff]
    %v274 = vld [vmem:[%s1 + $0x788] sm:$0xff]
    %v275 = vld [vmem:[%s1 + $0x790] sm:$0xff]
    %v276 = vld [vmem:[%s1 + $0x798] sm:$0xff]
    %v277 = vld [vmem:[%s1 + $0x7a0] sm:$0xff]
    %v278 = vld [vmem:[%s1 + $0x7a8] sm:$0xff]
    %v279 = vld [vmem:[%s1 + $0x7b0] sm:$0xff]
    %v280 = vld [vmem:[%s1 + $0x7b8] sm:$0xff]
    %v281 = vld [vmem:[%s1 + $0x7c0] sm:$0xff]
    %v282 = vld [vmem:[%s1 + $0x7c8] sm:$0xff]
    %v283 = vld [vmem:[%s1 + $0x7d0] sm:$0xff]
    %v284 = vld [vmem:[%s1 + $0x7d8] sm:$0xff]
    %v285 = vld [vmem:[%s1 + $0x7e0] sm:$0xff]
    %v286 = vld [vmem:[%s1 + $0x7e8] sm:$0xff]
    %v287 = vld [vmem:[%s1 + $0x7f0] sm:$0xff]
    %v288 = vld [vmem:[%s1 + $0x7f8] sm:$0xff]
    %v289 = vld [vmem:[%s1 + $0x800] sm:$0xff]
    %v290 = vld [vmem:[%s1 + $0x808] sm:$0xff]
    %v291 = vld [vmem:[%s1 + $0x810] sm:$0xff]
    %v292 = vld [vmem:[%s1 + $0x818] sm:$0xff]
    %v293 = vld [vmem:[%s1 + $0x820] sm:$0xff]
    %v294 = vld [vmem:[%s1 + $0x828] sm:$0xff]
    %v295 = vld [vmem:[%s1 + $0x830] sm:$0xff]
    %v296 = vld [vmem:[%s1 + $0x838] sm:$0xff]
    %v297 = vld [vmem:[%s1 + $0x840] sm:$0xff]
    %v298 = vld [vmem:[%s1 + $0x848] sm:$0xff]
    %v299 = vld [vmem:[%s1 + $0x850] sm:$0xff]
    %v300 = vld [vmem:[%s1 + $0x858] sm:$0xff]
    %v301 = vld [vmem:[%s1 + $0x860] sm:$0xff]
    %v302 = vld [vmem:[%s1 + $0x868] sm:$0xff]
    %v303 = vld [vmem:[%s1 + $0x870] sm:$0xff]
    %v304 = vld [vmem:[%s1 + $0x878] sm:$0xff]
    %v305 = vld [vmem:[%s1 + $0x880] sm:$0xff]
    %v306 = vld [vmem:[%s1 + $0x888] sm:$0xff]
    %v307 = vld [vmem:[%s1 + $0x890] sm:$0xff]
    %v308 = vld [vmem:[%s1 + $0x898] sm:$0xff]
    %v309 = vld [vmem:[%s1 + $0x8a0] sm:$0xff]
    %v310 = vld [vmem:[%s1 + $0x8a8] sm:$0xff]
    %v311 = vld [vmem:[%s1 + $0x8b0] sm:$0xff]
    %v312 = vld [vmem:[%s1 + $0x8b8] sm:$0xff]
    %v313 = vld [vmem:[%s1 + $0x8c0] sm:$0xff]
    %v314 = vld [vmem:[%s1 + $0x8c8] sm:$0xff]
    %v315 = vld [vmem:[%s1 + $0x8d0] sm:$0xff]
    %v316 = vld [vmem:[%s1 + $0x8d8] sm:$0xff]
    %v317 = vld [vmem:[%s1 + $0x8e0] sm:$0xff]
    %v318 = vld [vmem:[%s1 + $0x8e8] sm:$0xff]
    %v319 = vld [vmem:[%s1 + $0x8f0] sm:$0xff]
    %v320 = vld [vmem:[%s1 + $0x8f8] sm:$0xff]
    %v321 = vld [vmem:[%s1 + $0x900] sm:$0xff]
    %v322 = vld [vmem:[%s1 + $0x908] sm:$0xff]
    %v323 = vld [vmem:[%s1 + $0x910] sm:$0xff]
    %v324 = vld [vmem:[%s1 + $0x918] sm:$0xff]
    %v325 = vld [vmem:[%s1 + $0x920] sm:$0xff]
    %v326 = vld [vmem:[%s1 + $0x928] sm:$0xff]
    %v327 = vld [vmem:[%s1 + $0x930] sm:$0xff]
    %v328 = vld [vmem:[%s1 + $0x938] sm:$0xff]
    %v329 = vld [vmem:[%s1 + $0x940] sm:$0xff]
    %v330 = vld [vmem:[%s1 + $0x948] sm:$0xff]
    %v331 = vld [vmem:[%s1 + $0x950] sm:$0xff]
    %v332 = vld [vmem:[%s1 + $0x958] sm:$0xff]
    %v333 = vld [vmem:[%s1 + $0x960] sm:$0xff]
    %v334 = vld [vmem:[%s1 + $0x968] sm:$0xff]
    %v335 = vld [vmem:[%s1 + $0x970] sm:$0xff]
    %v336 = vld [vmem:[%s1 + $0x978] sm:$0xff]
    %v337 = vld [vmem:[%s1 + $0x980] sm:$0xff]
    %v338 = vld [vmem:[%s1 + $0x988] sm:$0xff]
    %v339 = vld [vmem:[%s1 + $0x990] sm:$0xff]
    %v340 = vld [vmem:[%s1 + $0x998] sm:$0xff]
    %v341 = vld [vmem:[%s1 + $0x9a0] sm:$0xff]
    %v342 = vld [vmem:[%s1 + $0x9a8] sm:$0xff]
    %v343 = vld [vmem:[%s1 + $0x9b0] sm:$0xff]
    %v344 = vld [vmem:[%s1 + $0x9b8] sm:$0xff]
    %v345 = vld [vmem:[%s1 + $0x9c0] sm:$0xff]
    %v346 = vld [vmem:[%s1 + $0x9c8] sm:$0xff]
    %v347 = vld [vmem:[%s1 + $0x9d0] sm:$0xff]
    %v348 = vld [vmem:[%s1 + $0x9d8] sm:$0xff]
    %v349 = vld [vmem:[%s1 + $0x9e0] sm:$0xff]
    %v350 = vld [vmem:[%s1 + $0x9e8] sm:$0xff]
    %v351 = vld [vmem:[%s1 + $0x9f0] sm:$0xff]
    %v352 = vld [vmem:[%s1 + $0x9f8] sm:$0xff]
    %v353 = vld [vmem:[%s1 + $0xa00] sm:$0xff]
    %v354 = vld [vmem:[%s1 + $0xa08] sm:$0xff]
    %v355 = vld [vmem:[%s1 + $0xa10] sm:$0xff]
    %v356 = vld [vmem:[%s1 + $0xa18] sm:$0xff]
    %v357 = vld [vmem:[%s1 + $0xa20] sm:$0xff]
    %v358 = vld [vmem:[%s1 + $0xa28] sm:$0xff]
    %v359 = vld [vmem:[%s1 + $0xa30] sm:$0xff]
    %v360 = vld [vmem:[%s1 + $0xa38] sm:$0xff]
    %v361 = vld [vmem:[%s1 + $0xa40] sm:$0xff]
    %v362 = vld [vmem:[%s1 + $0xa48] sm:$0xff]
    %v363 = vld [vmem:[%s1 + $0xa50] sm:$0xff]
    %v364 = vld [vmem:[%s1 + $0xa58] sm:$0xff]
    %v365 = vld [vmem:[%s1 + $0xa60] sm:$0xff]
    %v366 = vld [vmem:[%s1 + $0xa68] sm:$0xff]
    %v367 = vld [vmem:[%s1 + $0xa70] sm:$0xff]
    %v368 = vld [vmem:[%s1 + $0xa78] sm:$0xff]
    %v369 = vld [vmem:[%s1 + $0xa80] sm:$0xff]
    %v370 = vld [vmem:[%s1 + $0xa88] sm:$0xff]
    %v371 = vld [vmem:[%s2] sm:$0x1]
    %v373 = vlaneseq
    %v374 = vshrl.u32 %v373, 7
    %v375 = vsub.s32 0, %v374
    %v376 = vrot.slane %v371, %v375
    %v384 = vcombine.high %v27, %v27
    %v386 = vunpack.c.l.s4 1983009808
    %v387 = vunpack.c.0.s8 %v386
    %v388 = vlaneseq
    %v389 = vshrl.u32 %v388, 7
    %v390 = vsub.s32 %v387, %v389
    %v391 = vrot.slane %v27, %v390
    %v393 = vunpack.c.l.s4 1983009808
    %v394 = vunpack.c.0.s8 %v393
    %v395 = vlaneseq
    %v396 = vshrl.u32 %v395, 7
    %v397 = vsub.s32 %v394, %v396
    %v398 = vrot.slane %v384, %v397
    %v399 = vcombine.high %v391, %v391
    %v400 = vcombine.high %v398, %v398
    %v401 = vcombine.high %v28, %v28
    %v403 = vunpack.c.l.s4 1983009808
    %v404 = vunpack.c.0.s8 %v403
    %v405 = vlaneseq
    %v406 = vshrl.u32 %v405, 7
    %v407 = vsub.s32 %v404, %v406
    %v408 = vrot.slane %v28, %v407
    %v410 = vunpack.c.l.s4 1983009808
    %v411 = vunpack.c.0.s8 %v410
    %v412 = vlaneseq
    %v413 = vshrl.u32 %v412, 7
    %v414 = vsub.s32 %v411, %v413
    %v415 = vrot.slane %v401, %v414
    %v416 = vcombine.high %v408, %v408
    %v417 = vcombine.high %v415, %v415
    %v418 = vcombine.high %v29, %v29
    %v420 = vunpack.c.l.s4 1983009808
    %v421 = vunpack.c.0.s8 %v420
    %v422 = vlaneseq
    %v423 = vshrl.u32 %v422, 7
    %v424 = vsub.s32 %v421, %v423
    %v425 = vrot.slane %v29, %v424
    %v427 = vunpack.c.l.s4 1983009808
    %v428 = vunpack.c.0.s8 %v427
    %v429 = vlaneseq
    %v430 = vshrl.u32 %v429, 7
    %v431 = vsub.s32 %v428, %v430
    %v432 = vrot.slane %v418, %v431
    %v433 = vcombine.high %v425, %v425
    %v434 = vcombine.high %v432, %v432
    %v435 = vcombine.high %v30, %v30
    %v437 = vunpack.c.l.s4 1983009808
    %v438 = vunpack.c.0.s8 %v437
    %v439 = vlaneseq
    %v440 = vshrl.u32 %v439, 7
    %v441 = vsub.s32 %v438, %v440
    %v442 = vrot.slane %v30, %v441
    %v444 = vunpack.c.l.s4 1983009808
    %v445 = vunpack.c.0.s8 %v444
    %v446 = vlaneseq
    %v447 = vshrl.u32 %v446, 7
    %v448 = vsub.s32 %v445, %v447
    %v449 = vrot.slane %v435, %v448
    %v450 = vcombine.high %v442, %v442
    %v451 = vcombine.high %v449, %v449
    %v452 = vcombine.high %v31, %v31
    %v454 = vunpack.c.l.s4 1983009808
    %v455 = vunpack.c.0.s8 %v454
    %v456 = vlaneseq
    %v457 = vshrl.u32 %v456, 7
    %v458 = vsub.s32 %v455, %v457
    %v459 = vrot.slane %v31, %v458
    %v461 = vunpack.c.l.s4 1983009808
    %v462 = vunpack.c.0.s8 %v461
    %v463 = vlaneseq
    %v464 = vshrl.u32 %v463, 7
    %v465 = vsub.s32 %v462, %v464
    %v466 = vrot.slane %v452, %v465
    %v467 = vcombine.high %v459, %v459
    %v468 = vcombine.high %v466, %v466
    %v470 = vunpack.c.l.s4 1983009808
    %v471 = vunpack.c.0.s8 %v470
    %v472 = vlaneseq
    %v473 = vshrl.u32 %v472, 7
    %v474 = vsub.s32 %v471, %v473
    %v475 = vrot.slane %v32, %v474
    %v476 = vcombine.high %v475, %v475
    %vm498 = vcmask 130048
    %v499 = vsel %vm498, %v476, 0
    %501 = vmatprep.subr.mxu0 0.0
    %502 = vmatpush1.msra.mxu0 %v33
    %503 = vmatprep.subr.mxu0 0.0
    %504 = vmatpush1.msra.mxu0 %v34
    %505 = vmatprep.subr.mxu0 0.0
    %506 = vmatpush1.msra.mxu0 %v35
    %507 = vmatprep.subr.mxu0 0.0
    %508 = vmatpush1.msra.mxu0 %v36
    %509 = vmatprep.subr.mxu0 0.0
    %510 = vmatpush1.msra.mxu0 %v37
    %511 = vmatprep.subr.mxu0 0.0
    %512 = vmatpush1.msra.mxu0 %v38
    %513 = vmatprep.subr.mxu0 0.0
    %514 = vmatpush1.msra.mxu0 %v39
    %515 = vmatprep.subr.mxu0 0.0
    %516 = vmatpush1.msra.mxu0 %v40
    %517 = vmatprep.subr.mxu0 0.0
    %518 = vmatpush1.msra.mxu0 %v41
    %519 = vmatprep.subr.mxu0 0.0
    %520 = vmatpush1.msra.mxu0 %v42
    %521 = vmatprep.subr.mxu0 0.0
    %522 = vmatpush1.msra.mxu0 %v43
    %523 = vmatprep.subr.mxu0 0.0
    %524 = vmatpush1.msra.mxu0 %v44
    %525 = vmatprep.subr.mxu0 0.0
    %526 = vmatpush1.msra.mxu0 %v45
    %527 = vmatprep.subr.mxu0 0.0
    %528 = vmatpush1.msra.mxu0 %v46
    %529 = vmatprep.subr.mxu0 0.0
    %530 = vmatpush1.msra.mxu0 %v47
    %531 = vmatprep.subr.mxu0 0.0
    %532 = vmatpush1.msra.mxu0 %v48
    %533 = vmatprep.subr.mxu0 0.0
    %534 = vmatpush1.msra.mxu0 %v49
    %535 = vmatprep.subr.mxu0 0.0
    %536 = vmatpush1.msra.mxu0 %v50
    %537 = vmatprep.subr.mxu0 0.0
    %538 = vmatpush1.msra.mxu0 %v51
    %539 = vmatprep.subr.mxu0 0.0
    %540 = vmatpush1.msra.mxu0 %v52
    %541 = vmatprep.subr.mxu0 0.0
    %542 = vmatpush1.msra.mxu0 %v53
    %543 = vmatprep.subr.mxu0 0.0
    %544 = vmatpush1.msra.mxu0 %v54
    %545 = vmatprep.subr.mxu0 0.0
    %546 = vmatpush1.msra.mxu0 %v55
    %547 = vmatprep.subr.mxu0 0.0
    %548 = vmatpush1.msra.mxu0 %v56
    %549 = vmatprep.subr.mxu0 0.0
    %550 = vmatpush1.msra.mxu0 %v57
    %551 = vmatprep.subr.mxu0 0.0
    %552 = vmatpush1.msra.mxu0 %v58
    %553 = vmatprep.subr.mxu0 0.0
    %554 = vmatpush1.msra.mxu0 %v59
    %555 = vmatprep.subr.mxu0 0.0
    %556 = vmatpush1.msra.mxu0 %v60
    %557 = vmatprep.subr.mxu0 0.0
    %558 = vmatpush1.msra.mxu0 %v61
    %559 = vmatprep.subr.mxu0 0.0
    %560 = vmatpush1.msra.mxu0 %v62
    %561 = vmatprep.subr.mxu0 0.0
    %562 = vmatpush1.msra.mxu0 %v63
    %563 = vmatprep.subr.mxu0 0.0
    %564 = vmatpush1.msra.mxu0 %v64
    %565 = vmatprep.mubr.f32.mxu0 %v399
    %566 = vmatmul.mubr.f32.gmra.mrb[0].mxu0 %v391
    %v567 = vpop.f32.mrb[0].mxu0
    %v568 = vadd.f32 %v376, %v567
    %v569 = vpop.f32.mrb[0].mxu0
    %570 = vdwg.mxu0
    %571 = vmatprep.subr.mxu0 0.0
    %572 = vmatpush1.msra.mxu0 %v65
    %573 = vmatprep.subr.mxu0 0.0
    %574 = vmatpush1.msra.mxu0 %v66
    %575 = vmatprep.subr.mxu0 0.0
    %576 = vmatpush1.msra.mxu0 %v67
    %577 = vmatprep.subr.mxu0 0.0
    %578 = vmatpush1.msra.mxu0 %v68
    %579 = vmatprep.subr.mxu0 0.0
    %580 = vmatpush1.msra.mxu0 %v69
    %581 = vmatprep.subr.mxu0 0.0
    %582 = vmatpush1.msra.mxu0 %v70
    %583 = vmatprep.subr.mxu0 0.0
    %584 = vmatpush1.msra.mxu0 %v71
    %585 = vmatprep.subr.mxu0 0.0
    %586 = vmatpush1.msra.mxu0 %v72
    %587 = vmatprep.subr.mxu0 0.0
    %588 = vmatpush1.msra.mxu0 %v73
    %589 = vmatprep.subr.mxu0 0.0
    %590 = vmatpush1.msra.mxu0 %v74
    %591 = vmatprep.subr.mxu0 0.0
    %592 = vmatpush1.msra.mxu0 %v75
    %593 = vmatprep.subr.mxu0 0.0
    %594 = vmatpush1.msra.mxu0 %v76
    %595 = vmatprep.subr.mxu0 0.0
    %596 = vmatpush1.msra.mxu0 %v77
    %597 = vmatprep.subr.mxu0 0.0
    %598 = vmatpush1.msra.mxu0 %v78
    %599 = vmatprep.subr.mxu0 0.0
    %600 = vmatpush1.msra.mxu0 %v79
    %601 = vmatprep.subr.mxu0 0.0
    %602 = vmatpush1.msra.mxu0 %v80
    %603 = vmatprep.subr.mxu0 0.0
    %604 = vmatpush1.msra.mxu0 %v81
    %605 = vmatprep.subr.mxu0 0.0
    %606 = vmatpush1.msra.mxu0 %v82
    %607 = vmatprep.subr.mxu0 0.0
    %608 = vmatpush1.msra.mxu0 %v83
    %609 = vmatprep.subr.mxu0 0.0
    %610 = vmatpush1.msra.mxu0 %v84
    %611 = vmatprep.subr.mxu0 0.0
    %612 = vmatpush1.msra.mxu0 %v85
    %613 = vmatprep.subr.mxu0 0.0
    %614 = vmatpush1.msra.mxu0 %v86
    %615 = vmatprep.subr.mxu0 0.0
    %616 = vmatpush1.msra.mxu0 %v87
    %617 = vmatprep.subr.mxu0 0.0
    %618 = vmatpush1.msra.mxu0 %v88
    %619 = vmatprep.subr.mxu0 0.0
    %620 = vmatpush1.msra.mxu0 %v89
    %621 = vmatprep.subr.mxu0 0.0
    %622 = vmatpush1.msra.mxu0 %v90
    %623 = vmatprep.subr.mxu0 0.0
    %624 = vmatpush1.msra.mxu0 %v91
    %625 = vmatprep.subr.mxu0 0.0
    %626 = vmatpush1.msra.mxu0 %v92
    %627 = vmatprep.subr.mxu0 0.0
    %628 = vmatpush1.msra.mxu0 %v93
    %629 = vmatprep.subr.mxu0 0.0
    %630 = vmatpush1.msra.mxu0 %v94
    %631 = vmatprep.subr.mxu0 0.0
    %632 = vmatpush1.msra.mxu0 %v95
    %633 = vmatprep.subr.mxu0 0.0
    %634 = vmatpush1.msra.mxu0 %v96
    %635 = vmatprep.mubr.f32.mxu0 %v400
    %636 = vmatmul.mubr.f32.gmra.mrb[0].mxu0 %v398
    %v637 = vpop.f32.mrb[0].mxu0
    %v638 = vadd.f32 %v568, %v637
    %v639 = vpop.f32.mrb[0].mxu0
    %640 = vdwg.mxu0
    %641 = vmatprep.subr.mxu0 0.0
    %642 = vmatpush1.msra.mxu0 %v97
    %643 = vmatprep.subr.mxu0 0.0
    %644 = vmatpush1.msra.mxu0 %v98
    %645 = vmatprep.subr.mxu0 0.0
    %646 = vmatpush1.msra.mxu0 %v99
    %647 = vmatprep.subr.mxu0 0.0
    %648 = vmatpush1.msra.mxu0 %v100
    %649 = vmatprep.subr.mxu0 0.0
    %650 = vmatpush1.msra.mxu0 %v101
    %651 = vmatprep.subr.mxu0 0.0
    %652 = vmatpush1.msra.mxu0 %v102
    %653 = vmatprep.subr.mxu0 0.0
    %654 = vmatpush1.msra.mxu0 %v103
    %655 = vmatprep.subr.mxu0 0.0
    %656 = vmatpush1.msra.mxu0 %v104
    %657 = vmatprep.subr.mxu0 0.0
    %658 = vmatpush1.msra.mxu0 %v105
    %659 = vmatprep.subr.mxu0 0.0
    %660 = vmatpush1.msra.mxu0 %v106
    %661 = vmatprep.subr.mxu0 0.0
    %662 = vmatpush1.msra.mxu0 %v107
    %663 = vmatprep.subr.mxu0 0.0
    %664 = vmatpush1.msra.mxu0 %v108
    %665 = vmatprep.subr.mxu0 0.0
    %666 = vmatpush1.msra.mxu0 %v109
    %667 = vmatprep.subr.mxu0 0.0
    %668 = vmatpush1.msra.mxu0 %v110
    %669 = vmatprep.subr.mxu0 0.0
    %670 = vmatpush1.msra.mxu0 %v111
    %671 = vmatprep.subr.mxu0 0.0
    %672 = vmatpush1.msra.mxu0 %v112
    %673 = vmatprep.subr.mxu0 0.0
    %674 = vmatpush1.msra.mxu0 %v113
    %675 = vmatprep.subr.mxu0 0.0
    %676 = vmatpush1.msra.mxu0 %v114
    %677 = vmatprep.subr.mxu0 0.0
    %678 = vmatpush1.msra.mxu0 %v115
    %679 = vmatprep.subr.mxu0 0.0
    %680 = vmatpush1.msra.mxu0 %v116
    %681 = vmatprep.subr.mxu0 0.0
    %682 = vmatpush1.msra.mxu0 %v117
    %683 = vmatprep.subr.mxu0 0.0
    %684 = vmatpush1.msra.mxu0 %v118
    %685 = vmatprep.subr.mxu0 0.0
    %686 = vmatpush1.msra.mxu0 %v119
    %687 = vmatprep.subr.mxu0 0.0
    %688 = vmatpush1.msra.mxu0 %v120
    %689 = vmatprep.subr.mxu0 0.0
    %690 = vmatpush1.msra.mxu0 %v121
    %691 = vmatprep.subr.mxu0 0.0
    %692 = vmatpush1.msra.mxu0 %v122
    %693 = vmatprep.subr.mxu0 0.0
    %694 = vmatpush1.msra.mxu0 %v123
    %695 = vmatprep.subr.mxu0 0.0
    %696 = vmatpush1.msra.mxu0 %v124
    %697 = vmatprep.subr.mxu0 0.0
    %698 = vmatpush1.msra.mxu0 %v125
    %699 = vmatprep.subr.mxu0 0.0
    %700 = vmatpush1.msra.mxu0 %v126
    %701 = vmatprep.subr.mxu0 0.0
    %702 = vmatpush1.msra.mxu0 %v127
    %703 = vmatprep.subr.mxu0 0.0
    %704 = vmatpush1.msra.mxu0 %v128
    %705 = vmatprep.mubr.f32.mxu0 %v416
    %706 = vmatmul.mubr.f32.gmra.mrb[0].mxu0 %v408
    %v707 = vpop.f32.mrb[0].mxu0
    %v708 = vadd.f32 %v638, %v707
    %v709 = vpop.f32.mrb[0].mxu0
    %710 = vdwg.mxu0
    %711 = vmatprep.subr.mxu0 0.0
    %712 = vmatpush1.msra.mxu0 %v129
    %713 = vmatprep.subr.mxu0 0.0
    %714 = vmatpush1.msra.mxu0 %v130
    %715 = vmatprep.subr.mxu0 0.0
    %716 = vmatpush1.msra.mxu0 %v131
    %717 = vmatprep.subr.mxu0 0.0
    %718 = vmatpush1.msra.mxu0 %v132
    %719 = vmatprep.subr.mxu0 0.0
    %720 = vmatpush1.msra.mxu0 %v133
    %721 = vmatprep.subr.mxu0 0.0
    %722 = vmatpush1.msra.mxu0 %v134
    %723 = vmatprep.subr.mxu0 0.0
    %724 = vmatpush1.msra.mxu0 %v135
    %725 = vmatprep.subr.mxu0 0.0
    %726 = vmatpush1.msra.mxu0 %v136
    %727 = vmatprep.subr.mxu0 0.0
    %728 = vmatpush1.msra.mxu0 %v137
    %729 = vmatprep.subr.mxu0 0.0
    %730 = vmatpush1.msra.mxu0 %v138
    %731 = vmatprep.subr.mxu0 0.0
    %732 = vmatpush1.msra.mxu0 %v139
    %733 = vmatprep.subr.mxu0 0.0
    %734 = vmatpush1.msra.mxu0 %v140
    %735 = vmatprep.subr.mxu0 0.0
    %736 = vmatpush1.msra.mxu0 %v141
    %737 = vmatprep.subr.mxu0 0.0
    %738 = vmatpush1.msra.mxu0 %v142
    %739 = vmatprep.subr.mxu0 0.0
    %740 = vmatpush1.msra.mxu0 %v143
    %741 = vmatprep.subr.mxu0 0.0
    %742 = vmatpush1.msra.mxu0 %v144
    %743 = vmatprep.subr.mxu0 0.0
    %744 = vmatpush1.msra.mxu0 %v145
    %745 = vmatprep.subr.mxu0 0.0
    %746 = vmatpush1.msra.mxu0 %v146
    %747 = vmatprep.subr.mxu0 0.0
    %748 = vmatpush1.msra.mxu0 %v147
    %749 = vmatprep.subr.mxu0 0.0
    %750 = vmatpush1.msra.mxu0 %v148
    %751 = vmatprep.subr.mxu0 0.0
    %752 = vmatpush1.msra.mxu0 %v149
    %753 = vmatprep.subr.mxu0 0.0
    %754 = vmatpush1.msra.mxu0 %v150
    %755 = vmatprep.subr.mxu0 0.0
    %756 = vmatpush1.msra.mxu0 %v151
    %757 = vmatprep.subr.mxu0 0.0
    %758 = vmatpush1.msra.mxu0 %v152
    %759 = vmatprep.subr.mxu0 0.0
    %760 = vmatpush1.msra.mxu0 %v153
    %761 = vmatprep.subr.mxu0 0.0
    %762 = vmatpush1.msra.mxu0 %v154
    %763 = vmatprep.subr.mxu0 0.0
    %764 = vmatpush1.msra.mxu0 %v155
    %765 = vmatprep.subr.mxu0 0.0
    %766 = vmatpush1.msra.mxu0 %v156
    %767 = vmatprep.subr.mxu0 0.0
    %768 = vmatpush1.msra.mxu0 %v157
    %769 = vmatprep.subr.mxu0 0.0
    %770 = vmatpush1.msra.mxu0 %v158
    %771 = vmatprep.subr.mxu0 0.0
    %772 = vmatpush1.msra.mxu0 %v159
    %773 = vmatprep.subr.mxu0 0.0
    %774 = vmatpush1.msra.mxu0 %v160
    %775 = vmatprep.mubr.f32.mxu0 %v417
    %776 = vmatmul.mubr.f32.gmra.mrb[0].mxu0 %v415
    %v777 = vpop.f32.mrb[0].mxu0
    %v778 = vadd.f32 %v708, %v777
    %v779 = vpop.f32.mrb[0].mxu0
    %780 = vdwg.mxu0
    %781 = vmatprep.subr.mxu0 0.0
    %782 = vmatpush1.msra.mxu0 %v161
    %783 = vmatprep.subr.mxu0 0.0
    %784 = vmatpush1.msra.mxu0 %v162
    %785 = vmatprep.subr.mxu0 0.0
    %786 = vmatpush1.msra.mxu0 %v163
    %787 = vmatprep.subr.mxu0 0.0
    %788 = vmatpush1.msra.mxu0 %v164
    %789 = vmatprep.subr.mxu0 0.0
    %790 = vmatpush1.msra.mxu0 %v165
    %791 = vmatprep.subr.mxu0 0.0
    %792 = vmatpush1.msra.mxu0 %v166
    %793 = vmatprep.subr.mxu0 0.0
    %794 = vmatpush1.msra.mxu0 %v167
    %795 = vmatprep.subr.mxu0 0.0
    %796 = vmatpush1.msra.mxu0 %v168
    %797 = vmatprep.subr.mxu0 0.0
    %798 = vmatpush1.msra.mxu0 %v169
    %799 = vmatprep.subr.mxu0 0.0
    %800 = vmatpush1.msra.mxu0 %v170
    %801 = vmatprep.subr.mxu0 0.0
    %802 = vmatpush1.msra.mxu0 %v171
    %803 = vmatprep.subr.mxu0 0.0
    %804 = vmatpush1.msra.mxu0 %v172
    %805 = vmatprep.subr.mxu0 0.0
    %806 = vmatpush1.msra.mxu0 %v173
    %807 = vmatprep.subr.mxu0 0.0
    %808 = vmatpush1.msra.mxu0 %v174
    %809 = vmatprep.subr.mxu0 0.0
    %810 = vmatpush1.msra.mxu0 %v175
    %811 = vmatprep.subr.mxu0 0.0
    %812 = vmatpush1.msra.mxu0 %v176
    %813 = vmatprep.subr.mxu0 0.0
    %814 = vmatpush1.msra.mxu0 %v177
    %815 = vmatprep.subr.mxu0 0.0
    %816 = vmatpush1.msra.mxu0 %v178
    %817 = vmatprep.subr.mxu0 0.0
    %818 = vmatpush1.msra.mxu0 %v179
    %819 = vmatprep.subr.mxu0 0.0
    %820 = vmatpush1.msra.mxu0 %v180
    %821 = vmatprep.subr.mxu0 0.0
    %822 = vmatpush1.msra.mxu0 %v181
    %823 = vmatprep.subr.mxu0 0.0
    %824 = vmatpush1.msra.mxu0 %v182
    %825 = vmatprep.subr.mxu0 0.0
    %826 = vmatpush1.msra.mxu0 %v183
    %827 = vmatprep.subr.mxu0 0.0
    %828 = vmatpush1.msra.mxu0 %v184
    %829 = vmatprep.subr.mxu0 0.0
    %830 = vmatpush1.msra.mxu0 %v185
    %831 = vmatprep.subr.mxu0 0.0
    %832 = vmatpush1.msra.mxu0 %v186
    %833 = vmatprep.subr.mxu0 0.0
    %834 = vmatpush1.msra.mxu0 %v187
    %835 = vmatprep.subr.mxu0 0.0
    %836 = vmatpush1.msra.mxu0 %v188
    %837 = vmatprep.subr.mxu0 0.0
    %838 = vmatpush1.msra.mxu0 %v189
    %839 = vmatprep.subr.mxu0 0.0
    %840 = vmatpush1.msra.mxu0 %v190
    %841 = vmatprep.subr.mxu0 0.0
    %842 = vmatpush1.msra.mxu0 %v191
    %843 = vmatprep.subr.mxu0 0.0
    %844 = vmatpush1.msra.mxu0 %v192
    %845 = vmatprep.mubr.f32.mxu0 %v433
    %846 = vmatmul.mubr.f32.gmra.mrb[0].mxu0 %v425
    %v847 = vpop.f32.mrb[0].mxu0
    %v848 = vadd.f32 %v778, %v847
    %v849 = vpop.f32.mrb[0].mxu0
    %850 = vdwg.mxu0
    %851 = vmatprep.subr.mxu0 0.0
    %852 = vmatpush1.msra.mxu0 %v193
    %853 = vmatprep.subr.mxu0 0.0
    %854 = vmatpush1.msra.mxu0 %v194
    %855 = vmatprep.subr.mxu0 0.0
    %856 = vmatpush1.msra.mxu0 %v195
    %857 = vmatprep.subr.mxu0 0.0
    %858 = vmatpush1.msra.mxu0 %v196
    %859 = vmatprep.subr.mxu0 0.0
    %860 = vmatpush1.msra.mxu0 %v197
    %861 = vmatprep.subr.mxu0 0.0
    %862 = vmatpush1.msra.mxu0 %v198
    %863 = vmatprep.subr.mxu0 0.0
    %864 = vmatpush1.msra.mxu0 %v199
    %865 = vmatprep.subr.mxu0 0.0
    %866 = vmatpush1.msra.mxu0 %v200
    %867 = vmatprep.subr.mxu0 0.0
    %868 = vmatpush1.msra.mxu0 %v201
    %869 = vmatprep.subr.mxu0 0.0
    %870 = vmatpush1.msra.mxu0 %v202
    %871 = vmatprep.subr.mxu0 0.0
    %872 = vmatpush1.msra.mxu0 %v203
    %873 = vmatprep.subr.mxu0 0.0
    %874 = vmatpush1.msra.mxu0 %v204
    %875 = vmatprep.subr.mxu0 0.0
    %876 = vmatpush1.msra.mxu0 %v205
    %877 = vmatprep.subr.mxu0 0.0
    %878 = vmatpush1.msra.mxu0 %v206
    %879 = vmatprep.subr.mxu0 0.0
    %880 = vmatpush1.msra.mxu0 %v207
    %881 = vmatprep.subr.mxu0 0.0
    %882 = vmatpush1.msra.mxu0 %v208
    %883 = vmatprep.subr.mxu0 0.0
    %884 = vmatpush1.msra.mxu0 %v209
    %885 = vmatprep.subr.mxu0 0.0
    %886 = vmatpush1.msra.mxu0 %v210
    %887 = vmatprep.subr.mxu0 0.0
    %888 = vmatpush1.msra.mxu0 %v211
    %889 = vmatprep.subr.mxu0 0.0
    %890 = vmatpush1.msra.mxu0 %v212
    %891 = vmatprep.subr.mxu0 0.0
    %892 = vmatpush1.msra.mxu0 %v213
    %893 = vmatprep.subr.mxu0 0.0
    %894 = vmatpush1.msra.mxu0 %v214
    %895 = vmatprep.subr.mxu0 0.0
    %896 = vmatpush1.msra.mxu0 %v215
    %897 = vmatprep.subr.mxu0 0.0
    %898 = vmatpush1.msra.mxu0 %v216
    %899 = vmatprep.subr.mxu0 0.0
    %900 = vmatpush1.msra.mxu0 %v217
    %901 = vmatprep.subr.mxu0 0.0
    %902 = vmatpush1.msra.mxu0 %v218
    %903 = vmatprep.subr.mxu0 0.0
    %904 = vmatpush1.msra.mxu0 %v219
    %905 = vmatprep.subr.mxu0 0.0
    %906 = vmatpush1.msra.mxu0 %v220
    %907 = vmatprep.subr.mxu0 0.0
    %908 = vmatpush1.msra.mxu0 %v221
    %909 = vmatprep.subr.mxu0 0.0
    %910 = vmatpush1.msra.mxu0 %v222
    %911 = vmatprep.subr.mxu0 0.0
    %912 = vmatpush1.msra.mxu0 %v223
    %913 = vmatprep.subr.mxu0 0.0
    %914 = vmatpush1.msra.mxu0 %v224
    %915 = vmatprep.mubr.f32.mxu0 %v434
    %916 = vmatmul.mubr.f32.gmra.mrb[0].mxu0 %v432
    %v917 = vpop.f32.mrb[0].mxu0
    %v918 = vadd.f32 %v848, %v917
    %v919 = vpop.f32.mrb[0].mxu0
    %920 = vdwg.mxu0
    %921 = vmatprep.subr.mxu0 0.0
    %922 = vmatpush1.msra.mxu0 %v225
    %923 = vmatprep.subr.mxu0 0.0
    %924 = vmatpush1.msra.mxu0 %v226
    %925 = vmatprep.subr.mxu0 0.0
    %926 = vmatpush1.msra.mxu0 %v227
    %927 = vmatprep.subr.mxu0 0.0
    %928 = vmatpush1.msra.mxu0 %v228
    %929 = vmatprep.subr.mxu0 0.0
    %930 = vmatpush1.msra.mxu0 %v229
    %931 = vmatprep.subr.mxu0 0.0
    %932 = vmatpush1.msra.mxu0 %v230
    %933 = vmatprep.subr.mxu0 0.0
    %934 = vmatpush1.msra.mxu0 %v231
    %935 = vmatprep.subr.mxu0 0.0
    %936 = vmatpush1.msra.mxu0 %v232
    %937 = vmatprep.subr.mxu0 0.0
    %938 = vmatpush1.msra.mxu0 %v233
    %939 = vmatprep.subr.mxu0 0.0
    %940 = vmatpush1.msra.mxu0 %v234
    %941 = vmatprep.subr.mxu0 0.0
    %942 = vmatpush1.msra.mxu0 %v235
    %943 = vmatprep.subr.mxu0 0.0
    %944 = vmatpush1.msra.mxu0 %v236
    %945 = vmatprep.subr.mxu0 0.0
    %946 = vmatpush1.msra.mxu0 %v237
    %947 = vmatprep.subr.mxu0 0.0
    %948 = vmatpush1.msra.mxu0 %v238
    %949 = vmatprep.subr.mxu0 0.0
    %950 = vmatpush1.msra.mxu0 %v239
    %951 = vmatprep.subr.mxu0 0.0
    %952 = vmatpush1.msra.mxu0 %v240
    %953 = vmatprep.subr.mxu0 0.0
    %954 = vmatpush1.msra.mxu0 %v241
    %955 = vmatprep.subr.mxu0 0.0
    %956 = vmatpush1.msra.mxu0 %v242
    %957 = vmatprep.subr.mxu0 0.0
    %958 = vmatpush1.msra.mxu0 %v243
    %959 = vmatprep.subr.mxu0 0.0
    %960 = vmatpush1.msra.mxu0 %v244
    %961 = vmatprep.subr.mxu0 0.0
    %962 = vmatpush1.msra.mxu0 %v245
    %963 = vmatprep.subr.mxu0 0.0
    %964 = vmatpush1.msra.mxu0 %v246
    %965 = vmatprep.subr.mxu0 0.0
    %966 = vmatpush1.msra.mxu0 %v247
    %967 = vmatprep.subr.mxu0 0.0
    %968 = vmatpush1.msra.mxu0 %v248
    %969 = vmatprep.subr.mxu0 0.0
    %970 = vmatpush1.msra.mxu0 %v249
    %971 = vmatprep.subr.mxu0 0.0
    %972 = vmatpush1.msra.mxu0 %v250
    %973 = vmatprep.subr.mxu0 0.0
    %974 = vmatpush1.msra.mxu0 %v251
    %975 = vmatprep.subr.mxu0 0.0
    %976 = vmatpush1.msra.mxu0 %v252
    %977 = vmatprep.subr.mxu0 0.0
    %978 = vmatpush1.msra.mxu0 %v253
    %979 = vmatprep.subr.mxu0 0.0
    %980 = vmatpush1.msra.mxu0 %v254
    %981 = vmatprep.subr.mxu0 0.0
    %982 = vmatpush1.msra.mxu0 %v255
    %983 = vmatprep.subr.mxu0 0.0
    %984 = vmatpush1.msra.mxu0 %v256
    %985 = vmatprep.mubr.f32.mxu0 %v450
    %986 = vmatmul.mubr.f32.gmra.mrb[0].mxu0 %v442
    %v987 = vpop.f32.mrb[0].mxu0
    %v988 = vadd.f32 %v918, %v987
    %v989 = vpop.f32.mrb[0].mxu0
    %990 = vdwg.mxu0
    %991 = vmatprep.subr.mxu0 0.0
    %992 = vmatpush1.msra.mxu0 %v257
    %993 = vmatprep.subr.mxu0 0.0
    %994 = vmatpush1.msra.mxu0 %v258
    %995 = vmatprep.subr.mxu0 0.0
    %996 = vmatpush1.msra.mxu0 %v259
    %997 = vmatprep.subr.mxu0 0.0
    %998 = vmatpush1.msra.mxu0 %v260
    %999 = vmatprep.subr.mxu0 0.0
    %1000 = vmatpush1.msra.mxu0 %v261
    %1001 = vmatprep.subr.mxu0 0.0
    %1002 = vmatpush1.msra.mxu0 %v262
    %1003 = vmatprep.subr.mxu0 0.0
    %1004 = vmatpush1.msra.mxu0 %v263
    %1005 = vmatprep.subr.mxu0 0.0
    %1006 = vmatpush1.msra.mxu0 %v264
    %1007 = vmatprep.subr.mxu0 0.0
    %1008 = vmatpush1.msra.mxu0 %v265
    %1009 = vmatprep.subr.mxu0 0.0
    %1010 = vmatpush1.msra.mxu0 %v266
    %1011 = vmatprep.subr.mxu0 0.0
    %1012 = vmatpush1.msra.mxu0 %v267
    %1013 = vmatprep.subr.mxu0 0.0
    %1014 = vmatpush1.msra.mxu0 %v268
    %1015 = vmatprep.subr.mxu0 0.0
    %1016 = vmatpush1.msra.mxu0 %v269
    %1017 = vmatprep.subr.mxu0 0.0
    %1018 = vmatpush1.msra.mxu0 %v270
    %1019 = vmatprep.subr.mxu0 0.0
    %1020 = vmatpush1.msra.mxu0 %v271
    %1021 = vmatprep.subr.mxu0 0.0
    %1022 = vmatpush1.msra.mxu0 %v272
    %1023 = vmatprep.subr.mxu0 0.0
    %1024 = vmatpush1.msra.mxu0 %v273
    %1025 = vmatprep.subr.mxu0 0.0
    %1026 = vmatpush1.msra.mxu0 %v274
    %1027 = vmatprep.subr.mxu0 0.0
    %1028 = vmatpush1.msra.mxu0 %v275
    %1029 = vmatprep.subr.mxu0 0.0
    %1030 = vmatpush1.msra.mxu0 %v276
    %1031 = vmatprep.subr.mxu0 0.0
    %1032 = vmatpush1.msra.mxu0 %v277
    %1033 = vmatprep.subr.mxu0 0.0
    %1034 = vmatpush1.msra.mxu0 %v278
    %1035 = vmatprep.subr.mxu0 0.0
    %1036 = vmatpush1.msra.mxu0 %v279
    %1037 = vmatprep.subr.mxu0 0.0
    %1038 = vmatpush1.msra.mxu0 %v280
    %1039 = vmatprep.subr.mxu0 0.0
    %1040 = vmatpush1.msra.mxu0 %v281
    %1041 = vmatprep.subr.mxu0 0.0
    %1042 = vmatpush1.msra.mxu0 %v282
    %1043 = vmatprep.subr.mxu0 0.0
    %1044 = vmatpush1.msra.mxu0 %v283
    %1045 = vmatprep.subr.mxu0 0.0
    %1046 = vmatpush1.msra.mxu0 %v284
    %1047 = vmatprep.subr.mxu0 0.0
    %1048 = vmatpush1.msra.mxu0 %v285
    %1049 = vmatprep.subr.mxu0 0.0
    %1050 = vmatpush1.msra.mxu0 %v286
    %1051 = vmatprep.subr.mxu0 0.0
    %1052 = vmatpush1.msra.mxu0 %v287
    %1053 = vmatprep.subr.mxu0 0.0
    %1054 = vmatpush1.msra.mxu0 %v288
    %1055 = vmatprep.mubr.f32.mxu0 %v451
    %1056 = vmatmul.mubr.f32.gmra.mrb[0].mxu0 %v449
    %v1057 = vpop.f32.mrb[0].mxu0
    %v1058 = vadd.f32 %v988, %v1057
    %v1059 = vpop.f32.mrb[0].mxu0
    %1060 = vdwg.mxu0
    %1061 = vmatprep.subr.mxu0 0.0
    %1062 = vmatpush1.msra.mxu0 %v289
    %1063 = vmatprep.subr.mxu0 0.0
    %1064 = vmatpush1.msra.mxu0 %v290
    %1065 = vmatprep.subr.mxu0 0.0
    %1066 = vmatpush1.msra.mxu0 %v291
    %1067 = vmatprep.subr.mxu0 0.0
    %1068 = vmatpush1.msra.mxu0 %v292
    %1069 = vmatprep.subr.mxu0 0.0
    %1070 = vmatpush1.msra.mxu0 %v293
    %1071 = vmatprep.subr.mxu0 0.0
    %1072 = vmatpush1.msra.mxu0 %v294
    %1073 = vmatprep.subr.mxu0 0.0
    %1074 = vmatpush1.msra.mxu0 %v295
    %1075 = vmatprep.subr.mxu0 0.0
    %1076 = vmatpush1.msra.mxu0 %v296
    %1077 = vmatprep.subr.mxu0 0.0
    %1078 = vmatpush1.msra.mxu0 %v297
    %1079 = vmatprep.subr.mxu0 0.0
    %1080 = vmatpush1.msra.mxu0 %v298
    %1081 = vmatprep.subr.mxu0 0.0
    %1082 = vmatpush1.msra.mxu0 %v299
    %1083 = vmatprep.subr.mxu0 0.0
    %1084 = vmatpush1.msra.mxu0 %v300
    %1085 = vmatprep.subr.mxu0 0.0
    %1086 = vmatpush1.msra.mxu0 %v301
    %1087 = vmatprep.subr.mxu0 0.0
    %1088 = vmatpush1.msra.mxu0 %v302
    %1089 = vmatprep.subr.mxu0 0.0
    %1090 = vmatpush1.msra.mxu0 %v303
    %1091 = vmatprep.subr.mxu0 0.0
    %1092 = vmatpush1.msra.mxu0 %v304
    %1093 = vmatprep.subr.mxu0 0.0
    %1094 = vmatpush1.msra.mxu0 %v305
    %1095 = vmatprep.subr.mxu0 0.0
    %1096 = vmatpush1.msra.mxu0 %v306
    %1097 = vmatprep.subr.mxu0 0.0
    %1098 = vmatpush1.msra.mxu0 %v307
    %1099 = vmatprep.subr.mxu0 0.0
    %1100 = vmatpush1.msra.mxu0 %v308
    %1101 = vmatprep.subr.mxu0 0.0
    %1102 = vmatpush1.msra.mxu0 %v309
    %1103 = vmatprep.subr.mxu0 0.0
    %1104 = vmatpush1.msra.mxu0 %v310
    %1105 = vmatprep.subr.mxu0 0.0
    %1106 = vmatpush1.msra.mxu0 %v311
    %1107 = vmatprep.subr.mxu0 0.0
    %1108 = vmatpush1.msra.mxu0 %v312
    %1109 = vmatprep.subr.mxu0 0.0
    %1110 = vmatpush1.msra.mxu0 %v313
    %1111 = vmatprep.subr.mxu0 0.0
    %1112 = vmatpush1.msra.mxu0 %v314
    %1113 = vmatprep.subr.mxu0 0.0
    %1114 = vmatpush1.msra.mxu0 %v315
    %1115 = vmatprep.subr.mxu0 0.0
    %1116 = vmatpush1.msra.mxu0 %v316
    %1117 = vmatprep.subr.mxu0 0.0
    %1118 = vmatpush1.msra.mxu0 %v317
    %1119 = vmatprep.subr.mxu0 0.0
    %1120 = vmatpush1.msra.mxu0 %v318
    %1121 = vmatprep.subr.mxu0 0.0
    %1122 = vmatpush1.msra.mxu0 %v319
    %1123 = vmatprep.subr.mxu0 0.0
    %1124 = vmatpush1.msra.mxu0 %v320
    %1125 = vmatprep.mubr.f32.mxu0 %v467
    %1126 = vmatmul.mubr.f32.gmra.mrb[0].mxu0 %v459
    %v1127 = vpop.f32.mrb[0].mxu0
    %v1128 = vadd.f32 %v1058, %v1127
    %v1129 = vpop.f32.mrb[0].mxu0
    %1130 = vdwg.mxu0
    %1131 = vmatprep.subr.mxu0 0.0
    %1132 = vmatpush1.msra.mxu0 %v321
    %1133 = vmatprep.subr.mxu0 0.0
    %1134 = vmatpush1.msra.mxu0 %v322
    %1135 = vmatprep.subr.mxu0 0.0
    %1136 = vmatpush1.msra.mxu0 %v323
    %1137 = vmatprep.subr.mxu0 0.0
    %1138 = vmatpush1.msra.mxu0 %v324
    %1139 = vmatprep.subr.mxu0 0.0
    %1140 = vmatpush1.msra.mxu0 %v325
    %1141 = vmatprep.subr.mxu0 0.0
    %1142 = vmatpush1.msra.mxu0 %v326
    %1143 = vmatprep.subr.mxu0 0.0
    %1144 = vmatpush1.msra.mxu0 %v327
    %1145 = vmatprep.subr.mxu0 0.0
    %1146 = vmatpush1.msra.mxu0 %v328
    %1147 = vmatprep.subr.mxu0 0.0
    %1148 = vmatpush1.msra.mxu0 %v329
    %1149 = vmatprep.subr.mxu0 0.0
    %1150 = vmatpush1.msra.mxu0 %v330
    %1151 = vmatprep.subr.mxu0 0.0
    %1152 = vmatpush1.msra.mxu0 %v331
    %1153 = vmatprep.subr.mxu0 0.0
    %1154 = vmatpush1.msra.mxu0 %v332
    %1155 = vmatprep.subr.mxu0 0.0
    %1156 = vmatpush1.msra.mxu0 %v333
    %1157 = vmatprep.subr.mxu0 0.0
    %1158 = vmatpush1.msra.mxu0 %v334
    %1159 = vmatprep.subr.mxu0 0.0
    %1160 = vmatpush1.msra.mxu0 %v335
    %1161 = vmatprep.subr.mxu0 0.0
    %1162 = vmatpush1.msra.mxu0 %v336
    %1163 = vmatprep.subr.mxu0 0.0
    %1164 = vmatpush1.msra.mxu0 %v337
    %1165 = vmatprep.subr.mxu0 0.0
    %1166 = vmatpush1.msra.mxu0 %v338
    %1167 = vmatprep.subr.mxu0 0.0
    %1168 = vmatpush1.msra.mxu0 %v339
    %1169 = vmatprep.subr.mxu0 0.0
    %1170 = vmatpush1.msra.mxu0 %v340
    %1171 = vmatprep.subr.mxu0 0.0
    %1172 = vmatpush1.msra.mxu0 %v341
    %1173 = vmatprep.subr.mxu0 0.0
    %1174 = vmatpush1.msra.mxu0 %v342
    %1175 = vmatprep.subr.mxu0 0.0
    %1176 = vmatpush1.msra.mxu0 %v343
    %1177 = vmatprep.subr.mxu0 0.0
    %1178 = vmatpush1.msra.mxu0 %v344
    %1179 = vmatprep.subr.mxu0 0.0
    %1180 = vmatpush1.msra.mxu0 %v345
    %1181 = vmatprep.subr.mxu0 0.0
    %1182 = vmatpush1.msra.mxu0 %v346
    %1183 = vmatprep.subr.mxu0 0.0
    %1184 = vmatpush1.msra.mxu0 %v347
    %1185 = vmatprep.subr.mxu0 0.0
    %1186 = vmatpush1.msra.mxu0 %v348
    %1187 = vmatprep.subr.mxu0 0.0
    %1188 = vmatpush1.msra.mxu0 %v349
    %1189 = vmatprep.subr.mxu0 0.0
    %1190 = vmatpush1.msra.mxu0 %v350
    %1191 = vmatprep.subr.mxu0 0.0
    %1192 = vmatpush1.msra.mxu0 %v351
    %1193 = vmatprep.subr.mxu0 0.0
    %1194 = vmatpush1.msra.mxu0 %v352
    %1195 = vmatprep.mubr.f32.mxu0 %v468
    %1196 = vmatmul.mubr.f32.gmra.mrb[0].mxu0 %v466
    %v1197 = vpop.f32.mrb[0].mxu0
    %v1198 = vadd.f32 %v1128, %v1197
    %v1199 = vpop.f32.mrb[0].mxu0
    %1200 = vdwg.mxu0
    %1201 = vmatprep.subr.mxu0 0.0
    %1202 = vmatpush1.msra.mxu0 %v353
    %1203 = vmatprep.subr.mxu0 0.0
    %1204 = vmatpush1.msra.mxu0 %v354
    %1205 = vmatprep.subr.mxu0 0.0
    %1206 = vmatpush1.msra.mxu0 %v355
    %1207 = vmatprep.subr.mxu0 0.0
    %1208 = vmatpush1.msra.mxu0 %v356
    %1209 = vmatprep.subr.mxu0 0.0
    %1210 = vmatpush1.msra.mxu0 %v357
    %1211 = vmatprep.subr.mxu0 0.0
    %1212 = vmatpush1.msra.mxu0 %v358
    %1213 = vmatprep.subr.mxu0 0.0
    %1214 = vmatpush1.msra.mxu0 %v359
    %1215 = vmatprep.subr.mxu0 0.0
    %1216 = vmatpush1.msra.mxu0 %v360
    %1217 = vmatprep.subr.mxu0 0.0
    %1218 = vmatpush1.msra.mxu0 %v361
    %1219 = vmatprep.subr.mxu0 0.0
    %1220 = vmatpush1.msra.mxu0 %v362
    %1221 = vmatprep.subr.mxu0 0.0
    %1222 = vmatpush1.msra.mxu0 %v363
    %1223 = vmatprep.subr.mxu0 0.0
    %1224 = vmatpush1.msra.mxu0 %v364
    %1225 = vmatprep.subr.mxu0 0.0
    %1226 = vmatpush1.msra.mxu0 %v365
    %1227 = vmatprep.subr.mxu0 0.0
    %1228 = vmatpush1.msra.mxu0 %v366
    %1229 = vmatprep.subr.mxu0 0.0
    %1230 = vmatpush1.msra.mxu0 %v367
    %1231 = vmatprep.subr.mxu0 0.0
    %1232 = vmatpush1.msra.mxu0 %v368
    %1233 = vmatprep.subr.mxu0 0.0
    %1234 = vmatpush1.msra.mxu0 %v369
    %1235 = vmatprep.subr.mxu0 0.0
    %1236 = vmatpush1.msra.mxu0 %v370
    %1237 = vmatprep.subr.mxu0 0.0
    %1238 = vmatpush1.msra.mxu0 0.0
    %1239 = vmatprep.subr.mxu0 0.0
    %1240 = vmatpush1.msra.mxu0 0.0
    %1241 = vmatprep.subr.mxu0 0.0
    %1242 = vmatpush1.msra.mxu0 0.0
    %1243 = vmatprep.subr.mxu0 0.0
    %1244 = vmatpush1.msra.mxu0 0.0
    %1245 = vmatprep.subr.mxu0 0.0
    %1246 = vmatpush1.msra.mxu0 0.0
    %1247 = vmatprep.subr.mxu0 0.0
    %1248 = vmatpush1.msra.mxu0 0.0
    %1249 = vmatprep.subr.mxu0 0.0
    %1250 = vmatpush1.msra.mxu0 0.0
    %1251 = vmatprep.subr.mxu0 0.0
    %1252 = vmatpush1.msra.mxu0 0.0
    %1253 = vmatprep.subr.mxu0 0.0
    %1254 = vmatpush1.msra.mxu0 0.0
    %1255 = vmatprep.subr.mxu0 0.0
    %1256 = vmatpush1.msra.mxu0 0.0
    %1257 = vmatprep.subr.mxu0 0.0
    %1258 = vmatpush1.msra.mxu0 0.0
    %1259 = vmatprep.subr.mxu0 0.0
    %1260 = vmatpush1.msra.mxu0 0.0
    %1261 = vmatprep.subr.mxu0 0.0
    %1262 = vmatpush1.msra.mxu0 0.0
    %1263 = vmatprep.subr.mxu0 0.0
    %1264 = vmatpush1.msra.mxu0 0.0
    %1265 = vmatprep.mubr.f32.mxu0 %v499
    %1266 = vmatmul.mubr.f32.gmra.mrb[0].mxu0 %v475
    %v1267 = vpop.f32.mrb[0].mxu0
    %v1268 = vadd.f32 %v1198, %v1267
    %v1269 = vpop.f32.mrb[0].mxu0
    %1270 = vdwg.mxu0
    %v1271 = vmax.f32 %v1268, 0.0
    %v1272 = vld [vmem:[%s3] sm:$0xff]
    %v1273 = vld [vmem:[%s3 + $0x8] sm:$0xff]
    %v1274 = vld [vmem:[%s3 + $0x10] sm:$0xff]
    %v1275 = vld [vmem:[%s3 + $0x18] sm:$0xff]
    %v1276 = vld [vmem:[%s3 + $0x20] sm:$0xff]
    %v1277 = vld [vmem:[%s3 + $0x28] sm:$0xff]
    %v1278 = vld [vmem:[%s3 + $0x30] sm:$0xff]
    %v1279 = vld [vmem:[%s3 + $0x38] sm:$0xff]
    %v1280 = vld [vmem:[%s3 + $0x40] sm:$0xff]
    %v1281 = vld [vmem:[%s3 + $0x48] sm:$0xff]
    %v1282 = vld [vmem:[%s3 + $0x50] sm:$0xff]
    %v1283 = vld [vmem:[%s3 + $0x58] sm:$0xff]
    %v1284 = vld [vmem:[%s3 + $0x60] sm:$0xff]
    %v1285 = vld [vmem:[%s3 + $0x68] sm:$0xff]
    %v1286 = vld [vmem:[%s3 + $0x70] sm:$0xff]
    %v1287 = vld [vmem:[%s4] sm:$0x1]
    %v1289 = vlaneseq
    %v1290 = vshrl.u32 %v1289, 7
    %v1291 = vsub.s32 0, %v1290
    %v1292 = vrot.slane %v1287, %v1291
    %vm1294 = vcmask 982016
    %v1296 = vsel %vm1294, %v1271, 0
    %1298 = vmatprep.subr.mxu0 0.0
    %1299 = vmatpush1.msra.mxu0 %v1272
    %1300 = vmatprep.subr.mxu0 0.0
    %1301 = vmatpush1.msra.mxu0 %v1273
    %1302 = vmatprep.subr.mxu0 0.0
    %1303 = vmatpush1.msra.mxu0 %v1274
    %1304 = vmatprep.subr.mxu0 0.0
    %1305 = vmatpush1.msra.mxu0 %v1275
    %1306 = vmatprep.subr.mxu0 0.0
    %1307 = vmatpush1.msra.mxu0 %v1276
    %1308 = vmatprep.subr.mxu0 0.0
    %1309 = vmatpush1.msra.mxu0 %v1277
    %1310 = vmatprep.subr.mxu0 0.0
    %1311 = vmatpush1.msra.mxu0 %v1278
    %1312 = vmatprep.subr.mxu0 0.0
    %1313 = vmatpush1.msra.mxu0 %v1279
    %1314 = vmatprep.subr.mxu0 0.0
    %1315 = vmatpush1.msra.mxu0 %v1280
    %1316 = vmatprep.subr.mxu0 0.0
    %1317 = vmatpush1.msra.mxu0 %v1281
    %1318 = vmatprep.subr.mxu0 0.0
    %1319 = vmatpush1.msra.mxu0 %v1282
    %1320 = vmatprep.subr.mxu0 0.0
    %1321 = vmatpush1.msra.mxu0 %v1283
    %1322 = vmatprep.subr.mxu0 0.0
    %1323 = vmatpush1.msra.mxu0 %v1284
    %1324 = vmatprep.subr.mxu0 0.0
    %1325 = vmatpush1.msra.mxu0 %v1285
    %1326 = vmatprep.subr.mxu0 0.0
    %1327 = vmatpush1.msra.mxu0 %v1286
    %1328 = vmatprep.subr.mxu0 0.0
    %1329 = vmatpush1.msra.mxu0 0.0
    %1330 = vmatprep.subr.mxu0 0.0
    %1331 = vmatpush1.msra.mxu0 0.0
    %1332 = vmatprep.subr.mxu0 0.0
    %1333 = vmatpush1.msra.mxu0 0.0
    %1334 = vmatprep.subr.mxu0 0.0
    %1335 = vmatpush1.msra.mxu0 0.0
    %1336 = vmatprep.subr.mxu0 0.0
    %1337 = vmatpush1.msra.mxu0 0.0
    %1338 = vmatprep.subr.mxu0 0.0
    %1339 = vmatpush1.msra.mxu0 0.0
    %1340 = vmatprep.subr.mxu0 0.0
    %1341 = vmatpush1.msra.mxu0 0.0
    %1342 = vmatprep.subr.mxu0 0.0
    %1343 = vmatpush1.msra.mxu0 0.0
    %1344 = vmatprep.subr.mxu0 0.0
    %1345 = vmatpush1.msra.mxu0 0.0
    %1346 = vmatprep.subr.mxu0 0.0
    %1347 = vmatpush1.msra.mxu0 0.0
    %1348 = vmatprep.subr.mxu0 0.0
    %1349 = vmatpush1.msra.mxu0 0.0
    %1350 = vmatprep.subr.mxu0 0.0
    %1351 = vmatpush1.msra.mxu0 0.0
    %1352 = vmatprep.subr.mxu0 0.0
    %1353 = vmatpush1.msra.mxu0 0.0
    %1354 = vmatprep.subr.mxu0 0.0
    %1355 = vmatpush1.msra.mxu0 0.0
    %1356 = vmatprep.subr.mxu0 0.0
    %1357 = vmatpush1.msra.mxu0 0.0
    %1358 = vmatprep.subr.mxu0 0.0
    %1359 = vmatpush1.msra.mxu0 0.0
    %1360 = vmatprep.subr.mxu0 0.0
    %1361 = vmatpush1.msra.mxu0 0.0
    %1362 = vmatprep.mubr.f32.mxu0 0.0
    %1363 = vmatmul.mubr.f32.gmra.mrb[0].mxu0 %v1296
    %v1364 = vpop.f32.mrb[0].mxu0
    %v1365 = vadd.f32 %v1292, %v1364
    %v1366 = vpop.f32.mrb[0].mxu0
    %1367 = vdwg.mxu0
    %v1368 = vmax.f32 %v1365, 0.0
    %v1369 = vld [vmem:[%s5] sm:$0xff]
    %v1370 = vld [vmem:[%s5 + $0x8] sm:$0xff]
    %v1371 = vld [vmem:[%s5 + $0x10] sm:$0xff]
    %v1372 = vld [vmem:[%s5 + $0x18] sm:$0xff]
    %v1373 = vld [vmem:[%s5 + $0x20] sm:$0xff]
    %v1374 = vld [vmem:[%s5 + $0x28] sm:$0xff]
    %v1375 = vld [vmem:[%s5 + $0x30] sm:$0xff]
    %v1376 = vld [vmem:[%s5 + $0x38] sm:$0xff]
    %v1377 = vld [vmem:[%s5 + $0x40] sm:$0xff]
    %v1378 = vld [vmem:[%s5 + $0x48] sm:$0xff]
    %v1379 = vld [vmem:[%s5 + $0x50] sm:$0xf]
    %v1380 = vld [vmem:[%s6] sm:$0x1]
    %v1382 = vlaneseq
    %v1383 = vshrl.u32 %v1382, 7
    %v1384 = vsub.s32 0, %v1383
    %v1385 = vrot.slane %v1380, %v1384
    %vm1387 = vcmask 687104
    %v1389 = vsel %vm1387, %v1368, 0
    %vm1391 = vcmask 1043456
    %v1393 = vsel %vm1391, %v1379, 0
    %1395 = vmatprep.subr.mxu0 0.0
    %1396 = vmatpush1.msra.mxu0 %v1369
    %1397 = vmatprep.subr.mxu0 0.0
    %1398 = vmatpush1.msra.mxu0 %v1370
    %1399 = vmatprep.subr.mxu0 0.0
    %1400 = vmatpush1.msra.mxu0 %v1371
    %1401 = vmatprep.subr.mxu0 0.0
    %1402 = vmatpush1.msra.mxu0 %v1372
    %1403 = vmatprep.subr.mxu0 0.0
    %1404 = vmatpush1.msra.mxu0 %v1373
    %1405 = vmatprep.subr.mxu0 0.0
    %1406 = vmatpush1.msra.mxu0 %v1374
    %1407 = vmatprep.subr.mxu0 0.0
    %1408 = vmatpush1.msra.mxu0 %v1375
    %1409 = vmatprep.subr.mxu0 0.0
    %1410 = vmatpush1.msra.mxu0 %v1376
    %1411 = vmatprep.subr.mxu0 0.0
    %1412 = vmatpush1.msra.mxu0 %v1377
    %1413 = vmatprep.subr.mxu0 0.0
    %1414 = vmatpush1.msra.mxu0 %v1378
    %1415 = vmatprep.subr.mxu0 0.0
    %1416 = vmatpush1.msra.mxu0 %v1393
    %1417 = vmatprep.subr.mxu0 0.0
    %1418 = vmatpush1.msra.mxu0 0.0
    %1419 = vmatprep.subr.mxu0 0.0
    %1420 = vmatpush1.msra.mxu0 0.0
    %1421 = vmatprep.subr.mxu0 0.0
    %1422 = vmatpush1.msra.mxu0 0.0
    %1423 = vmatprep.subr.mxu0 0.0
    %1424 = vmatpush1.msra.mxu0 0.0
    %1425 = vmatprep.subr.mxu0 0.0
    %1426 = vmatpush1.msra.mxu0 0.0
    %1427 = vmatprep.subr.mxu0 0.0
    %1428 = vmatpush1.msra.mxu0 0.0
    %1429 = vmatprep.subr.mxu0 0.0
    %1430 = vmatpush1.msra.mxu0 0.0
    %1431 = vmatprep.subr.mxu0 0.0
    %1432 = vmatpush1.msra.mxu0 0.0
    %1433 = vmatprep.subr.mxu0 0.0
    %1434 = vmatpush1.msra.mxu0 0.0
    %1435 = vmatprep.subr.mxu0 0.0
    %1436 = vmatpush1.msra.mxu0 0.0
    %1437 = vmatprep.subr.mxu0 0.0
    %1438 = vmatpush1.msra.mxu0 0.0
    %1439 = vmatprep.subr.mxu0 0.0
    %1440 = vmatpush1.msra.mxu0 0.0
    %1441 = vmatprep.subr.mxu0 0.0
    %1442 = vmatpush1.msra.mxu0 0.0
    %1443 = vmatprep.subr.mxu0 0.0
    %1444 = vmatpush1.msra.mxu0 0.0
    %1445 = vmatprep.subr.mxu0 0.0
    %1446 = vmatpush1.msra.mxu0 0.0
    %1447 = vmatprep.subr.mxu0 0.0
    %1448 = vmatpush1.msra.mxu0 0.0
    %1449 = vmatprep.subr.mxu0 0.0
    %1450 = vmatpush1.msra.mxu0 0.0
    %1451 = vmatprep.subr.mxu0 0.0
    %1452 = vmatpush1.msra.mxu0 0.0
    %1453 = vmatprep.subr.mxu0 0.0
    %1454 = vmatpush1.msra.mxu0 0.0
    %1455 = vmatprep.subr.mxu0 0.0
    %1456 = vmatpush1.msra.mxu0 0.0
    %1457 = vmatprep.subr.mxu0 0.0
    %1458 = vmatpush1.msra.mxu0 0.0
    %1459 = vmatprep.mubr.f32.mxu0 0.0
    %1460 = vmatmul.mubr.f32.gmra.mrb[0].mxu0 %v1389
    %v1461 = vpop.f32.mrb[0].mxu0
    %v1462 = vadd.f32 %v1385, %v1461
    %v1463 = vpop.f32.mrb[0].mxu0
    %1464 = vdwg.mxu0
    %vm1465 = vcmask 74752
    %1466 = vst.msk [vmem:[#allocation2] sm:$0x3] %vm1465, %v1462
    // Predicated region
    $region30: #{net_forward.3} parent=1 // pred_check
      _
    $region31: #{net_forward.3} parent=1 // pred_check_branch
      %1468 = sbr.rel (0) target = $region33
    $region32: #{net_forward.3} parent=1 // pred_region
      %s1470 = ssub.s32 32, 32
      %1471 = vsyncadd [#allocation3], %s1470
      %s1473 = sshll.u32 [#allocation2], 4
      %s1474 = int_to_ptr.vmem [resolvable:$true] %s1473
      %1476 = dma.vmem_to_hbm [thread:$0]  %s1474, 32, %s7, [#allocation3]
    $region33: #{net_forward.3} parent=1 // pred_fallthru
      _
    // Predicated region
    $region34: #{net_forward.3} parent=1 // pred_check
      _
    $region35: #{net_forward.3} parent=1 // pred_check_branch
      %1478 = sbr.rel (0) target = $region37
    $region36: #{net_forward.3} parent=1 // pred_region
      %1479 = dma.done [#allocation3], 32
    $region37: #{net_forward.3} parent=1 // pred_fallthru
      _
    %1480 = vsyncpa [#allocation3], 1

// kernel: net_forward.2
$region0: #{net_forward.2}
  #allocation0 [shape = 'u32[]', space=smem, size = 0x4, offset = 0x4, fixed_abs, tag = 'smem constant byte address 0x4 - core index']
  #allocation1 [shape = 'u32[144,128]{1,0:T(1,128)}', space=vmem, size = 0x12000, scoped, tag = 'internal scratch']
  %s0 = inlined_call_operand.hbm [shape: f32[2,3,64,64], index: 0, kind: input, shape index: {}]
  %s1 = inlined_call_operand.hbm [shape: f32[5,3,64,384], index: 1, kind: input, shape index: {}]
  %s2 = inlined_call_operand.hbm [shape: f32[1,384], index: 2, kind: input, shape index: {}]
  %s3 = inlined_call_operand.hbm [shape: f32[5,192,512], index: 3, kind: input, shape index: {}]
  %s4 = inlined_call_operand.hbm [shape: f32[1,512], index: 4, kind: input, shape index: {}]
  %s5 = inlined_call_operand.vmem [shape: f32[383,192], index: 5, kind: input, shape index: {}]
  %s6 = inlined_call_operand.hbm [shape: f32[30,59], index: 6, kind: input, shape index: {}]
  %s7 = inlined_call_operand.hbm [shape: f32[511,256], index: 7, kind: input, shape index: {}]
  %s8 = inlined_call_operand.hbm [shape: f32[13,25], index: 8, kind: input, shape index: {}]
  %s9 = inlined_call_operand.vmem [shape: f32[2,16,13,13], index: 9, kind: output, shape index: {}]
  %s10 = sld [smem:[#allocation0]]
  $region101: #{net_forward.2} parent=0
    _
  %s12 = ssub.s32 1, %s10
  %s13 = scalar_select 0, %s12, %s10
  $region1: #{net_forward.2} parent=0
    #allocation2 [shape = 'u8[196608]{0}', space=vmem, size = 0x30000, scoped, tag = 'input window, operand 0']
    #allocation3 [shape = 's32[2]{0}', space=sflag, size = 0x8, scoped, tag = 'scoped memory for net_forward.2']
    #allocation4 [shape = 'u8[1474560]{0}', space=vmem, size = 0x168000, scoped, tag = 'input window, operand 1, single buffered']
    #allocation5 [shape = 's32[1]{0}', space=sflag, size = 0x4, scoped, tag = 'scoped memory for net_forward.2']
    #allocation6 [shape = 'u8[1536]{0}', space=vmem, size = 0x800, scoped, tag = 'input window, operand 2, single buffered']
    #allocation7 [shape = 'u8[1966080]{0}', space=vmem, size = 0x1e0000, scoped, tag = 'input window, operand 3, single buffered']
    #allocation8 [shape = 's32[1]{0}', space=sflag, size = 0x4, scoped, tag = 'scoped memory for net_forward.2']
    #allocation9 [shape = 'u8[2048]{0}', space=vmem, size = 0x800, scoped, tag = 'input window, operand 4, single buffered']
    #allocation10 [shape = 'u8[16384]{0}', space=vmem, size = 0x4000, scoped, tag = 'input window, operand 6, single buffered']
    #allocation11 [shape = 's32[1]{0}', space=sflag, size = 0x4, scoped, tag = 'scoped memory for net_forward.2']
    #allocation12 [shape = 'u8[524288]{0}', space=vmem, size = 0x80000, scoped, tag = 'input window, operand 7, single buffered']
    #allocation13 [shape = 'u8[8192]{0}', space=vmem, size = 0x2000, scoped, tag = 'input window, operand 8, single buffered']
    #allocation14 [shape = 's32[1]{0}', space=sflag, size = 0x4, scoped, tag = 'scoped memory for net_forward.2']
    %14 = vsyncpa [#allocation3], 0
    %s15 = scalar_lea.sflag [#allocation3], 1
    %16 = vsyncpa %s15, 0
    %17 = vsyncpa [#allocation5], 0
    %18 = vsyncpa [#allocation8], 0
    %19 = vsyncpa [#allocation11], 0
    %20 = vsyncpa [#allocation14], 0
    loop: start=0, step=1, limit=4
    $region2: #{net_forward.2} parent=1 // loop_pre_header
      _
    $region3: #{net_forward.2} parent=1 // loop_header
      %s22 = sphi 0, %s26
      %p23 = scmp.ge.s32.totalorder %s22, 4
      %s32 = sphi 0, %s34
      %s35 = sphi 0, %s32
      %s36 = sphi 0, %s35
      %s52 = sphi 0, %s36
      %s56 = sphi 0, %s56
      %s58 = sphi 0, %s56
      %s59 = sphi 0, %s58
      %s73 = sphi 0, %s59
      %s77 = sphi 0, %s77
      %s79 = sphi 0, %s77
      %s80 = sphi 0, %s79
      %s94 = sphi 0, %s80
      %s98 = sphi 0, %s98
      %s100 = sphi 0, %s98
      %s101 = sphi 0, %s100
      %s115 = sphi 0, %s101
      %s119 = sphi 0, %s119
      %s121 = sphi 0, %s119
      %s122 = sphi 0, %s121
      %s136 = sphi 0, %s122
      %s140 = sphi 0, %s140
      %s142 = sphi 0, %s140
      %s143 = sphi 0, %s142
      %s157 = sphi 0, %s143
      %s161 = sphi 0, %s161
      %s163 = sphi 0, %s161
      %s164 = sphi 0, %s163
      %s178 = sphi 0, %s164
      %s182 = sphi 0, %s182
      %s184 = sphi 0, %s182
      %s185 = sphi 0, %s184
      %s199 = sphi 0, %s185
      %s203 = sphi 0, %s203
      %s205 = sphi 0, %s203
      %s206 = sphi 0, %s205
      %s220 = sphi 0, %s206
      %s226 = sphi 0, %s228
      %s229 = sphi 0, %s226
      %s230 = sphi 0, %s229
      %s246 = sphi 0, %s230
    $region4: #{net_forward.2} parent=1 // loop_header_branch
      %25 = sbr.rel (%p23) target = $region8
    $region5: #{net_forward.2} parent=1 // loop_body
      %s27 = ssub.s32 %s22, 1
      %s28 = ssub.s32 %s22, 2
      %s29 = sadd.s32 %s22, 1
      %s30 = ssub.s32 %s22, %s29
      %p31 = scmp.eq.s32.totalorder %s30, 0
      %s33 = sadd.s32 %s32, 1
      %s34 = scalar_select %p31, %s32, %s33
      %p37 = pneg %p31
      %p38 = scmp.eq.s32.totalorder %s22, 1
      %p39 = por %p37, %p38
      %p40 = scmp.ne.s32.totalorder %s32, %s35
      %p41 = scmp.eq.s32.totalorder %s22, 0
      %p42 = por %p40, %p41
      %p43 = scmp.ne.s32.totalorder %s32, %s35
      %p44 = scmp.eq.s32.totalorder %s27, 1
      %p45 = por %p43, %p44
      %p46 = scmp.ne.s32.totalorder %s35, %s36
      %p47 = scmp.eq.s32.totalorder %s27, 0
      %p48 = por %p46, %p47
      %p49 = scmp.ne.s32.totalorder %s35, %s36
      %p50 = scmp.eq.s32.totalorder %s28, 1
      %p51 = por %p49, %p50
      %p53 = scmp.ne.s32.totalorder %s36, %s52
      %p54 = scmp.eq.s32.totalorder %s28, 0
      %p55 = por %p53, %p54
      %s57 = sadd.s32 %s56, 1
      %p60 = scmp.eq.s32.totalorder %s22, 1
      %p61 = scmp.ne.s32.totalorder %s56, %s58
      %p62 = scmp.eq.s32.totalorder %s22, 0
      %p63 = por %p61, %p62
      %p64 = scmp.ne.s32.totalorder %s56, %s58
      %p65 = scmp.eq.s32.totalorder %s27, 1
      %p66 = por %p64, %p65
      %p67 = scmp.ne.s32.totalorder %s58, %s59
      %p68 = scmp.eq.s32.totalorder %s27, 0
      %p69 = por %p67, %p68
      %p70 = scmp.ne.s32.totalorder %s58, %s59
      %p71 = scmp.eq.s32.totalorder %s28, 1
      %p72 = por %p70, %p71
      %p74 = scmp.ne.s32.totalorder %s59, %s73
      %p75 = scmp.eq.s32.totalorder %s28, 0
      %p76 = por %p74, %p75
      %s78 = sadd.s32 %s77, 1
      %p81 = scmp.eq.s32.totalorder %s22, 1
      %p82 = scmp.ne.s32.totalorder %s77, %s79
      %p83 = scmp.eq.s32.totalorder %s22, 0
      %p84 = por %p82, %p83
      %p85 = scmp.ne.s32.totalorder %s77, %s79
      %p86 = scmp.eq.s32.totalorder %s27, 1
      %p87 = por %p85, %p86
      %p88 = scmp.ne.s32.totalorder %s79, %s80
      %p89 = scmp.eq.s32.totalorder %s27, 0
      %p90 = por %p88, %p89
      %p91 = scmp.ne.s32.totalorder %s79, %s80
      %p92 = scmp.eq.s32.totalorder %s28, 1
      %p93 = por %p91, %p92
      %p95 = scmp.ne.s32.totalorder %s80, %s94
      %p96 = scmp.eq.s32.totalorder %s28, 0
      %p97 = por %p95, %p96
      %s99 = sadd.s32 %s98, 1
      %p102 = scmp.eq.s32.totalorder %s22, 1
      %p103 = scmp.ne.s32.totalorder %s98, %s100
      %p104 = scmp.eq.s32.totalorder %s22, 0
      %p105 = por %p103, %p104
      %p106 = scmp.ne.s32.totalorder %s98, %s100
      %p107 = scmp.eq.s32.totalorder %s27, 1
      %p108 = por %p106, %p107
      %p109 = scmp.ne.s32.totalorder %s100, %s101
      %p110 = scmp.eq.s32.totalorder %s27, 0
      %p111 = por %p109, %p110
      %p112 = scmp.ne.s32.totalorder %s100, %s101
      %p113 = scmp.eq.s32.totalorder %s28, 1
      %p114 = por %p112, %p113
      %p116 = scmp.ne.s32.totalorder %s101, %s115
      %p117 = scmp.eq.s32.totalorder %s28, 0
      %p118 = por %p116, %p117
      %s120 = sadd.s32 %s119, 1
      %p123 = scmp.eq.s32.totalorder %s22, 1
      %p124 = scmp.ne.s32.totalorder %s119, %s121
      %p125 = scmp.eq.s32.totalorder %s22, 0
      %p126 = por %p124, %p125
      %p127 = scmp.ne.s32.totalorder %s119, %s121
      %p128 = scmp.eq.s32.totalorder %s27, 1
      %p129 = por %p127, %p128
      %p130 = scmp.ne.s32.totalorder %s121, %s122
      %p131 = scmp.eq.s32.totalorder %s27, 0
      %p132 = por %p130, %p131
      %p133 = scmp.ne.s32.totalorder %s121, %s122
      %p134 = scmp.eq.s32.totalorder %s28, 1
      %p135 = por %p133, %p134
      %p137 = scmp.ne.s32.totalorder %s122, %s136
      %p138 = scmp.eq.s32.totalorder %s28, 0
      %p139 = por %p137, %p138
      %s141 = sadd.s32 %s140, 1
      %p144 = scmp.eq.s32.totalorder %s22, 1
      %p145 = scmp.ne.s32.totalorder %s140, %s142
      %p146 = scmp.eq.s32.totalorder %s22, 0
      %p147 = por %p145, %p146
      %p148 = scmp.ne.s32.totalorder %s140, %s142
      %p149 = scmp.eq.s32.totalorder %s27, 1
      %p150 = por %p148, %p149
      %p151 = scmp.ne.s32.totalorder %s142, %s143
      %p152 = scmp.eq.s32.totalorder %s27, 0
      %p153 = por %p151, %p152
      %p154 = scmp.ne.s32.totalorder %s142, %s143
      %p155 = scmp.eq.s32.totalorder %s28, 1
      %p156 = por %p154, %p155
      %p158 = scmp.ne.s32.totalorder %s143, %s157
      %p159 = scmp.eq.s32.totalorder %s28, 0
      %p160 = por %p158, %p159
      %s162 = sadd.s32 %s161, 1
      %p165 = scmp.eq.s32.totalorder %s22, 1
      %p166 = scmp.ne.s32.totalorder %s161, %s163
      %p167 = scmp.eq.s32.totalorder %s22, 0
      %p168 = por %p166, %p167
      %p169 = scmp.ne.s32.totalorder %s161, %s163
      %p170 = scmp.eq.s32.totalorder %s27, 1
      %p171 = por %p169, %p170
      %p172 = scmp.ne.s32.totalorder %s163, %s164
      %p173 = scmp.eq.s32.totalorder %s27, 0
      %p174 = por %p172, %p173
      %p175 = scmp.ne.s32.totalorder %s163, %s164
      %p176 = scmp.eq.s32.totalorder %s28, 1
      %p177 = por %p175, %p176
      %p179 = scmp.ne.s32.totalorder %s164, %s178
      %p180 = scmp.eq.s32.totalorder %s28, 0
      %p181 = por %p179, %p180
      %s183 = sadd.s32 %s182, 1
      %p186 = scmp.eq.s32.totalorder %s22, 1
      %p187 = scmp.ne.s32.totalorder %s182, %s184
      %p188 = scmp.eq.s32.totalorder %s22, 0
      %p189 = por %p187, %p188
      %p190 = scmp.ne.s32.totalorder %s182, %s184
      %p191 = scmp.eq.s32.totalorder %s27, 1
      %p192 = por %p190, %p191
      %p193 = scmp.ne.s32.totalorder %s184, %s185
      %p194 = scmp.eq.s32.totalorder %s27, 0
      %p195 = por %p193, %p194
      %p196 = scmp.ne.s32.totalorder %s184, %s185
      %p197 = scmp.eq.s32.totalorder %s28, 1
      %p198 = por %p196, %p197
      %p200 = scmp.ne.s32.totalorder %s185, %s199
      %p201 = scmp.eq.s32.totalorder %s28, 0
      %p202 = por %p200, %p201
      %s204 = sadd.s32 %s203, 1
      %p207 = scmp.eq.s32.totalorder %s22, 1
      %p208 = scmp.ne.s32.totalorder %s203, %s205
      %p209 = scmp.eq.s32.totalorder %s22, 0
      %p210 = por %p208, %p209
      %p211 = scmp.ne.s32.totalorder %s203, %s205
      %p212 = scmp.eq.s32.totalorder %s27, 1
      %p213 = por %p211, %p212
      %p214 = scmp.ne.s32.totalorder %s205, %s206
      %p215 = scmp.eq.s32.totalorder %s27, 0
      %p216 = por %p214, %p215
      %p217 = scmp.ne.s32.totalorder %s205, %s206
      %p218 = scmp.eq.s32.totalorder %s28, 1
      %p219 = por %p217, %p218
      %p221 = scmp.ne.s32.totalorder %s206, %s220
      %p222 = scmp.eq.s32.totalorder %s28, 0
      %p223 = por %p221, %p222
      %s224 = ssub.s32 %s22, %s29
      %p225 = scmp.eq.s32.totalorder %s224, 0
      %s227 = sadd.s32 %s226, 1
      %s228 = scalar_select %p225, %s226, %s227
      %p231 = pneg %p225
      %p232 = scmp.eq.s32.totalorder %s22, 1
      %p233 = por %p231, %p232
      %p234 = scmp.ne.s32.totalorder %s226, %s229
      %p235 = scmp.eq.s32.totalorder %s22, 0
      %p236 = por %p234, %p235
      %p237 = scmp.ne.s32.totalorder %s226, %s229
      %p238 = scmp.eq.s32.totalorder %s27, 1
      %p239 = por %p237, %p238
      %p240 = scmp.ne.s32.totalorder %s229, %s230
      %p241 = scmp.eq.s32.totalorder %s27, 0
      %p242 = por %p240, %p241
      %p243 = scmp.ne.s32.totalorder %s229, %s230
      %p244 = scmp.eq.s32.totalorder %s28, 1
      %p245 = por %p243, %p244
      %p247 = scmp.ne.s32.totalorder %s230, %s246
      %p248 = scmp.eq.s32.totalorder %s28, 0
      %p249 = por %p247, %p248
      %p250 = scmp.le.s32.totalorder 1, %s22
      %p251 = scmp.lt.s32.totalorder %s22, 3
      %p252 = pnand %p250, %p251
      %p253 = pneg %p252
      // Predicated region
      $region9: #{net_forward.2} parent=5 // pred_check
        _
      $region10: #{net_forward.2} parent=5 // pred_check_branch
        %255 = sbr.rel (%p252) target = $region12
      $region11: #{net_forward.2} parent=5 // pred_region
        %s256 = ssub.s32 %s22, 1
        // Predicated region
        $region13: #{net_forward.2} parent=11 // pred_check
          %p257 = pneg %p69
        $region14: #{net_forward.2} parent=11 // pred_check_branch
          %259 = sbr.rel (%p257) target = $region16
        $region15: #{net_forward.2} parent=11 // pred_region
          %s261 = ssub.s32 46080, 46080
          %262 = vsyncadd [#allocation5], %s261
          %s263 = sshll.u32 [#allocation4], 4
          %s264 = int_to_ptr.vmem [resolvable:$true] %s263
          %269 = dma.hbm_to_vmem [thread:$0]  %s1, 46080, %s264, [#allocation5], 384, 384, 24
        $region16: #{net_forward.2} parent=11 // pred_fallthru
          _
        // Predicated region
        $region17: #{net_forward.2} parent=11 // pred_check
          %p270 = pneg %p90
        $region18: #{net_forward.2} parent=11 // pred_check_branch
          %272 = sbr.rel (%p270) target = $region20
        $region19: #{net_forward.2} parent=11 // pred_region
          %s274 = ssub.s32 48, 48
          %275 = vsyncadd [#allocation5], %s274
          %s277 = sshll.u32 [#allocation6], 4
          %s278 = int_to_ptr.vmem [resolvable:$true] %s277
          %280 = dma.hbm_to_vmem [thread:$0]  %s2, 48, %s278, [#allocation5]
        $region20: #{net_forward.2} parent=11 // pred_fallthru
          _
        // Predicated region
        $region21: #{net_forward.2} parent=11 // pred_check
          %p281 = pneg %p111
        $region22: #{net_forward.2} parent=11 // pred_check_branch
          %283 = sbr.rel (%p281) target = $region24
        $region23: #{net_forward.2} parent=11 // pred_region
          %s285 = ssub.s32 61440, 61440
          %286 = vsyncadd [#allocation8], %s285
          %s287 = sshll.u32 [#allocation7], 4
          %s288 = int_to_ptr.vmem [resolvable:$true] %s287
          %293 = dma.hbm_to_vmem [thread:$0]  %s3, 61440, %s288, [#allocation8], 512, 512, 32
        $region24: #{net_forward.2} parent=11 // pred_fallthru
          _
        // Predicated region
        $region25: #{net_forward.2} parent=11 // pred_check
          %p294 = pneg %p132
        $region26: #{net_forward.2} parent=11 // pred_check_branch
          %296 = sbr.rel (%p294) target = $region28
        $region27: #{net_forward.2} parent=11 // pred_region
          %s298 = ssub.s32 64, 64
          %299 = vsyncadd [#allocation8], %s298
          %s301 = sshll.u32 [#allocation9], 4
          %s302 = int_to_ptr.vmem [resolvable:$true] %s301
          %304 = dma.hbm_to_vmem [thread:$0]  %s4, 64, %s302, [#allocation8]
        $region28: #{net_forward.2} parent=11 // pred_fallthru
          _
        // Predicated region
        $region29: #{net_forward.2} parent=11 // pred_check
          %p305 = pneg %p153
        $region30: #{net_forward.2} parent=11 // pred_check_branch
          %307 = sbr.rel (%p305) target = $region32
        $region31: #{net_forward.2} parent=11 // pred_region
          _
        $region32: #{net_forward.2} parent=11 // pred_fallthru
          _
        // Predicated region
        $region33: #{net_forward.2} parent=11 // pred_check
          %p308 = pneg %p174
        $region34: #{net_forward.2} parent=11 // pred_check_branch
          %310 = sbr.rel (%p308) target = $region36
        $region35: #{net_forward.2} parent=11 // pred_region
          %s312 = ssub.s32 512, 512
          %313 = vsyncadd [#allocation11], %s312
          %s314 = sshll.u32 [#allocation10], 4
          %s315 = int_to_ptr.vmem [resolvable:$true] %s314
          %320 = dma.hbm_to_vmem [thread:$0]  %s6, 512, %s315, [#allocation11], 128, 128, 8
        $region36: #{net_forward.2} parent=11 // pred_fallthru
          _
        // Predicated region
        $region37: #{net_forward.2} parent=11 // pred_check
          %p321 = pneg %p195
        $region38: #{net_forward.2} parent=11 // pred_check_branch
          %323 = sbr.rel (%p321) target = $region40
        $region39: #{net_forward.2} parent=11 // pred_region
          %s325 = ssub.s32 16384, 16384
          %326 = vsyncadd [#allocation11], %s325
          %s327 = sshll.u32 [#allocation12], 4
          %s328 = int_to_ptr.vmem [resolvable:$true] %s327
          %333 = dma.hbm_to_vmem [thread:$0]  %s7, 16384, %s328, [#allocation11], 256, 256, 16
        $region40: #{net_forward.2} parent=11 // pred_fallthru
          _
        // Predicated region
        $region41: #{net_forward.2} parent=11 // pred_check
          %p334 = pneg %p216
        $region42: #{net_forward.2} parent=11 // pred_check_branch
          %336 = sbr.rel (%p334) target = $region44
        $region43: #{net_forward.2} parent=11 // pred_region
          %s338 = ssub.s32 256, 256
          %339 = vsyncadd [#allocation14], %s338
          %s340 = sshll.u32 [#allocation13], 4
          %s341 = int_to_ptr.vmem [resolvable:$true] %s340
          %346 = dma.hbm_to_vmem [thread:$0]  %s8, 256, %s341, [#allocation14], 128, 128, 8
        $region44: #{net_forward.2} parent=11 // pred_fallthru
          _
      $region12: #{net_forward.2} parent=5 // pred_fallthru
        _
      %p347 = scmp.lt.s32.totalorder %s22, 2
      // Predicated region
      $region45: #{net_forward.2} parent=5 // pred_check
        %p348 = pneg %p347
      $region46: #{net_forward.2} parent=5 // pred_check_branch
        %350 = sbr.rel (%p348) target = $region48
      $region47: #{net_forward.2} parent=5 // pred_region
        // Predicated region
        $region49: #{net_forward.2} parent=47 // pred_check
          %p351 = pneg %p42
        $region50: #{net_forward.2} parent=47 // pred_check_branch
          %353 = sbr.rel (%p351) target = $region52
        $region51: #{net_forward.2} parent=47 // pred_region
          %s354 = sand.u32 %s32, 1
          %s355 = scalar_lea.sflag [#allocation3], %s354
          %s356 = sand.u32 %s32, 1
          %s357 = smul.addr %s356, 192
          %s358 = scalar_lea.vmem [#allocation2], %s357
          %s360 = ssub.s32 3072, 3072
          %361 = vsyncadd %s355, %s360
          %s362 = smul.addr %s22, 24
          %s363 = smul.addr %s362, 128
          %s364 = scalar_lea.hbm %s0, %s363
          %s365 = sshll.u32 %s358, 4
          %s366 = int_to_ptr.vmem [resolvable:$true] %s365
          %371 = dma.hbm_to_vmem [thread:$0]  %s364, 3072, %s366, %s355, 128, 128, 8
        $region52: #{net_forward.2} parent=47 // pred_fallthru
          _
      $region48: #{net_forward.2} parent=5 // pred_fallthru
        _
      %p372 = scmp.le.s32.totalorder 1, %s22
      %p373 = scmp.lt.s32.totalorder %s22, 3
      %p374 = pnand %p372, %p373
      %p375 = pneg %p374
      // Predicated region
      $region53: #{net_forward.2} parent=5 // pred_check
        _
      $region54: #{net_forward.2} parent=5 // pred_check_branch
        %377 = sbr.rel (%p374) target = $region56
      $region55: #{net_forward.2} parent=5 // pred_region
        %s378 = ssub.s32 %s22, 1
        %s379 = sand.u32 %s35, 1
        %s380 = scalar_lea.sflag [#allocation3], %s379
        %s381 = sand.u32 %s35, 1
        %s382 = smul.addr %s381, 192
        %s383 = scalar_lea.vmem [#allocation2], %s382
        // Predicated region
        $region57: #{net_forward.2} parent=55 // pred_check
          %p384 = pneg %p48
        $region58: #{net_forward.2} parent=55 // pred_check_branch
          %386 = sbr.rel (%p384) target = $region60
        $region59: #{net_forward.2} parent=55 // pred_region
          %387 = dma.done %s380, 3072
        $region60: #{net_forward.2} parent=55 // pred_fallthru
          _
        // Predicated region
        $region61: #{net_forward.2} parent=55 // pred_check
          %p388 = pneg %p69
        $region62: #{net_forward.2} parent=55 // pred_check_branch
          %390 = sbr.rel (%p388) target = $region64
        $region63: #{net_forward.2} parent=55 // pred_region
          %391 = dma.done [#allocation5], 46080
        $region64: #{net_forward.2} parent=55 // pred_fallthru
          _
        // Predicated region
        $region65: #{net_forward.2} parent=55 // pred_check
          %p392 = pneg %p90
        $region66: #{net_forward.2} parent=55 // pred_check_branch
          %394 = sbr.rel (%p392) target = $region68
        $region67: #{net_forward.2} parent=55 // pred_region
          %395 = dma.done [#allocation5], 48
        $region68: #{net_forward.2} parent=55 // pred_fallthru
          _
        // Predicated region
        $region69: #{net_forward.2} parent=55 // pred_check
          %p396 = pneg %p111
        $region70: #{net_forward.2} parent=55 // pred_check_branch
          %398 = sbr.rel (%p396) target = $region72
        $region71: #{net_forward.2} parent=55 // pred_region
          %399 = dma.done [#allocation8], 61440
        $region72: #{net_forward.2} parent=55 // pred_fallthru
          _
        // Predicated region
        $region73: #{net_forward.2} parent=55 // pred_check
          %p400 = pneg %p132
        $region74: #{net_forward.2} parent=55 // pred_check_branch
          %402 = sbr.rel (%p400) target = $region76
        $region75: #{net_forward.2} parent=55 // pred_region
          %403 = dma.done [#allocation8], 64
        $region76: #{net_forward.2} parent=55 // pred_fallthru
          _
        // Predicated region
        $region77: #{net_forward.2} parent=55 // pred_check
          %p404 = pneg %p174
        $region78: #{net_forward.2} parent=55 // pred_check_branch
          %406 = sbr.rel (%p404) target = $region80
        $region79: #{net_forward.2} parent=55 // pred_region
          %407 = dma.done [#allocation11], 512
        $region80: #{net_forward.2} parent=55 // pred_fallthru
          _
        // Predicated region
        $region81: #{net_forward.2} parent=55 // pred_check
          %p408 = pneg %p195
        $region82: #{net_forward.2} parent=55 // pred_check_branch
          %410 = sbr.rel (%p408) target = $region84
        $region83: #{net_forward.2} parent=55 // pred_region
          %411 = dma.done [#allocation11], 16384
        $region84: #{net_forward.2} parent=55 // pred_fallthru
          _
        // Predicated region
        $region85: #{net_forward.2} parent=55 // pred_check
          %p412 = pneg %p216
        $region86: #{net_forward.2} parent=55 // pred_check_branch
          %414 = sbr.rel (%p412) target = $region88
        $region87: #{net_forward.2} parent=55 // pred_region
          %415 = dma.done [#allocation14], 256
        $region88: #{net_forward.2} parent=55 // pred_fallthru
          _
        %s416 = sand.u32 %s35, 1
        %s417 = scalar_lea.sflag [#allocation3], %s416
        %s418 = sand.u32 %s35, 1
        %s419 = smul.addr %s418, 192
        %s420 = scalar_lea.vmem [#allocation2], %s419
        %p421 = pneg %p48
        %p422 = pneg %p45
        %p423 = pneg %p69
        %p424 = pneg %p66
        %p425 = pneg %p90
        %p426 = pneg %p87
        %p427 = pneg %p111
        %p428 = pneg %p108
        %p429 = pneg %p132
        %p430 = pneg %p129
        %p431 = pneg %p153
        %p432 = pneg %p150
        %p433 = pneg %p174
        %p434 = pneg %p171
        %p435 = pneg %p195
        %p436 = pneg %p192
        %p437 = pneg %p216
        %p438 = pneg %p213
        %p439 = pneg %p242
        %p440 = pneg %p239
        %p441 = scmp.lt.s32.totalorder %s27, 1
        %s442 = scalar_select %p441, %s27, 1
        %s443 = smul.addr %s442, 32
        %s444 = smul.addr %s443, 8
        %s445 = scalar_lea.vmem %s9, %s444
        %p446 = scmp.lt.s32.totalorder %s27, 1
        %s447 = scalar_select %p446, %s27, 1
        %s448 = smul.addr %s447, 32
        %s449 = smul.addr %s448, 8
        %s450 = scalar_lea.vmem %s9, %s449
        %v451 = vld [vmem:[%s383] sm:$0xff]
        %v452 = vld [vmem:[%s383 + $0x8] sm:$0xff]
        %v453 = vld [vmem:[%s383 + $0x10] sm:$0xff]
        %v454 = vld [vmem:[%s383 + $0x18] sm:$0xff]
        %v455 = vld [vmem:[%s383 + $0x20] sm:$0xff]
        %v456 = vld [vmem:[%s383 + $0x28] sm:$0xff]
        %v457 = vld [vmem:[%s383 + $0x30] sm:$0xff]
        %v458 = vld [vmem:[%s383 + $0x38] sm:$0xf]
        %v459 = vld [vmem:[#allocation4] sm:$0xff]
        %v460 = vld [vmem:[#allocation4 + $0x8] sm:$0xff]
        %v461 = vld [vmem:[#allocation4 + $0x10] sm:$0xff]
        %v462 = vld [vmem:[#allocation4 + $0x18] sm:$0xff]
        %v463 = vld [vmem:[#allocation4 + $0x20] sm:$0xff]
        %v464 = vld [vmem:[#allocation4 + $0x28] sm:$0xff]
        %v465 = vld [vmem:[#allocation4 + $0x30] sm:$0xff]
        %v466 = vld [vmem:[#allocation4 + $0x38] sm:$0xff]
        %v467 = vld [vmem:[#allocation4 + $0x40] sm:$0xff]
        %v468 = vld [vmem:[#allocation4 + $0x48] sm:$0xff]
        %v469 = vld [vmem:[#allocation4 + $0x50] sm:$0xff]
        %v470 = vld [vmem:[#allocation4 + $0x58] sm:$0xff]
        %v471 = vld [vmem:[#allocation4 + $0x60] sm:$0xff]
        %v472 = vld [vmem:[#allocation4 + $0x68] sm:$0xff]
        %v473 = vld [vmem:[#allocation4 + $0x70] sm:$0xff]
        %v474 = vld [vmem:[#allocation4 + $0x78] sm:$0xff]
        %v475 = vld [vmem:[#allocation4 + $0x80] sm:$0xff]
        %v476 = vld [vmem:[#allocation4 + $0x88] sm:$0xff]
        %v477 = vld [vmem:[#allocation4 + $0x90] sm:$0xff]
        %v478 = vld [vmem:[#allocation4 + $0x98] sm:$0xff]
        %v479 = vld [vmem:[#allocation4 + $0xa0] sm:$0xff]
        %v480 = vld [vmem:[#allocation4 + $0xa8] sm:$0xff]
        %v481 = vld [vmem:[#allocation4 + $0xb0] sm:$0xff]
        %v482 = vld [vmem:[#allocation4 + $0xb8] sm:$0xff]
        %s483 = scalar_lea.vmem %s383, 64 [#allocation2]
        %v484 = vld [vmem:[%s483] sm:$0xff]
        %v485 = vld [vmem:[%s483 + $0x8] sm:$0xff]
        %v486 = vld [vmem:[%s483 + $0x10] sm:$0xff]
        %v487 = vld [vmem:[%s483 + $0x18] sm:$0xff]
        %v488 = vld [vmem:[%s483 + $0x20] sm:$0xff]
        %v489 = vld [vmem:[%s483 + $0x28] sm:$0xff]
        %v490 = vld [vmem:[%s483 + $0x30] sm:$0xff]
        %v491 = vld [vmem:[%s483 + $0x38] sm:$0xf]
        %s492 = scalar_lea.vmem [#allocation4], 192
        %v493 = vld [vmem:[%s492] sm:$0xff]
        %v494 = vld [vmem:[%s492 + $0x8] sm:$0xff]
        %v495 = vld [vmem:[%s492 + $0x10] sm:$0xff]
        %v496 = vld [vmem:[%s492 + $0x18] sm:$0xff]
        %v497 = vld [vmem:[%s492 + $0x20] sm:$0xff]
        %v498 = vld [vmem:[%s492 + $0x28] sm:$0xff]
        %v499 = vld [vmem:[%s492 + $0x30] sm:$0xff]
        %v500 = vld [vmem:[%s492 + $0x38] sm:$0xff]
        %v501 = vld [vmem:[%s492 + $0x40] sm:$0xff]
        %v502 = vld [vmem:[%s492 + $0x48] sm:$0xff]
        %v503 = vld [vmem:[%s492 + $0x50] sm:$0xff]
        %v504 = vld [vmem:[%s492 + $0x58] sm:$0xff]
        %v505 = vld [vmem:[%s492 + $0x60] sm:$0xff]
        %v506 = vld [vmem:[%s492 + $0x68] sm:$0xff]
        %v507 = vld [vmem:[%s492 + $0x70] sm:$0xff]
        %v508 = vld [vmem:[%s492 + $0x78] sm:$0xff]
        %v509 = vld [vmem:[%s492 + $0x80] sm:$0xff]
        %v510 = vld [vmem:[%s492 + $0x88] sm:$0xff]
        %v511 = vld [vmem:[%s492 + $0x90] sm:$0xff]
        %v512 = vld [vmem:[%s492 + $0x98] sm:$0xff]
        %v513 = vld [vmem:[%s492 + $0xa0] sm:$0xff]
        %v514 = vld [vmem:[%s492 + $0xa8] sm:$0xff]
        %v515 = vld [vmem:[%s492 + $0xb0] sm:$0xff]
        %v516 = vld [vmem:[%s492 + $0xb8] sm:$0xff]
        %vm517 = vcmask 523264
        %v519 = vsel %vm517, %v484, 0
        %v522 = vsel %vm517, %v485, 0
        %v525 = vsel %vm517, %v486, 0
        %v528 = vsel %vm517, %v487, 0
        %v531 = vsel %vm517, %v488, 0
        %v534 = vsel %vm517, %v489, 0
        %v537 = vsel %vm517, %v490, 0
        %v540 = vsel %vm517, %v491, 0
        %542 = vmatprep.subr.mxu0 %v494
        %543 = vmatpush1.msra.mxu0 %v493
        %544 = vmatprep.subr.mxu0 %v497
        %545 = vmatpush1.msra.mxu0 %v496
        %546 = vmatprep.subr.mxu0 %v500
        %547 = vmatpush1.msra.mxu0 %v499
        %548 = vmatprep.subr.mxu0 %v503
        %549 = vmatpush1.msra.mxu0 %v502
        %550 = vmatprep.subr.mxu0 %v506
        %551 = vmatpush1.msra.mxu0 %v505
        %552 = vmatprep.subr.mxu0 %v509
        %553 = vmatpush1.msra.mxu0 %v508
        %554 = vmatprep.subr.mxu0 %v512
        %555 = vmatpush1.msra.mxu0 %v511
        %556 = vmatprep.subr.mxu0 %v515
        %557 = vmatpush1.msra.mxu0 %v514
        %558 = vmatprep.subr.mxu0 0.0
        %559 = vmatpush1.msra.mxu0 0.0
        %560 = vmatprep.subr.mxu0 0.0
        %561 = vmatpush1.msra.mxu0 0.0
        %562 = vmatprep.subr.mxu0 0.0
        %563 = vmatpush1.msra.mxu0 0.0
        %564 = vmatprep.subr.mxu0 0.0
        %565 = vmatpush1.msra.mxu0 0.0
        %566 = vmatprep.subr.mxu0 0.0
        %567 = vmatpush1.msra.mxu0 0.0
        %568 = vmatprep.subr.mxu0 0.0
        %569 = vmatpush1.msra.mxu0 0.0
        %570 = vmatprep.subr.mxu0 0.0
        %571 = vmatpush1.msra.mxu0 0.0
        %572 = vmatprep.subr.mxu0 0.0
        %573 = vmatpush1.msra.mxu0 0.0
        %574 = vmatprep.subr.mxu0 0.0
        %575 = vmatpush1.msra.mxu0 0.0
        %576 = vmatprep.subr.mxu0 0.0
        %577 = vmatpush1.msra.mxu0 0.0
        %578 = vmatprep.subr.mxu0 0.0
        %579 = vmatpush1.msra.mxu0 0.0
        %580 = vmatprep.subr.mxu0 0.0
        %581 = vmatpush1.msra.mxu0 0.0
        %582 = vmatprep.subr.mxu0 0.0
        %583 = vmatpush1.msra.mxu0 0.0
        %584 = vmatprep.subr.mxu0 0.0
        %585 = vmatpush1.msra.mxu0 0.0
        %586 = vmatprep.subr.mxu0 0.0
        %587 = vmatpush1.msra.mxu0 0.0
        %588 = vmatprep.subr.mxu0 0.0
        %589 = vmatpush1.msra.mxu0 0.0
        %590 = vmatprep.subr.mxu0 0.0
        %591 = vmatpush1.msra.mxu0 0.0
        %592 = vmatprep.subr.mxu0 0.0
        %593 = vmatpush1.msra.mxu0 0.0
        %594 = vmatprep.subr.mxu0 0.0
        %595 = vmatpush1.msra.mxu0 0.0
        %596 = vmatprep.subr.mxu0 0.0
        %597 = vmatpush1.msra.mxu0 0.0
        %598 = vmatprep.subr.mxu0 0.0
        %599 = vmatpush1.msra.mxu0 0.0
        %600 = vmatprep.subr.mxu0 0.0
        %601 = vmatpush1.msra.mxu0 0.0
        %602 = vmatprep.subr.mxu0 0.0
        %603 = vmatpush1.msra.mxu0 0.0
        %604 = vmatprep.subr.mxu0 0.0
        %605 = vmatpush1.msra.mxu0 0.0
        %606 = vmatprep.mubr.f32.mxu0 0.0
        %607 = vmatmul.mubr.f32.gmra.mrb[0].mxu0 %v519
        %v608 = vpop.f32.mrb[0].mxu0
        %v609 = vadd.f32 0.0, %v608
        %v610 = vpop.f32.mrb[0].mxu0
        %v611 = vadd.f32 0.0, %v610
        %612 = vmatprep.mubr.f32.mxu0 0.0
        %613 = vmatmul.mubr.f32.gmra.mrb[0].mxu0 %v522
        %v614 = vpop.f32.mrb[0].mxu0
        %v615 = vadd.f32 0.0, %v614
        %v616 = vpop.f32.mrb[0].mxu0
        %v617 = vadd.f32 0.0, %v616
        %618 = vmatprep.mubr.f32.mxu0 0.0
        %619 = vmatmul.mubr.f32.gmra.mrb[0].mxu0 %v525
        %v620 = vpop.f32.mrb[0].mxu0
        %v621 = vadd.f32 0.0, %v620
        %v622 = vpop.f32.mrb[0].mxu0
        %v623 = vadd.f32 0.0, %v622
        %624 = vmatprep.mubr.f32.mxu0 0.0
        %625 = vmatmul.mubr.f32.gmra.mrb[0].mxu0 %v528
        %v626 = vpop.f32.mrb[0].mxu0
        %v627 = vadd.f32 0.0, %v626
        %v628 = vpop.f32.mrb[0].mxu0
        %v629 = vadd.f32 0.0, %v628
        %630 = vmatprep.mubr.f32.mxu0 0.0
        %631 = vmatmul.mubr.f32.gmra.mrb[0].mxu0 %v531
        %v632 = vpop.f32.mrb[0].mxu0
        %v633 = vadd.f32 0.0, %v632
        %v634 = vpop.f32.mrb[0].mxu0
        %v635 = vadd.f32 0.0, %v634
        %636 = vmatprep.mubr.f32.mxu0 0.0
        %637 = vmatmul.mubr.f32.gmra.mrb[0].mxu0 %v534
        %v638 = vpop.f32.mrb[0].mxu0
        %v639 = vadd.f32 0.0, %v638
        %v640 = vpop.f32.mrb[0].mxu0
        %v641 = vadd.f32 0.0, %v640
        %642 = vmatprep.mubr.f32.mxu0 0.0
        %643 = vmatmul.mubr.f32.gmra.mrb[0].mxu0 %v537
        %v644 = vpop.f32.mrb[0].mxu0
        %v645 = vadd.f32 0.0, %v644
        %v646 = vpop.f32.mrb[0].mxu0
        %v647 = vadd.f32 0.0, %v646
        %648 = vmatprep.mubr.f32.mxu0 0.0
        %649 = vmatmul.mubr.f32.gmra.mrb[0].mxu0 %v540
        %v650 = vpop.f32.mrb[0].mxu0
        %v651 = vadd.f32 0.0, %v650
        %v652 = vpop.f32.mrb[0].mxu0
        %v653 = vadd.f32 0.0, %v652
        %654 = vdwg.mxu0
        %655 = vmatprep.subr.mxu0 0.0
        %656 = vmatpush1.msra.mxu0 %v495
        %657 = vmatprep.subr.mxu0 0.0
        %658 = vmatpush1.msra.mxu0 %v498
        %659 = vmatprep.subr.mxu0 0.0
        %660 = vmatpush1.msra.mxu0 %v501
        %661 = vmatprep.subr.mxu0 0.0
        %662 = vmatpush1.msra.mxu0 %v504
        %663 = vmatprep.subr.mxu0 0.0
        %664 = vmatpush1.msra.mxu0 %v507
        %665 = vmatprep.subr.mxu0 0.0
        %666 = vmatpush1.msra.mxu0 %v510
        %667 = vmatprep.subr.mxu0 0.0
        %668 = vmatpush1.msra.mxu0 %v513
        %669 = vmatprep.subr.mxu0 0.0
        %670 = vmatpush1.msra.mxu0 %v516
        %671 = vmatprep.subr.mxu0 0.0
        %672 = vmatpush1.msra.mxu0 0.0
        %673 = vmatprep.subr.mxu0 0.0
        %674 = vmatpush1.msra.mxu0 0.0
        %675 = vmatprep.subr.mxu0 0.0
        %676 = vmatpush1.msra.mxu0 0.0
        %677 = vmatprep.subr.mxu0 0.0
        %678 = vmatpush1.msra.mxu0 0.0
        %679 = vmatprep.subr.mxu0 0.0
        %680 = vmatpush1.msra.mxu0 0.0
        %681 = vmatprep.subr.mxu0 0.0
        %682 = vmatpush1.msra.mxu0 0.0
        %683 = vmatprep.subr.mxu0 0.0
        %684 = vmatpush1.msra.mxu0 0.0
        %685 = vmatprep.subr.mxu0 0.0
        %686 = vmatpush1.msra.mxu0 0.0
        %687 = vmatprep.subr.mxu0 0.0
        %688 = vmatpush1.msra.mxu0 0.0
        %689 = vmatprep.subr.mxu0 0.0
        %690 = vmatpush1.msra.mxu0 0.0
        %691 = vmatprep.subr.mxu0 0.0
        %692 = vmatpush1.msra.mxu0 0.0
        %693 = vmatprep.subr.mxu0 0.0
        %694 = vmatpush1.msra.mxu0 0.0
        %695 = vmatprep.subr.mxu0 0.0
        %696 = vmatpush1.msra.mxu0 0.0
        %697 = vmatprep.subr.mxu0 0.0
        %698 = vmatpush1.msra.mxu0 0.0
        %699 = vmatprep.subr.mxu0 0.0
        %700 = vmatpush1.msra.mxu0 0.0
        %701 = vmatprep.subr.mxu0 0.0
        %702 = vmatpush1.msra.mxu0 0.0
        %703 = vmatprep.subr.mxu0 0.0
        %704 = vmatpush1.msra.mxu0 0.0
        %705 = vmatprep.subr.mxu0 0.0
        %706 = vmatpush1.msra.mxu0 0.0
        %707 = vmatprep.subr.mxu0 0.0
        %708 = vmatpush1.msra.mxu0 0.0
        %709 = vmatprep.subr.mxu0 0.0
        %710 = vmatpush1.msra.mxu0 0.0
        %711 = vmatprep.subr.mxu0 0.0
        %712 = vmatpush1.msra.mxu0 0.0
        %713 = vmatprep.subr.mxu0 0.0
        %714 = vmatpush1.msra.mxu0 0.0
        %715 = vmatprep.subr.mxu0 0.0
        %716 = vmatpush1.msra.mxu0 0.0
        %717 = vmatprep.subr.mxu0 0.0
        %718 = vmatpush1.msra.mxu0 0.0
        %719 = vmatprep.mubr.f32.mxu0 0.0
        %720 = vmatmul.mubr.f32.gmra.mrb[0].mxu0 %v519
        %v721 = vpop.f32.mrb[0].mxu0
        %v722 = vadd.f32 0.0, %v721
        %v723 = vpop.f32.mrb[0].mxu0
        %724 = vmatprep.mubr.f32.mxu0 0.0
        %725 = vmatmul.mubr.f32.gmra.mrb[0].mxu0 %v522
        %v726 = vpop.f32.mrb[0].mxu0
        %v727 = vadd.f32 0.0, %v726
        %v728 = vpop.f32.mrb[0].mxu0
        %729 = vmatprep.mubr.f32.mxu0 0.0
        %730 = vmatmul.mubr.f32.gmra.mrb[0].mxu0 %v525
        %v731 = vpop.f32.mrb[0].mxu0
        %v732 = vadd.f32 0.0, %v731
        %v733 = vpop.f32.mrb[0].mxu0
        %734 = vmatprep.mubr.f32.mxu0 0.0
        %735 = vmatmul.mubr.f32.gmra.mrb[0].mxu0 %v528
        %v736 = vpop.f32.mrb[0].mxu0
        %v737 = vadd.f32 0.0, %v736
        %v738 = vpop.f32.mrb[0].mxu0
        %739 = vmatprep.mubr.f32.mxu0 0.0
        %740 = vmatmul.mubr.f32.gmra.mrb[0].mxu0 %v531
        %v741 = vpop.f32.mrb[0].mxu0
        %v742 = vadd.f32 0.0, %v741
        %v743 = vpop.f32.mrb[0].mxu0
        %744 = vmatprep.mubr.f32.mxu0 0.0
        %745 = vmatmul.mubr.f32.gmra.mrb[0].mxu0 %v534
        %v746 = vpop.f32.mrb[0].mxu0
        %v747 = vadd.f32 0.0, %v746
        %v748 = vpop.f32.mrb[0].mxu0
        %749 = vmatprep.mubr.f32.mxu0 0.0
        %750 = vmatmul.mubr.f32.gmra.mrb[0].mxu0 %v537
        %v751 = vpop.f32.mrb[0].mxu0
        %v752 = vadd.f32 0.0, %v751
        %v753 = vpop.f32.mrb[0].mxu0
        %754 = vmatprep.mubr.f32.mxu0 0.0
        %755 = vmatmul.mubr.f32.gmra.mrb[0].mxu0 %v540
        %v756 = vpop.f32.mrb[0].mxu0
        %v757 = vadd.f32 0.0, %v756
        %v758 = vpop.f32.mrb[0].mxu0
        %759 = vdwg.mxu0
        %v761 = vsel %vm517, %v451, 0
        %v764 = vsel %vm517, %v452, 0
        %v767 = vsel %vm517, %v453, 0
        %v770 = vsel %vm517, %v454, 0
        %v773 = vsel %vm517, %v455, 0
        %v776 = vsel %vm517, %v456, 0
        %v779 = vsel %vm517, %v457, 0
        %v782 = vsel %vm517, %v458, 0
        %784 = vmatprep.subr.mxu0 %v460
        %785 = vmatpush1.msra.mxu0 %v459
        %786 = vmatprep.subr.mxu0 %v463
        %787 = vmatpush1.msra.mxu0 %v462
        %788 = vmatprep.subr.mxu0 %v466
        %789 = vmatpush1.msra.mxu0 %v465
        %790 = vmatprep.subr.mxu0 %v469
        %791 = vmatpush1.msra.mxu0 %v468
        %792 = vmatprep.subr.mxu0 %v472
        %793 = vmatpush1.msra.mxu0 %v471
        %794 = vmatprep.subr.mxu0 %v475
        %795 = vmatpush1.msra.mxu0 %v474
        %796 = vmatprep.subr.mxu0 %v478
        %797 = vmatpush1.msra.mxu0 %v477
        %798 = vmatprep.subr.mxu0 %v481
        %799 = vmatpush1.msra.mxu0 %v480
        %800 = vmatprep.subr.mxu0 0.0
        %801 = vmatpush1.msra.mxu0 0.0
        %802 = vmatprep.subr.mxu0 0.0
        %803 = vmatpush1.msra.mxu0 0.0
        %804 = vmatprep.subr.mxu0 0.0
        %805 = vmatpush1.msra.mxu0 0.0
        %806 = vmatprep.subr.mxu0 0.0
        %807 = vmatpush1.msra.mxu0 0.0
        %808 = vmatprep.subr.mxu0 0.0
        %809 = vmatpush1.msra.mxu0 0.0
        %810 = vmatprep.subr.mxu0 0.0
        %811 = vmatpush1.msra.mxu0 0.0
        %812 = vmatprep.subr.mxu0 0.0
        %813 = vmatpush1.msra.mxu0 0.0
        %814 = vmatprep.subr.mxu0 0.0
        %815 = vmatpush1.msra.mxu0 0.0
        %816 = vmatprep.subr.mxu0 0.0
        %817 = vmatpush1.msra.mxu0 0.0
        %818 = vmatprep.subr.mxu0 0.0
        %819 = vmatpush1.msra.mxu0 0.0
        %820 = vmatprep.subr.mxu0 0.0
        %821 = vmatpush1.msra.mxu0 0.0
        %822 = vmatprep.subr.mxu0 0.0
        %823 = vmatpush1.msra.mxu0 0.0
        %824 = vmatprep.subr.mxu0 0.0
        %825 = vmatpush1.msra.mxu0 0.0
        %826 = vmatprep.subr.mxu0 0.0
        %827 = vmatpush1.msra.mxu0 0.0
        %828 = vmatprep.subr.mxu0 0.0
        %829 = vmatpush1.msra.mxu0 0.0
        %830 = vmatprep.subr.mxu0 0.0
        %831 = vmatpush1.msra.mxu0 0.0
        %832 = vmatprep.subr.mxu0 0.0
        %833 = vmatpush1.msra.mxu0 0.0
        %834 = vmatprep.subr.mxu0 0.0
        %835 = vmatpush1.msra.mxu0 0.0
        %836 = vmatprep.subr.mxu0 0.0
        %837 = vmatpush1.msra.mxu0 0.0
        %838 = vmatprep.subr.mxu0 0.0
        %839 = vmatpush1.msra.mxu0 0.0
        %840 = vmatprep.subr.mxu0 0.0
        %841 = vmatpush1.msra.mxu0 0.0
        %842 = vmatprep.subr.mxu0 0.0
        %843 = vmatpush1.msra.mxu0 0.0
        %844 = vmatprep.subr.mxu0 0.0
        %845 = vmatpush1.msra.mxu0 0.0
        %846 = vmatprep.subr.mxu0 0.0
        %847 = vmatpush1.msra.mxu0 0.0
        %848 = vmatprep.mubr.f32.mxu0 0.0
        %849 = vmatmul.mubr.f32.gmra.mrb[0].mxu0 %v761
        %v850 = vpop.f32.mrb[0].mxu0
        %v851 = vadd.f32 %v609, %v850
        %v852 = vpop.f32.mrb[0].mxu0
        %v853 = vadd.f32 %v611, %v852
        %854 = vmatprep.mubr.f32.mxu0 0.0
        %855 = vmatmul.mubr.f32.gmra.mrb[0].mxu0 %v764
        %v856 = vpop.f32.mrb[0].mxu0
        %v857 = vadd.f32 %v615, %v856
        %v858 = vpop.f32.mrb[0].mxu0
        %v859 = vadd.f32 %v617, %v858
        %860 = vmatprep.mubr.f32.mxu0 0.0
        %861 = vmatmul.mubr.f32.gmra.mrb[0].mxu0 %v767
        %v862 = vpop.f32.mrb[0].mxu0
        %v863 = vadd.f32 %v621, %v862
        %v864 = vpop.f32.mrb[0].mxu0
        %v865 = vadd.f32 %v623, %v864
        %866 = vmatprep.mubr.f32.mxu0 0.0
        %867 = vmatmul.mubr.f32.gmra.mrb[0].mxu0 %v770
        %v868 = vpop.f32.mrb[0].mxu0
        %v869 = vadd.f32 %v627, %v868
        %v870 = vpop.f32.mrb[0].mxu0
        %v871 = vadd.f32 %v629, %v870
        %872 = vmatprep.mubr.f32.mxu0 0.0
        %873 = vmatmul.mubr.f32.gmra.mrb[0].mxu0 %v773
        %v874 = vpop.f32.mrb[0].mxu0
        %v875 = vadd.f32 %v633, %v874
        %v876 = vpop.f32.mrb[0].mxu0
        %v877 = vadd.f32 %v635, %v876
        %878 = vmatprep.mubr.f32.mxu0 0.0
        %879 = vmatmul.mubr.f32.gmra.mrb[0].mxu0 %v776
        %v880 = vpop.f32.mrb[0].mxu0
        %v881 = vadd.f32 %v639, %v880
        %v882 = vpop.f32.mrb[0].mxu0
        %v883 = vadd.f32 %v641, %v882
        %884 = vmatprep.mubr.f32.mxu0 0.0
        %885 = vmatmul.mubr.f32.gmra.mrb[0].mxu0 %v779
        %v886 = vpop.f32.mrb[0].mxu0
        %v887 = vadd.f32 %v645, %v886
        %v888 = vpop.f32.mrb[0].mxu0
        %v889 = vadd.f32 %v647, %v888
        %890 = vmatprep.mubr.f32.mxu0 0.0
        %891 = vmatmul.mubr.f32.gmra.mrb[0].mxu0 %v782
        %v892 = vpop.f32.mrb[0].mxu0
        %v893 = vadd.f32 %v651, %v892
        %v894 = vpop.f32.mrb[0].mxu0
        %v895 = vadd.f32 %v653, %v894
        %896 = vdwg.mxu0
        %897 = vmatprep.subr.mxu0 0.0
        %898 = vmatpush1.msra.mxu0 %v461
        %899 = vmatprep.subr.mxu0 0.0
        %900 = vmatpush1.msra.mxu0 %v464
        %901 = vmatprep.subr.mxu0 0.0
        %902 = vmatpush1.msra.mxu0 %v467
        %903 = vmatprep.subr.mxu0 0.0
        %904 = vmatpush1.msra.mxu0 %v470
        %905 = vmatprep.subr.mxu0 0.0
        %906 = vmatpush1.msra.mxu0 %v473
        %907 = vmatprep.subr.mxu0 0.0
        %908 = vmatpush1.msra.mxu0 %v476
        %909 = vmatprep.subr.mxu0 0.0
        %910 = vmatpush1.msra.mxu0 %v479
        %911 = vmatprep.subr.mxu0 0.0
        %912 = vmatpush1.msra.mxu0 %v482
        %913 = vmatprep.subr.mxu0 0.0
        %914 = vmatpush1.msra.mxu0 0.0
        %915 = vmatprep.subr.mxu0 0.0
        %916 = vmatpush1.msra.mxu0 0.0
        %917 = vmatprep.subr.mxu0 0.0
        %918 = vmatpush1.msra.mxu0 0.0
        %919 = vmatprep.subr.mxu0 0.0
        %920 = vmatpush1.msra.mxu0 0.0
        %921 = vmatprep.subr.mxu0 0.0
        %922 = vmatpush1.msra.mxu0 0.0
        %923 = vmatprep.subr.mxu0 0.0
        %924 = vmatpush1.msra.mxu0 0.0
        %925 = vmatprep.subr.mxu0 0.0
        %926 = vmatpush1.msra.mxu0 0.0
        %927 = vmatprep.subr.mxu0 0.0
        %928 = vmatpush1.msra.mxu0 0.0
        %929 = vmatprep.subr.mxu0 0.0
        %930 = vmatpush1.msra.mxu0 0.0
        %931 = vmatprep.subr.mxu0 0.0
        %932 = vmatpush1.msra.mxu0 0.0
        %933 = vmatprep.subr.mxu0 0.0
        %934 = vmatpush1.msra.mxu0 0.0
        %935 = vmatprep.subr.mxu0 0.0
        %936 = vmatpush1.msra.mxu0 0.0
        %937 = vmatprep.subr.mxu0 0.0
        %938 = vmatpush1.msra.mxu0 0.0
        %939 = vmatprep.subr.mxu0 0.0
        %940 = vmatpush1.msra.mxu0 0.0
        %941 = vmatprep.subr.mxu0 0.0
        %942 = vmatpush1.msra.mxu0 0.0
        %943 = vmatprep.subr.mxu0 0.0
        %944 = vmatpush1.msra.mxu0 0.0
        %945 = vmatprep.subr.mxu0 0.0
        %946 = vmatpush1.msra.mxu0 0.0
        %947 = vmatprep.subr.mxu0 0.0
        %948 = vmatpush1.msra.mxu0 0.0
        %949 = vmatprep.subr.mxu0 0.0
        %950 = vmatpush1.msra.mxu0 0.0
        %951 = vmatprep.subr.mxu0 0.0
        %952 = vmatpush1.msra.mxu0 0.0
        %953 = vmatprep.subr.mxu0 0.0
        %954 = vmatpush1.msra.mxu0 0.0
        %955 = vmatprep.subr.mxu0 0.0
        %956 = vmatpush1.msra.mxu0 0.0
        %957 = vmatprep.subr.mxu0 0.0
        %958 = vmatpush1.msra.mxu0 0.0
        %959 = vmatprep.subr.mxu0 0.0
        %960 = vmatpush1.msra.mxu0 0.0
        %961 = vmatprep.mubr.f32.mxu0 0.0
        %962 = vmatmul.mubr.f32.gmra.mrb[0].mxu0 %v761
        %v963 = vpop.f32.mrb[0].mxu0
        %v964 = vadd.f32 %v722, %v963
        %v965 = vpop.f32.mrb[0].mxu0
        %966 = vmatprep.mubr.f32.mxu0 0.0
        %967 = vmatmul.mubr.f32.gmra.mrb[0].mxu0 %v764
        %v968 = vpop.f32.mrb[0].mxu0
        %v969 = vadd.f32 %v727, %v968
        %v970 = vpop.f32.mrb[0].mxu0
        %971 = vmatprep.mubr.f32.mxu0 0.0
        %972 = vmatmul.mubr.f32.gmra.mrb[0].mxu0 %v767
        %v973 = vpop.f32.mrb[0].mxu0
        %v974 = vadd.f32 %v732, %v973
        %v975 = vpop.f32.mrb[0].mxu0
        %976 = vmatprep.mubr.f32.mxu0 0.0
        %977 = vmatmul.mubr.f32.gmra.mrb[0].mxu0 %v770
        %v978 = vpop.f32.mrb[0].mxu0
        %v979 = vadd.f32 %v737, %v978
        %v980 = vpop.f32.mrb[0].mxu0
        %981 = vmatprep.mubr.f32.mxu0 0.0
        %982 = vmatmul.mubr.f32.gmra.mrb[0].mxu0 %v773
        %v983 = vpop.f32.mrb[0].mxu0
        %v984 = vadd.f32 %v742, %v983
        %v985 = vpop.f32.mrb[0].mxu0
        %986 = vmatprep.mubr.f32.mxu0 0.0
        %987 = vmatmul.mubr.f32.gmra.mrb[0].mxu0 %v776
        %v988 = vpop.f32.mrb[0].mxu0
        %v989 = vadd.f32 %v747, %v988
        %v990 = vpop.f32.mrb[0].mxu0
        %991 = vmatprep.mubr.f32.mxu0 0.0
        %992 = vmatmul.mubr.f32.gmra.mrb[0].mxu0 %v779
        %v993 = vpop.f32.mrb[0].mxu0
        %v994 = vadd.f32 %v752, %v993
        %v995 = vpop.f32.mrb[0].mxu0
        %996 = vmatprep.mubr.f32.mxu0 0.0
        %997 = vmatmul.mubr.f32.gmra.mrb[0].mxu0 %v782
        %v998 = vpop.f32.mrb[0].mxu0
        %v999 = vadd.f32 %v757, %v998
        %v1000 = vpop.f32.mrb[0].mxu0
        %1001 = vdwg.mxu0
        %s1002 = scalar_lea.vmem %s383, 128 [#allocation2]
        %v1003 = vld [vmem:[%s1002] sm:$0xff]
        %v1004 = vld [vmem:[%s1002 + $0x8] sm:$0xff]
        %v1005 = vld [vmem:[%s1002 + $0x10] sm:$0xff]
        %v1006 = vld [vmem:[%s1002 + $0x18] sm:$0xff]
        %v1007 = vld [vmem:[%s1002 + $0x20] sm:$0xff]
        %v1008 = vld [vmem:[%s1002 + $0x28] sm:$0xff]
        %v1009 = vld [vmem:[%s1002 + $0x30] sm:$0xff]
        %v1010 = vld [vmem:[%s1002 + $0x38] sm:$0xf]
        %s1011 = scalar_lea.vmem [#allocation4], 384
        %v1012 = vld [vmem:[%s1011] sm:$0xff]
        %v1013 = vld [vmem:[%s1011 + $0x8] sm:$0xff]
        %v1014 = vld [vmem:[%s1011 + $0x10] sm:$0xff]
        %v1015 = vld [vmem:[%s1011 + $0x18] sm:$0xff]
        %v1016 = vld [vmem:[%s1011 + $0x20] sm:$0xff]
        %v1017 = vld [vmem:[%s1011 + $0x28] sm:$0xff]
        %v1018 = vld [vmem:[%s1011 + $0x30] sm:$0xff]
        %v1019 = vld [vmem:[%s1011 + $0x38] sm:$0xff]
        %v1020 = vld [vmem:[%s1011 + $0x40] sm:$0xff]
        %v1021 = vld [vmem:[%s1011 + $0x48] sm:$0xff]
        %v1022 = vld [vmem:[%s1011 + $0x50] sm:$0xff]
        %v1023 = vld [vmem:[%s1011 + $0x58] sm:$0xff]
        %v1024 = vld [vmem:[%s1011 + $0x60] sm:$0xff]
        %v1025 = vld [vmem:[%s1011 + $0x68] sm:$0xff]
        %v1026 = vld [vmem:[%s1011 + $0x70] sm:$0xff]
        %v1027 = vld [vmem:[%s1011 + $0x78] sm:$0xff]
        %v1028 = vld [vmem:[%s1011 + $0x80] sm:$0xff]
        %v1029 = vld [vmem:[%s1011 + $0x88] sm:$0xff]
        %v1030 = vld [vmem:[%s1011 + $0x90] sm:$0xff]
        %v1031 = vld [vmem:[%s1011 + $0x98] sm:$0xff]
        %v1032 = vld [vmem:[%s1011 + $0xa0] sm:$0xff]
        %v1033 = vld [vmem:[%s1011 + $0xa8] sm:$0xff]
        %v1034 = vld [vmem:[%s1011 + $0xb0] sm:$0xff]
        %v1035 = vld [vmem:[%s1011 + $0xb8] sm:$0xff]
        %v1037 = vsel %vm517, %v1003, 0
        %v1040 = vsel %vm517, %v1004, 0
        %v1043 = vsel %vm517, %v1005, 0
        %v1046 = vsel %vm517, %v1006, 0
        %v1049 = vsel %vm517, %v1007, 0
        %v1052 = vsel %vm517, %v1008, 0
        %v1055 = vsel %vm517, %v1009, 0
        %v1058 = vsel %vm517, %v1010, 0
        %1060 = vmatprep.subr.mxu0 %v1013
        %1061 = vmatpush1.msra.mxu0 %v1012
        %1062 = vmatprep.subr.mxu0 %v1016
        %1063 = vmatpush1.msra.mxu0 %v1015
        %1064 = vmatprep.subr.mxu0 %v1019
        %1065 = vmatpush1.msra.mxu0 %v1018
        %1066 = vmatprep.subr.mxu0 %v1022
        %1067 = vmatpush1.msra.mxu0 %v1021
        %1068 = vmatprep.subr.mxu0 %v1025
        %1069 = vmatpush1.msra.mxu0 %v1024
        %1070 = vmatprep.subr.mxu0 %v1028
        %1071 = vmatpush1.msra.mxu0 %v1027
        %1072 = vmatprep.subr.mxu0 %v1031
        %1073 = vmatpush1.msra.mxu0 %v1030
        %1074 = vmatprep.subr.mxu0 %v1034
        %1075 = vmatpush1.msra.mxu0 %v1033
        %1076 = vmatprep.subr.mxu0 0.0
        %1077 = vmatpush1.msra.mxu0 0.0
        %1078 = vmatprep.subr.mxu0 0.0
        %1079 = vmatpush1.msra.mxu0 0.0
        %1080 = vmatprep.subr.mxu0 0.0
        %1081 = vmatpush1.msra.mxu0 0.0
        %1082 = vmatprep.subr.mxu0 0.0
        %1083 = vmatpush1.msra.mxu0 0.0
        %1084 = vmatprep.subr.mxu0 0.0
        %1085 = vmatpush1.msra.mxu0 0.0
        %1086 = vmatprep.subr.mxu0 0.0
        %1087 = vmatpush1.msra.mxu0 0.0
        %1088 = vmatprep.subr.mxu0 0.0
        %1089 = vmatpush1.msra.mxu0 0.0
        %1090 = vmatprep.subr.mxu0 0.0
        %1091 = vmatpush1.msra.mxu0 0.0
        %1092 = vmatprep.subr.mxu0 0.0
        %1093 = vmatpush1.msra.mxu0 0.0
        %1094 = vmatprep.subr.mxu0 0.0
        %1095 = vmatpush1.msra.mxu0 0.0
        %1096 = vmatprep.subr.mxu0 0.0
        %1097 = vmatpush1.msra.mxu0 0.0
        %1098 = vmatprep.subr.mxu0 0.0
        %1099 = vmatpush1.msra.mxu0 0.0
        %1100 = vmatprep.subr.mxu0 0.0
        %1101 = vmatpush1.msra.mxu0 0.0
        %1102 = vmatprep.subr.mxu0 0.0
        %1103 = vmatpush1.msra.mxu0 0.0
        %1104 = vmatprep.subr.mxu0 0.0
        %1105 = vmatpush1.msra.mxu0 0.0
        %1106 = vmatprep.subr.mxu0 0.0
        %1107 = vmatpush1.msra.mxu0 0.0
        %1108 = vmatprep.subr.mxu0 0.0
        %1109 = vmatpush1.msra.mxu0 0.0
        %1110 = vmatprep.subr.mxu0 0.0
        %1111 = vmatpush1.msra.mxu0 0.0
        %1112 = vmatprep.subr.mxu0 0.0
        %1113 = vmatpush1.msra.mxu0 0.0
        %1114 = vmatprep.subr.mxu0 0.0
        %1115 = vmatpush1.msra.mxu0 0.0
        %1116 = vmatprep.subr.mxu0 0.0
        %1117 = vmatpush1.msra.mxu0 0.0
        %1118 = vmatprep.subr.mxu0 0.0
        %1119 = vmatpush1.msra.mxu0 0.0
        %1120 = vmatprep.subr.mxu0 0.0
        %1121 = vmatpush1.msra.mxu0 0.0
        %1122 = vmatprep.subr.mxu0 0.0
        %1123 = vmatpush1.msra.mxu0 0.0
        %1124 = vmatprep.mubr.f32.mxu0 0.0
        %1125 = vmatmul.mubr.f32.gmra.mrb[0].mxu0 %v1037
        %v1126 = vpop.f32.mrb[0].mxu0
        %v1127 = vadd.f32 0.0, %v1126
        %v1128 = vpop.f32.mrb[0].mxu0
        %v1129 = vadd.f32 0.0, %v1128
        %1130 = vmatprep.mubr.f32.mxu0 0.0
        %1131 = vmatmul.mubr.f32.gmra.mrb[0].mxu0 %v1040
        %v1132 = vpop.f32.mrb[0].mxu0
        %v1133 = vadd.f32 0.0, %v1132
        %v1134 = vpop.f32.mrb[0].mxu0
        %v1135 = vadd.f32 0.0, %v1134
        %1136 = vmatprep.mubr.f32.mxu0 0.0
        %1137 = vmatmul.mubr.f32.gmra.mrb[0].mxu0 %v1043
        %v1138 = vpop.f32.mrb[0].mxu0
        %v1139 = vadd.f32 0.0, %v1138
        %v1140 = vpop.f32.mrb[0].mxu0
        %v1141 = vadd.f32 0.0, %v1140
        %1142 = vmatprep.mubr.f32.mxu0 0.0
        %1143 = vmatmul.mubr.f32.gmra.mrb[0].mxu0 %v1046
        %v1144 = vpop.f32.mrb[0].mxu0
        %v1145 = vadd.f32 0.0, %v1144
        %v1146 = vpop.f32.mrb[0].mxu0
        %v1147 = vadd.f32 0.0, %v1146
        %1148 = vmatprep.mubr.f32.mxu0 0.0
        %1149 = vmatmul.mubr.f32.gmra.mrb[0].mxu0 %v1049
        %v1150 = vpop.f32.mrb[0].mxu0
        %v1151 = vadd.f32 0.0, %v1150
        %v1152 = vpop.f32.mrb[0].mxu0
        %v1153 = vadd.f32 0.0, %v1152
        %1154 = vmatprep.mubr.f32.mxu0 0.0
        %1155 = vmatmul.mubr.f32.gmra.mrb[0].mxu0 %v1052
        %v1156 = vpop.f32.mrb[0].mxu0
        %v1157 = vadd.f32 0.0, %v1156
        %v1158 = vpop.f32.mrb[0].mxu0
        %v1159 = vadd.f32 0.0, %v1158
        %1160 = vmatprep.mubr.f32.mxu0 0.0
        %1161 = vmatmul.mubr.f32.gmra.mrb[0].mxu0 %v1055
        %v1162 = vpop.f32.mrb[0].mxu0
        %v1163 = vadd.f32 0.0, %v1162
        %v1164 = vpop.f32.mrb[0].mxu0
        %v1165 = vadd.f32 0.0, %v1164
        %1166 = vmatprep.mubr.f32.mxu0 0.0
        %1167 = vmatmul.mubr.f32.gmra.mrb[0].mxu0 %v1058
        %v1168 = vpop.f32.mrb[0].mxu0
        %v1169 = vadd.f32 0.0, %v1168
        %v1170 = vpop.f32.mrb[0].mxu0
        %v1171 = vadd.f32 0.0, %v1170
        %1172 = vdwg.mxu0
        %1173 = vmatprep.subr.mxu0 0.0
        %1174 = vmatpush1.msra.mxu0 %v1014
        %1175 = vmatprep.subr.mxu0 0.0
        %1176 = vmatpush1.msra.mxu0 %v1017
        %1177 = vmatprep.subr.mxu0 0.0
        %1178 = vmatpush1.msra.mxu0 %v1020
        %1179 = vmatprep.subr.mxu0 0.0
        %1180 = vmatpush1.msra.mxu0 %v1023
        %1181 = vmatprep.subr.mxu0 0.0
        %1182 = vmatpush1.msra.mxu0 %v1026
        %1183 = vmatprep.subr.mxu0 0.0
        %1184 = vmatpush1.msra.mxu0 %v1029
        %1185 = vmatprep.subr.mxu0 0.0
        %1186 = vmatpush1.msra.mxu0 %v1032
        %1187 = vmatprep.subr.mxu0 0.0
        %1188 = vmatpush1.msra.mxu0 %v1035
        %1189 = vmatprep.subr.mxu0 0.0
        %1190 = vmatpush1.msra.mxu0 0.0
        %1191 = vmatprep.subr.mxu0 0.0
        %1192 = vmatpush1.msra.mxu0 0.0
        %1193 = vmatprep.subr.mxu0 0.0
        %1194 = vmatpush1.msra.mxu0 0.0
        %1195 = vmatprep.subr.mxu0 0.0
        %1196 = vmatpush1.msra.mxu0 0.0
        %1197 = vmatprep.subr.mxu0 0.0
        %1198 = vmatpush1.msra.mxu0 0.0
        %1199 = vmatprep.subr.mxu0 0.0
        %1200 = vmatpush1.msra.mxu0 0.0
        %1201 = vmatprep.subr.mxu0 0.0
        %1202 = vmatpush1.msra.mxu0 0.0
        %1203 = vmatprep.subr.mxu0 0.0
        %1204 = vmatpush1.msra.mxu0 0.0
        %1205 = vmatprep.subr.mxu0 0.0
        %1206 = vmatpush1.msra.mxu0 0.0
        %1207 = vmatprep.subr.mxu0 0.0
        %1208 = vmatpush1.msra.mxu0 0.0
        %1209 = vmatprep.subr.mxu0 0.0
        %1210 = vmatpush1.msra.mxu0 0.0
        %1211 = vmatprep.subr.mxu0 0.0
        %1212 = vmatpush1.msra.mxu0 0.0
        %1213 = vmatprep.subr.mxu0 0.0
        %1214 = vmatpush1.msra.mxu0 0.0
        %1215 = vmatprep.subr.mxu0 0.0
        %1216 = vmatpush1.msra.mxu0 0.0
        %1217 = vmatprep.subr.mxu0 0.0
        %1218 = vmatpush1.msra.mxu0 0.0
        %1219 = vmatprep.subr.mxu0 0.0
        %1220 = vmatpush1.msra.mxu0 0.0
        %1221 = vmatprep.subr.mxu0 0.0
        %1222 = vmatpush1.msra.mxu0 0.0
        %1223 = vmatprep.subr.mxu0 0.0
        %1224 = vmatpush1.msra.mxu0 0.0
        %1225 = vmatprep.subr.mxu0 0.0
        %1226 = vmatpush1.msra.mxu0 0.0
        %1227 = vmatprep.subr.mxu0 0.0
        %1228 = vmatpush1.msra.mxu0 0.0
        %1229 = vmatprep.subr.mxu0 0.0
        %1230 = vmatpush1.msra.mxu0 0.0
        %1231 = vmatprep.subr.mxu0 0.0
        %1232 = vmatpush1.msra.mxu0 0.0
        %1233 = vmatprep.subr.mxu0 0.0
        %1234 = vmatpush1.msra.mxu0 0.0
        %1235 = vmatprep.subr.mxu0 0.0
        %1236 = vmatpush1.msra.mxu0 0.0
        %1237 = vmatprep.mubr.f32.mxu0 0.0
        %1238 = vmatmul.mubr.f32.gmra.mrb[0].mxu0 %v1037
        %v1239 = vpop.f32.mrb[0].mxu0
        %v1240 = vadd.f32 0.0, %v1239
        %v1241 = vpop.f32.mrb[0].mxu0
        %1242 = vmatprep.mubr.f32.mxu0 0.0
        %1243 = vmatmul.mubr.f32.gmra.mrb[0].mxu0 %v1040
        %v1244 = vpop.f32.mrb[0].mxu0
        %v1245 = vadd.f32 0.0, %v1244
        %v1246 = vpop.f32.mrb[0].mxu0
        %1247 = vmatprep.mubr.f32.mxu0 0.0
        %1248 = vmatmul.mubr.f32.gmra.mrb[0].mxu0 %v1043
        %v1249 = vpop.f32.mrb[0].mxu0
        %v1250 = vadd.f32 0.0, %v1249
        %v1251 = vpop.f32.mrb[0].mxu0
        %1252 = vmatprep.mubr.f32.mxu0 0.0
        %1253 = vmatmul.mubr.f32.gmra.mrb[0].mxu0 %v1046
        %v1254 = vpop.f32.mrb[0].mxu0
        %v1255 = vadd.f32 0.0, %v1254
        %v1256 = vpop.f32.mrb[0].mxu0
        %1257 = vmatprep.mubr.f32.mxu0 0.0
        %1258 = vmatmul.mubr.f32.gmra.mrb[0].mxu0 %v1049
        %v1259 = vpop.f32.mrb[0].mxu0
        %v1260 = vadd.f32 0.0, %v1259
        %v1261 = vpop.f32.mrb[0].mxu0
        %1262 = vmatprep.mubr.f32.mxu0 0.0
        %1263 = vmatmul.mubr.f32.gmra.mrb[0].mxu0 %v1052
        %v1264 = vpop.f32.mrb[0].mxu0
        %v1265 = vadd.f32 0.0, %v1264
        %v1266 = vpop.f32.mrb[0].mxu0
        %1267 = vmatprep.mubr.f32.mxu0 0.0
        %1268 = vmatmul.mubr.f32.gmra.mrb[0].mxu0 %v1055
        %v1269 = vpop.f32.mrb[0].mxu0
        %v1270 = vadd.f32 0.0, %v1269
        %v1271 = vpop.f32.mrb[0].mxu0
        %1272 = vmatprep.mubr.f32.mxu0 0.0
        %1273 = vmatmul.mubr.f32.gmra.mrb[0].mxu0 %v1058
        %v1274 = vpop.f32.mrb[0].mxu0
        %v1275 = vadd.f32 0.0, %v1274
        %v1276 = vpop.f32.mrb[0].mxu0
        %1277 = vdwg.mxu0
        %v1278 = vadd.f32 %v851, %v1127
        %v1279 = vadd.f32 %v853, %v1129
        %v1280 = vadd.f32 %v964, %v1240
        %v1281 = vadd.f32 %v857, %v1133
        %v1282 = vadd.f32 %v859, %v1135
        %v1283 = vadd.f32 %v969, %v1245
        %v1284 = vadd.f32 %v863, %v1139
        %v1285 = vadd.f32 %v865, %v1141
        %v1286 = vadd.f32 %v974, %v1250
        %v1287 = vadd.f32 %v869, %v1145
        %v1288 = vadd.f32 %v871, %v1147
        %v1289 = vadd.f32 %v979, %v1255
        %v1290 = vadd.f32 %v875, %v1151
        %v1291 = vadd.f32 %v877, %v1153
        %v1292 = vadd.f32 %v984, %v1260
        %v1293 = vadd.f32 %v881, %v1157
        %v1294 = vadd.f32 %v883, %v1159
        %v1295 = vadd.f32 %v989, %v1265
        %v1296 = vadd.f32 %v887, %v1163
        %v1297 = vadd.f32 %v889, %v1165
        %v1298 = vadd.f32 %v994, %v1270
        %v1299 = vadd.f32 %v893, %v1169
        %v1300 = vadd.f32 %v895, %v1171
        %v1301 = vadd.f32 %v999, %v1275
        %v1302 = vld [vmem:[%s383 + $0x1] sm:$0xff]
        %v1303 = vld [vmem:[%s383 + $0x9] sm:$0xff]
        %v1304 = vld [vmem:[%s383 + $0x11] sm:$0xff]
        %v1305 = vld [vmem:[%s383 + $0x19] sm:$0xff]
        %v1306 = vld [vmem:[%s383 + $0x21] sm:$0xff]
        %v1307 = vld [vmem:[%s383 + $0x29] sm:$0xff]
        %v1308 = vld [vmem:[%s383 + $0x31] sm:$0xff]
        %v1309 = vld [vmem:[%s383 + $0x39] sm:$0xf]
        %s1310 = scalar_lea.vmem [#allocation4], 576
        %v1311 = vld [vmem:[%s1310] sm:$0xff]
        %v1312 = vld [vmem:[%s1310 + $0x8] sm:$0xff]
        %v1313 = vld [vmem:[%s1310 + $0x10] sm:$0xff]
        %v1314 = vld [vmem:[%s1310 + $0x18] sm:$0xff]
        %v1315 = vld [vmem:[%s1310 + $0x20] sm:$0xff]
        %v1316 = vld [vmem:[%s1310 + $0x28] sm:$0xff]
        %v1317 = vld [vmem:[%s1310 + $0x30] sm:$0xff]
        %v1318 = vld [vmem:[%s1310 + $0x38] sm:$0xff]
        %v1319 = vld [vmem:[%s1310 + $0x40] sm:$0xff]
        %v1320 = vld [vmem:[%s1310 + $0x48] sm:$0xff]
        %v1321 = vld [vmem:[%s1310 + $0x50] sm:$0xff]
        %v1322 = vld [vmem:[%s1310 + $0x58] sm:$0xff]
        %v1323 = vld [vmem:[%s1310 + $0x60] sm:$0xff]
        %v1324 = vld [vmem:[%s1310 + $0x68] sm:$0xff]
        %v1325 = vld [vmem:[%s1310 + $0x70] sm:$0xff]
        %v1326 = vld [vmem:[%s1310 + $0x78] sm:$0xff]
        %v1327 = vld [vmem:[%s1310 + $0x80] sm:$0xff]
        %v1328 = vld [vmem:[%s1310 + $0x88] sm:$0xff]
        %v1329 = vld [vmem:[%s1310 + $0x90] sm:$0xff]
        %v1330 = vld [vmem:[%s1310 + $0x98] sm:$0xff]
        %v1331 = vld [vmem:[%s1310 + $0xa0] sm:$0xff]
        %v1332 = vld [vmem:[%s1310 + $0xa8] sm:$0xff]
        %v1333 = vld [vmem:[%s1310 + $0xb0] sm:$0xff]
        %v1334 = vld [vmem:[%s1310 + $0xb8] sm:$0xff]
        %v1336 = vsel %vm517, %v1302, 0
        %v1339 = vsel %vm517, %v1303, 0
        %v1342 = vsel %vm517, %v1304, 0
        %v1345 = vsel %vm517, %v1305, 0
        %v1348 = vsel %vm517, %v1306, 0
        %v1351 = vsel %vm517, %v1307, 0
        %v1354 = vsel %vm517, %v1308, 0
        %v1357 = vsel %vm517, %v1309, 0
        %1359 = vmatprep.subr.mxu0 %v1312
        %1360 = vmatpush1.msra.mxu0 %v1311
        %1361 = vmatprep.subr.mxu0 %v1315
        %1362 = vmatpush1.msra.mxu0 %v1314
        %1363 = vmatprep.subr.mxu0 %v1318
        %1364 = vmatpush1.msra.mxu0 %v1317
        %1365 = vmatprep.subr.mxu0 %v1321
        %1366 = vmatpush1.msra.mxu0 %v1320
        %1367 = vmatprep.subr.mxu0 %v1324
        %1368 = vmatpush1.msra.mxu0 %v1323
        %1369 = vmatprep.subr.mxu0 %v1327
        %1370 = vmatpush1.msra.mxu0 %v1326
        %1371 = vmatprep.subr.mxu0 %v1330
        %1372 = vmatpush1.msra.mxu0 %v1329
        %1373 = vmatprep.subr.mxu0 %v1333
        %1374 = vmatpush1.msra.mxu0 %v1332
        %1375 = vmatprep.subr.mxu0 0.0
        %1376 = vmatpush1.msra.mxu0 0.0
        %1377 = vmatprep.subr.mxu0 0.0
        %1378 = vmatpush1.msra.mxu0 0.0
        %1379 = vmatprep.subr.mxu0 0.0
        %1380 = vmatpush1.msra.mxu0 0.0
        %1381 = vmatprep.subr.mxu0 0.0
        %1382 = vmatpush1.msra.mxu0 0.0
        %1383 = vmatprep.subr.mxu0 0.0
        %1384 = vmatpush1.msra.mxu0 0.0
        %1385 = vmatprep.subr.mxu0 0.0
        %1386 = vmatpush1.msra.mxu0 0.0
        %1387 = vmatprep.subr.mxu0 0.0
        %1388 = vmatpush1.msra.mxu0 0.0
        %1389 = vmatprep.subr.mxu0 0.0
        %1390 = vmatpush1.msra.mxu0 0.0
        %1391 = vmatprep.subr.mxu0 0.0
        %1392 = vmatpush1.msra.mxu0 0.0
        %1393 = vmatprep.subr.mxu0 0.0
        %1394 = vmatpush1.msra.mxu0 0.0
        %1395 = vmatprep.subr.mxu0 0.0
        %1396 = vmatpush1.msra.mxu0 0.0
        %1397 = vmatprep.subr.mxu0 0.0
        %1398 = vmatpush1.msra.mxu0 0.0
        %1399 = vmatprep.subr.mxu0 0.0
        %1400 = vmatpush1.msra.mxu0 0.0
        %1401 = vmatprep.subr.mxu0 0.0
        %1402 = vmatpush1.msra.mxu0 0.0
        %1403 = vmatprep.subr.mxu0 0.0
        %1404 = vmatpush1.msra.mxu0 0.0
        %1405 = vmatprep.subr.mxu0 0.0
        %1406 = vmatpush1.msra.mxu0 0.0
        %1407 = vmatprep.subr.mxu0 0.0
        %1408 = vmatpush1.msra.mxu0 0.0
        %1409 = vmatprep.subr.mxu0 0.0
        %1410 = vmatpush1.msra.mxu0 0.0
        %1411 = vmatprep.subr.mxu0 0.0
        %1412 = vmatpush1.msra.mxu0 0.0
        %1413 = vmatprep.subr.mxu0 0.0
        %1414 = vmatpush1.msra.mxu0 0.0
        %1415 = vmatprep.subr.mxu0 0.0
        %1416 = vmatpush1.msra.mxu0 0.0
        %1417 = vmatprep.subr.mxu0 0.0
        %1418 = vmatpush1.msra.mxu0 0.0
        %1419 = vmatprep.subr.mxu0 0.0
        %1420 = vmatpush1.msra.mxu0 0.0
        %1421 = vmatprep.subr.mxu0 0.0
        %1422 = vmatpush1.msra.mxu0 0.0
        %1423 = vmatprep.mubr.f32.mxu0 0.0
        %1424 = vmatmul.mubr.f32.gmra.mrb[0].mxu0 %v1336
        %v1425 = vpop.f32.mrb[0].mxu0
        %v1426 = vadd.f32 0.0, %v1425
        %v1427 = vpop.f32.mrb[0].mxu0
        %v1428 = vadd.f32 0.0, %v1427
        %1429 = vmatprep.mubr.f32.mxu0 0.0
        %1430 = vmatmul.mubr.f32.gmra.mrb[0].mxu0 %v1339
        %v1431 = vpop.f32.mrb[0].mxu0
        %v1432 = vadd.f32 0.0, %v1431
        %v1433 = vpop.f32.mrb[0].mxu0
        %v1434 = vadd.f32 0.0, %v1433
        %1435 = vmatprep.mubr.f32.mxu0 0.0
        %1436 = vmatmul.mubr.f32.gmra.mrb[0].mxu0 %v1342
        %v1437 = vpop.f32.mrb[0].mxu0
        %v1438 = vadd.f32 0.0, %v1437
        %v1439 = vpop.f32.mrb[0].mxu0
        %v1440 = vadd.f32 0.0, %v1439
        %1441 = vmatprep.mubr.f32.mxu0 0.0
        %1442 = vmatmul.mubr.f32.gmra.mrb[0].mxu0 %v1345
        %v1443 = vpop.f32.mrb[0].mxu0
        %v1444 = vadd.f32 0.0, %v1443
        %v1445 = vpop.f32.mrb[0].mxu0
        %v1446 = vadd.f32 0.0, %v1445
        %1447 = vmatprep.mubr.f32.mxu0 0.0
        %1448 = vmatmul.mubr.f32.gmra.mrb[0].mxu0 %v1348
        %v1449 = vpop.f32.mrb[0].mxu0
        %v1450 = vadd.f32 0.0, %v1449
        %v1451 = vpop.f32.mrb[0].mxu0
        %v1452 = vadd.f32 0.0, %v1451
        %1453 = vmatprep.mubr.f32.mxu0 0.0
        %1454 = vmatmul.mubr.f32.gmra.mrb[0].mxu0 %v1351
        %v1455 = vpop.f32.mrb[0].mxu0
        %v1456 = vadd.f32 0.0, %v1455
        %v1457 = vpop.f32.mrb[0].mxu0
        %v1458 = vadd.f32 0.0, %v1457
        %1459 = vmatprep.mubr.f32.mxu0 0.0
        %1460 = vmatmul.mubr.f32.gmra.mrb[0].mxu0 %v1354
        %v1461 = vpop.f32.mrb[0].mxu0
        %v1462 = vadd.f32 0.0, %v1461
        %v1463 = vpop.f32.mrb[0].mxu0
        %v1464 = vadd.f32 0.0, %v1463
        %1465 = vmatprep.mubr.f32.mxu0 0.0
        %1466 = vmatmul.mubr.f32.gmra.mrb[0].mxu0 %v1357
        %v1467 = vpop.f32.mrb[0].mxu0
        %v1468 = vadd.f32 0.0, %v1467
        %v1469 = vpop.f32.mrb[0].mxu0
        %v1470 = vadd.f32 0.0, %v1469
        %1471 = vdwg.mxu0
        %1472 = vmatprep.subr.mxu0 0.0
        %1473 = vmatpush1.msra.mxu0 %v1313
        %1474 = vmatprep.subr.mxu0 0.0
        %1475 = vmatpush1.msra.mxu0 %v1316
        %1476 = vmatprep.subr.mxu0 0.0
        %1477 = vmatpush1.msra.mxu0 %v1319
        %1478 = vmatprep.subr.mxu0 0.0
        %1479 = vmatpush1.msra.mxu0 %v1322
        %1480 = vmatprep.subr.mxu0 0.0
        %1481 = vmatpush1.msra.mxu0 %v1325
        %1482 = vmatprep.subr.mxu0 0.0
        %1483 = vmatpush1.msra.mxu0 %v1328
        %1484 = vmatprep.subr.mxu0 0.0
        %1485 = vmatpush1.msra.mxu0 %v1331
        %1486 = vmatprep.subr.mxu0 0.0
        %1487 = vmatpush1.msra.mxu0 %v1334
        %1488 = vmatprep.subr.mxu0 0.0
        %1489 = vmatpush1.msra.mxu0 0.0
        %1490 = vmatprep.subr.mxu0 0.0
        %1491 = vmatpush1.msra.mxu0 0.0
        %1492 = vmatprep.subr.mxu0 0.0
        %1493 = vmatpush1.msra.mxu0 0.0
        %1494 = vmatprep.subr.mxu0 0.0
        %1495 = vmatpush1.msra.mxu0 0.0
        %1496 = vmatprep.subr.mxu0 0.0
        %1497 = vmatpush1.msra.mxu0 0.0
        %1498 = vmatprep.subr.mxu0 0.0
        %1499 = vmatpush1.msra.mxu0 0.0
        %1500 = vmatprep.subr.mxu0 0.0
        %1501 = vmatpush1.msra.mxu0 0.0
        %1502 = vmatprep.subr.mxu0 0.0
        %1503 = vmatpush1.msra.mxu0 0.0
        %1504 = vmatprep.subr.mxu0 0.0
        %1505 = vmatpush1.msra.mxu0 0.0
        %1506 = vmatprep.subr.mxu0 0.0
        %1507 = vmatpush1.msra.mxu0 0.0
        %1508 = vmatprep.subr.mxu0 0.0
        %1509 = vmatpush1.msra.mxu0 0.0
        %1510 = vmatprep.subr.mxu0 0.0
        %1511 = vmatpush1.msra.mxu0 0.0
        %1512 = vmatprep.subr.mxu0 0.0
        %1513 = vmatpush1.msra.mxu0 0.0
        %1514 = vmatprep.subr.mxu0 0.0
        %1515 = vmatpush1.msra.mxu0 0.0
        %1516 = vmatprep.subr.mxu0 0.0
        %1517 = vmatpush1.msra.mxu0 0.0
        %1518 = vmatprep.subr.mxu0 0.0
        %1519 = vmatpush1.msra.mxu0 0.0
        %1520 = vmatprep.subr.mxu0 0.0
        %1521 = vmatpush1.msra.mxu0 0.0
        %1522 = vmatprep.subr.mxu0 0.0
        %1523 = vmatpush1.msra.mxu0 0.0
        %1524 = vmatprep.subr.mxu0 0.0
        %1525 = vmatpush1.msra.mxu0 0.0
        %1526 = vmatprep.subr.mxu0 0.0
        %1527 = vmatpush1.msra.mxu0 0.0
        %1528 = vmatprep.subr.mxu0 0.0
        %1529 = vmatpush1.msra.mxu0 0.0
        %1530 = vmatprep.subr.mxu0 0.0
        %1531 = vmatpush1.msra.mxu0 0.0
        %1532 = vmatprep.subr.mxu0 0.0
        %1533 = vmatpush1.msra.mxu0 0.0
        %1534 = vmatprep.subr.mxu0 0.0
        %1535 = vmatpush1.msra.mxu0 0.0
        %1536 = vmatprep.mubr.f32.mxu0 0.0
        %1537 = vmatmul.mubr.f32.gmra.mrb[0].mxu0 %v1336
        %v1538 = vpop.f32.mrb[0].mxu0
        %v1539 = vadd.f32 0.0, %v1538
        %v1540 = vpop.f32.mrb[0].mxu0
        %1541 = vmatprep.mubr.f32.mxu0 0.0
        %1542 = vmatmul.mubr.f32.gmra.mrb[0].mxu0 %v1339
        %v1543 = vpop.f32.mrb[0].mxu0
        %v1544 = vadd.f32 0.0, %v1543
        %v1545 = vpop.f32.mrb[0].mxu0
        %1546 = vmatprep.mubr.f32.mxu0 0.0
        %1547 = vmatmul.mubr.f32.gmra.mrb[0].mxu0 %v1342
        %v1548 = vpop.f32.mrb[0].mxu0
        %v1549 = vadd.f32 0.0, %v1548
        %v1550 = vpop.f32.mrb[0].mxu0
        %1551 = vmatprep.mubr.f32.mxu0 0.0
        %1552 = vmatmul.mubr.f32.gmra.mrb[0].mxu0 %v1345
        %v1553 = vpop.f32.mrb[0].mxu0
        %v1554 = vadd.f32 0.0, %v1553
        %v1555 = vpop.f32.mrb[0].mxu0
        %1556 = vmatprep.mubr.f32.mxu0 0.0
        %1557 = vmatmul.mubr.f32.gmra.mrb[0].mxu0 %v1348
        %v1558 = vpop.f32.mrb[0].mxu0
        %v1559 = vadd.f32 0.0, %v1558
        %v1560 = vpop.f32.mrb[0].mxu0
        %1561 = vmatprep.mubr.f32.mxu0 0.0
        %1562 = vmatmul.mubr.f32.gmra.mrb[0].mxu0 %v1351
        %v1563 = vpop.f32.mrb[0].mxu0
        %v1564 = vadd.f32 0.0, %v1563
        %v1565 = vpop.f32.mrb[0].mxu0
        %1566 = vmatprep.mubr.f32.mxu0 0.0
        %1567 = vmatmul.mubr.f32.gmra.mrb[0].mxu0 %v1354
        %v1568 = vpop.f32.mrb[0].mxu0
        %v1569 = vadd.f32 0.0, %v1568
        %v1570 = vpop.f32.mrb[0].mxu0
        %1571 = vmatprep.mubr.f32.mxu0 0.0
        %1572 = vmatmul.mubr.f32.gmra.mrb[0].mxu0 %v1357
        %v1573 = vpop.f32.mrb[0].mxu0
        %v1574 = vadd.f32 0.0, %v1573
        %v1575 = vpop.f32.mrb[0].mxu0
        %1576 = vdwg.mxu0
        %v1577 = vadd.f32 %v1278, %v1426
        %v1578 = vadd.f32 %v1279, %v1428
        %v1579 = vadd.f32 %v1280, %v1539
        %v1580 = vadd.f32 %v1281, %v1432
        %v1581 = vadd.f32 %v1282, %v1434
        %v1582 = vadd.f32 %v1283, %v1544
        %v1583 = vadd.f32 %v1284, %v1438
        %v1584 = vadd.f32 %v1285, %v1440
        %v1585 = vadd.f32 %v1286, %v1549
        %v1586 = vadd.f32 %v1287, %v1444
        %v1587 = vadd.f32 %v1288, %v1446
        %v1588 = vadd.f32 %v1289, %v1554
        %v1589 = vadd.f32 %v1290, %v1450
        %v1590 = vadd.f32 %v1291, %v1452
        %v1591 = vadd.f32 %v1292, %v1559
        %v1592 = vadd.f32 %v1293, %v1456
        %v1593 = vadd.f32 %v1294, %v1458
        %v1594 = vadd.f32 %v1295, %v1564
        %v1595 = vadd.f32 %v1296, %v1462
        %v1596 = vadd.f32 %v1297, %v1464
        %v1597 = vadd.f32 %v1298, %v1569
        %v1598 = vadd.f32 %v1299, %v1468
        %v1599 = vadd.f32 %v1300, %v1470
        %v1600 = vadd.f32 %v1301, %v1574
        %v1601 = vld [vmem:[%s483 + $0x1] sm:$0xff]
        %v1602 = vld [vmem:[%s483 + $0x9] sm:$0xff]
        %v1603 = vld [vmem:[%s483 + $0x11] sm:$0xff]
        %v1604 = vld [vmem:[%s483 + $0x19] sm:$0xff]
        %v1605 = vld [vmem:[%s483 + $0x21] sm:$0xff]
        %v1606 = vld [vmem:[%s483 + $0x29] sm:$0xff]
        %v1607 = vld [vmem:[%s483 + $0x31] sm:$0xff]
        %v1608 = vld [vmem:[%s483 + $0x39] sm:$0xf]
        %s1609 = scalar_lea.vmem [#allocation4], 768
        %v1610 = vld [vmem:[%s1609] sm:$0xff]
        %v1611 = vld [vmem:[%s1609 + $0x8] sm:$0xff]
        %v1612 = vld [vmem:[%s1609 + $0x10] sm:$0xff]
        %v1613 = vld [vmem:[%s1609 + $0x18] sm:$0xff]
        %v1614 = vld [vmem:[%s1609 + $0x20] sm:$0xff]
        %v1615 = vld [vmem:[%s1609 + $0x28] sm:$0xff]
        %v1616 = vld [vmem:[%s1609 + $0x30] sm:$0xff]
        %v1617 = vld [vmem:[%s1609 + $0x38] sm:$0xff]
        %v1618 = vld [vmem:[%s1609 + $0x40] sm:$0xff]
        %v1619 = vld [vmem:[%s1609 + $0x48] sm:$0xff]
        %v1620 = vld [vmem:[%s1609 + $0x50] sm:$0xff]
        %v1621 = vld [vmem:[%s1609 + $0x58] sm:$0xff]
        %v1622 = vld [vmem:[%s1609 + $0x60] sm:$0xff]
        %v1623 = vld [vmem:[%s1609 + $0x68] sm:$0xff]
        %v1624 = vld [vmem:[%s1609 + $0x70] sm:$0xff]
        %v1625 = vld [vmem:[%s1609 + $0x78] sm:$0xff]
        %v1626 = vld [vmem:[%s1609 + $0x80] sm:$0xff]
        %v1627 = vld [vmem:[%s1609 + $0x88] sm:$0xff]
        %v1628 = vld [vmem:[%s1609 + $0x90] sm:$0xff]
        %v1629 = vld [vmem:[%s1609 + $0x98] sm:$0xff]
        %v1630 = vld [vmem:[%s1609 + $0xa0] sm:$0xff]
        %v1631 = vld [vmem:[%s1609 + $0xa8] sm:$0xff]
        %v1632 = vld [vmem:[%s1609 + $0xb0] sm:$0xff]
        %v1633 = vld [vmem:[%s1609 + $0xb8] sm:$0xff]
        %v1635 = vsel %vm517, %v1601, 0
        %v1638 = vsel %vm517, %v1602, 0
        %v1641 = vsel %vm517, %v1603, 0
        %v1644 = vsel %vm517, %v1604, 0
        %v1647 = vsel %vm517, %v1605, 0
        %v1650 = vsel %vm517, %v1606, 0
        %v1653 = vsel %vm517, %v1607, 0
        %v1656 = vsel %vm517, %v1608, 0
        %1658 = vmatprep.subr.mxu0 %v1611
        %1659 = vmatpush1.msra.mxu0 %v1610
        %1660 = vmatprep.subr.mxu0 %v1614
        %1661 = vmatpush1.msra.mxu0 %v1613
        %1662 = vmatprep.subr.mxu0 %v1617
        %1663 = vmatpush1.msra.mxu0 %v1616
        %1664 = vmatprep.subr.mxu0 %v1620
        %1665 = vmatpush1.msra.mxu0 %v1619
        %1666 = vmatprep.subr.mxu0 %v1623
        %1667 = vmatpush1.msra.mxu0 %v1622
        %1668 = vmatprep.subr.mxu0 %v1626
        %1669 = vmatpush1.msra.mxu0 %v1625
        %1670 = vmatprep.subr.mxu0 %v1629
        %1671 = vmatpush1.msra.mxu0 %v1628
        %1672 = vmatprep.subr.mxu0 %v1632
        %1673 = vmatpush1.msra.mxu0 %v1631
        %1674 = vmatprep.subr.mxu0 0.0
        %1675 = vmatpush1.msra.mxu0 0.0
        %1676 = vmatprep.subr.mxu0 0.0
        %1677 = vmatpush1.msra.mxu0 0.0
        %1678 = vmatprep.subr.mxu0 0.0
        %1679 = vmatpush1.msra.mxu0 0.0
        %1680 = vmatprep.subr.mxu0 0.0
        %1681 = vmatpush1.msra.mxu0 0.0
        %1682 = vmatprep.subr.mxu0 0.0
        %1683 = vmatpush1.msra.mxu0 0.0
        %1684 = vmatprep.subr.mxu0 0.0
        %1685 = vmatpush1.msra.mxu0 0.0
        %1686 = vmatprep.subr.mxu0 0.0
        %1687 = vmatpush1.msra.mxu0 0.0
        %1688 = vmatprep.subr.mxu0 0.0
        %1689 = vmatpush1.msra.mxu0 0.0
        %1690 = vmatprep.subr.mxu0 0.0
        %1691 = vmatpush1.msra.mxu0 0.0
        %1692 = vmatprep.subr.mxu0 0.0
        %1693 = vmatpush1.msra.mxu0 0.0
        %1694 = vmatprep.subr.mxu0 0.0
        %1695 = vmatpush1.msra.mxu0 0.0
        %1696 = vmatprep.subr.mxu0 0.0
        %1697 = vmatpush1.msra.mxu0 0.0
        %1698 = vmatprep.subr.mxu0 0.0
        %1699 = vmatpush1.msra.mxu0 0.0
        %1700 = vmatprep.subr.mxu0 0.0
        %1701 = vmatpush1.msra.mxu0 0.0
        %1702 = vmatprep.subr.mxu0 0.0
        %1703 = vmatpush1.msra.mxu0 0.0
        %1704 = vmatprep.subr.mxu0 0.0
        %1705 = vmatpush1.msra.mxu0 0.0
        %1706 = vmatprep.subr.mxu0 0.0
        %1707 = vmatpush1.msra.mxu0 0.0
        %1708 = vmatprep.subr.mxu0 0.0
        %1709 = vmatpush1.msra.mxu0 0.0
        %1710 = vmatprep.subr.mxu0 0.0
        %1711 = vmatpush1.msra.mxu0 0.0
        %1712 = vmatprep.subr.mxu0 0.0
        %1713 = vmatpush1.msra.mxu0 0.0
        %1714 = vmatprep.subr.mxu0 0.0
        %1715 = vmatpush1.msra.mxu0 0.0
        %1716 = vmatprep.subr.mxu0 0.0
        %1717 = vmatpush1.msra.mxu0 0.0
        %1718 = vmatprep.subr.mxu0 0.0
        %1719 = vmatpush1.msra.mxu0 0.0
        %1720 = vmatprep.subr.mxu0 0.0
        %1721 = vmatpush1.msra.mxu0 0.0
        %1722 = vmatprep.mubr.f32.mxu0 0.0
        %1723 = vmatmul.mubr.f32.gmra.mrb[0].mxu0 %v1635
        %v1724 = vpop.f32.mrb[0].mxu0
        %v1725 = vadd.f32 0.0, %v1724
        %v1726 = vpop.f32.mrb[0].mxu0
        %v1727 = vadd.f32 0.0, %v1726
        %1728 = vmatprep.mubr.f32.mxu0 0.0
        %1729 = vmatmul.mubr.f32.gmra.mrb[0].mxu0 %v1638
        %v1730 = vpop.f32.mrb[0].mxu0
        %v1731 = vadd.f32 0.0, %v1730
        %v1732 = vpop.f32.mrb[0].mxu0
        %v1733 = vadd.f32 0.0, %v1732
        %1734 = vmatprep.mubr.f32.mxu0 0.0
        %1735 = vmatmul.mubr.f32.gmra.mrb[0].mxu0 %v1641
        %v1736 = vpop.f32.mrb[0].mxu0
        %v1737 = vadd.f32 0.0, %v1736
        %v1738 = vpop.f32.mrb[0].mxu0
        %v1739 = vadd.f32 0.0, %v1738
        %1740 = vmatprep.mubr.f32.mxu0 0.0
        %1741 = vmatmul.mubr.f32.gmra.mrb[0].mxu0 %v1644
        %v1742 = vpop.f32.mrb[0].mxu0
        %v1743 = vadd.f32 0.0, %v1742
        %v1744 = vpop.f32.mrb[0].mxu0
        %v1745 = vadd.f32 0.0, %v1744
        %1746 = vmatprep.mubr.f32.mxu0 0.0
        %1747 = vmatmul.mubr.f32.gmra.mrb[0].mxu0 %v1647
        %v1748 = vpop.f32.mrb[0].mxu0
        %v1749 = vadd.f32 0.0, %v1748
        %v1750 = vpop.f32.mrb[0].mxu0
        %v1751 = vadd.f32 0.0, %v1750
        %1752 = vmatprep.mubr.f32.mxu0 0.0
        %1753 = vmatmul.mubr.f32.gmra.mrb[0].mxu0 %v1650
        %v1754 = vpop.f32.mrb[0].mxu0
        %v1755 = vadd.f32 0.0, %v1754
        %v1756 = vpop.f32.mrb[0].mxu0
        %v1757 = vadd.f32 0.0, %v1756
        %1758 = vmatprep.mubr.f32.mxu0 0.0
        %1759 = vmatmul.mubr.f32.gmra.mrb[0].mxu0 %v1653
        %v1760 = vpop.f32.mrb[0].mxu0
        %v1761 = vadd.f32 0.0, %v1760
        %v1762 = vpop.f32.mrb[0].mxu0
        %v1763 = vadd.f32 0.0, %v1762
        %1764 = vmatprep.mubr.f32.mxu0 0.0
        %1765 = vmatmul.mubr.f32.gmra.mrb[0].mxu0 %v1656
        %v1766 = vpop.f32.mrb[0].mxu0
        %v1767 = vadd.f32 0.0, %v1766
        %v1768 = vpop.f32.mrb[0].mxu0
        %v1769 = vadd.f32 0.0, %v1768
        %1770 = vdwg.mxu0
        %1771 = vmatprep.subr.mxu0 0.0
        %1772 = vmatpush1.msra.mxu0 %v1612
        %1773 = vmatprep.subr.mxu0 0.0
        %1774 = vmatpush1.msra.mxu0 %v1615
        %1775 = vmatprep.subr.mxu0 0.0
        %1776 = vmatpush1.msra.mxu0 %v1618
        %1777 = vmatprep.subr.mxu0 0.0
        %1778 = vmatpush1.msra.mxu0 %v1621
        %1779 = vmatprep.subr.mxu0 0.0
        %1780 = vmatpush1.msra.mxu0 %v1624
        %1781 = vmatprep.subr.mxu0 0.0
        %1782 = vmatpush1.msra.mxu0 %v1627
        %1783 = vmatprep.subr.mxu0 0.0
        %1784 = vmatpush1.msra.mxu0 %v1630
        %1785 = vmatprep.subr.mxu0 0.0
        %1786 = vmatpush1.msra.mxu0 %v1633
        %1787 = vmatprep.subr.mxu0 0.0
        %1788 = vmatpush1.msra.mxu0 0.0
        %1789 = vmatprep.subr.mxu0 0.0
        %1790 = vmatpush1.msra.mxu0 0.0
        %1791 = vmatprep.subr.mxu0 0.0
        %1792 = vmatpush1.msra.mxu0 0.0
        %1793 = vmatprep.subr.mxu0 0.0
        %1794 = vmatpush1.msra.mxu0 0.0
        %1795 = vmatprep.subr.mxu0 0.0
        %1796 = vmatpush1.msra.mxu0 0.0
        %1797 = vmatprep.subr.mxu0 0.0
        %1798 = vmatpush1.msra.mxu0 0.0
        %1799 = vmatprep.subr.mxu0 0.0
        %1800 = vmatpush1.msra.mxu0 0.0
        %1801 = vmatprep.subr.mxu0 0.0
        %1802 = vmatpush1.msra.mxu0 0.0
        %1803 = vmatprep.subr.mxu0 0.0
        %1804 = vmatpush1.msra.mxu0 0.0
        %1805 = vmatprep.subr.mxu0 0.0
        %1806 = vmatpush1.msra.mxu0 0.0
        %1807 = vmatprep.subr.mxu0 0.0
        %1808 = vmatpush1.msra.mxu0 0.0
        %1809 = vmatprep.subr.mxu0 0.0
        %1810 = vmatpush1.msra.mxu0 0.0
        %1811 = vmatprep.subr.mxu0 0.0
        %1812 = vmatpush1.msra.mxu0 0.0
        %1813 = vmatprep.subr.mxu0 0.0
        %1814 = vmatpush1.msra.mxu0 0.0
        %1815 = vmatprep.subr.mxu0 0.0
        %1816 = vmatpush1.msra.mxu0 0.0
        %1817 = vmatprep.subr.mxu0 0.0
        %1818 = vmatpush1.msra.mxu0 0.0
        %1819 = vmatprep.subr.mxu0 0.0
        %1820 = vmatpush1.msra.mxu0 0.0
        %1821 = vmatprep.subr.mxu0 0.0
        %1822 = vmatpush1.msra.mxu0 0.0
        %1823 = vmatprep.subr.mxu0 0.0
        %1824 = vmatpush1.msra.mxu0 0.0
        %1825 = vmatprep.subr.mxu0 0.0
        %1826 = vmatpush1.msra.mxu0 0.0
        %1827 = vmatprep.subr.mxu0 0.0
        %1828 = vmatpush1.msra.mxu0 0.0
        %1829 = vmatprep.subr.mxu0 0.0
        %1830 = vmatpush1.msra.mxu0 0.0
        %1831 = vmatprep.subr.mxu0 0.0
        %1832 = vmatpush1.msra.mxu0 0.0
        %1833 = vmatprep.subr.mxu0 0.0
        %1834 = vmatpush1.msra.mxu0 0.0
        %1835 = vmatprep.mubr.f32.mxu0 0.0
        %1836 = vmatmul.mubr.f32.gmra.mrb[0].mxu0 %v1635
        %v1837 = vpop.f32.mrb[0].mxu0
        %v1838 = vadd.f32 0.0, %v1837
        %v1839 = vpop.f32.mrb[0].mxu0
        %1840 = vmatprep.mubr.f32.mxu0 0.0
        %1841 = vmatmul.mubr.f32.gmra.mrb[0].mxu0 %v1638
        %v1842 = vpop.f32.mrb[0].mxu0
        %v1843 = vadd.f32 0.0, %v1842
        %v1844 = vpop.f32.mrb[0].mxu0
        %1845 = vmatprep.mubr.f32.mxu0 0.0
        %1846 = vmatmul.mubr.f32.gmra.mrb[0].mxu0 %v1641
        %v1847 = vpop.f32.mrb[0].mxu0
        %v1848 = vadd.f32 0.0, %v1847
        %v1849 = vpop.f32.mrb[0].mxu0
        %1850 = vmatprep.mubr.f32.mxu0 0.0
        %1851 = vmatmul.mubr.f32.gmra.mrb[0].mxu0 %v1644
        %v1852 = vpop.f32.mrb[0].mxu0
        %v1853 = vadd.f32 0.0, %v1852
        %v1854 = vpop.f32.mrb[0].mxu0
        %1855 = vmatprep.mubr.f32.mxu0 0.0
        %1856 = vmatmul.mubr.f32.gmra.mrb[0].mxu0 %v1647
        %v1857 = vpop.f32.mrb[0].mxu0
        %v1858 = vadd.f32 0.0, %v1857
        %v1859 = vpop.f32.mrb[0].mxu0
        %1860 = vmatprep.mubr.f32.mxu0 0.0
        %1861 = vmatmul.mubr.f32.gmra.mrb[0].mxu0 %v1650
        %v1862 = vpop.f32.mrb[0].mxu0
        %v1863 = vadd.f32 0.0, %v1862
        %v1864 = vpop.f32.mrb[0].mxu0
        %1865 = vmatprep.mubr.f32.mxu0 0.0
        %1866 = vmatmul.mubr.f32.gmra.mrb[0].mxu0 %v1653
        %v1867 = vpop.f32.mrb[0].mxu0
        %v1868 = vadd.f32 0.0, %v1867
        %v1869 = vpop.f32.mrb[0].mxu0
        %1870 = vmatprep.mubr.f32.mxu0 0.0
        %1871 = vmatmul.mubr.f32.gmra.mrb[0].mxu0 %v1656
        %v1872 = vpop.f32.mrb[0].mxu0
        %v1873 = vadd.f32 0.0, %v1872
        %v1874 = vpop.f32.mrb[0].mxu0
        %1875 = vdwg.mxu0
        %v1876 = vadd.f32 %v1577, %v1725
        %v1877 = vadd.f32 %v1578, %v1727
        %v1878 = vadd.f32 %v1579, %v1838
        %v1879 = vadd.f32 %v1580, %v1731
        %v1880 = vadd.f32 %v1581, %v1733
        %v1881 = vadd.f32 %v1582, %v1843
        %v1882 = vadd.f32 %v1583, %v1737
        %v1883 = vadd.f32 %v1584, %v1739
        %v1884 = vadd.f32 %v1585, %v1848
        %v1885 = vadd.f32 %v1586, %v1743
        %v1886 = vadd.f32 %v1587, %v1745
        %v1887 = vadd.f32 %v1588, %v1853
        %v1888 = vadd.f32 %v1589, %v1749
        %v1889 = vadd.f32 %v1590, %v1751
        %v1890 = vadd.f32 %v1591, %v1858
        %v1891 = vadd.f32 %v1592, %v1755
        %v1892 = vadd.f32 %v1593, %v1757
        %v1893 = vadd.f32 %v1594, %v1863
        %v1894 = vadd.f32 %v1595, %v1761
        %v1895 = vadd.f32 %v1596, %v1763
        %v1896 = vadd.f32 %v1597, %v1868
        %v1897 = vadd.f32 %v1598, %v1767
        %v1898 = vadd.f32 %v1599, %v1769
        %v1899 = vadd.f32 %v1600, %v1873
        %v1900 = vld [vmem:[%s1002 + $0x1] sm:$0xff]
        %v1901 = vld [vmem:[%s1002 + $0x9] sm:$0xff]
        %v1902 = vld [vmem:[%s1002 + $0x11] sm:$0xff]
        %v1903 = vld [vmem:[%s1002 + $0x19] sm:$0xff]
        %v1904 = vld [vmem:[%s1002 + $0x21] sm:$0xff]
        %v1905 = vld [vmem:[%s1002 + $0x29] sm:$0xff]
        %v1906 = vld [vmem:[%s1002 + $0x31] sm:$0xff]
        %v1907 = vld [vmem:[%s1002 + $0x39] sm:$0xf]
        %s1908 = scalar_lea.vmem [#allocation4], 960
        %v1909 = vld [vmem:[%s1908] sm:$0xff]
        %v1910 = vld [vmem:[%s1908 + $0x8] sm:$0xff]
        %v1911 = vld [vmem:[%s1908 + $0x10] sm:$0xff]
        %v1912 = vld [vmem:[%s1908 + $0x18] sm:$0xff]
        %v1913 = vld [vmem:[%s1908 + $0x20] sm:$0xff]
        %v1914 = vld [vmem:[%s1908 + $0x28] sm:$0xff]
        %v1915 = vld [vmem:[%s1908 + $0x30] sm:$0xff]
        %v1916 = vld [vmem:[%s1908 + $0x38] sm:$0xff]
        %v1917 = vld [vmem:[%s1908 + $0x40] sm:$0xff]
        %v1918 = vld [vmem:[%s1908 + $0x48] sm:$0xff]
        %v1919 = vld [vmem:[%s1908 + $0x50] sm:$0xff]
        %v1920 = vld [vmem:[%s1908 + $0x58] sm:$0xff]
        %v1921 = vld [vmem:[%s1908 + $0x60] sm:$0xff]
        %v1922 = vld [vmem:[%s1908 + $0x68] sm:$0xff]
        %v1923 = vld [vmem:[%s1908 + $0x70] sm:$0xff]
        %v1924 = vld [vmem:[%s1908 + $0x78] sm:$0xff]
        %v1925 = vld [vmem:[%s1908 + $0x80] sm:$0xff]
        %v1926 = vld [vmem:[%s1908 + $0x88] sm:$0xff]
        %v1927 = vld [vmem:[%s1908 + $0x90] sm:$0xff]
        %v1928 = vld [vmem:[%s1908 + $0x98] sm:$0xff]
        %v1929 = vld [vmem:[%s1908 + $0xa0] sm:$0xff]
        %v1930 = vld [vmem:[%s1908 + $0xa8] sm:$0xff]
        %v1931 = vld [vmem:[%s1908 + $0xb0] sm:$0xff]
        %v1932 = vld [vmem:[%s1908 + $0xb8] sm:$0xff]
        %v1934 = vsel %vm517, %v1900, 0
        %v1937 = vsel %vm517, %v1901, 0
        %v1940 = vsel %vm517, %v1902, 0
        %v1943 = vsel %vm517, %v1903, 0
        %v1946 = vsel %vm517, %v1904, 0
        %v1949 = vsel %vm517, %v1905, 0
        %v1952 = vsel %vm517, %v1906, 0
        %v1955 = vsel %vm517, %v1907, 0
        %1957 = vmatprep.subr.mxu0 %v1910
        %1958 = vmatpush1.msra.mxu0 %v1909
        %1959 = vmatprep.subr.mxu0 %v1913
        %1960 = vmatpush1.msra.mxu0 %v1912
        %1961 = vmatprep.subr.mxu0 %v1916
        %1962 = vmatpush1.msra.mxu0 %v1915
        %1963 = vmatprep.subr.mxu0 %v1919
        %1964 = vmatpush1.msra.mxu0 %v1918
        %1965 = vmatprep.subr.mxu0 %v1922
        %1966 = vmatpush1.msra.mxu0 %v1921
        %1967 = vmatprep.subr.mxu0 %v1925
        %1968 = vmatpush1.msra.mxu0 %v1924
        %1969 = vmatprep.subr.mxu0 %v1928
        %1970 = vmatpush1.msra.mxu0 %v1927
        %1971 = vmatprep.subr.mxu0 %v1931
        %1972 = vmatpush1.msra.mxu0 %v1930
        %1973 = vmatprep.subr.mxu0 0.0
        %1974 = vmatpush1.msra.mxu0 0.0
        %1975 = vmatprep.subr.mxu0 0.0
        %1976 = vmatpush1.msra.mxu0 0.0
        %1977 = vmatprep.subr.mxu0 0.0
        %1978 = vmatpush1.msra.mxu0 0.0
        %1979 = vmatprep.subr.mxu0 0.0
        %1980 = vmatpush1.msra.mxu0 0.0
        %1981 = vmatprep.subr.mxu0 0.0
        %1982 = vmatpush1.msra.mxu0 0.0
        %1983 = vmatprep.subr.mxu0 0.0
        %1984 = vmatpush1.msra.mxu0 0.0
        %1985 = vmatprep.subr.mxu0 0.0
        %1986 = vmatpush1.msra.mxu0 0.0
        %1987 = vmatprep.subr.mxu0 0.0
        %1988 = vmatpush1.msra.mxu0 0.0
        %1989 = vmatprep.subr.mxu0 0.0
        %1990 = vmatpush1.msra.mxu0 0.0
        %1991 = vmatprep.subr.mxu0 0.0
        %1992 = vmatpush1.msra.mxu0 0.0
        %1993 = vmatprep.subr.mxu0 0.0
        %1994 = vmatpush1.msra.mxu0 0.0
        %1995 = vmatprep.subr.mxu0 0.0
        %1996 = vmatpush1.msra.mxu0 0.0
        %1997 = vmatprep.subr.mxu0 0.0
        %1998 = vmatpush1.msra.mxu0 0.0
        %1999 = vmatprep.subr.mxu0 0.0
        %2000 = vmatpush1.msra.mxu0 0.0
        %2001 = vmatprep.subr.mxu0 0.0
        %2002 = vmatpush1.msra.mxu0 0.0
        %2003 = vmatprep.subr.mxu0 0.0
        %2004 = vmatpush1.msra.mxu0 0.0
        %2005 = vmatprep.subr.mxu0 0.0
        %2006 = vmatpush1.msra.mxu0 0.0
        %2007 = vmatprep.subr.mxu0 0.0
        %2008 = vmatpush1.msra.mxu0 0.0
        %2009 = vmatprep.subr.mxu0 0.0
        %2010 = vmatpush1.msra.mxu0 0.0
        %2011 = vmatprep.subr.mxu0 0.0
        %2012 = vmatpush1.msra.mxu0 0.0
        %2013 = vmatprep.subr.mxu0 0.0
        %2014 = vmatpush1.msra.mxu0 0.0
        %2015 = vmatprep.subr.mxu0 0.0
        %2016 = vmatpush1.msra.mxu0 0.0
        %2017 = vmatprep.subr.mxu0 0.0
        %2018 = vmatpush1.msra.mxu0 0.0
        %2019 = vmatprep.subr.mxu0 0.0
        %2020 = vmatpush1.msra.mxu0 0.0
        %2021 = vmatprep.mubr.f32.mxu0 0.0
        %2022 = vmatmul.mubr.f32.gmra.mrb[0].mxu0 %v1934
        %v2023 = vpop.f32.mrb[0].mxu0
        %v2024 = vadd.f32 0.0, %v2023
        %v2025 = vpop.f32.mrb[0].mxu0
        %v2026 = vadd.f32 0.0, %v2025
        %2027 = vmatprep.mubr.f32.mxu0 0.0
        %2028 = vmatmul.mubr.f32.gmra.mrb[0].mxu0 %v1937
        %v2029 = vpop.f32.mrb[0].mxu0
        %v2030 = vadd.f32 0.0, %v2029
        %v2031 = vpop.f32.mrb[0].mxu0
        %v2032 = vadd.f32 0.0, %v2031
        %2033 = vmatprep.mubr.f32.mxu0 0.0
        %2034 = vmatmul.mubr.f32.gmra.mrb[0].mxu0 %v1940
        %v2035 = vpop.f32.mrb[0].mxu0
        %v2036 = vadd.f32 0.0, %v2035
        %v2037 = vpop.f32.mrb[0].mxu0
        %v2038 = vadd.f32 0.0, %v2037
        %2039 = vmatprep.mubr.f32.mxu0 0.0
        %2040 = vmatmul.mubr.f32.gmra.mrb[0].mxu0 %v1943
        %v2041 = vpop.f32.mrb[0].mxu0
        %v2042 = vadd.f32 0.0, %v2041
        %v2043 = vpop.f32.mrb[0].mxu0
        %v2044 = vadd.f32 0.0, %v2043
        %2045 = vmatprep.mubr.f32.mxu0 0.0
        %2046 = vmatmul.mubr.f32.gmra.mrb[0].mxu0 %v1946
        %v2047 = vpop.f32.mrb[0].mxu0
        %v2048 = vadd.f32 0.0, %v2047
        %v2049 = vpop.f32.mrb[0].mxu0
        %v2050 = vadd.f32 0.0, %v2049
        %2051 = vmatprep.mubr.f32.mxu0 0.0
        %2052 = vmatmul.mubr.f32.gmra.mrb[0].mxu0 %v1949
        %v2053 = vpop.f32.mrb[0].mxu0
        %v2054 = vadd.f32 0.0, %v2053
        %v2055 = vpop.f32.mrb[0].mxu0
        %v2056 = vadd.f32 0.0, %v2055
        %2057 = vmatprep.mubr.f32.mxu0 0.0
        %2058 = vmatmul.mubr.f32.gmra.mrb[0].mxu0 %v1952
        %v2059 = vpop.f32.mrb[0].mxu0
        %v2060 = vadd.f32 0.0, %v2059
        %v2061 = vpop.f32.mrb[0].mxu0
        %v2062 = vadd.f32 0.0, %v2061
        %2063 = vmatprep.mubr.f32.mxu0 0.0
        %2064 = vmatmul.mubr.f32.gmra.mrb[0].mxu0 %v1955
        %v2065 = vpop.f32.mrb[0].mxu0
        %v2066 = vadd.f32 0.0, %v2065
        %v2067 = vpop.f32.mrb[0].mxu0
        %v2068 = vadd.f32 0.0, %v2067
        %2069 = vdwg.mxu0
        %2070 = vmatprep.subr.mxu0 0.0
        %2071 = vmatpush1.msra.mxu0 %v1911
        %2072 = vmatprep.subr.mxu0 0.0
        %2073 = vmatpush1.msra.mxu0 %v1914
        %2074 = vmatprep.subr.mxu0 0.0
        %2075 = vmatpush1.msra.mxu0 %v1917
        %2076 = vmatprep.subr.mxu0 0.0
        %2077 = vmatpush1.msra.mxu0 %v1920
        %2078 = vmatprep.subr.mxu0 0.0
        %2079 = vmatpush1.msra.mxu0 %v1923
        %2080 = vmatprep.subr.mxu0 0.0
        %2081 = vmatpush1.msra.mxu0 %v1926
        %2082 = vmatprep.subr.mxu0 0.0
        %2083 = vmatpush1.msra.mxu0 %v1929
        %2084 = vmatprep.subr.mxu0 0.0
        %2085 = vmatpush1.msra.mxu0 %v1932
        %2086 = vmatprep.subr.mxu0 0.0
        %2087 = vmatpush1.msra.mxu0 0.0
        %2088 = vmatprep.subr.mxu0 0.0
        %2089 = vmatpush1.msra.mxu0 0.0
        %2090 = vmatprep.subr.mxu0 0.0
        %2091 = vmatpush1.msra.mxu0 0.0
        %2092 = vmatprep.subr.mxu0 0.0
        %2093 = vmatpush1.msra.mxu0 0.0
        %2094 = vmatprep.subr.mxu0 0.0
        %2095 = vmatpush1.msra.mxu0 0.0
        %2096 = vmatprep.subr.mxu0 0.0
        %2097 = vmatpush1.msra.mxu0 0.0
        %2098 = vmatprep.subr.mxu0 0.0
        %2099 = vmatpush1.msra.mxu0 0.0
        %2100 = vmatprep.subr.mxu0 0.0
        %2101 = vmatpush1.msra.mxu0 0.0
        %2102 = vmatprep.subr.mxu0 0.0
        %2103 = vmatpush1.msra.mxu0 0.0
        %2104 = vmatprep.subr.mxu0 0.0
        %2105 = vmatpush1.msra.mxu0 0.0
        %2106 = vmatprep.subr.mxu0 0.0
        %2107 = vmatpush1.msra.mxu0 0.0
        %2108 = vmatprep.subr.mxu0 0.0
        %2109 = vmatpush1.msra.mxu0 0.0
        %2110 = vmatprep.subr.mxu0 0.0
        %2111 = vmatpush1.msra.mxu0 0.0
        %2112 = vmatprep.subr.mxu0 0.0
        %2113 = vmatpush1.msra.mxu0 0.0
        %2114 = vmatprep.subr.mxu0 0.0
        %2115 = vmatpush1.msra.mxu0 0.0
        %2116 = vmatprep.subr.mxu0 0.0
        %2117 = vmatpush1.msra.mxu0 0.0
        %2118 = vmatprep.subr.mxu0 0.0
        %2119 = vmatpush1.msra.mxu0 0.0
        %2120 = vmatprep.subr.mxu0 0.0
        %2121 = vmatpush1.msra.mxu0 0.0
        %2122 = vmatprep.subr.mxu0 0.0
        %2123 = vmatpush1.msra.mxu0 0.0
        %2124 = vmatprep.subr.mxu0 0.0
        %2125 = vmatpush1.msra.mxu0 0.0
        %2126 = vmatprep.subr.mxu0 0.0
        %2127 = vmatpush1.msra.mxu0 0.0
        %2128 = vmatprep.subr.mxu0 0.0
        %2129 = vmatpush1.msra.mxu0 0.0
        %2130 = vmatprep.subr.mxu0 0.0
        %2131 = vmatpush1.msra.mxu0 0.0
        %2132 = vmatprep.subr.mxu0 0.0
        %2133 = vmatpush1.msra.mxu0 0.0
        %2134 = vmatprep.mubr.f32.mxu0 0.0
        %2135 = vmatmul.mubr.f32.gmra.mrb[0].mxu0 %v1934
        %v2136 = vpop.f32.mrb[0].mxu0
        %v2137 = vadd.f32 0.0, %v2136
        %v2138 = vpop.f32.mrb[0].mxu0
        %2139 = vmatprep.mubr.f32.mxu0 0.0
        %2140 = vmatmul.mubr.f32.gmra.mrb[0].mxu0 %v1937
        %v2141 = vpop.f32.mrb[0].mxu0
        %v2142 = vadd.f32 0.0, %v2141
        %v2143 = vpop.f32.mrb[0].mxu0
        %2144 = vmatprep.mubr.f32.mxu0 0.0
        %2145 = vmatmul.mubr.f32.gmra.mrb[0].mxu0 %v1940
        %v2146 = vpop.f32.mrb[0].mxu0
        %v2147 = vadd.f32 0.0, %v2146
        %v2148 = vpop.f32.mrb[0].mxu0
        %2149 = vmatprep.mubr.f32.mxu0 0.0
        %2150 = vmatmul.mubr.f32.gmra.mrb[0].mxu0 %v1943
        %v2151 = vpop.f32.mrb[0].mxu0
        %v2152 = vadd.f32 0.0, %v2151
        %v2153 = vpop.f32.mrb[0].mxu0
        %2154 = vmatprep.mubr.f32.mxu0 0.0
        %2155 = vmatmul.mubr.f32.gmra.mrb[0].mxu0 %v1946
        %v2156 = vpop.f32.mrb[0].mxu0
        %v2157 = vadd.f32 0.0, %v2156
        %v2158 = vpop.f32.mrb[0].mxu0
        %2159 = vmatprep.mubr.f32.mxu0 0.0
        %2160 = vmatmul.mubr.f32.gmra.mrb[0].mxu0 %v1949
        %v2161 = vpop.f32.mrb[0].mxu0
        %v2162 = vadd.f32 0.0, %v2161
        %v2163 = vpop.f32.mrb[0].mxu0
        %2164 = vmatprep.mubr.f32.mxu0 0.0
        %2165 = vmatmul.mubr.f32.gmra.mrb[0].mxu0 %v1952
        %v2166 = vpop.f32.mrb[0].mxu0
        %v2167 = vadd.f32 0.0, %v2166
        %v2168 = vpop.f32.mrb[0].mxu0
        %2169 = vmatprep.mubr.f32.mxu0 0.0
        %2170 = vmatmul.mubr.f32.gmra.mrb[0].mxu0 %v1955
        %v2171 = vpop.f32.mrb[0].mxu0
        %v2172 = vadd.f32 0.0, %v2171
        %v2173 = vpop.f32.mrb[0].mxu0
        %2174 = vdwg.mxu0
        %v2175 = vadd.f32 %v1876, %v2024
        %v2176 = vadd.f32 %v1877, %v2026
        %v2177 = vadd.f32 %v1878, %v2137
        %v2178 = vadd.f32 %v1879, %v2030
        %v2179 = vadd.f32 %v1880, %v2032
        %v2180 = vadd.f32 %v1881, %v2142
        %v2181 = vadd.f32 %v1882, %v2036
        %v2182 = vadd.f32 %v1883, %v2038
        %v2183 = vadd.f32 %v1884, %v2147
        %v2184 = vadd.f32 %v1885, %v2042
        %v2185 = vadd.f32 %v1886, %v2044
        %v2186 = vadd.f32 %v1887, %v2152
        %v2187 = vadd.f32 %v1888, %v2048
        %v2188 = vadd.f32 %v1889, %v2050
        %v2189 = vadd.f32 %v1890, %v2157
        %v2190 = vadd.f32 %v1891, %v2054
        %v2191 = vadd.f32 %v1892, %v2056
        %v2192 = vadd.f32 %v1893, %v2162
        %v2193 = vadd.f32 %v1894, %v2060
        %v2194 = vadd.f32 %v1895, %v2062
        %v2195 = vadd.f32 %v1896, %v2167
        %v2196 = vadd.f32 %v1897, %v2066
        %v2197 = vadd.f32 %v1898, %v2068
        %v2198 = vadd.f32 %v1899, %v2172
        %v2199 = vld [vmem:[%s383 + $0x2] sm:$0xff]
        %v2200 = vld [vmem:[%s383 + $0xa] sm:$0xff]
        %v2201 = vld [vmem:[%s383 + $0x12] sm:$0xff]
        %v2202 = vld [vmem:[%s383 + $0x1a] sm:$0xff]
        %v2203 = vld [vmem:[%s383 + $0x22] sm:$0xff]
        %v2204 = vld [vmem:[%s383 + $0x2a] sm:$0xff]
        %v2205 = vld [vmem:[%s383 + $0x32] sm:$0xff]
        %v2206 = vld [vmem:[%s383 + $0x3a] sm:$0xf]
        %s2207 = scalar_lea.vmem [#allocation4], 1152
        %v2208 = vld [vmem:[%s2207] sm:$0xff]
        %v2209 = vld [vmem:[%s2207 + $0x8] sm:$0xff]
        %v2210 = vld [vmem:[%s2207 + $0x10] sm:$0xff]
        %v2211 = vld [vmem:[%s2207 + $0x18] sm:$0xff]
        %v2212 = vld [vmem:[%s2207 + $0x20] sm:$0xff]
        %v2213 = vld [vmem:[%s2207 + $0x28] sm:$0xff]
        %v2214 = vld [vmem:[%s2207 + $0x30] sm:$0xff]
        %v2215 = vld [vmem:[%s2207 + $0x38] sm:$0xff]
        %v2216 = vld [vmem:[%s2207 + $0x40] sm:$0xff]
        %v2217 = vld [vmem:[%s2207 + $0x48] sm:$0xff]
        %v2218 = vld [vmem:[%s2207 + $0x50] sm:$0xff]
        %v2219 = vld [vmem:[%s2207 + $0x58] sm:$0xff]
        %v2220 = vld [vmem:[%s2207 + $0x60] sm:$0xff]
        %v2221 = vld [vmem:[%s2207 + $0x68] sm:$0xff]
        %v2222 = vld [vmem:[%s2207 + $0x70] sm:$0xff]
        %v2223 = vld [vmem:[%s2207 + $0x78] sm:$0xff]
        %v2224 = vld [vmem:[%s2207 + $0x80] sm:$0xff]
        %v2225 = vld [vmem:[%s2207 + $0x88] sm:$0xff]
        %v2226 = vld [vmem:[%s2207 + $0x90] sm:$0xff]
        %v2227 = vld [vmem:[%s2207 + $0x98] sm:$0xff]
        %v2228 = vld [vmem:[%s2207 + $0xa0] sm:$0xff]
        %v2229 = vld [vmem:[%s2207 + $0xa8] sm:$0xff]
        %v2230 = vld [vmem:[%s2207 + $0xb0] sm:$0xff]
        %v2231 = vld [vmem:[%s2207 + $0xb8] sm:$0xff]
        %v2233 = vsel %vm517, %v2199, 0
        %v2236 = vsel %vm517, %v2200, 0
        %v2239 = vsel %vm517, %v2201, 0
        %v2242 = vsel %vm517, %v2202, 0
        %v2245 = vsel %vm517, %v2203, 0
        %v2248 = vsel %vm517, %v2204, 0
        %v2251 = vsel %vm517, %v2205, 0
        %v2254 = vsel %vm517, %v2206, 0
        %2256 = vmatprep.subr.mxu0 %v2209
        %2257 = vmatpush1.msra.mxu0 %v2208
        %2258 = vmatprep.subr.mxu0 %v2212
        %2259 = vmatpush1.msra.mxu0 %v2211
        %2260 = vmatprep.subr.mxu0 %v2215
        %2261 = vmatpush1.msra.mxu0 %v2214
        %2262 = vmatprep.subr.mxu0 %v2218
        %2263 = vmatpush1.msra.mxu0 %v2217
        %2264 = vmatprep.subr.mxu0 %v2221
        %2265 = vmatpush1.msra.mxu0 %v2220
        %2266 = vmatprep.subr.mxu0 %v2224
        %2267 = vmatpush1.msra.mxu0 %v2223
        %2268 = vmatprep.subr.mxu0 %v2227
        %2269 = vmatpush1.msra.mxu0 %v2226
        %2270 = vmatprep.subr.mxu0 %v2230
        %2271 = vmatpush1.msra.mxu0 %v2229
        %2272 = vmatprep.subr.mxu0 0.0
        %2273 = vmatpush1.msra.mxu0 0.0
        %2274 = vmatprep.subr.mxu0 0.0
        %2275 = vmatpush1.msra.mxu0 0.0
        %2276 = vmatprep.subr.mxu0 0.0
        %2277 = vmatpush1.msra.mxu0 0.0
        %2278 = vmatprep.subr.mxu0 0.0
        %2279 = vmatpush1.msra.mxu0 0.0
        %2280 = vmatprep.subr.mxu0 0.0
        %2281 = vmatpush1.msra.mxu0 0.0
        %2282 = vmatprep.subr.mxu0 0.0
        %2283 = vmatpush1.msra.mxu0 0.0
        %2284 = vmatprep.subr.mxu0 0.0
        %2285 = vmatpush1.msra.mxu0 0.0
        %2286 = vmatprep.subr.mxu0 0.0
        %2287 = vmatpush1.msra.mxu0 0.0
        %2288 = vmatprep.subr.mxu0 0.0
        %2289 = vmatpush1.msra.mxu0 0.0
        %2290 = vmatprep.subr.mxu0 0.0
        %2291 = vmatpush1.msra.mxu0 0.0
        %2292 = vmatprep.subr.mxu0 0.0
        %2293 = vmatpush1.msra.mxu0 0.0
        %2294 = vmatprep.subr.mxu0 0.0
        %2295 = vmatpush1.msra.mxu0 0.0
        %2296 = vmatprep.subr.mxu0 0.0
        %2297 = vmatpush1.msra.mxu0 0.0
        %2298 = vmatprep.subr.mxu0 0.0
        %2299 = vmatpush1.msra.mxu0 0.0
        %2300 = vmatprep.subr.mxu0 0.0
        %2301 = vmatpush1.msra.mxu0 0.0
        %2302 = vmatprep.subr.mxu0 0.0
        %2303 = vmatpush1.msra.mxu0 0.0
        %2304 = vmatprep.subr.mxu0 0.0
        %2305 = vmatpush1.msra.mxu0 0.0
        %2306 = vmatprep.subr.mxu0 0.0
        %2307 = vmatpush1.msra.mxu0 0.0
        %2308 = vmatprep.subr.mxu0 0.0
        %2309 = vmatpush1.msra.mxu0 0.0
        %2310 = vmatprep.subr.mxu0 0.0
        %2311 = vmatpush1.msra.mxu0 0.0
        %2312 = vmatprep.subr.mxu0 0.0
        %2313 = vmatpush1.msra.mxu0 0.0
        %2314 = vmatprep.subr.mxu0 0.0
        %2315 = vmatpush1.msra.mxu0 0.0
        %2316 = vmatprep.subr.mxu0 0.0
        %2317 = vmatpush1.msra.mxu0 0.0
        %2318 = vmatprep.subr.mxu0 0.0
        %2319 = vmatpush1.msra.mxu0 0.0
        %2320 = vmatprep.mubr.f32.mxu0 0.0
        %2321 = vmatmul.mubr.f32.gmra.mrb[0].mxu0 %v2233
        %v2322 = vpop.f32.mrb[0].mxu0
        %v2323 = vadd.f32 0.0, %v2322
        %v2324 = vpop.f32.mrb[0].mxu0
        %v2325 = vadd.f32 0.0, %v2324
        %2326 = vmatprep.mubr.f32.mxu0 0.0
        %2327 = vmatmul.mubr.f32.gmra.mrb[0].mxu0 %v2236
        %v2328 = vpop.f32.mrb[0].mxu0
        %v2329 = vadd.f32 0.0, %v2328
        %v2330 = vpop.f32.mrb[0].mxu0
        %v2331 = vadd.f32 0.0, %v2330
        %2332 = vmatprep.mubr.f32.mxu0 0.0
        %2333 = vmatmul.mubr.f32.gmra.mrb[0].mxu0 %v2239
        %v2334 = vpop.f32.mrb[0].mxu0
        %v2335 = vadd.f32 0.0, %v2334
        %v2336 = vpop.f32.mrb[0].mxu0
        %v2337 = vadd.f32 0.0, %v2336
        %2338 = vmatprep.mubr.f32.mxu0 0.0
        %2339 = vmatmul.mubr.f32.gmra.mrb[0].mxu0 %v2242
        %v2340 = vpop.f32.mrb[0].mxu0
        %v2341 = vadd.f32 0.0, %v2340
        %v2342 = vpop.f32.mrb[0].mxu0
        %v2343 = vadd.f32 0.0, %v2342
        %2344 = vmatprep.mubr.f32.mxu0 0.0
        %2345 = vmatmul.mubr.f32.gmra.mrb[0].mxu0 %v2245
        %v2346 = vpop.f32.mrb[0].mxu0
        %v2347 = vadd.f32 0.0, %v2346
        %v2348 = vpop.f32.mrb[0].mxu0
        %v2349 = vadd.f32 0.0, %v2348
        %2350 = vmatprep.mubr.f32.mxu0 0.0
        %2351 = vmatmul.mubr.f32.gmra.mrb[0].mxu0 %v2248
        %v2352 = vpop.f32.mrb[0].mxu0
        %v2353 = vadd.f32 0.0, %v2352
        %v2354 = vpop.f32.mrb[0].mxu0
        %v2355 = vadd.f32 0.0, %v2354
        %2356 = vmatprep.mubr.f32.mxu0 0.0
        %2357 = vmatmul.mubr.f32.gmra.mrb[0].mxu0 %v2251
        %v2358 = vpop.f32.mrb[0].mxu0
        %v2359 = vadd.f32 0.0, %v2358
        %v2360 = vpop.f32.mrb[0].mxu0
        %v2361 = vadd.f32 0.0, %v2360
        %2362 = vmatprep.mubr.f32.mxu0 0.0
        %2363 = vmatmul.mubr.f32.gmra.mrb[0].mxu0 %v2254
        %v2364 = vpop.f32.mrb[0].mxu0
        %v2365 = vadd.f32 0.0, %v2364
        %v2366 = vpop.f32.mrb[0].mxu0
        %v2367 = vadd.f32 0.0, %v2366
        %2368 = vdwg.mxu0
        %2369 = vmatprep.subr.mxu0 0.0
        %2370 = vmatpush1.msra.mxu0 %v2210
        %2371 = vmatprep.subr.mxu0 0.0
        %2372 = vmatpush1.msra.mxu0 %v2213
        %2373 = vmatprep.subr.mxu0 0.0
        %2374 = vmatpush1.msra.mxu0 %v2216
        %2375 = vmatprep.subr.mxu0 0.0
        %2376 = vmatpush1.msra.mxu0 %v2219
        %2377 = vmatprep.subr.mxu0 0.0
        %2378 = vmatpush1.msra.mxu0 %v2222
        %2379 = vmatprep.subr.mxu0 0.0
        %2380 = vmatpush1.msra.mxu0 %v2225
        %2381 = vmatprep.subr.mxu0 0.0
        %2382 = vmatpush1.msra.mxu0 %v2228
        %2383 = vmatprep.subr.mxu0 0.0
        %2384 = vmatpush1.msra.mxu0 %v2231
        %2385 = vmatprep.subr.mxu0 0.0
        %2386 = vmatpush1.msra.mxu0 0.0
        %2387 = vmatprep.subr.mxu0 0.0
        %2388 = vmatpush1.msra.mxu0 0.0
        %2389 = vmatprep.subr.mxu0 0.0
        %2390 = vmatpush1.msra.mxu0 0.0
        %2391 = vmatprep.subr.mxu0 0.0
        %2392 = vmatpush1.msra.mxu0 0.0
        %2393 = vmatprep.subr.mxu0 0.0
        %2394 = vmatpush1.msra.mxu0 0.0
        %2395 = vmatprep.subr.mxu0 0.0
        %2396 = vmatpush1.msra.mxu0 0.0
        %2397 = vmatprep.subr.mxu0 0.0
        %2398 = vmatpush1.msra.mxu0 0.0
        %2399 = vmatprep.subr.mxu0 0.0
        %2400 = vmatpush1.msra.mxu0 0.0
        %2401 = vmatprep.subr.mxu0 0.0
        %2402 = vmatpush1.msra.mxu0 0.0
        %2403 = vmatprep.subr.mxu0 0.0
        %2404 = vmatpush1.msra.mxu0 0.0
        %2405 = vmatprep.subr.mxu0 0.0
        %2406 = vmatpush1.msra.mxu0 0.0
        %2407 = vmatprep.subr.mxu0 0.0
        %2408 = vmatpush1.msra.mxu0 0.0
        %2409 = vmatprep.subr.mxu0 0.0
        %2410 = vmatpush1.msra.mxu0 0.0
        %2411 = vmatprep.subr.mxu0 0.0
        %2412 = vmatpush1.msra.mxu0 0.0
        %2413 = vmatprep.subr.mxu0 0.0
        %2414 = vmatpush1.msra.mxu0 0.0
        %2415 = vmatprep.subr.mxu0 0.0
        %2416 = vmatpush1.msra.mxu0 0.0
        %2417 = vmatprep.subr.mxu0 0.0
        %2418 = vmatpush1.msra.mxu0 0.0
        %2419 = vmatprep.subr.mxu0 0.0
        %2420 = vmatpush1.msra.mxu0 0.0
        %2421 = vmatprep.subr.mxu0 0.0
        %2422 = vmatpush1.msra.mxu0 0.0
        %2423 = vmatprep.subr.mxu0 0.0
        %2424 = vmatpush1.msra.mxu0 0.0
        %2425 = vmatprep.subr.mxu0 0.0
        %2426 = vmatpush1.msra.mxu0 0.0
        %2427 = vmatprep.subr.mxu0 0.0
        %2428 = vmatpush1.msra.mxu0 0.0
        %2429 = vmatprep.subr.mxu0 0.0
        %2430 = vmatpush1.msra.mxu0 0.0
        %2431 = vmatprep.subr.mxu0 0.0
        %2432 = vmatpush1.msra.mxu0 0.0
        %2433 = vmatprep.mubr.f32.mxu0 0.0
        %2434 = vmatmul.mubr.f32.gmra.mrb[0].mxu0 %v2233
        %v2435 = vpop.f32.mrb[0].mxu0
        %v2436 = vadd.f32 0.0, %v2435
        %v2437 = vpop.f32.mrb[0].mxu0
        %2438 = vmatprep.mubr.f32.mxu0 0.0
        %2439 = vmatmul.mubr.f32.gmra.mrb[0].mxu0 %v2236
        %v2440 = vpop.f32.mrb[0].mxu0
        %v2441 = vadd.f32 0.0, %v2440
        %v2442 = vpop.f32.mrb[0].mxu0
        %2443 = vmatprep.mubr.f32.mxu0 0.0
        %2444 = vmatmul.mubr.f32.gmra.mrb[0].mxu0 %v2239
        %v2445 = vpop.f32.mrb[0].mxu0
        %v2446 = vadd.f32 0.0, %v2445
        %v2447 = vpop.f32.mrb[0].mxu0
        %2448 = vmatprep.mubr.f32.mxu0 0.0
        %2449 = vmatmul.mubr.f32.gmra.mrb[0].mxu0 %v2242
        %v2450 = vpop.f32.mrb[0].mxu0
        %v2451 = vadd.f32 0.0, %v2450
        %v2452 = vpop.f32.mrb[0].mxu0
        %2453 = vmatprep.mubr.f32.mxu0 0.0
        %2454 = vmatmul.mubr.f32.gmra.mrb[0].mxu0 %v2245
        %v2455 = vpop.f32.mrb[0].mxu0
        %v2456 = vadd.f32 0.0, %v2455
        %v2457 = vpop.f32.mrb[0].mxu0
        %2458 = vmatprep.mubr.f32.mxu0 0.0
        %2459 = vmatmul.mubr.f32.gmra.mrb[0].mxu0 %v2248
        %v2460 = vpop.f32.mrb[0].mxu0
        %v2461 = vadd.f32 0.0, %v2460
        %v2462 = vpop.f32.mrb[0].mxu0
        %2463 = vmatprep.mubr.f32.mxu0 0.0
        %2464 = vmatmul.mubr.f32.gmra.mrb[0].mxu0 %v2251
        %v2465 = vpop.f32.mrb[0].mxu0
        %v2466 = vadd.f32 0.0, %v2465
        %v2467 = vpop.f32.mrb[0].mxu0
        %2468 = vmatprep.mubr.f32.mxu0 0.0
        %2469 = vmatmul.mubr.f32.gmra.mrb[0].mxu0 %v2254
        %v2470 = vpop.f32.mrb[0].mxu0
        %v2471 = vadd.f32 0.0, %v2470
        %v2472 = vpop.f32.mrb[0].mxu0
        %2473 = vdwg.mxu0
        %v2474 = vadd.f32 %v2175, %v2323
        %v2475 = vadd.f32 %v2176, %v2325
        %v2476 = vadd.f32 %v2177, %v2436
        %v2477 = vadd.f32 %v2178, %v2329
        %v2478 = vadd.f32 %v2179, %v2331
        %v2479 = vadd.f32 %v2180, %v2441
        %v2480 = vadd.f32 %v2181, %v2335
        %v2481 = vadd.f32 %v2182, %v2337
        %v2482 = vadd.f32 %v2183, %v2446
        %v2483 = vadd.f32 %v2184, %v2341
        %v2484 = vadd.f32 %v2185, %v2343
        %v2485 = vadd.f32 %v2186, %v2451
        %v2486 = vadd.f32 %v2187, %v2347
        %v2487 = vadd.f32 %v2188, %v2349
        %v2488 = vadd.f32 %v2189, %v2456
        %v2489 = vadd.f32 %v2190, %v2353
        %v2490 = vadd.f32 %v2191, %v2355
        %v2491 = vadd.f32 %v2192, %v2461
        %v2492 = vadd.f32 %v2193, %v2359
        %v2493 = vadd.f32 %v2194, %v2361
        %v2494 = vadd.f32 %v2195, %v2466
        %v2495 = vadd.f32 %v2196, %v2365
        %v2496 = vadd.f32 %v2197, %v2367
        %v2497 = vadd.f32 %v2198, %v2471
        %v2498 = vld [vmem:[%s483 + $0x2] sm:$0xff]
        %v2499 = vld [vmem:[%s483 + $0xa] sm:$0xff]
        %v2500 = vld [vmem:[%s483 + $0x12] sm:$0xff]
        %v2501 = vld [vmem:[%s483 + $0x1a] sm:$0xff]
        %v2502 = vld [vmem:[%s483 + $0x22] sm:$0xff]
        %v2503 = vld [vmem:[%s483 + $0x2a] sm:$0xff]
        %v2504 = vld [vmem:[%s483 + $0x32] sm:$0xff]
        %v2505 = vld [vmem:[%s483 + $0x3a] sm:$0xf]
        %s2506 = scalar_lea.vmem [#allocation4], 1344
        %v2507 = vld [vmem:[%s2506] sm:$0xff]
        %v2508 = vld [vmem:[%s2506 + $0x8] sm:$0xff]
        %v2509 = vld [vmem:[%s2506 + $0x10] sm:$0xff]
        %v2510 = vld [vmem:[%s2506 + $0x18] sm:$0xff]
        %v2511 = vld [vmem:[%s2506 + $0x20] sm:$0xff]
        %v2512 = vld [vmem:[%s2506 + $0x28] sm:$0xff]
        %v2513 = vld [vmem:[%s2506 + $0x30] sm:$0xff]
        %v2514 = vld [vmem:[%s2506 + $0x38] sm:$0xff]
        %v2515 = vld [vmem:[%s2506 + $0x40] sm:$0xff]
        %v2516 = vld [vmem:[%s2506 + $0x48] sm:$0xff]
        %v2517 = vld [vmem:[%s2506 + $0x50] sm:$0xff]
        %v2518 = vld [vmem:[%s2506 + $0x58] sm:$0xff]
        %v2519 = vld [vmem:[%s2506 + $0x60] sm:$0xff]
        %v2520 = vld [vmem:[%s2506 + $0x68] sm:$0xff]
        %v2521 = vld [vmem:[%s2506 + $0x70] sm:$0xff]
        %v2522 = vld [vmem:[%s2506 + $0x78] sm:$0xff]
        %v2523 = vld [vmem:[%s2506 + $0x80] sm:$0xff]
        %v2524 = vld [vmem:[%s2506 + $0x88] sm:$0xff]
        %v2525 = vld [vmem:[%s2506 + $0x90] sm:$0xff]
        %v2526 = vld [vmem:[%s2506 + $0x98] sm:$0xff]
        %v2527 = vld [vmem:[%s2506 + $0xa0] sm:$0xff]
        %v2528 = vld [vmem:[%s2506 + $0xa8] sm:$0xff]
        %v2529 = vld [vmem:[%s2506 + $0xb0] sm:$0xff]
        %v2530 = vld [vmem:[%s2506 + $0xb8] sm:$0xff]
        %v2532 = vsel %vm517, %v2498, 0
        %v2535 = vsel %vm517, %v2499, 0
        %v2538 = vsel %vm517, %v2500, 0
        %v2541 = vsel %vm517, %v2501, 0
        %v2544 = vsel %vm517, %v2502, 0
        %v2547 = vsel %vm517, %v2503, 0
        %v2550 = vsel %vm517, %v2504, 0
        %v2553 = vsel %vm517, %v2505, 0
        %2555 = vmatprep.subr.mxu0 %v2508
        %2556 = vmatpush1.msra.mxu0 %v2507
        %2557 = vmatprep.subr.mxu0 %v2511
        %2558 = vmatpush1.msra.mxu0 %v2510
        %2559 = vmatprep.subr.mxu0 %v2514
        %2560 = vmatpush1.msra.mxu0 %v2513
        %2561 = vmatprep.subr.mxu0 %v2517
        %2562 = vmatpush1.msra.mxu0 %v2516
        %2563 = vmatprep.subr.mxu0 %v2520
        %2564 = vmatpush1.msra.mxu0 %v2519
        %2565 = vmatprep.subr.mxu0 %v2523
        %2566 = vmatpush1.msra.mxu0 %v2522
        %2567 = vmatprep.subr.mxu0 %v2526
        %2568 = vmatpush1.msra.mxu0 %v2525
        %2569 = vmatprep.subr.mxu0 %v2529
        %2570 = vmatpush1.msra.mxu0 %v2528
        %2571 = vmatprep.subr.mxu0 0.0
        %2572 = vmatpush1.msra.mxu0 0.0
        %2573 = vmatprep.subr.mxu0 0.0
        %2574 = vmatpush1.msra.mxu0 0.0
        %2575 = vmatprep.subr.mxu0 0.0
        %2576 = vmatpush1.msra.mxu0 0.0
        %2577 = vmatprep.subr.mxu0 0.0
        %2578 = vmatpush1.msra.mxu0 0.0
        %2579 = vmatprep.subr.mxu0 0.0
        %2580 = vmatpush1.msra.mxu0 0.0
        %2581 = vmatprep.subr.mxu0 0.0
        %2582 = vmatpush1.msra.mxu0 0.0
        %2583 = vmatprep.subr.mxu0 0.0
        %2584 = vmatpush1.msra.mxu0 0.0
        %2585 = vmatprep.subr.mxu0 0.0
        %2586 = vmatpush1.msra.mxu0 0.0
        %2587 = vmatprep.subr.mxu0 0.0
        %2588 = vmatpush1.msra.mxu0 0.0
        %2589 = vmatprep.subr.mxu0 0.0
        %2590 = vmatpush1.msra.mxu0 0.0
        %2591 = vmatprep.subr.mxu0 0.0
        %2592 = vmatpush1.msra.mxu0 0.0
        %2593 = vmatprep.subr.mxu0 0.0
        %2594 = vmatpush1.msra.mxu0 0.0
        %2595 = vmatprep.subr.mxu0 0.0
        %2596 = vmatpush1.msra.mxu0 0.0
        %2597 = vmatprep.subr.mxu0 0.0
        %2598 = vmatpush1.msra.mxu0 0.0
        %2599 = vmatprep.subr.mxu0 0.0
        %2600 = vmatpush1.msra.mxu0 0.0
        %2601 = vmatprep.subr.mxu0 0.0
        %2602 = vmatpush1.msra.mxu0 0.0
        %2603 = vmatprep.subr.mxu0 0.0
        %2604 = vmatpush1.msra.mxu0 0.0
        %2605 = vmatprep.subr.mxu0 0.0
        %2606 = vmatpush1.msra.mxu0 0.0
        %2607 = vmatprep.subr.mxu0 0.0
        %2608 = vmatpush1.msra.mxu0 0.0
        %2609 = vmatprep.subr.mxu0 0.0
        %2610 = vmatpush1.msra.mxu0 0.0
        %2611 = vmatprep.subr.mxu0 0.0
        %2612 = vmatpush1.msra.mxu0 0.0
        %2613 = vmatprep.subr.mxu0 0.0
        %2614 = vmatpush1.msra.mxu0 0.0
        %2615 = vmatprep.subr.mxu0 0.0
        %2616 = vmatpush1.msra.mxu0 0.0
        %2617 = vmatprep.subr.mxu0 0.0
        %2618 = vmatpush1.msra.mxu0 0.0
        %2619 = vmatprep.mubr.f32.mxu0 0.0
        %2620 = vmatmul.mubr.f32.gmra.mrb[0].mxu0 %v2532
        %v2621 = vpop.f32.mrb[0].mxu0
        %v2622 = vadd.f32 0.0, %v2621
        %v2623 = vpop.f32.mrb[0].mxu0
        %v2624 = vadd.f32 0.0, %v2623
        %2625 = vmatprep.mubr.f32.mxu0 0.0
        %2626 = vmatmul.mubr.f32.gmra.mrb[0].mxu0 %v2535
        %v2627 = vpop.f32.mrb[0].mxu0
        %v2628 = vadd.f32 0.0, %v2627
        %v2629 = vpop.f32.mrb[0].mxu0
        %v2630 = vadd.f32 0.0, %v2629
        %2631 = vmatprep.mubr.f32.mxu0 0.0
        %2632 = vmatmul.mubr.f32.gmra.mrb[0].mxu0 %v2538
        %v2633 = vpop.f32.mrb[0].mxu0
        %v2634 = vadd.f32 0.0, %v2633
        %v2635 = vpop.f32.mrb[0].mxu0
        %v2636 = vadd.f32 0.0, %v2635
        %2637 = vmatprep.mubr.f32.mxu0 0.0
        %2638 = vmatmul.mubr.f32.gmra.mrb[0].mxu0 %v2541
        %v2639 = vpop.f32.mrb[0].mxu0
        %v2640 = vadd.f32 0.0, %v2639
        %v2641 = vpop.f32.mrb[0].mxu0
        %v2642 = vadd.f32 0.0, %v2641
        %2643 = vmatprep.mubr.f32.mxu0 0.0
        %2644 = vmatmul.mubr.f32.gmra.mrb[0].mxu0 %v2544
        %v2645 = vpop.f32.mrb[0].mxu0
        %v2646 = vadd.f32 0.0, %v2645
        %v2647 = vpop.f32.mrb[0].mxu0
        %v2648 = vadd.f32 0.0, %v2647
        %2649 = vmatprep.mubr.f32.mxu0 0.0
        %2650 = vmatmul.mubr.f32.gmra.mrb[0].mxu0 %v2547
        %v2651 = vpop.f32.mrb[0].mxu0
        %v2652 = vadd.f32 0.0, %v2651
        %v2653 = vpop.f32.mrb[0].mxu0
        %v2654 = vadd.f32 0.0, %v2653
        %2655 = vmatprep.mubr.f32.mxu0 0.0
        %2656 = vmatmul.mubr.f32.gmra.mrb[0].mxu0 %v2550
        %v2657 = vpop.f32.mrb[0].mxu0
        %v2658 = vadd.f32 0.0, %v2657
        %v2659 = vpop.f32.mrb[0].mxu0
        %v2660 = vadd.f32 0.0, %v2659
        %2661 = vmatprep.mubr.f32.mxu0 0.0
        %2662 = vmatmul.mubr.f32.gmra.mrb[0].mxu0 %v2553
        %v2663 = vpop.f32.mrb[0].mxu0
        %v2664 = vadd.f32 0.0, %v2663
        %v2665 = vpop.f32.mrb[0].mxu0
        %v2666 = vadd.f32 0.0, %v2665
        %2667 = vdwg.mxu0
        %2668 = vmatprep.subr.mxu0 0.0
        %2669 = vmatpush1.msra.mxu0 %v2509
        %2670 = vmatprep.subr.mxu0 0.0
        %2671 = vmatpush1.msra.mxu0 %v2512
        %2672 = vmatprep.subr.mxu0 0.0
        %2673 = vmatpush1.msra.mxu0 %v2515
        %2674 = vmatprep.subr.mxu0 0.0
        %2675 = vmatpush1.msra.mxu0 %v2518
        %2676 = vmatprep.subr.mxu0 0.0
        %2677 = vmatpush1.msra.mxu0 %v2521
        %2678 = vmatprep.subr.mxu0 0.0
        %2679 = vmatpush1.msra.mxu0 %v2524
        %2680 = vmatprep.subr.mxu0 0.0
        %2681 = vmatpush1.msra.mxu0 %v2527
        %2682 = vmatprep.subr.mxu0 0.0
        %2683 = vmatpush1.msra.mxu0 %v2530
        %2684 = vmatprep.subr.mxu0 0.0
        %2685 = vmatpush1.msra.mxu0 0.0
        %2686 = vmatprep.subr.mxu0 0.0
        %2687 = vmatpush1.msra.mxu0 0.0
        %2688 = vmatprep.subr.mxu0 0.0
        %2689 = vmatpush1.msra.mxu0 0.0
        %2690 = vmatprep.subr.mxu0 0.0
        %2691 = vmatpush1.msra.mxu0 0.0
        %2692 = vmatprep.subr.mxu0 0.0
        %2693 = vmatpush1.msra.mxu0 0.0
        %2694 = vmatprep.subr.mxu0 0.0
        %2695 = vmatpush1.msra.mxu0 0.0
        %2696 = vmatprep.subr.mxu0 0.0
        %2697 = vmatpush1.msra.mxu0 0.0
        %2698 = vmatprep.subr.mxu0 0.0
        %2699 = vmatpush1.msra.mxu0 0.0
        %2700 = vmatprep.subr.mxu0 0.0
        %2701 = vmatpush1.msra.mxu0 0.0
        %2702 = vmatprep.subr.mxu0 0.0
        %2703 = vmatpush1.msra.mxu0 0.0
        %2704 = vmatprep.subr.mxu0 0.0
        %2705 = vmatpush1.msra.mxu0 0.0
        %2706 = vmatprep.subr.mxu0 0.0
        %2707 = vmatpush1.msra.mxu0 0.0
        %2708 = vmatprep.subr.mxu0 0.0
        %2709 = vmatpush1.msra.mxu0 0.0
        %2710 = vmatprep.subr.mxu0 0.0
        %2711 = vmatpush1.msra.mxu0 0.0
        %2712 = vmatprep.subr.mxu0 0.0
        %2713 = vmatpush1.msra.mxu0 0.0
        %2714 = vmatprep.subr.mxu0 0.0
        %2715 = vmatpush1.msra.mxu0 0.0
        %2716 = vmatprep.subr.mxu0 0.0
        %2717 = vmatpush1.msra.mxu0 0.0
        %2718 = vmatprep.subr.mxu0 0.0
        %2719 = vmatpush1.msra.mxu0 0.0
        %2720 = vmatprep.subr.mxu0 0.0
        %2721 = vmatpush1.msra.mxu0 0.0
        %2722 = vmatprep.subr.mxu0 0.0
        %2723 = vmatpush1.msra.mxu0 0.0
        %2724 = vmatprep.subr.mxu0 0.0
        %2725 = vmatpush1.msra.mxu0 0.0
        %2726 = vmatprep.subr.mxu0 0.0
        %2727 = vmatpush1.msra.mxu0 0.0
        %2728 = vmatprep.subr.mxu0 0.0
        %2729 = vmatpush1.msra.mxu0 0.0
        %2730 = vmatprep.subr.mxu0 0.0
        %2731 = vmatpush1.msra.mxu0 0.0
        %2732 = vmatprep.mubr.f32.mxu0 0.0
        %2733 = vmatmul.mubr.f32.gmra.mrb[0].mxu0 %v2532
        %v2734 = vpop.f32.mrb[0].mxu0
        %v2735 = vadd.f32 0.0, %v2734
        %v2736 = vpop.f32.mrb[0].mxu0
        %2737 = vmatprep.mubr.f32.mxu0 0.0
        %2738 = vmatmul.mubr.f32.gmra.mrb[0].mxu0 %v2535
        %v2739 = vpop.f32.mrb[0].mxu0
        %v2740 = vadd.f32 0.0, %v2739
        %v2741 = vpop.f32.mrb[0].mxu0
        %2742 = vmatprep.mubr.f32.mxu0 0.0
        %2743 = vmatmul.mubr.f32.gmra.mrb[0].mxu0 %v2538
        %v2744 = vpop.f32.mrb[0].mxu0
        %v2745 = vadd.f32 0.0, %v2744
        %v2746 = vpop.f32.mrb[0].mxu0
        %2747 = vmatprep.mubr.f32.mxu0 0.0
        %2748 = vmatmul.mubr.f32.gmra.mrb[0].mxu0 %v2541
        %v2749 = vpop.f32.mrb[0].mxu0
        %v2750 = vadd.f32 0.0, %v2749
        %v2751 = vpop.f32.mrb[0].mxu0
        %2752 = vmatprep.mubr.f32.mxu0 0.0
        %2753 = vmatmul.mubr.f32.gmra.mrb[0].mxu0 %v2544
        %v2754 = vpop.f32.mrb[0].mxu0
        %v2755 = vadd.f32 0.0, %v2754
        %v2756 = vpop.f32.mrb[0].mxu0
        %2757 = vmatprep.mubr.f32.mxu0 0.0
        %2758 = vmatmul.mubr.f32.gmra.mrb[0].mxu0 %v2547
        %v2759 = vpop.f32.mrb[0].mxu0
        %v2760 = vadd.f32 0.0, %v2759
        %v2761 = vpop.f32.mrb[0].mxu0
        %2762 = vmatprep.mubr.f32.mxu0 0.0
        %2763 = vmatmul.mubr.f32.gmra.mrb[0].mxu0 %v2550
        %v2764 = vpop.f32.mrb[0].mxu0
        %v2765 = vadd.f32 0.0, %v2764
        %v2766 = vpop.f32.mrb[0].mxu0
        %2767 = vmatprep.mubr.f32.mxu0 0.0
        %2768 = vmatmul.mubr.f32.gmra.mrb[0].mxu0 %v2553
        %v2769 = vpop.f32.mrb[0].mxu0
        %v2770 = vadd.f32 0.0, %v2769
        %v2771 = vpop.f32.mrb[0].mxu0
        %2772 = vdwg.mxu0
        %v2773 = vadd.f32 %v2474, %v2622
        %v2774 = vadd.f32 %v2475, %v2624
        %v2775 = vadd.f32 %v2476, %v2735
        %v2776 = vadd.f32 %v2477, %v2628
        %v2777 = vadd.f32 %v2478, %v2630
        %v2778 = vadd.f32 %v2479, %v2740
        %v2779 = vadd.f32 %v2480, %v2634
        %v2780 = vadd.f32 %v2481, %v2636
        %v2781 = vadd.f32 %v2482, %v2745
        %v2782 = vadd.f32 %v2483, %v2640
        %v2783 = vadd.f32 %v2484, %v2642
        %v2784 = vadd.f32 %v2485, %v2750
        %v2785 = vadd.f32 %v2486, %v2646
        %v2786 = vadd.f32 %v2487, %v2648
        %v2787 = vadd.f32 %v2488, %v2755
        %v2788 = vadd.f32 %v2489, %v2652
        %v2789 = vadd.f32 %v2490, %v2654
        %v2790 = vadd.f32 %v2491, %v2760
        %v2791 = vadd.f32 %v2492, %v2658
        %v2792 = vadd.f32 %v2493, %v2660
        %v2793 = vadd.f32 %v2494, %v2765
        %v2794 = vadd.f32 %v2495, %v2664
        %v2795 = vadd.f32 %v2496, %v2666
        %v2796 = vadd.f32 %v2497, %v2770
        %v2797 = vld [vmem:[%s1002 + $0x2] sm:$0xff]
        %v2798 = vld [vmem:[%s1002 + $0xa] sm:$0xff]
        %v2799 = vld [vmem:[%s1002 + $0x12] sm:$0xff]
        %v2800 = vld [vmem:[%s1002 + $0x1a] sm:$0xff]
        %v2801 = vld [vmem:[%s1002 + $0x22] sm:$0xff]
        %v2802 = vld [vmem:[%s1002 + $0x2a] sm:$0xff]
        %v2803 = vld [vmem:[%s1002 + $0x32] sm:$0xff]
        %v2804 = vld [vmem:[%s1002 + $0x3a] sm:$0xf]
        %s2805 = scalar_lea.vmem [#allocation4], 1536
        %v2806 = vld [vmem:[%s2805] sm:$0xff]
        %v2807 = vld [vmem:[%s2805 + $0x8] sm:$0xff]
        %v2808 = vld [vmem:[%s2805 + $0x10] sm:$0xff]
        %v2809 = vld [vmem:[%s2805 + $0x18] sm:$0xff]
        %v2810 = vld [vmem:[%s2805 + $0x20] sm:$0xff]
        %v2811 = vld [vmem:[%s2805 + $0x28] sm:$0xff]
        %v2812 = vld [vmem:[%s2805 + $0x30] sm:$0xff]
        %v2813 = vld [vmem:[%s2805 + $0x38] sm:$0xff]
        %v2814 = vld [vmem:[%s2805 + $0x40] sm:$0xff]
        %v2815 = vld [vmem:[%s2805 + $0x48] sm:$0xff]
        %v2816 = vld [vmem:[%s2805 + $0x50] sm:$0xff]
        %v2817 = vld [vmem:[%s2805 + $0x58] sm:$0xff]
        %v2818 = vld [vmem:[%s2805 + $0x60] sm:$0xff]
        %v2819 = vld [vmem:[%s2805 + $0x68] sm:$0xff]
        %v2820 = vld [vmem:[%s2805 + $0x70] sm:$0xff]
        %v2821 = vld [vmem:[%s2805 + $0x78] sm:$0xff]
        %v2822 = vld [vmem:[%s2805 + $0x80] sm:$0xff]
        %v2823 = vld [vmem:[%s2805 + $0x88] sm:$0xff]
        %v2824 = vld [vmem:[%s2805 + $0x90] sm:$0xff]
        %v2825 = vld [vmem:[%s2805 + $0x98] sm:$0xff]
        %v2826 = vld [vmem:[%s2805 + $0xa0] sm:$0xff]
        %v2827 = vld [vmem:[%s2805 + $0xa8] sm:$0xff]
        %v2828 = vld [vmem:[%s2805 + $0xb0] sm:$0xff]
        %v2829 = vld [vmem:[%s2805 + $0xb8] sm:$0xff]
        %v2831 = vsel %vm517, %v2797, 0
        %v2834 = vsel %vm517, %v2798, 0
        %v2837 = vsel %vm517, %v2799, 0
        %v2840 = vsel %vm517, %v2800, 0
        %v2843 = vsel %vm517, %v2801, 0
        %v2846 = vsel %vm517, %v2802, 0
        %v2849 = vsel %vm517, %v2803, 0
        %v2852 = vsel %vm517, %v2804, 0
        %2854 = vmatprep.subr.mxu0 %v2807
        %2855 = vmatpush1.msra.mxu0 %v2806
        %2856 = vmatprep.subr.mxu0 %v2810
        %2857 = vmatpush1.msra.mxu0 %v2809
        %2858 = vmatprep.subr.mxu0 %v2813
        %2859 = vmatpush1.msra.mxu0 %v2812
        %2860 = vmatprep.subr.mxu0 %v2816
        %2861 = vmatpush1.msra.mxu0 %v2815
        %2862 = vmatprep.subr.mxu0 %v2819
        %2863 = vmatpush1.msra.mxu0 %v2818
        %2864 = vmatprep.subr.mxu0 %v2822
        %2865 = vmatpush1.msra.mxu0 %v2821
        %2866 = vmatprep.subr.mxu0 %v2825
        %2867 = vmatpush1.msra.mxu0 %v2824
        %2868 = vmatprep.subr.mxu0 %v2828
        %2869 = vmatpush1.msra.mxu0 %v2827
        %2870 = vmatprep.subr.mxu0 0.0
        %2871 = vmatpush1.msra.mxu0 0.0
        %2872 = vmatprep.subr.mxu0 0.0
        %2873 = vmatpush1.msra.mxu0 0.0
        %2874 = vmatprep.subr.mxu0 0.0
        %2875 = vmatpush1.msra.mxu0 0.0
        %2876 = vmatprep.subr.mxu0 0.0
        %2877 = vmatpush1.msra.mxu0 0.0
        %2878 = vmatprep.subr.mxu0 0.0
        %2879 = vmatpush1.msra.mxu0 0.0
        %2880 = vmatprep.subr.mxu0 0.0
        %2881 = vmatpush1.msra.mxu0 0.0
        %2882 = vmatprep.subr.mxu0 0.0
        %2883 = vmatpush1.msra.mxu0 0.0
        %2884 = vmatprep.subr.mxu0 0.0
        %2885 = vmatpush1.msra.mxu0 0.0
        %2886 = vmatprep.subr.mxu0 0.0
        %2887 = vmatpush1.msra.mxu0 0.0
        %2888 = vmatprep.subr.mxu0 0.0
        %2889 = vmatpush1.msra.mxu0 0.0
        %2890 = vmatprep.subr.mxu0 0.0
        %2891 = vmatpush1.msra.mxu0 0.0
        %2892 = vmatprep.subr.mxu0 0.0
        %2893 = vmatpush1.msra.mxu0 0.0
        %2894 = vmatprep.subr.mxu0 0.0
        %2895 = vmatpush1.msra.mxu0 0.0
        %2896 = vmatprep.subr.mxu0 0.0
        %2897 = vmatpush1.msra.mxu0 0.0
        %2898 = vmatprep.subr.mxu0 0.0
        %2899 = vmatpush1.msra.mxu0 0.0
        %2900 = vmatprep.subr.mxu0 0.0
        %2901 = vmatpush1.msra.mxu0 0.0
        %2902 = vmatprep.subr.mxu0 0.0
        %2903 = vmatpush1.msra.mxu0 0.0
        %2904 = vmatprep.subr.mxu0 0.0
        %2905 = vmatpush1.msra.mxu0 0.0
        %2906 = vmatprep.subr.mxu0 0.0
        %2907 = vmatpush1.msra.mxu0 0.0
        %2908 = vmatprep.subr.mxu0 0.0
        %2909 = vmatpush1.msra.mxu0 0.0
        %2910 = vmatprep.subr.mxu0 0.0
        %2911 = vmatpush1.msra.mxu0 0.0
        %2912 = vmatprep.subr.mxu0 0.0
        %2913 = vmatpush1.msra.mxu0 0.0
        %2914 = vmatprep.subr.mxu0 0.0
        %2915 = vmatpush1.msra.mxu0 0.0
        %2916 = vmatprep.subr.mxu0 0.0
        %2917 = vmatpush1.msra.mxu0 0.0
        %2918 = vmatprep.mubr.f32.mxu0 0.0
        %2919 = vmatmul.mubr.f32.gmra.mrb[0].mxu0 %v2831
        %v2920 = vpop.f32.mrb[0].mxu0
        %v2921 = vadd.f32 0.0, %v2920
        %v2922 = vpop.f32.mrb[0].mxu0
        %v2923 = vadd.f32 0.0, %v2922
        %2924 = vmatprep.mubr.f32.mxu0 0.0
        %2925 = vmatmul.mubr.f32.gmra.mrb[0].mxu0 %v2834
        %v2926 = vpop.f32.mrb[0].mxu0
        %v2927 = vadd.f32 0.0, %v2926
        %v2928 = vpop.f32.mrb[0].mxu0
        %v2929 = vadd.f32 0.0, %v2928
        %2930 = vmatprep.mubr.f32.mxu0 0.0
        %2931 = vmatmul.mubr.f32.gmra.mrb[0].mxu0 %v2837
        %v2932 = vpop.f32.mrb[0].mxu0
        %v2933 = vadd.f32 0.0, %v2932
        %v2934 = vpop.f32.mrb[0].mxu0
        %v2935 = vadd.f32 0.0, %v2934
        %2936 = vmatprep.mubr.f32.mxu0 0.0
        %2937 = vmatmul.mubr.f32.gmra.mrb[0].mxu0 %v2840
        %v2938 = vpop.f32.mrb[0].mxu0
        %v2939 = vadd.f32 0.0, %v2938
        %v2940 = vpop.f32.mrb[0].mxu0
        %v2941 = vadd.f32 0.0, %v2940
        %2942 = vmatprep.mubr.f32.mxu0 0.0
        %2943 = vmatmul.mubr.f32.gmra.mrb[0].mxu0 %v2843
        %v2944 = vpop.f32.mrb[0].mxu0
        %v2945 = vadd.f32 0.0, %v2944
        %v2946 = vpop.f32.mrb[0].mxu0
        %v2947 = vadd.f32 0.0, %v2946
        %2948 = vmatprep.mubr.f32.mxu0 0.0
        %2949 = vmatmul.mubr.f32.gmra.mrb[0].mxu0 %v2846
        %v2950 = vpop.f32.mrb[0].mxu0
        %v2951 = vadd.f32 0.0, %v2950
        %v2952 = vpop.f32.mrb[0].mxu0
        %v2953 = vadd.f32 0.0, %v2952
        %2954 = vmatprep.mubr.f32.mxu0 0.0
        %2955 = vmatmul.mubr.f32.gmra.mrb[0].mxu0 %v2849
        %v2956 = vpop.f32.mrb[0].mxu0
        %v2957 = vadd.f32 0.0, %v2956
        %v2958 = vpop.f32.mrb[0].mxu0
        %v2959 = vadd.f32 0.0, %v2958
        %2960 = vmatprep.mubr.f32.mxu0 0.0
        %2961 = vmatmul.mubr.f32.gmra.mrb[0].mxu0 %v2852
        %v2962 = vpop.f32.mrb[0].mxu0
        %v2963 = vadd.f32 0.0, %v2962
        %v2964 = vpop.f32.mrb[0].mxu0
        %v2965 = vadd.f32 0.0, %v2964
        %2966 = vdwg.mxu0
        %2967 = vmatprep.subr.mxu0 0.0
        %2968 = vmatpush1.msra.mxu0 %v2808
        %2969 = vmatprep.subr.mxu0 0.0
        %2970 = vmatpush1.msra.mxu0 %v2811
        %2971 = vmatprep.subr.mxu0 0.0
        %2972 = vmatpush1.msra.mxu0 %v2814
        %2973 = vmatprep.subr.mxu0 0.0
        %2974 = vmatpush1.msra.mxu0 %v2817
        %2975 = vmatprep.subr.mxu0 0.0
        %2976 = vmatpush1.msra.mxu0 %v2820
        %2977 = vmatprep.subr.mxu0 0.0
        %2978 = vmatpush1.msra.mxu0 %v2823
        %2979 = vmatprep.subr.mxu0 0.0
        %2980 = vmatpush1.msra.mxu0 %v2826
        %2981 = vmatprep.subr.mxu0 0.0
        %2982 = vmatpush1.msra.mxu0 %v2829
        %2983 = vmatprep.subr.mxu0 0.0
        %2984 = vmatpush1.msra.mxu0 0.0
        %2985 = vmatprep.subr.mxu0 0.0
        %2986 = vmatpush1.msra.mxu0 0.0
        %2987 = vmatprep.subr.mxu0 0.0
        %2988 = vmatpush1.msra.mxu0 0.0
        %2989 = vmatprep.subr.mxu0 0.0
        %2990 = vmatpush1.msra.mxu0 0.0
        %2991 = vmatprep.subr.mxu0 0.0
        %2992 = vmatpush1.msra.mxu0 0.0
        %2993 = vmatprep.subr.mxu0 0.0
        %2994 = vmatpush1.msra.mxu0 0.0
        %2995 = vmatprep.subr.mxu0 0.0
        %2996 = vmatpush1.msra.mxu0 0.0
        %2997 = vmatprep.subr.mxu0 0.0
        %2998 = vmatpush1.msra.mxu0 0.0
        %2999 = vmatprep.subr.mxu0 0.0
        %3000 = vmatpush1.msra.mxu0 0.0
        %3001 = vmatprep.subr.mxu0 0.0
        %3002 = vmatpush1.msra.mxu0 0.0
        %3003 = vmatprep.subr.mxu0 0.0
        %3004 = vmatpush1.msra.mxu0 0.0
        %3005 = vmatprep.subr.mxu0 0.0
        %3006 = vmatpush1.msra.mxu0 0.0
        %3007 = vmatprep.subr.mxu0 0.0
        %3008 = vmatpush1.msra.mxu0 0.0
        %3009 = vmatprep.subr.mxu0 0.0
        %3010 = vmatpush1.msra.mxu0 0.0
        %3011 = vmatprep.subr.mxu0 0.0
        %3012 = vmatpush1.msra.mxu0 0.0
        %3013 = vmatprep.subr.mxu0 0.0
        %3014 = vmatpush1.msra.mxu0 0.0
        %3015 = vmatprep.subr.mxu0 0.0
        %3016 = vmatpush1.msra.mxu0 0.0
        %3017 = vmatprep.subr.mxu0 0.0
        %3018 = vmatpush1.msra.mxu0 0.0
        %3019 = vmatprep.subr.mxu0 0.0
        %3020 = vmatpush1.msra.mxu0 0.0
        %3021 = vmatprep.subr.mxu0 0.0
        %3022 = vmatpush1.msra.mxu0 0.0
        %3023 = vmatprep.subr.mxu0 0.0
        %3024 = vmatpush1.msra.mxu0 0.0
        %3025 = vmatprep.subr.mxu0 0.0
        %3026 = vmatpush1.msra.mxu0 0.0
        %3027 = vmatprep.subr.mxu0 0.0
        %3028 = vmatpush1.msra.mxu0 0.0
        %3029 = vmatprep.subr.mxu0 0.0
        %3030 = vmatpush1.msra.mxu0 0.0
        %3031 = vmatprep.mubr.f32.mxu0 0.0
        %3032 = vmatmul.mubr.f32.gmra.mrb[0].mxu0 %v2831
        %v3033 = vpop.f32.mrb[0].mxu0
        %v3034 = vadd.f32 0.0, %v3033
        %v3035 = vpop.f32.mrb[0].mxu0
        %3036 = vmatprep.mubr.f32.mxu0 0.0
        %3037 = vmatmul.mubr.f32.gmra.mrb[0].mxu0 %v2834
        %v3038 = vpop.f32.mrb[0].mxu0
        %v3039 = vadd.f32 0.0, %v3038
        %v3040 = vpop.f32.mrb[0].mxu0
        %3041 = vmatprep.mubr.f32.mxu0 0.0
        %3042 = vmatmul.mubr.f32.gmra.mrb[0].mxu0 %v2837
        %v3043 = vpop.f32.mrb[0].mxu0
        %v3044 = vadd.f32 0.0, %v3043
        %v3045 = vpop.f32.mrb[0].mxu0
        %3046 = vmatprep.mubr.f32.mxu0 0.0
        %3047 = vmatmul.mubr.f32.gmra.mrb[0].mxu0 %v2840
        %v3048 = vpop.f32.mrb[0].mxu0
        %v3049 = vadd.f32 0.0, %v3048
        %v3050 = vpop.f32.mrb[0].mxu0
        %3051 = vmatprep.mubr.f32.mxu0 0.0
        %3052 = vmatmul.mubr.f32.gmra.mrb[0].mxu0 %v2843
        %v3053 = vpop.f32.mrb[0].mxu0
        %v3054 = vadd.f32 0.0, %v3053
        %v3055 = vpop.f32.mrb[0].mxu0
        %3056 = vmatprep.mubr.f32.mxu0 0.0
        %3057 = vmatmul.mubr.f32.gmra.mrb[0].mxu0 %v2846
        %v3058 = vpop.f32.mrb[0].mxu0
        %v3059 = vadd.f32 0.0, %v3058
        %v3060 = vpop.f32.mrb[0].mxu0
        %3061 = vmatprep.mubr.f32.mxu0 0.0
        %3062 = vmatmul.mubr.f32.gmra.mrb[0].mxu0 %v2849
        %v3063 = vpop.f32.mrb[0].mxu0
        %v3064 = vadd.f32 0.0, %v3063
        %v3065 = vpop.f32.mrb[0].mxu0
        %3066 = vmatprep.mubr.f32.mxu0 0.0
        %3067 = vmatmul.mubr.f32.gmra.mrb[0].mxu0 %v2852
        %v3068 = vpop.f32.mrb[0].mxu0
        %v3069 = vadd.f32 0.0, %v3068
        %v3070 = vpop.f32.mrb[0].mxu0
        %3071 = vdwg.mxu0
        %v3072 = vadd.f32 %v2773, %v2921
        %v3073 = vadd.f32 %v2774, %v2923
        %v3074 = vadd.f32 %v2775, %v3034
        %v3075 = vadd.f32 %v2776, %v2927
        %v3076 = vadd.f32 %v2777, %v2929
        %v3077 = vadd.f32 %v2778, %v3039
        %v3078 = vadd.f32 %v2779, %v2933
        %v3079 = vadd.f32 %v2780, %v2935
        %v3080 = vadd.f32 %v2781, %v3044
        %v3081 = vadd.f32 %v2782, %v2939
        %v3082 = vadd.f32 %v2783, %v2941
        %v3083 = vadd.f32 %v2784, %v3049
        %v3084 = vadd.f32 %v2785, %v2945
        %v3085 = vadd.f32 %v2786, %v2947
        %v3086 = vadd.f32 %v2787, %v3054
        %v3087 = vadd.f32 %v2788, %v2951
        %v3088 = vadd.f32 %v2789, %v2953
        %v3089 = vadd.f32 %v2790, %v3059
        %v3090 = vadd.f32 %v2791, %v2957
        %v3091 = vadd.f32 %v2792, %v2959
        %v3092 = vadd.f32 %v2793, %v3064
        %v3093 = vadd.f32 %v2794, %v2963
        %v3094 = vadd.f32 %v2795, %v2965
        %v3095 = vadd.f32 %v2796, %v3069
        %v3096 = vld [vmem:[%s383 + $0x3] sm:$0xff]
        %v3097 = vld [vmem:[%s383 + $0xb] sm:$0xff]
        %v3098 = vld [vmem:[%s383 + $0x13] sm:$0xff]
        %v3099 = vld [vmem:[%s383 + $0x1b] sm:$0xff]
        %v3100 = vld [vmem:[%s383 + $0x23] sm:$0xff]
        %v3101 = vld [vmem:[%s383 + $0x2b] sm:$0xff]
        %v3102 = vld [vmem:[%s383 + $0x33] sm:$0xff]
        %v3103 = vld [vmem:[%s383 + $0x3b] sm:$0xf]
        %s3104 = scalar_lea.vmem [#allocation4], 1728
        %v3105 = vld [vmem:[%s3104] sm:$0xff]
        %v3106 = vld [vmem:[%s3104 + $0x8] sm:$0xff]
        %v3107 = vld [vmem:[%s3104 + $0x10] sm:$0xff]
        %v3108 = vld [vmem:[%s3104 + $0x18] sm:$0xff]
        %v3109 = vld [vmem:[%s3104 + $0x20] sm:$0xff]
        %v3110 = vld [vmem:[%s3104 + $0x28] sm:$0xff]
        %v3111 = vld [vmem:[%s3104 + $0x30] sm:$0xff]
        %v3112 = vld [vmem:[%s3104 + $0x38] sm:$0xff]
        %v3113 = vld [vmem:[%s3104 + $0x40] sm:$0xff]
        %v3114 = vld [vmem:[%s3104 + $0x48] sm:$0xff]
        %v3115 = vld [vmem:[%s3104 + $0x50] sm:$0xff]
        %v3116 = vld [vmem:[%s3104 + $0x58] sm:$0xff]
        %v3117 = vld [vmem:[%s3104 + $0x60] sm:$0xff]
        %v3118 = vld [vmem:[%s3104 + $0x68] sm:$0xff]
        %v3119 = vld [vmem:[%s3104 + $0x70] sm:$0xff]
        %v3120 = vld [vmem:[%s3104 + $0x78] sm:$0xff]
        %v3121 = vld [vmem:[%s3104 + $0x80] sm:$0xff]
        %v3122 = vld [vmem:[%s3104 + $0x88] sm:$0xff]
        %v3123 = vld [vmem:[%s3104 + $0x90] sm:$0xff]
        %v3124 = vld [vmem:[%s3104 + $0x98] sm:$0xff]
        %v3125 = vld [vmem:[%s3104 + $0xa0] sm:$0xff]
        %v3126 = vld [vmem:[%s3104 + $0xa8] sm:$0xff]
        %v3127 = vld [vmem:[%s3104 + $0xb0] sm:$0xff]
        %v3128 = vld [vmem:[%s3104 + $0xb8] sm:$0xff]
        %v3130 = vsel %vm517, %v3096, 0
        %v3133 = vsel %vm517, %v3097, 0
        %v3136 = vsel %vm517, %v3098, 0
        %v3139 = vsel %vm517, %v3099, 0
        %v3142 = vsel %vm517, %v3100, 0
        %v3145 = vsel %vm517, %v3101, 0
        %v3148 = vsel %vm517, %v3102, 0
        %v3151 = vsel %vm517, %v3103, 0
        %3153 = vmatprep.subr.mxu0 %v3106
        %3154 = vmatpush1.msra.mxu0 %v3105
        %3155 = vmatprep.subr.mxu0 %v3109
        %3156 = vmatpush1.msra.mxu0 %v3108
        %3157 = vmatprep.subr.mxu0 %v3112
        %3158 = vmatpush1.msra.mxu0 %v3111
        %3159 = vmatprep.subr.mxu0 %v3115
        %3160 = vmatpush1.msra.mxu0 %v3114
        %3161 = vmatprep.subr.mxu0 %v3118
        %3162 = vmatpush1.msra.mxu0 %v3117
        %3163 = vmatprep.subr.mxu0 %v3121
        %3164 = vmatpush1.msra.mxu0 %v3120
        %3165 = vmatprep.subr.mxu0 %v3124
        %3166 = vmatpush1.msra.mxu0 %v3123
        %3167 = vmatprep.subr.mxu0 %v3127
        %3168 = vmatpush1.msra.mxu0 %v3126
        %3169 = vmatprep.subr.mxu0 0.0
        %3170 = vmatpush1.msra.mxu0 0.0
        %3171 = vmatprep.subr.mxu0 0.0
        %3172 = vmatpush1.msra.mxu0 0.0
        %3173 = vmatprep.subr.mxu0 0.0
        %3174 = vmatpush1.msra.mxu0 0.0
        %3175 = vmatprep.subr.mxu0 0.0
        %3176 = vmatpush1.msra.mxu0 0.0
        %3177 = vmatprep.subr.mxu0 0.0
        %3178 = vmatpush1.msra.mxu0 0.0
        %3179 = vmatprep.subr.mxu0 0.0
        %3180 = vmatpush1.msra.mxu0 0.0
        %3181 = vmatprep.subr.mxu0 0.0
        %3182 = vmatpush1.msra.mxu0 0.0
        %3183 = vmatprep.subr.mxu0 0.0
        %3184 = vmatpush1.msra.mxu0 0.0
        %3185 = vmatprep.subr.mxu0 0.0
        %3186 = vmatpush1.msra.mxu0 0.0
        %3187 = vmatprep.subr.mxu0 0.0
        %3188 = vmatpush1.msra.mxu0 0.0
        %3189 = vmatprep.subr.mxu0 0.0
        %3190 = vmatpush1.msra.mxu0 0.0
        %3191 = vmatprep.subr.mxu0 0.0
        %3192 = vmatpush1.msra.mxu0 0.0
        %3193 = vmatprep.subr.mxu0 0.0
        %3194 = vmatpush1.msra.mxu0 0.0
        %3195 = vmatprep.subr.mxu0 0.0
        %3196 = vmatpush1.msra.mxu0 0.0
        %3197 = vmatprep.subr.mxu0 0.0
        %3198 = vmatpush1.msra.mxu0 0.0
        %3199 = vmatprep.subr.mxu0 0.0
        %3200 = vmatpush1.msra.mxu0 0.0
        %3201 = vmatprep.subr.mxu0 0.0
        %3202 = vmatpush1.msra.mxu0 0.0
        %3203 = vmatprep.subr.mxu0 0.0
        %3204 = vmatpush1.msra.mxu0 0.0
        %3205 = vmatprep.subr.mxu0 0.0
        %3206 = vmatpush1.msra.mxu0 0.0
        %3207 = vmatprep.subr.mxu0 0.0
        %3208 = vmatpush1.msra.mxu0 0.0
        %3209 = vmatprep.subr.mxu0 0.0
        %3210 = vmatpush1.msra.mxu0 0.0
        %3211 = vmatprep.subr.mxu0 0.0
        %3212 = vmatpush1.msra.mxu0 0.0
        %3213 = vmatprep.subr.mxu0 0.0
        %3214 = vmatpush1.msra.mxu0 0.0
        %3215 = vmatprep.subr.mxu0 0.0
        %3216 = vmatpush1.msra.mxu0 0.0
        %3217 = vmatprep.mubr.f32.mxu0 0.0
        %3218 = vmatmul.mubr.f32.gmra.mrb[0].mxu0 %v3130
        %v3219 = vpop.f32.mrb[0].mxu0
        %v3220 = vadd.f32 0.0, %v3219
        %v3221 = vpop.f32.mrb[0].mxu0
        %v3222 = vadd.f32 0.0, %v3221
        %3223 = vmatprep.mubr.f32.mxu0 0.0
        %3224 = vmatmul.mubr.f32.gmra.mrb[0].mxu0 %v3133
        %v3225 = vpop.f32.mrb[0].mxu0
        %v3226 = vadd.f32 0.0, %v3225
        %v3227 = vpop.f32.mrb[0].mxu0
        %v3228 = vadd.f32 0.0, %v3227
        %3229 = vmatprep.mubr.f32.mxu0 0.0
        %3230 = vmatmul.mubr.f32.gmra.mrb[0].mxu0 %v3136
        %v3231 = vpop.f32.mrb[0].mxu0
        %v3232 = vadd.f32 0.0, %v3231
        %v3233 = vpop.f32.mrb[0].mxu0
        %v3234 = vadd.f32 0.0, %v3233
        %3235 = vmatprep.mubr.f32.mxu0 0.0
        %3236 = vmatmul.mubr.f32.gmra.mrb[0].mxu0 %v3139
        %v3237 = vpop.f32.mrb[0].mxu0
        %v3238 = vadd.f32 0.0, %v3237
        %v3239 = vpop.f32.mrb[0].mxu0
        %v3240 = vadd.f32 0.0, %v3239
        %3241 = vmatprep.mubr.f32.mxu0 0.0
        %3242 = vmatmul.mubr.f32.gmra.mrb[0].mxu0 %v3142
        %v3243 = vpop.f32.mrb[0].mxu0
        %v3244 = vadd.f32 0.0, %v3243
        %v3245 = vpop.f32.mrb[0].mxu0
        %v3246 = vadd.f32 0.0, %v3245
        %3247 = vmatprep.mubr.f32.mxu0 0.0
        %3248 = vmatmul.mubr.f32.gmra.mrb[0].mxu0 %v3145
        %v3249 = vpop.f32.mrb[0].mxu0
        %v3250 = vadd.f32 0.0, %v3249
        %v3251 = vpop.f32.mrb[0].mxu0
        %v3252 = vadd.f32 0.0, %v3251
        %3253 = vmatprep.mubr.f32.mxu0 0.0
        %3254 = vmatmul.mubr.f32.gmra.mrb[0].mxu0 %v3148
        %v3255 = vpop.f32.mrb[0].mxu0
        %v3256 = vadd.f32 0.0, %v3255
        %v3257 = vpop.f32.mrb[0].mxu0
        %v3258 = vadd.f32 0.0, %v3257
        %3259 = vmatprep.mubr.f32.mxu0 0.0
        %3260 = vmatmul.mubr.f32.gmra.mrb[0].mxu0 %v3151
        %v3261 = vpop.f32.mrb[0].mxu0
        %v3262 = vadd.f32 0.0, %v3261
        %v3263 = vpop.f32.mrb[0].mxu0
        %v3264 = vadd.f32 0.0, %v3263
        %3265 = vdwg.mxu0
        %3266 = vmatprep.subr.mxu0 0.0
        %3267 = vmatpush1.msra.mxu0 %v3107
        %3268 = vmatprep.subr.mxu0 0.0
        %3269 = vmatpush1.msra.mxu0 %v3110
        %3270 = vmatprep.subr.mxu0 0.0
        %3271 = vmatpush1.msra.mxu0 %v3113
        %3272 = vmatprep.subr.mxu0 0.0
        %3273 = vmatpush1.msra.mxu0 %v3116
        %3274 = vmatprep.subr.mxu0 0.0
        %3275 = vmatpush1.msra.mxu0 %v3119
        %3276 = vmatprep.subr.mxu0 0.0
        %3277 = vmatpush1.msra.mxu0 %v3122
        %3278 = vmatprep.subr.mxu0 0.0
        %3279 = vmatpush1.msra.mxu0 %v3125
        %3280 = vmatprep.subr.mxu0 0.0
        %3281 = vmatpush1.msra.mxu0 %v3128
        %3282 = vmatprep.subr.mxu0 0.0
        %3283 = vmatpush1.msra.mxu0 0.0
        %3284 = vmatprep.subr.mxu0 0.0
        %3285 = vmatpush1.msra.mxu0 0.0
        %3286 = vmatprep.subr.mxu0 0.0
        %3287 = vmatpush1.msra.mxu0 0.0
        %3288 = vmatprep.subr.mxu0 0.0
        %3289 = vmatpush1.msra.mxu0 0.0
        %3290 = vmatprep.subr.mxu0 0.0
        %3291 = vmatpush1.msra.mxu0 0.0
        %3292 = vmatprep.subr.mxu0 0.0
        %3293 = vmatpush1.msra.mxu0 0.0
        %3294 = vmatprep.subr.mxu0 0.0
        %3295 = vmatpush1.msra.mxu0 0.0
        %3296 = vmatprep.subr.mxu0 0.0
        %3297 = vmatpush1.msra.mxu0 0.0
        %3298 = vmatprep.subr.mxu0 0.0
        %3299 = vmatpush1.msra.mxu0 0.0
        %3300 = vmatprep.subr.mxu0 0.0
        %3301 = vmatpush1.msra.mxu0 0.0
        %3302 = vmatprep.subr.mxu0 0.0
        %3303 = vmatpush1.msra.mxu0 0.0
        %3304 = vmatprep.subr.mxu0 0.0
        %3305 = vmatpush1.msra.mxu0 0.0
        %3306 = vmatprep.subr.mxu0 0.0
        %3307 = vmatpush1.msra.mxu0 0.0
        %3308 = vmatprep.subr.mxu0 0.0
        %3309 = vmatpush1.msra.mxu0 0.0
        %3310 = vmatprep.subr.mxu0 0.0
        %3311 = vmatpush1.msra.mxu0 0.0
        %3312 = vmatprep.subr.mxu0 0.0
        %3313 = vmatpush1.msra.mxu0 0.0
        %3314 = vmatprep.subr.mxu0 0.0
        %3315 = vmatpush1.msra.mxu0 0.0
        %3316 = vmatprep.subr.mxu0 0.0
        %3317 = vmatpush1.msra.mxu0 0.0
        %3318 = vmatprep.subr.mxu0 0.0
        %3319 = vmatpush1.msra.mxu0 0.0
        %3320 = vmatprep.subr.mxu0 0.0
        %3321 = vmatpush1.msra.mxu0 0.0
        %3322 = vmatprep.subr.mxu0 0.0
        %3323 = vmatpush1.msra.mxu0 0.0
        %3324 = vmatprep.subr.mxu0 0.0
        %3325 = vmatpush1.msra.mxu0 0.0
        %3326 = vmatprep.subr.mxu0 0.0
        %3327 = vmatpush1.msra.mxu0 0.0
        %3328 = vmatprep.subr.mxu0 0.0
        %3329 = vmatpush1.msra.mxu0 0.0
        %3330 = vmatprep.mubr.f32.mxu0 0.0
        %3331 = vmatmul.mubr.f32.gmra.mrb[0].mxu0 %v3130
        %v3332 = vpop.f32.mrb[0].mxu0
        %v3333 = vadd.f32 0.0, %v3332
        %v3334 = vpop.f32.mrb[0].mxu0
        %3335 = vmatprep.mubr.f32.mxu0 0.0
        %3336 = vmatmul.mubr.f32.gmra.mrb[0].mxu0 %v3133
        %v3337 = vpop.f32.mrb[0].mxu0
        %v3338 = vadd.f32 0.0, %v3337
        %v3339 = vpop.f32.mrb[0].mxu0
        %3340 = vmatprep.mubr.f32.mxu0 0.0
        %3341 = vmatmul.mubr.f32.gmra.mrb[0].mxu0 %v3136
        %v3342 = vpop.f32.mrb[0].mxu0
        %v3343 = vadd.f32 0.0, %v3342
        %v3344 = vpop.f32.mrb[0].mxu0
        %3345 = vmatprep.mubr.f32.mxu0 0.0
        %3346 = vmatmul.mubr.f32.gmra.mrb[0].mxu0 %v3139
        %v3347 = vpop.f32.mrb[0].mxu0
        %v3348 = vadd.f32 0.0, %v3347
        %v3349 = vpop.f32.mrb[0].mxu0
        %3350 = vmatprep.mubr.f32.mxu0 0.0
        %3351 = vmatmul.mubr.f32.gmra.mrb[0].mxu0 %v3142
        %v3352 = vpop.f32.mrb[0].mxu0
        %v3353 = vadd.f32 0.0, %v3352
        %v3354 = vpop.f32.mrb[0].mxu0
        %3355 = vmatprep.mubr.f32.mxu0 0.0
        %3356 = vmatmul.mubr.f32.gmra.mrb[0].mxu0 %v3145
        %v3357 = vpop.f32.mrb[0].mxu0
        %v3358 = vadd.f32 0.0, %v3357
        %v3359 = vpop.f32.mrb[0].mxu0
        %3360 = vmatprep.mubr.f32.mxu0 0.0
        %3361 = vmatmul.mubr.f32.gmra.mrb[0].mxu0 %v3148
        %v3362 = vpop.f32.mrb[0].mxu0
        %v3363 = vadd.f32 0.0, %v3362
        %v3364 = vpop.f32.mrb[0].mxu0
        %3365 = vmatprep.mubr.f32.mxu0 0.0
        %3366 = vmatmul.mubr.f32.gmra.mrb[0].mxu0 %v3151
        %v3367 = vpop.f32.mrb[0].mxu0
        %v3368 = vadd.f32 0.0, %v3367
        %v3369 = vpop.f32.mrb[0].mxu0
        %3370 = vdwg.mxu0
        %v3371 = vadd.f32 %v3072, %v3220
        %v3372 = vadd.f32 %v3073, %v3222
        %v3373 = vadd.f32 %v3074, %v3333
        %v3374 = vadd.f32 %v3075, %v3226
        %v3375 = vadd.f32 %v3076, %v3228
        %v3376 = vadd.f32 %v3077, %v3338
        %v3377 = vadd.f32 %v3078, %v3232
        %v3378 = vadd.f32 %v3079, %v3234
        %v3379 = vadd.f32 %v3080, %v3343
        %v3380 = vadd.f32 %v3081, %v3238
        %v3381 = vadd.f32 %v3082, %v3240
        %v3382 = vadd.f32 %v3083, %v3348
        %v3383 = vadd.f32 %v3084, %v3244
        %v3384 = vadd.f32 %v3085, %v3246
        %v3385 = vadd.f32 %v3086, %v3353
        %v3386 = vadd.f32 %v3087, %v3250
        %v3387 = vadd.f32 %v3088, %v3252
        %v3388 = vadd.f32 %v3089, %v3358
        %v3389 = vadd.f32 %v3090, %v3256
        %v3390 = vadd.f32 %v3091, %v3258
        %v3391 = vadd.f32 %v3092, %v3363
        %v3392 = vadd.f32 %v3093, %v3262
        %v3393 = vadd.f32 %v3094, %v3264
        %v3394 = vadd.f32 %v3095, %v3368
        %v3395 = vld [vmem:[%s483 + $0x3] sm:$0xff]
        %v3396 = vld [vmem:[%s483 + $0xb] sm:$0xff]
        %v3397 = vld [vmem:[%s483 + $0x13] sm:$0xff]
        %v3398 = vld [vmem:[%s483 + $0x1b] sm:$0xff]
        %v3399 = vld [vmem:[%s483 + $0x23] sm:$0xff]
        %v3400 = vld [vmem:[%s483 + $0x2b] sm:$0xff]
        %v3401 = vld [vmem:[%s483 + $0x33] sm:$0xff]
        %v3402 = vld [vmem:[%s483 + $0x3b] sm:$0xf]
        %s3403 = scalar_lea.vmem [#allocation4], 1920
        %v3404 = vld [vmem:[%s3403] sm:$0xff]
        %v3405 = vld [vmem:[%s3403 + $0x8] sm:$0xff]
        %v3406 = vld [vmem:[%s3403 + $0x10] sm:$0xff]
        %v3407 = vld [vmem:[%s3403 + $0x18] sm:$0xff]
        %v3408 = vld [vmem:[%s3403 + $0x20] sm:$0xff]
        %v3409 = vld [vmem:[%s3403 + $0x28] sm:$0xff]
        %v3410 = vld [vmem:[%s3403 + $0x30] sm:$0xff]
        %v3411 = vld [vmem:[%s3403 + $0x38] sm:$0xff]
        %v3412 = vld [vmem:[%s3403 + $0x40] sm:$0xff]
        %v3413 = vld [vmem:[%s3403 + $0x48] sm:$0xff]
        %v3414 = vld [vmem:[%s3403 + $0x50] sm:$0xff]
        %v3415 = vld [vmem:[%s3403 + $0x58] sm:$0xff]
        %v3416 = vld [vmem:[%s3403 + $0x60] sm:$0xff]
        %v3417 = vld [vmem:[%s3403 + $0x68] sm:$0xff]
        %v3418 = vld [vmem:[%s3403 + $0x70] sm:$0xff]
        %v3419 = vld [vmem:[%s3403 + $0x78] sm:$0xff]
        %v3420 = vld [vmem:[%s3403 + $0x80] sm:$0xff]
        %v3421 = vld [vmem:[%s3403 + $0x88] sm:$0xff]
        %v3422 = vld [vmem:[%s3403 + $0x90] sm:$0xff]
        %v3423 = vld [vmem:[%s3403 + $0x98] sm:$0xff]
        %v3424 = vld [vmem:[%s3403 + $0xa0] sm:$0xff]
        %v3425 = vld [vmem:[%s3403 + $0xa8] sm:$0xff]
        %v3426 = vld [vmem:[%s3403 + $0xb0] sm:$0xff]
        %v3427 = vld [vmem:[%s3403 + $0xb8] sm:$0xff]
        %v3429 = vsel %vm517, %v3395, 0
        %v3432 = vsel %vm517, %v3396, 0
        %v3435 = vsel %vm517, %v3397, 0
        %v3438 = vsel %vm517, %v3398, 0
        %v3441 = vsel %vm517, %v3399, 0
        %v3444 = vsel %vm517, %v3400, 0
        %v3447 = vsel %vm517, %v3401, 0
        %v3450 = vsel %vm517, %v3402, 0
        %3452 = vmatprep.subr.mxu0 %v3405
        %3453 = vmatpush1.msra.mxu0 %v3404
        %3454 = vmatprep.subr.mxu0 %v3408
        %3455 = vmatpush1.msra.mxu0 %v3407
        %3456 = vmatprep.subr.mxu0 %v3411
        %3457 = vmatpush1.msra.mxu0 %v3410
        %3458 = vmatprep.subr.mxu0 %v3414
        %3459 = vmatpush1.msra.mxu0 %v3413
        %3460 = vmatprep.subr.mxu0 %v3417
        %3461 = vmatpush1.msra.mxu0 %v3416
        %3462 = vmatprep.subr.mxu0 %v3420
        %3463 = vmatpush1.msra.mxu0 %v3419
        %3464 = vmatprep.subr.mxu0 %v3423
        %3465 = vmatpush1.msra.mxu0 %v3422
        %3466 = vmatprep.subr.mxu0 %v3426
        %3467 = vmatpush1.msra.mxu0 %v3425
        %3468 = vmatprep.subr.mxu0 0.0
        %3469 = vmatpush1.msra.mxu0 0.0
        %3470 = vmatprep.subr.mxu0 0.0
        %3471 = vmatpush1.msra.mxu0 0.0
        %3472 = vmatprep.subr.mxu0 0.0
        %3473 = vmatpush1.msra.mxu0 0.0
        %3474 = vmatprep.subr.mxu0 0.0
        %3475 = vmatpush1.msra.mxu0 0.0
        %3476 = vmatprep.subr.mxu0 0.0
        %3477 = vmatpush1.msra.mxu0 0.0
        %3478 = vmatprep.subr.mxu0 0.0
        %3479 = vmatpush1.msra.mxu0 0.0
        %3480 = vmatprep.subr.mxu0 0.0
        %3481 = vmatpush1.msra.mxu0 0.0
        %3482 = vmatprep.subr.mxu0 0.0
        %3483 = vmatpush1.msra.mxu0 0.0
        %3484 = vmatprep.subr.mxu0 0.0
        %3485 = vmatpush1.msra.mxu0 0.0
        %3486 = vmatprep.subr.mxu0 0.0
        %3487 = vmatpush1.msra.mxu0 0.0
        %3488 = vmatprep.subr.mxu0 0.0
        %3489 = vmatpush1.msra.mxu0 0.0
        %3490 = vmatprep.subr.mxu0 0.0
        %3491 = vmatpush1.msra.mxu0 0.0
        %3492 = vmatprep.subr.mxu0 0.0
        %3493 = vmatpush1.msra.mxu0 0.0
        %3494 = vmatprep.subr.mxu0 0.0
        %3495 = vmatpush1.msra.mxu0 0.0
        %3496 = vmatprep.subr.mxu0 0.0
        %3497 = vmatpush1.msra.mxu0 0.0
        %3498 = vmatprep.subr.mxu0 0.0
        %3499 = vmatpush1.msra.mxu0 0.0
        %3500 = vmatprep.subr.mxu0 0.0
        %3501 = vmatpush1.msra.mxu0 0.0
        %3502 = vmatprep.subr.mxu0 0.0
        %3503 = vmatpush1.msra.mxu0 0.0
        %3504 = vmatprep.subr.mxu0 0.0
        %3505 = vmatpush1.msra.mxu0 0.0
        %3506 = vmatprep.subr.mxu0 0.0
        %3507 = vmatpush1.msra.mxu0 0.0
        %3508 = vmatprep.subr.mxu0 0.0
        %3509 = vmatpush1.msra.mxu0 0.0
        %3510 = vmatprep.subr.mxu0 0.0
        %3511 = vmatpush1.msra.mxu0 0.0
        %3512 = vmatprep.subr.mxu0 0.0
        %3513 = vmatpush1.msra.mxu0 0.0
        %3514 = vmatprep.subr.mxu0 0.0
        %3515 = vmatpush1.msra.mxu0 0.0
        %3516 = vmatprep.mubr.f32.mxu0 0.0
        %3517 = vmatmul.mubr.f32.gmra.mrb[0].mxu0 %v3429
        %v3518 = vpop.f32.mrb[0].mxu0
        %v3519 = vadd.f32 0.0, %v3518
        %v3520 = vpop.f32.mrb[0].mxu0
        %v3521 = vadd.f32 0.0, %v3520
        %3522 = vmatprep.mubr.f32.mxu0 0.0
        %3523 = vmatmul.mubr.f32.gmra.mrb[0].mxu0 %v3432
        %v3524 = vpop.f32.mrb[0].mxu0
        %v3525 = vadd.f32 0.0, %v3524
        %v3526 = vpop.f32.mrb[0].mxu0
        %v3527 = vadd.f32 0.0, %v3526
        %3528 = vmatprep.mubr.f32.mxu0 0.0
        %3529 = vmatmul.mubr.f32.gmra.mrb[0].mxu0 %v3435
        %v3530 = vpop.f32.mrb[0].mxu0
        %v3531 = vadd.f32 0.0, %v3530
        %v3532 = vpop.f32.mrb[0].mxu0
        %v3533 = vadd.f32 0.0, %v3532
        %3534 = vmatprep.mubr.f32.mxu0 0.0
        %3535 = vmatmul.mubr.f32.gmra.mrb[0].mxu0 %v3438
        %v3536 = vpop.f32.mrb[0].mxu0
        %v3537 = vadd.f32 0.0, %v3536
        %v3538 = vpop.f32.mrb[0].mxu0
        %v3539 = vadd.f32 0.0, %v3538
        %3540 = vmatprep.mubr.f32.mxu0 0.0
        %3541 = vmatmul.mubr.f32.gmra.mrb[0].mxu0 %v3441
        %v3542 = vpop.f32.mrb[0].mxu0
        %v3543 = vadd.f32 0.0, %v3542
        %v3544 = vpop.f32.mrb[0].mxu0
        %v3545 = vadd.f32 0.0, %v3544
        %3546 = vmatprep.mubr.f32.mxu0 0.0
        %3547 = vmatmul.mubr.f32.gmra.mrb[0].mxu0 %v3444
        %v3548 = vpop.f32.mrb[0].mxu0
        %v3549 = vadd.f32 0.0, %v3548
        %v3550 = vpop.f32.mrb[0].mxu0
        %v3551 = vadd.f32 0.0, %v3550
        %3552 = vmatprep.mubr.f32.mxu0 0.0
        %3553 = vmatmul.mubr.f32.gmra.mrb[0].mxu0 %v3447
        %v3554 = vpop.f32.mrb[0].mxu0
        %v3555 = vadd.f32 0.0, %v3554
        %v3556 = vpop.f32.mrb[0].mxu0
        %v3557 = vadd.f32 0.0, %v3556
        %3558 = vmatprep.mubr.f32.mxu0 0.0
        %3559 = vmatmul.mubr.f32.gmra.mrb[0].mxu0 %v3450
        %v3560 = vpop.f32.mrb[0].mxu0
        %v3561 = vadd.f32 0.0, %v3560
        %v3562 = vpop.f32.mrb[0].mxu0
        %v3563 = vadd.f32 0.0, %v3562
        %3564 = vdwg.mxu0
        %3565 = vmatprep.subr.mxu0 0.0
        %3566 = vmatpush1.msra.mxu0 %v3406
        %3567 = vmatprep.subr.mxu0 0.0
        %3568 = vmatpush1.msra.mxu0 %v3409
        %3569 = vmatprep.subr.mxu0 0.0
        %3570 = vmatpush1.msra.mxu0 %v3412
        %3571 = vmatprep.subr.mxu0 0.0
        %3572 = vmatpush1.msra.mxu0 %v3415
        %3573 = vmatprep.subr.mxu0 0.0
        %3574 = vmatpush1.msra.mxu0 %v3418
        %3575 = vmatprep.subr.mxu0 0.0
        %3576 = vmatpush1.msra.mxu0 %v3421
        %3577 = vmatprep.subr.mxu0 0.0
        %3578 = vmatpush1.msra.mxu0 %v3424
        %3579 = vmatprep.subr.mxu0 0.0
        %3580 = vmatpush1.msra.mxu0 %v3427
        %3581 = vmatprep.subr.mxu0 0.0
        %3582 = vmatpush1.msra.mxu0 0.0
        %3583 = vmatprep.subr.mxu0 0.0
        %3584 = vmatpush1.msra.mxu0 0.0
        %3585 = vmatprep.subr.mxu0 0.0
        %3586 = vmatpush1.msra.mxu0 0.0
        %3587 = vmatprep.subr.mxu0 0.0
        %3588 = vmatpush1.msra.mxu0 0.0
        %3589 = vmatprep.subr.mxu0 0.0
        %3590 = vmatpush1.msra.mxu0 0.0
        %3591 = vmatprep.subr.mxu0 0.0
        %3592 = vmatpush1.msra.mxu0 0.0
        %3593 = vmatprep.subr.mxu0 0.0
        %3594 = vmatpush1.msra.mxu0 0.0
        %3595 = vmatprep.subr.mxu0 0.0
        %3596 = vmatpush1.msra.mxu0 0.0
        %3597 = vmatprep.subr.mxu0 0.0
        %3598 = vmatpush1.msra.mxu0 0.0
        %3599 = vmatprep.subr.mxu0 0.0
        %3600 = vmatpush1.msra.mxu0 0.0
        %3601 = vmatprep.subr.mxu0 0.0
        %3602 = vmatpush1.msra.mxu0 0.0
        %3603 = vmatprep.subr.mxu0 0.0
        %3604 = vmatpush1.msra.mxu0 0.0
        %3605 = vmatprep.subr.mxu0 0.0
        %3606 = vmatpush1.msra.mxu0 0.0
        %3607 = vmatprep.subr.mxu0 0.0
        %3608 = vmatpush1.msra.mxu0 0.0
        %3609 = vmatprep.subr.mxu0 0.0
        %3610 = vmatpush1.msra.mxu0 0.0
        %3611 = vmatprep.subr.mxu0 0.0
        %3612 = vmatpush1.msra.mxu0 0.0
        %3613 = vmatprep.subr.mxu0 0.0
        %3614 = vmatpush1.msra.mxu0 0.0
        %3615 = vmatprep.subr.mxu0 0.0
        %3616 = vmatpush1.msra.mxu0 0.0
        %3617 = vmatprep.subr.mxu0 0.0
        %3618 = vmatpush1.msra.mxu0 0.0
        %3619 = vmatprep.subr.mxu0 0.0
        %3620 = vmatpush1.msra.mxu0 0.0
        %3621 = vmatprep.subr.mxu0 0.0
        %3622 = vmatpush1.msra.mxu0 0.0
        %3623 = vmatprep.subr.mxu0 0.0
        %3624 = vmatpush1.msra.mxu0 0.0
        %3625 = vmatprep.subr.mxu0 0.0
        %3626 = vmatpush1.msra.mxu0 0.0
        %3627 = vmatprep.subr.mxu0 0.0
        %3628 = vmatpush1.msra.mxu0 0.0
        %3629 = vmatprep.mubr.f32.mxu0 0.0
        %3630 = vmatmul.mubr.f32.gmra.mrb[0].mxu0 %v3429
        %v3631 = vpop.f32.mrb[0].mxu0
        %v3632 = vadd.f32 0.0, %v3631
        %v3633 = vpop.f32.mrb[0].mxu0
        %3634 = vmatprep.mubr.f32.mxu0 0.0
        %3635 = vmatmul.mubr.f32.gmra.mrb[0].mxu0 %v3432
        %v3636 = vpop.f32.mrb[0].mxu0
        %v3637 = vadd.f32 0.0, %v3636
        %v3638 = vpop.f32.mrb[0].mxu0
        %3639 = vmatprep.mubr.f32.mxu0 0.0
        %3640 = vmatmul.mubr.f32.gmra.mrb[0].mxu0 %v3435
        %v3641 = vpop.f32.mrb[0].mxu0
        %v3642 = vadd.f32 0.0, %v3641
        %v3643 = vpop.f32.mrb[0].mxu0
        %3644 = vmatprep.mubr.f32.mxu0 0.0
        %3645 = vmatmul.mubr.f32.gmra.mrb[0].mxu0 %v3438
        %v3646 = vpop.f32.mrb[0].mxu0
        %v3647 = vadd.f32 0.0, %v3646
        %v3648 = vpop.f32.mrb[0].mxu0
        %3649 = vmatprep.mubr.f32.mxu0 0.0
        %3650 = vmatmul.mubr.f32.gmra.mrb[0].mxu0 %v3441
        %v3651 = vpop.f32.mrb[0].mxu0
        %v3652 = vadd.f32 0.0, %v3651
        %v3653 = vpop.f32.mrb[0].mxu0
        %3654 = vmatprep.mubr.f32.mxu0 0.0
        %3655 = vmatmul.mubr.f32.gmra.mrb[0].mxu0 %v3444
        %v3656 = vpop.f32.mrb[0].mxu0
        %v3657 = vadd.f32 0.0, %v3656
        %v3658 = vpop.f32.mrb[0].mxu0
        %3659 = vmatprep.mubr.f32.mxu0 0.0
        %3660 = vmatmul.mubr.f32.gmra.mrb[0].mxu0 %v3447
        %v3661 = vpop.f32.mrb[0].mxu0
        %v3662 = vadd.f32 0.0, %v3661
        %v3663 = vpop.f32.mrb[0].mxu0
        %3664 = vmatprep.mubr.f32.mxu0 0.0
        %3665 = vmatmul.mubr.f32.gmra.mrb[0].mxu0 %v3450
        %v3666 = vpop.f32.mrb[0].mxu0
        %v3667 = vadd.f32 0.0, %v3666
        %v3668 = vpop.f32.mrb[0].mxu0
        %3669 = vdwg.mxu0
        %v3670 = vadd.f32 %v3371, %v3519
        %v3671 = vadd.f32 %v3372, %v3521
        %v3672 = vadd.f32 %v3373, %v3632
        %v3673 = vadd.f32 %v3374, %v3525
        %v3674 = vadd.f32 %v3375, %v3527
        %v3675 = vadd.f32 %v3376, %v3637
        %v3676 = vadd.f32 %v3377, %v3531
        %v3677 = vadd.f32 %v3378, %v3533
        %v3678 = vadd.f32 %v3379, %v3642
        %v3679 = vadd.f32 %v3380, %v3537
        %v3680 = vadd.f32 %v3381, %v3539
        %v3681 = vadd.f32 %v3382, %v3647
        %v3682 = vadd.f32 %v3383, %v3543
        %v3683 = vadd.f32 %v3384, %v3545
        %v3684 = vadd.f32 %v3385, %v3652
        %v3685 = vadd.f32 %v3386, %v3549
        %v3686 = vadd.f32 %v3387, %v3551
        %v3687 = vadd.f32 %v3388, %v3657
        %v3688 = vadd.f32 %v3389, %v3555
        %v3689 = vadd.f32 %v3390, %v3557
        %v3690 = vadd.f32 %v3391, %v3662
        %v3691 = vadd.f32 %v3392, %v3561
        %v3692 = vadd.f32 %v3393, %v3563
        %v3693 = vadd.f32 %v3394, %v3667
        %v3694 = vld [vmem:[%s1002 + $0x3] sm:$0xff]
        %v3695 = vld [vmem:[%s1002 + $0xb] sm:$0xff]
        %v3696 = vld [vmem:[%s1002 + $0x13] sm:$0xff]
        %v3697 = vld [vmem:[%s1002 + $0x1b] sm:$0xff]
        %v3698 = vld [vmem:[%s1002 + $0x23] sm:$0xff]
        %v3699 = vld [vmem:[%s1002 + $0x2b] sm:$0xff]
        %v3700 = vld [vmem:[%s1002 + $0x33] sm:$0xff]
        %v3701 = vld [vmem:[%s1002 + $0x3b] sm:$0xf]
        %s3702 = scalar_lea.vmem [#allocation4], 2112
        %v3703 = vld [vmem:[%s3702] sm:$0xff]
        %v3704 = vld [vmem:[%s3702 + $0x8] sm:$0xff]
        %v3705 = vld [vmem:[%s3702 + $0x10] sm:$0xff]
        %v3706 = vld [vmem:[%s3702 + $0x18] sm:$0xff]
        %v3707 = vld [vmem:[%s3702 + $0x20] sm:$0xff]
        %v3708 = vld [vmem:[%s3702 + $0x28] sm:$0xff]
        %v3709 = vld [vmem:[%s3702 + $0x30] sm:$0xff]
        %v3710 = vld [vmem:[%s3702 + $0x38] sm:$0xff]
        %v3711 = vld [vmem:[%s3702 + $0x40] sm:$0xff]
        %v3712 = vld [vmem:[%s3702 + $0x48] sm:$0xff]
        %v3713 = vld [vmem:[%s3702 + $0x50] sm:$0xff]
        %v3714 = vld [vmem:[%s3702 + $0x58] sm:$0xff]
        %v3715 = vld [vmem:[%s3702 + $0x60] sm:$0xff]
        %v3716 = vld [vmem:[%s3702 + $0x68] sm:$0xff]
        %v3717 = vld [vmem:[%s3702 + $0x70] sm:$0xff]
        %v3718 = vld [vmem:[%s3702 + $0x78] sm:$0xff]
        %v3719 = vld [vmem:[%s3702 + $0x80] sm:$0xff]
        %v3720 = vld [vmem:[%s3702 + $0x88] sm:$0xff]
        %v3721 = vld [vmem:[%s3702 + $0x90] sm:$0xff]
        %v3722 = vld [vmem:[%s3702 + $0x98] sm:$0xff]
        %v3723 = vld [vmem:[%s3702 + $0xa0] sm:$0xff]
        %v3724 = vld [vmem:[%s3702 + $0xa8] sm:$0xff]
        %v3725 = vld [vmem:[%s3702 + $0xb0] sm:$0xff]
        %v3726 = vld [vmem:[%s3702 + $0xb8] sm:$0xff]
        %v3728 = vsel %vm517, %v3694, 0
        %v3731 = vsel %vm517, %v3695, 0
        %v3734 = vsel %vm517, %v3696, 0
        %v3737 = vsel %vm517, %v3697, 0
        %v3740 = vsel %vm517, %v3698, 0
        %v3743 = vsel %vm517, %v3699, 0
        %v3746 = vsel %vm517, %v3700, 0
        %v3749 = vsel %vm517, %v3701, 0
        %3751 = vmatprep.subr.mxu0 %v3704
        %3752 = vmatpush1.msra.mxu0 %v3703
        %3753 = vmatprep.subr.mxu0 %v3707
        %3754 = vmatpush1.msra.mxu0 %v3706
        %3755 = vmatprep.subr.mxu0 %v3710
        %3756 = vmatpush1.msra.mxu0 %v3709
        %3757 = vmatprep.subr.mxu0 %v3713
        %3758 = vmatpush1.msra.mxu0 %v3712
        %3759 = vmatprep.subr.mxu0 %v3716
        %3760 = vmatpush1.msra.mxu0 %v3715
        %3761 = vmatprep.subr.mxu0 %v3719
        %3762 = vmatpush1.msra.mxu0 %v3718
        %3763 = vmatprep.subr.mxu0 %v3722
        %3764 = vmatpush1.msra.mxu0 %v3721
        %3765 = vmatprep.subr.mxu0 %v3725
        %3766 = vmatpush1.msra.mxu0 %v3724
        %3767 = vmatprep.subr.mxu0 0.0
        %3768 = vmatpush1.msra.mxu0 0.0
        %3769 = vmatprep.subr.mxu0 0.0
        %3770 = vmatpush1.msra.mxu0 0.0
        %3771 = vmatprep.subr.mxu0 0.0
        %3772 = vmatpush1.msra.mxu0 0.0
        %3773 = vmatprep.subr.mxu0 0.0
        %3774 = vmatpush1.msra.mxu0 0.0
        %3775 = vmatprep.subr.mxu0 0.0
        %3776 = vmatpush1.msra.mxu0 0.0
        %3777 = vmatprep.subr.mxu0 0.0
        %3778 = vmatpush1.msra.mxu0 0.0
        %3779 = vmatprep.subr.mxu0 0.0
        %3780 = vmatpush1.msra.mxu0 0.0
        %3781 = vmatprep.subr.mxu0 0.0
        %3782 = vmatpush1.msra.mxu0 0.0
        %3783 = vmatprep.subr.mxu0 0.0
        %3784 = vmatpush1.msra.mxu0 0.0
        %3785 = vmatprep.subr.mxu0 0.0
        %3786 = vmatpush1.msra.mxu0 0.0
        %3787 = vmatprep.subr.mxu0 0.0
        %3788 = vmatpush1.msra.mxu0 0.0
        %3789 = vmatprep.subr.mxu0 0.0
        %3790 = vmatpush1.msra.mxu0 0.0
        %3791 = vmatprep.subr.mxu0 0.0
        %3792 = vmatpush1.msra.mxu0 0.0
        %3793 = vmatprep.subr.mxu0 0.0
        %3794 = vmatpush1.msra.mxu0 0.0
        %3795 = vmatprep.subr.mxu0 0.0
        %3796 = vmatpush1.msra.mxu0 0.0
        %3797 = vmatprep.subr.mxu0 0.0
        %3798 = vmatpush1.msra.mxu0 0.0
        %3799 = vmatprep.subr.mxu0 0.0
        %3800 = vmatpush1.msra.mxu0 0.0
        %3801 = vmatprep.subr.mxu0 0.0
        %3802 = vmatpush1.msra.mxu0 0.0
        %3803 = vmatprep.subr.mxu0 0.0
        %3804 = vmatpush1.msra.mxu0 0.0
        %3805 = vmatprep.subr.mxu0 0.0
        %3806 = vmatpush1.msra.mxu0 0.0
        %3807 = vmatprep.subr.mxu0 0.0
        %3808 = vmatpush1.msra.mxu0 0.0
        %3809 = vmatprep.subr.mxu0 0.0
        %3810 = vmatpush1.msra.mxu0 0.0
        %3811 = vmatprep.subr.mxu0 0.0
        %3812 = vmatpush1.msra.mxu0 0.0
        %3813 = vmatprep.subr.mxu0 0.0
        %3814 = vmatpush1.msra.mxu0 0.0
        %3815 = vmatprep.mubr.f32.mxu0 0.0
        %3816 = vmatmul.mubr.f32.gmra.mrb[0].mxu0 %v3728
        %v3817 = vpop.f32.mrb[0].mxu0
        %v3818 = vadd.f32 0.0, %v3817
        %v3819 = vpop.f32.mrb[0].mxu0
        %v3820 = vadd.f32 0.0, %v3819
        %3821 = vmatprep.mubr.f32.mxu0 0.0
        %3822 = vmatmul.mubr.f32.gmra.mrb[0].mxu0 %v3731
        %v3823 = vpop.f32.mrb[0].mxu0
        %v3824 = vadd.f32 0.0, %v3823
        %v3825 = vpop.f32.mrb[0].mxu0
        %v3826 = vadd.f32 0.0, %v3825
        %3827 = vmatprep.mubr.f32.mxu0 0.0
        %3828 = vmatmul.mubr.f32.gmra.mrb[0].mxu0 %v3734
        %v3829 = vpop.f32.mrb[0].mxu0
        %v3830 = vadd.f32 0.0, %v3829
        %v3831 = vpop.f32.mrb[0].mxu0
        %v3832 = vadd.f32 0.0, %v3831
        %3833 = vmatprep.mubr.f32.mxu0 0.0
        %3834 = vmatmul.mubr.f32.gmra.mrb[0].mxu0 %v3737
        %v3835 = vpop.f32.mrb[0].mxu0
        %v3836 = vadd.f32 0.0, %v3835
        %v3837 = vpop.f32.mrb[0].mxu0
        %v3838 = vadd.f32 0.0, %v3837
        %3839 = vmatprep.mubr.f32.mxu0 0.0
        %3840 = vmatmul.mubr.f32.gmra.mrb[0].mxu0 %v3740
        %v3841 = vpop.f32.mrb[0].mxu0
        %v3842 = vadd.f32 0.0, %v3841
        %v3843 = vpop.f32.mrb[0].mxu0
        %v3844 = vadd.f32 0.0, %v3843
        %3845 = vmatprep.mubr.f32.mxu0 0.0
        %3846 = vmatmul.mubr.f32.gmra.mrb[0].mxu0 %v3743
        %v3847 = vpop.f32.mrb[0].mxu0
        %v3848 = vadd.f32 0.0, %v3847
        %v3849 = vpop.f32.mrb[0].mxu0
        %v3850 = vadd.f32 0.0, %v3849
        %3851 = vmatprep.mubr.f32.mxu0 0.0
        %3852 = vmatmul.mubr.f32.gmra.mrb[0].mxu0 %v3746
        %v3853 = vpop.f32.mrb[0].mxu0
        %v3854 = vadd.f32 0.0, %v3853
        %v3855 = vpop.f32.mrb[0].mxu0
        %v3856 = vadd.f32 0.0, %v3855
        %3857 = vmatprep.mubr.f32.mxu0 0.0
        %3858 = vmatmul.mubr.f32.gmra.mrb[0].mxu0 %v3749
        %v3859 = vpop.f32.mrb[0].mxu0
        %v3860 = vadd.f32 0.0, %v3859
        %v3861 = vpop.f32.mrb[0].mxu0
        %v3862 = vadd.f32 0.0, %v3861
        %3863 = vdwg.mxu0
        %3864 = vmatprep.subr.mxu0 0.0
        %3865 = vmatpush1.msra.mxu0 %v3705
        %3866 = vmatprep.subr.mxu0 0.0
        %3867 = vmatpush1.msra.mxu0 %v3708
        %3868 = vmatprep.subr.mxu0 0.0
        %3869 = vmatpush1.msra.mxu0 %v3711
        %3870 = vmatprep.subr.mxu0 0.0
        %3871 = vmatpush1.msra.mxu0 %v3714
        %3872 = vmatprep.subr.mxu0 0.0
        %3873 = vmatpush1.msra.mxu0 %v3717
        %3874 = vmatprep.subr.mxu0 0.0
        %3875 = vmatpush1.msra.mxu0 %v3720
        %3876 = vmatprep.subr.mxu0 0.0
        %3877 = vmatpush1.msra.mxu0 %v3723
        %3878 = vmatprep.subr.mxu0 0.0
        %3879 = vmatpush1.msra.mxu0 %v3726
        %3880 = vmatprep.subr.mxu0 0.0
        %3881 = vmatpush1.msra.mxu0 0.0
        %3882 = vmatprep.subr.mxu0 0.0
        %3883 = vmatpush1.msra.mxu0 0.0
        %3884 = vmatprep.subr.mxu0 0.0
        %3885 = vmatpush1.msra.mxu0 0.0
        %3886 = vmatprep.subr.mxu0 0.0
        %3887 = vmatpush1.msra.mxu0 0.0
        %3888 = vmatprep.subr.mxu0 0.0
        %3889 = vmatpush1.msra.mxu0 0.0
        %3890 = vmatprep.subr.mxu0 0.0
        %3891 = vmatpush1.msra.mxu0 0.0
        %3892 = vmatprep.subr.mxu0 0.0
        %3893 = vmatpush1.msra.mxu0 0.0
        %3894 = vmatprep.subr.mxu0 0.0
        %3895 = vmatpush1.msra.mxu0 0.0
        %3896 = vmatprep.subr.mxu0 0.0
        %3897 = vmatpush1.msra.mxu0 0.0
        %3898 = vmatprep.subr.mxu0 0.0
        %3899 = vmatpush1.msra.mxu0 0.0
        %3900 = vmatprep.subr.mxu0 0.0
        %3901 = vmatpush1.msra.mxu0 0.0
        %3902 = vmatprep.subr.mxu0 0.0
        %3903 = vmatpush1.msra.mxu0 0.0
        %3904 = vmatprep.subr.mxu0 0.0
        %3905 = vmatpush1.msra.mxu0 0.0
        %3906 = vmatprep.subr.mxu0 0.0
        %3907 = vmatpush1.msra.mxu0 0.0
        %3908 = vmatprep.subr.mxu0 0.0
        %3909 = vmatpush1.msra.mxu0 0.0
        %3910 = vmatprep.subr.mxu0 0.0
        %3911 = vmatpush1.msra.mxu0 0.0
        %3912 = vmatprep.subr.mxu0 0.0
        %3913 = vmatpush1.msra.mxu0 0.0
        %3914 = vmatprep.subr.mxu0 0.0
        %3915 = vmatpush1.msra.mxu0 0.0
        %3916 = vmatprep.subr.mxu0 0.0
        %3917 = vmatpush1.msra.mxu0 0.0
        %3918 = vmatprep.subr.mxu0 0.0
        %3919 = vmatpush1.msra.mxu0 0.0
        %3920 = vmatprep.subr.mxu0 0.0
        %3921 = vmatpush1.msra.mxu0 0.0
        %3922 = vmatprep.subr.mxu0 0.0
        %3923 = vmatpush1.msra.mxu0 0.0
        %3924 = vmatprep.subr.mxu0 0.0
        %3925 = vmatpush1.msra.mxu0 0.0
        %3926 = vmatprep.subr.mxu0 0.0
        %3927 = vmatpush1.msra.mxu0 0.0
        %3928 = vmatprep.mubr.f32.mxu0 0.0
        %3929 = vmatmul.mubr.f32.gmra.mrb[0].mxu0 %v3728
        %v3930 = vpop.f32.mrb[0].mxu0
        %v3931 = vadd.f32 0.0, %v3930
        %v3932 = vpop.f32.mrb[0].mxu0
        %3933 = vmatprep.mubr.f32.mxu0 0.0
        %3934 = vmatmul.mubr.f32.gmra.mrb[0].mxu0 %v3731
        %v3935 = vpop.f32.mrb[0].mxu0
        %v3936 = vadd.f32 0.0, %v3935
        %v3937 = vpop.f32.mrb[0].mxu0
        %3938 = vmatprep.mubr.f32.mxu0 0.0
        %3939 = vmatmul.mubr.f32.gmra.mrb[0].mxu0 %v3734
        %v3940 = vpop.f32.mrb[0].mxu0
        %v3941 = vadd.f32 0.0, %v3940
        %v3942 = vpop.f32.mrb[0].mxu0
        %3943 = vmatprep.mubr.f32.mxu0 0.0
        %3944 = vmatmul.mubr.f32.gmra.mrb[0].mxu0 %v3737
        %v3945 = vpop.f32.mrb[0].mxu0
        %v3946 = vadd.f32 0.0, %v3945
        %v3947 = vpop.f32.mrb[0].mxu0
        %3948 = vmatprep.mubr.f32.mxu0 0.0
        %3949 = vmatmul.mubr.f32.gmra.mrb[0].mxu0 %v3740
        %v3950 = vpop.f32.mrb[0].mxu0
        %v3951 = vadd.f32 0.0, %v3950
        %v3952 = vpop.f32.mrb[0].mxu0
        %3953 = vmatprep.mubr.f32.mxu0 0.0
        %3954 = vmatmul.mubr.f32.gmra.mrb[0].mxu0 %v3743
        %v3955 = vpop.f32.mrb[0].mxu0
        %v3956 = vadd.f32 0.0, %v3955
        %v3957 = vpop.f32.mrb[0].mxu0
        %3958 = vmatprep.mubr.f32.mxu0 0.0
        %3959 = vmatmul.mubr.f32.gmra.mrb[0].mxu0 %v3746
        %v3960 = vpop.f32.mrb[0].mxu0
        %v3961 = vadd.f32 0.0, %v3960
        %v3962 = vpop.f32.mrb[0].mxu0
        %3963 = vmatprep.mubr.f32.mxu0 0.0
        %3964 = vmatmul.mubr.f32.gmra.mrb[0].mxu0 %v3749
        %v3965 = vpop.f32.mrb[0].mxu0
        %v3966 = vadd.f32 0.0, %v3965
        %v3967 = vpop.f32.mrb[0].mxu0
        %3968 = vdwg.mxu0
        %v3969 = vadd.f32 %v3670, %v3818
        %v3970 = vadd.f32 %v3671, %v3820
        %v3971 = vadd.f32 %v3672, %v3931
        %v3972 = vadd.f32 %v3673, %v3824
        %v3973 = vadd.f32 %v3674, %v3826
        %v3974 = vadd.f32 %v3675, %v3936
        %v3975 = vadd.f32 %v3676, %v3830
        %v3976 = vadd.f32 %v3677, %v3832
        %v3977 = vadd.f32 %v3678, %v3941
        %v3978 = vadd.f32 %v3679, %v3836
        %v3979 = vadd.f32 %v3680, %v3838
        %v3980 = vadd.f32 %v3681, %v3946
        %v3981 = vadd.f32 %v3682, %v3842
        %v3982 = vadd.f32 %v3683, %v3844
        %v3983 = vadd.f32 %v3684, %v3951
        %v3984 = vadd.f32 %v3685, %v3848
        %v3985 = vadd.f32 %v3686, %v3850
        %v3986 = vadd.f32 %v3687, %v3956
        %v3987 = vadd.f32 %v3688, %v3854
        %v3988 = vadd.f32 %v3689, %v3856
        %v3989 = vadd.f32 %v3690, %v3961
        %v3990 = vadd.f32 %v3691, %v3860
        %v3991 = vadd.f32 %v3692, %v3862
        %v3992 = vadd.f32 %v3693, %v3966
        %v3993 = vld [vmem:[%s383 + $0x4] sm:$0xff]
        %v3994 = vld [vmem:[%s383 + $0xc] sm:$0xff]
        %v3995 = vld [vmem:[%s383 + $0x14] sm:$0xff]
        %v3996 = vld [vmem:[%s383 + $0x1c] sm:$0xff]
        %v3997 = vld [vmem:[%s383 + $0x24] sm:$0xff]
        %v3998 = vld [vmem:[%s383 + $0x2c] sm:$0xff]
        %v3999 = vld [vmem:[%s383 + $0x34] sm:$0xff]
        %v4000 = vld [vmem:[%s383 + $0x3c] sm:$0xf]
        %s4001 = scalar_lea.vmem [#allocation4], 2304
        %v4002 = vld [vmem:[%s4001] sm:$0xff]
        %v4003 = vld [vmem:[%s4001 + $0x8] sm:$0xff]
        %v4004 = vld [vmem:[%s4001 + $0x10] sm:$0xff]
        %v4005 = vld [vmem:[%s4001 + $0x18] sm:$0xff]
        %v4006 = vld [vmem:[%s4001 + $0x20] sm:$0xff]
        %v4007 = vld [vmem:[%s4001 + $0x28] sm:$0xff]
        %v4008 = vld [vmem:[%s4001 + $0x30] sm:$0xff]
        %v4009 = vld [vmem:[%s4001 + $0x38] sm:$0xff]
        %v4010 = vld [vmem:[%s4001 + $0x40] sm:$0xff]
        %v4011 = vld [vmem:[%s4001 + $0x48] sm:$0xff]
        %v4012 = vld [vmem:[%s4001 + $0x50] sm:$0xff]
        %v4013 = vld [vmem:[%s4001 + $0x58] sm:$0xff]
        %v4014 = vld [vmem:[%s4001 + $0x60] sm:$0xff]
        %v4015 = vld [vmem:[%s4001 + $0x68] sm:$0xff]
        %v4016 = vld [vmem:[%s4001 + $0x70] sm:$0xff]
        %v4017 = vld [vmem:[%s4001 + $0x78] sm:$0xff]
        %v4018 = vld [vmem:[%s4001 + $0x80] sm:$0xff]
        %v4019 = vld [vmem:[%s4001 + $0x88] sm:$0xff]
        %v4020 = vld [vmem:[%s4001 + $0x90] sm:$0xff]
        %v4021 = vld [vmem:[%s4001 + $0x98] sm:$0xff]
        %v4022 = vld [vmem:[%s4001 + $0xa0] sm:$0xff]
        %v4023 = vld [vmem:[%s4001 + $0xa8] sm:$0xff]
        %v4024 = vld [vmem:[%s4001 + $0xb0] sm:$0xff]
        %v4025 = vld [vmem:[%s4001 + $0xb8] sm:$0xff]
        %v4027 = vsel %vm517, %v3993, 0
        %v4030 = vsel %vm517, %v3994, 0
        %v4033 = vsel %vm517, %v3995, 0
        %v4036 = vsel %vm517, %v3996, 0
        %v4039 = vsel %vm517, %v3997, 0
        %v4042 = vsel %vm517, %v3998, 0
        %v4045 = vsel %vm517, %v3999, 0
        %v4048 = vsel %vm517, %v4000, 0
        %4050 = vmatprep.subr.mxu0 %v4003
        %4051 = vmatpush1.msra.mxu0 %v4002
        %4052 = vmatprep.subr.mxu0 %v4006
        %4053 = vmatpush1.msra.mxu0 %v4005
        %4054 = vmatprep.subr.mxu0 %v4009
        %4055 = vmatpush1.msra.mxu0 %v4008
        %4056 = vmatprep.subr.mxu0 %v4012
        %4057 = vmatpush1.msra.mxu0 %v4011
        %4058 = vmatprep.subr.mxu0 %v4015
        %4059 = vmatpush1.msra.mxu0 %v4014
        %4060 = vmatprep.subr.mxu0 %v4018
        %4061 = vmatpush1.msra.mxu0 %v4017
        %4062 = vmatprep.subr.mxu0 %v4021
        %4063 = vmatpush1.msra.mxu0 %v4020
        %4064 = vmatprep.subr.mxu0 %v4024
        %4065 = vmatpush1.msra.mxu0 %v4023
        %4066 = vmatprep.subr.mxu0 0.0
        %4067 = vmatpush1.msra.mxu0 0.0
        %4068 = vmatprep.subr.mxu0 0.0
        %4069 = vmatpush1.msra.mxu0 0.0
        %4070 = vmatprep.subr.mxu0 0.0
        %4071 = vmatpush1.msra.mxu0 0.0
        %4072 = vmatprep.subr.mxu0 0.0
        %4073 = vmatpush1.msra.mxu0 0.0
        %4074 = vmatprep.subr.mxu0 0.0
        %4075 = vmatpush1.msra.mxu0 0.0
        %4076 = vmatprep.subr.mxu0 0.0
        %4077 = vmatpush1.msra.mxu0 0.0
        %4078 = vmatprep.subr.mxu0 0.0
        %4079 = vmatpush1.msra.mxu0 0.0
        %4080 = vmatprep.subr.mxu0 0.0
        %4081 = vmatpush1.msra.mxu0 0.0
        %4082 = vmatprep.subr.mxu0 0.0
        %4083 = vmatpush1.msra.mxu0 0.0
        %4084 = vmatprep.subr.mxu0 0.0
        %4085 = vmatpush1.msra.mxu0 0.0
        %4086 = vmatprep.subr.mxu0 0.0
        %4087 = vmatpush1.msra.mxu0 0.0
        %4088 = vmatprep.subr.mxu0 0.0
        %4089 = vmatpush1.msra.mxu0 0.0
        %4090 = vmatprep.subr.mxu0 0.0
        %4091 = vmatpush1.msra.mxu0 0.0
        %4092 = vmatprep.subr.mxu0 0.0
        %4093 = vmatpush1.msra.mxu0 0.0
        %4094 = vmatprep.subr.mxu0 0.0
        %4095 = vmatpush1.msra.mxu0 0.0
        %4096 = vmatprep.subr.mxu0 0.0
        %4097 = vmatpush1.msra.mxu0 0.0
        %4098 = vmatprep.subr.mxu0 0.0
        %4099 = vmatpush1.msra.mxu0 0.0
        %4100 = vmatprep.subr.mxu0 0.0
        %4101 = vmatpush1.msra.mxu0 0.0
        %4102 = vmatprep.subr.mxu0 0.0
        %4103 = vmatpush1.msra.mxu0 0.0
        %4104 = vmatprep.subr.mxu0 0.0
        %4105 = vmatpush1.msra.mxu0 0.0
        %4106 = vmatprep.subr.mxu0 0.0
        %4107 = vmatpush1.msra.mxu0 0.0
        %4108 = vmatprep.subr.mxu0 0.0
        %4109 = vmatpush1.msra.mxu0 0.0
        %4110 = vmatprep.subr.mxu0 0.0
        %4111 = vmatpush1.msra.mxu0 0.0
        %4112 = vmatprep.subr.mxu0 0.0
        %4113 = vmatpush1.msra.mxu0 0.0
        %4114 = vmatprep.mubr.f32.mxu0 0.0
        %4115 = vmatmul.mubr.f32.gmra.mrb[0].mxu0 %v4027
        %v4116 = vpop.f32.mrb[0].mxu0
        %v4117 = vadd.f32 0.0, %v4116
        %v4118 = vpop.f32.mrb[0].mxu0
        %v4119 = vadd.f32 0.0, %v4118
        %4120 = vmatprep.mubr.f32.mxu0 0.0
        %4121 = vmatmul.mubr.f32.gmra.mrb[0].mxu0 %v4030
        %v4122 = vpop.f32.mrb[0].mxu0
        %v4123 = vadd.f32 0.0, %v4122
        %v4124 = vpop.f32.mrb[0].mxu0
        %v4125 = vadd.f32 0.0, %v4124
        %4126 = vmatprep.mubr.f32.mxu0 0.0
        %4127 = vmatmul.mubr.f32.gmra.mrb[0].mxu0 %v4033
        %v4128 = vpop.f32.mrb[0].mxu0
        %v4129 = vadd.f32 0.0, %v4128
        %v4130 = vpop.f32.mrb[0].mxu0
        %v4131 = vadd.f32 0.0, %v4130
        %4132 = vmatprep.mubr.f32.mxu0 0.0
        %4133 = vmatmul.mubr.f32.gmra.mrb[0].mxu0 %v4036
        %v4134 = vpop.f32.mrb[0].mxu0
        %v4135 = vadd.f32 0.0, %v4134
        %v4136 = vpop.f32.mrb[0].mxu0
        %v4137 = vadd.f32 0.0, %v4136
        %4138 = vmatprep.mubr.f32.mxu0 0.0
        %4139 = vmatmul.mubr.f32.gmra.mrb[0].mxu0 %v4039
        %v4140 = vpop.f32.mrb[0].mxu0
        %v4141 = vadd.f32 0.0, %v4140
        %v4142 = vpop.f32.mrb[0].mxu0
        %v4143 = vadd.f32 0.0, %v4142
        %4144 = vmatprep.mubr.f32.mxu0 0.0
        %4145 = vmatmul.mubr.f32.gmra.mrb[0].mxu0 %v4042
        %v4146 = vpop.f32.mrb[0].mxu0
        %v4147 = vadd.f32 0.0, %v4146
        %v4148 = vpop.f32.mrb[0].mxu0
        %v4149 = vadd.f32 0.0, %v4148
        %4150 = vmatprep.mubr.f32.mxu0 0.0
        %4151 = vmatmul.mubr.f32.gmra.mrb[0].mxu0 %v4045
        %v4152 = vpop.f32.mrb[0].mxu0
        %v4153 = vadd.f32 0.0, %v4152
        %v4154 = vpop.f32.mrb[0].mxu0
        %v4155 = vadd.f32 0.0, %v4154
        %4156 = vmatprep.mubr.f32.mxu0 0.0
        %4157 = vmatmul.mubr.f32.gmra.mrb[0].mxu0 %v4048
        %v4158 = vpop.f32.mrb[0].mxu0
        %v4159 = vadd.f32 0.0, %v4158
        %v4160 = vpop.f32.mrb[0].mxu0
        %v4161 = vadd.f32 0.0, %v4160
        %4162 = vdwg.mxu0
        %4163 = vmatprep.subr.mxu0 0.0
        %4164 = vmatpush1.msra.mxu0 %v4004
        %4165 = vmatprep.subr.mxu0 0.0
        %4166 = vmatpush1.msra.mxu0 %v4007
        %4167 = vmatprep.subr.mxu0 0.0
        %4168 = vmatpush1.msra.mxu0 %v4010
        %4169 = vmatprep.subr.mxu0 0.0
        %4170 = vmatpush1.msra.mxu0 %v4013
        %4171 = vmatprep.subr.mxu0 0.0
        %4172 = vmatpush1.msra.mxu0 %v4016
        %4173 = vmatprep.subr.mxu0 0.0
        %4174 = vmatpush1.msra.mxu0 %v4019
        %4175 = vmatprep.subr.mxu0 0.0
        %4176 = vmatpush1.msra.mxu0 %v4022
        %4177 = vmatprep.subr.mxu0 0.0
        %4178 = vmatpush1.msra.mxu0 %v4025
        %4179 = vmatprep.subr.mxu0 0.0
        %4180 = vmatpush1.msra.mxu0 0.0
        %4181 = vmatprep.subr.mxu0 0.0
        %4182 = vmatpush1.msra.mxu0 0.0
        %4183 = vmatprep.subr.mxu0 0.0
        %4184 = vmatpush1.msra.mxu0 0.0
        %4185 = vmatprep.subr.mxu0 0.0
        %4186 = vmatpush1.msra.mxu0 0.0
        %4187 = vmatprep.subr.mxu0 0.0
        %4188 = vmatpush1.msra.mxu0 0.0
        %4189 = vmatprep.subr.mxu0 0.0
        %4190 = vmatpush1.msra.mxu0 0.0
        %4191 = vmatprep.subr.mxu0 0.0
        %4192 = vmatpush1.msra.mxu0 0.0
        %4193 = vmatprep.subr.mxu0 0.0
        %4194 = vmatpush1.msra.mxu0 0.0
        %4195 = vmatprep.subr.mxu0 0.0
        %4196 = vmatpush1.msra.mxu0 0.0
        %4197 = vmatprep.subr.mxu0 0.0
        %4198 = vmatpush1.msra.mxu0 0.0
        %4199 = vmatprep.subr.mxu0 0.0
        %4200 = vmatpush1.msra.mxu0 0.0
        %4201 = vmatprep.subr.mxu0 0.0
        %4202 = vmatpush1.msra.mxu0 0.0
        %4203 = vmatprep.subr.mxu0 0.0
        %4204 = vmatpush1.msra.mxu0 0.0
        %4205 = vmatprep.subr.mxu0 0.0
        %4206 = vmatpush1.msra.mxu0 0.0
        %4207 = vmatprep.subr.mxu0 0.0
        %4208 = vmatpush1.msra.mxu0 0.0
        %4209 = vmatprep.subr.mxu0 0.0
        %4210 = vmatpush1.msra.mxu0 0.0
        %4211 = vmatprep.subr.mxu0 0.0
        %4212 = vmatpush1.msra.mxu0 0.0
        %4213 = vmatprep.subr.mxu0 0.0
        %4214 = vmatpush1.msra.mxu0 0.0
        %4215 = vmatprep.subr.mxu0 0.0
        %4216 = vmatpush1.msra.mxu0 0.0
        %4217 = vmatprep.subr.mxu0 0.0
        %4218 = vmatpush1.msra.mxu0 0.0
        %4219 = vmatprep.subr.mxu0 0.0
        %4220 = vmatpush1.msra.mxu0 0.0
        %4221 = vmatprep.subr.mxu0 0.0
        %4222 = vmatpush1.msra.mxu0 0.0
        %4223 = vmatprep.subr.mxu0 0.0
        %4224 = vmatpush1.msra.mxu0 0.0
        %4225 = vmatprep.subr.mxu0 0.0
        %4226 = vmatpush1.msra.mxu0 0.0
        %4227 = vmatprep.mubr.f32.mxu0 0.0
        %4228 = vmatmul.mubr.f32.gmra.mrb[0].mxu0 %v4027
        %v4229 = vpop.f32.mrb[0].mxu0
        %v4230 = vadd.f32 0.0, %v4229
        %v4231 = vpop.f32.mrb[0].mxu0
        %4232 = vmatprep.mubr.f32.mxu0 0.0
        %4233 = vmatmul.mubr.f32.gmra.mrb[0].mxu0 %v4030
        %v4234 = vpop.f32.mrb[0].mxu0
        %v4235 = vadd.f32 0.0, %v4234
        %v4236 = vpop.f32.mrb[0].mxu0
        %4237 = vmatprep.mubr.f32.mxu0 0.0
        %4238 = vmatmul.mubr.f32.gmra.mrb[0].mxu0 %v4033
        %v4239 = vpop.f32.mrb[0].mxu0
        %v4240 = vadd.f32 0.0, %v4239
        %v4241 = vpop.f32.mrb[0].mxu0
        %4242 = vmatprep.mubr.f32.mxu0 0.0
        %4243 = vmatmul.mubr.f32.gmra.mrb[0].mxu0 %v4036
        %v4244 = vpop.f32.mrb[0].mxu0
        %v4245 = vadd.f32 0.0, %v4244
        %v4246 = vpop.f32.mrb[0].mxu0
        %4247 = vmatprep.mubr.f32.mxu0 0.0
        %4248 = vmatmul.mubr.f32.gmra.mrb[0].mxu0 %v4039
        %v4249 = vpop.f32.mrb[0].mxu0
        %v4250 = vadd.f32 0.0, %v4249
        %v4251 = vpop.f32.mrb[0].mxu0
        %4252 = vmatprep.mubr.f32.mxu0 0.0
        %4253 = vmatmul.mubr.f32.gmra.mrb[0].mxu0 %v4042
        %v4254 = vpop.f32.mrb[0].mxu0
        %v4255 = vadd.f32 0.0, %v4254
        %v4256 = vpop.f32.mrb[0].mxu0
        %4257 = vmatprep.mubr.f32.mxu0 0.0
        %4258 = vmatmul.mubr.f32.gmra.mrb[0].mxu0 %v4045
        %v4259 = vpop.f32.mrb[0].mxu0
        %v4260 = vadd.f32 0.0, %v4259
        %v4261 = vpop.f32.mrb[0].mxu0
        %4262 = vmatprep.mubr.f32.mxu0 0.0
        %4263 = vmatmul.mubr.f32.gmra.mrb[0].mxu0 %v4048
        %v4264 = vpop.f32.mrb[0].mxu0
        %v4265 = vadd.f32 0.0, %v4264
        %v4266 = vpop.f32.mrb[0].mxu0
        %4267 = vdwg.mxu0
        %v4268 = vadd.f32 %v3969, %v4117
        %v4269 = vadd.f32 %v3970, %v4119
        %v4270 = vadd.f32 %v3971, %v4230
        %v4271 = vadd.f32 %v3972, %v4123
        %v4272 = vadd.f32 %v3973, %v4125
        %v4273 = vadd.f32 %v3974, %v4235
        %v4274 = vadd.f32 %v3975, %v4129
        %v4275 = vadd.f32 %v3976, %v4131
        %v4276 = vadd.f32 %v3977, %v4240
        %v4277 = vadd.f32 %v3978, %v4135
        %v4278 = vadd.f32 %v3979, %v4137
        %v4279 = vadd.f32 %v3980, %v4245
        %v4280 = vadd.f32 %v3981, %v4141
        %v4281 = vadd.f32 %v3982, %v4143
        %v4282 = vadd.f32 %v3983, %v4250
        %v4283 = vadd.f32 %v3984, %v4147
        %v4284 = vadd.f32 %v3985, %v4149
        %v4285 = vadd.f32 %v3986, %v4255
        %v4286 = vadd.f32 %v3987, %v4153
        %v4287 = vadd.f32 %v3988, %v4155
        %v4288 = vadd.f32 %v3989, %v4260
        %v4289 = vadd.f32 %v3990, %v4159
        %v4290 = vadd.f32 %v3991, %v4161
        %v4291 = vadd.f32 %v3992, %v4265
        %v4292 = vld [vmem:[%s483 + $0x4] sm:$0xff]
        %v4293 = vld [vmem:[%s483 + $0xc] sm:$0xff]
        %v4294 = vld [vmem:[%s483 + $0x14] sm:$0xff]
        %v4295 = vld [vmem:[%s483 + $0x1c] sm:$0xff]
        %v4296 = vld [vmem:[%s483 + $0x24] sm:$0xff]
        %v4297 = vld [vmem:[%s483 + $0x2c] sm:$0xff]
        %v4298 = vld [vmem:[%s483 + $0x34] sm:$0xff]
        %v4299 = vld [vmem:[%s483 + $0x3c] sm:$0xf]
        %s4300 = scalar_lea.vmem [#allocation4], 2496
        %v4301 = vld [vmem:[%s4300] sm:$0xff]
        %v4302 = vld [vmem:[%s4300 + $0x8] sm:$0xff]
        %v4303 = vld [vmem:[%s4300 + $0x10] sm:$0xff]
        %v4304 = vld [vmem:[%s4300 + $0x18] sm:$0xff]
        %v4305 = vld [vmem:[%s4300 + $0x20] sm:$0xff]
        %v4306 = vld [vmem:[%s4300 + $0x28] sm:$0xff]
        %v4307 = vld [vmem:[%s4300 + $0x30] sm:$0xff]
        %v4308 = vld [vmem:[%s4300 + $0x38] sm:$0xff]
        %v4309 = vld [vmem:[%s4300 + $0x40] sm:$0xff]
        %v4310 = vld [vmem:[%s4300 + $0x48] sm:$0xff]
        %v4311 = vld [vmem:[%s4300 + $0x50] sm:$0xff]
        %v4312 = vld [vmem:[%s4300 + $0x58] sm:$0xff]
        %v4313 = vld [vmem:[%s4300 + $0x60] sm:$0xff]
        %v4314 = vld [vmem:[%s4300 + $0x68] sm:$0xff]
        %v4315 = vld [vmem:[%s4300 + $0x70] sm:$0xff]
        %v4316 = vld [vmem:[%s4300 + $0x78] sm:$0xff]
        %v4317 = vld [vmem:[%s4300 + $0x80] sm:$0xff]
        %v4318 = vld [vmem:[%s4300 + $0x88] sm:$0xff]
        %v4319 = vld [vmem:[%s4300 + $0x90] sm:$0xff]
        %v4320 = vld [vmem:[%s4300 + $0x98] sm:$0xff]
        %v4321 = vld [vmem:[%s4300 + $0xa0] sm:$0xff]
        %v4322 = vld [vmem:[%s4300 + $0xa8] sm:$0xff]
        %v4323 = vld [vmem:[%s4300 + $0xb0] sm:$0xff]
        %v4324 = vld [vmem:[%s4300 + $0xb8] sm:$0xff]
        %v4326 = vsel %vm517, %v4292, 0
        %v4329 = vsel %vm517, %v4293, 0
        %v4332 = vsel %vm517, %v4294, 0
        %v4335 = vsel %vm517, %v4295, 0
        %v4338 = vsel %vm517, %v4296, 0
        %v4341 = vsel %vm517, %v4297, 0
        %v4344 = vsel %vm517, %v4298, 0
        %v4347 = vsel %vm517, %v4299, 0
        %4349 = vmatprep.subr.mxu0 %v4302
        %4350 = vmatpush1.msra.mxu0 %v4301
        %4351 = vmatprep.subr.mxu0 %v4305
        %4352 = vmatpush1.msra.mxu0 %v4304
        %4353 = vmatprep.subr.mxu0 %v4308
        %4354 = vmatpush1.msra.mxu0 %v4307
        %4355 = vmatprep.subr.mxu0 %v4311
        %4356 = vmatpush1.msra.mxu0 %v4310
        %4357 = vmatprep.subr.mxu0 %v4314
        %4358 = vmatpush1.msra.mxu0 %v4313
        %4359 = vmatprep.subr.mxu0 %v4317
        %4360 = vmatpush1.msra.mxu0 %v4316
        %4361 = vmatprep.subr.mxu0 %v4320
        %4362 = vmatpush1.msra.mxu0 %v4319
        %4363 = vmatprep.subr.mxu0 %v4323
        %4364 = vmatpush1.msra.mxu0 %v4322
        %4365 = vmatprep.subr.mxu0 0.0
        %4366 = vmatpush1.msra.mxu0 0.0
        %4367 = vmatprep.subr.mxu0 0.0
        %4368 = vmatpush1.msra.mxu0 0.0
        %4369 = vmatprep.subr.mxu0 0.0
        %4370 = vmatpush1.msra.mxu0 0.0
        %4371 = vmatprep.subr.mxu0 0.0
        %4372 = vmatpush1.msra.mxu0 0.0
        %4373 = vmatprep.subr.mxu0 0.0
        %4374 = vmatpush1.msra.mxu0 0.0
        %4375 = vmatprep.subr.mxu0 0.0
        %4376 = vmatpush1.msra.mxu0 0.0
        %4377 = vmatprep.subr.mxu0 0.0
        %4378 = vmatpush1.msra.mxu0 0.0
        %4379 = vmatprep.subr.mxu0 0.0
        %4380 = vmatpush1.msra.mxu0 0.0
        %4381 = vmatprep.subr.mxu0 0.0
        %4382 = vmatpush1.msra.mxu0 0.0
        %4383 = vmatprep.subr.mxu0 0.0
        %4384 = vmatpush1.msra.mxu0 0.0
        %4385 = vmatprep.subr.mxu0 0.0
        %4386 = vmatpush1.msra.mxu0 0.0
        %4387 = vmatprep.subr.mxu0 0.0
        %4388 = vmatpush1.msra.mxu0 0.0
        %4389 = vmatprep.subr.mxu0 0.0
        %4390 = vmatpush1.msra.mxu0 0.0
        %4391 = vmatprep.subr.mxu0 0.0
        %4392 = vmatpush1.msra.mxu0 0.0
        %4393 = vmatprep.subr.mxu0 0.0
        %4394 = vmatpush1.msra.mxu0 0.0
        %4395 = vmatprep.subr.mxu0 0.0
        %4396 = vmatpush1.msra.mxu0 0.0
        %4397 = vmatprep.subr.mxu0 0.0
        %4398 = vmatpush1.msra.mxu0 0.0
        %4399 = vmatprep.subr.mxu0 0.0
        %4400 = vmatpush1.msra.mxu0 0.0
        %4401 = vmatprep.subr.mxu0 0.0
        %4402 = vmatpush1.msra.mxu0 0.0
        %4403 = vmatprep.subr.mxu0 0.0
        %4404 = vmatpush1.msra.mxu0 0.0
        %4405 = vmatprep.subr.mxu0 0.0
        %4406 = vmatpush1.msra.mxu0 0.0
        %4407 = vmatprep.subr.mxu0 0.0
        %4408 = vmatpush1.msra.mxu0 0.0
        %4409 = vmatprep.subr.mxu0 0.0
        %4410 = vmatpush1.msra.mxu0 0.0
        %4411 = vmatprep.subr.mxu0 0.0
        %4412 = vmatpush1.msra.mxu0 0.0
        %4413 = vmatprep.mubr.f32.mxu0 0.0
        %4414 = vmatmul.mubr.f32.gmra.mrb[0].mxu0 %v4326
        %v4415 = vpop.f32.mrb[0].mxu0
        %v4416 = vadd.f32 0.0, %v4415
        %v4417 = vpop.f32.mrb[0].mxu0
        %v4418 = vadd.f32 0.0, %v4417
        %4419 = vmatprep.mubr.f32.mxu0 0.0
        %4420 = vmatmul.mubr.f32.gmra.mrb[0].mxu0 %v4329
        %v4421 = vpop.f32.mrb[0].mxu0
        %v4422 = vadd.f32 0.0, %v4421
        %v4423 = vpop.f32.mrb[0].mxu0
        %v4424 = vadd.f32 0.0, %v4423
        %4425 = vmatprep.mubr.f32.mxu0 0.0
        %4426 = vmatmul.mubr.f32.gmra.mrb[0].mxu0 %v4332
        %v4427 = vpop.f32.mrb[0].mxu0
        %v4428 = vadd.f32 0.0, %v4427
        %v4429 = vpop.f32.mrb[0].mxu0
        %v4430 = vadd.f32 0.0, %v4429
        %4431 = vmatprep.mubr.f32.mxu0 0.0
        %4432 = vmatmul.mubr.f32.gmra.mrb[0].mxu0 %v4335
        %v4433 = vpop.f32.mrb[0].mxu0
        %v4434 = vadd.f32 0.0, %v4433
        %v4435 = vpop.f32.mrb[0].mxu0
        %v4436 = vadd.f32 0.0, %v4435
        %4437 = vmatprep.mubr.f32.mxu0 0.0
        %4438 = vmatmul.mubr.f32.gmra.mrb[0].mxu0 %v4338
        %v4439 = vpop.f32.mrb[0].mxu0
        %v4440 = vadd.f32 0.0, %v4439
        %v4441 = vpop.f32.mrb[0].mxu0
        %v4442 = vadd.f32 0.0, %v4441
        %4443 = vmatprep.mubr.f32.mxu0 0.0
        %4444 = vmatmul.mubr.f32.gmra.mrb[0].mxu0 %v4341
        %v4445 = vpop.f32.mrb[0].mxu0
        %v4446 = vadd.f32 0.0, %v4445
        %v4447 = vpop.f32.mrb[0].mxu0
        %v4448 = vadd.f32 0.0, %v4447
        %4449 = vmatprep.mubr.f32.mxu0 0.0
        %4450 = vmatmul.mubr.f32.gmra.mrb[0].mxu0 %v4344
        %v4451 = vpop.f32.mrb[0].mxu0
        %v4452 = vadd.f32 0.0, %v4451
        %v4453 = vpop.f32.mrb[0].mxu0
        %v4454 = vadd.f32 0.0, %v4453
        %4455 = vmatprep.mubr.f32.mxu0 0.0
        %4456 = vmatmul.mubr.f32.gmra.mrb[0].mxu0 %v4347
        %v4457 = vpop.f32.mrb[0].mxu0
        %v4458 = vadd.f32 0.0, %v4457
        %v4459 = vpop.f32.mrb[0].mxu0
        %v4460 = vadd.f32 0.0, %v4459
        %4461 = vdwg.mxu0
        %4462 = vmatprep.subr.mxu0 0.0
        %4463 = vmatpush1.msra.mxu0 %v4303
        %4464 = vmatprep.subr.mxu0 0.0
        %4465 = vmatpush1.msra.mxu0 %v4306
        %4466 = vmatprep.subr.mxu0 0.0
        %4467 = vmatpush1.msra.mxu0 %v4309
        %4468 = vmatprep.subr.mxu0 0.0
        %4469 = vmatpush1.msra.mxu0 %v4312
        %4470 = vmatprep.subr.mxu0 0.0
        %4471 = vmatpush1.msra.mxu0 %v4315
        %4472 = vmatprep.subr.mxu0 0.0
        %4473 = vmatpush1.msra.mxu0 %v4318
        %4474 = vmatprep.subr.mxu0 0.0
        %4475 = vmatpush1.msra.mxu0 %v4321
        %4476 = vmatprep.subr.mxu0 0.0
        %4477 = vmatpush1.msra.mxu0 %v4324
        %4478 = vmatprep.subr.mxu0 0.0
        %4479 = vmatpush1.msra.mxu0 0.0
        %4480 = vmatprep.subr.mxu0 0.0
        %4481 = vmatpush1.msra.mxu0 0.0
        %4482 = vmatprep.subr.mxu0 0.0
        %4483 = vmatpush1.msra.mxu0 0.0
        %4484 = vmatprep.subr.mxu0 0.0
        %4485 = vmatpush1.msra.mxu0 0.0
        %4486 = vmatprep.subr.mxu0 0.0
        %4487 = vmatpush1.msra.mxu0 0.0
        %4488 = vmatprep.subr.mxu0 0.0
        %4489 = vmatpush1.msra.mxu0 0.0
        %4490 = vmatprep.subr.mxu0 0.0
        %4491 = vmatpush1.msra.mxu0 0.0
        %4492 = vmatprep.subr.mxu0 0.0
        %4493 = vmatpush1.msra.mxu0 0.0
        %4494 = vmatprep.subr.mxu0 0.0
        %4495 = vmatpush1.msra.mxu0 0.0
        %4496 = vmatprep.subr.mxu0 0.0
        %4497 = vmatpush1.msra.mxu0 0.0
        %4498 = vmatprep.subr.mxu0 0.0
        %4499 = vmatpush1.msra.mxu0 0.0
        %4500 = vmatprep.subr.mxu0 0.0
        %4501 = vmatpush1.msra.mxu0 0.0
        %4502 = vmatprep.subr.mxu0 0.0
        %4503 = vmatpush1.msra.mxu0 0.0
        %4504 = vmatprep.subr.mxu0 0.0
        %4505 = vmatpush1.msra.mxu0 0.0
        %4506 = vmatprep.subr.mxu0 0.0
        %4507 = vmatpush1.msra.mxu0 0.0
        %4508 = vmatprep.subr.mxu0 0.0
        %4509 = vmatpush1.msra.mxu0 0.0
        %4510 = vmatprep.subr.mxu0 0.0
        %4511 = vmatpush1.msra.mxu0 0.0
        %4512 = vmatprep.subr.mxu0 0.0
        %4513 = vmatpush1.msra.mxu0 0.0
        %4514 = vmatprep.subr.mxu0 0.0
        %4515 = vmatpush1.msra.mxu0 0.0
        %4516 = vmatprep.subr.mxu0 0.0
        %4517 = vmatpush1.msra.mxu0 0.0
        %4518 = vmatprep.subr.mxu0 0.0
        %4519 = vmatpush1.msra.mxu0 0.0
        %4520 = vmatprep.subr.mxu0 0.0
        %4521 = vmatpush1.msra.mxu0 0.0
        %4522 = vmatprep.subr.mxu0 0.0
        %4523 = vmatpush1.msra.mxu0 0.0
        %4524 = vmatprep.subr.mxu0 0.0
        %4525 = vmatpush1.msra.mxu0 0.0
        %4526 = vmatprep.mubr.f32.mxu0 0.0
        %4527 = vmatmul.mubr.f32.gmra.mrb[0].mxu0 %v4326
        %v4528 = vpop.f32.mrb[0].mxu0
        %v4529 = vadd.f32 0.0, %v4528
        %v4530 = vpop.f32.mrb[0].mxu0
        %4531 = vmatprep.mubr.f32.mxu0 0.0
        %4532 = vmatmul.mubr.f32.gmra.mrb[0].mxu0 %v4329
        %v4533 = vpop.f32.mrb[0].mxu0
        %v4534 = vadd.f32 0.0, %v4533
        %v4535 = vpop.f32.mrb[0].mxu0
        %4536 = vmatprep.mubr.f32.mxu0 0.0
        %4537 = vmatmul.mubr.f32.gmra.mrb[0].mxu0 %v4332
        %v4538 = vpop.f32.mrb[0].mxu0
        %v4539 = vadd.f32 0.0, %v4538
        %v4540 = vpop.f32.mrb[0].mxu0
        %4541 = vmatprep.mubr.f32.mxu0 0.0
        %4542 = vmatmul.mubr.f32.gmra.mrb[0].mxu0 %v4335
        %v4543 = vpop.f32.mrb[0].mxu0
        %v4544 = vadd.f32 0.0, %v4543
        %v4545 = vpop.f32.mrb[0].mxu0
        %4546 = vmatprep.mubr.f32.mxu0 0.0
        %4547 = vmatmul.mubr.f32.gmra.mrb[0].mxu0 %v4338
        %v4548 = vpop.f32.mrb[0].mxu0
        %v4549 = vadd.f32 0.0, %v4548
        %v4550 = vpop.f32.mrb[0].mxu0
        %4551 = vmatprep.mubr.f32.mxu0 0.0
        %4552 = vmatmul.mubr.f32.gmra.mrb[0].mxu0 %v4341
        %v4553 = vpop.f32.mrb[0].mxu0
        %v4554 = vadd.f32 0.0, %v4553
        %v4555 = vpop.f32.mrb[0].mxu0
        %4556 = vmatprep.mubr.f32.mxu0 0.0
        %4557 = vmatmul.mubr.f32.gmra.mrb[0].mxu0 %v4344
        %v4558 = vpop.f32.mrb[0].mxu0
        %v4559 = vadd.f32 0.0, %v4558
        %v4560 = vpop.f32.mrb[0].mxu0
        %4561 = vmatprep.mubr.f32.mxu0 0.0
        %4562 = vmatmul.mubr.f32.gmra.mrb[0].mxu0 %v4347
        %v4563 = vpop.f32.mrb[0].mxu0
        %v4564 = vadd.f32 0.0, %v4563
        %v4565 = vpop.f32.mrb[0].mxu0
        %4566 = vdwg.mxu0
        %v4567 = vadd.f32 %v4268, %v4416
        %v4568 = vadd.f32 %v4269, %v4418
        %v4569 = vadd.f32 %v4270, %v4529
        %v4570 = vadd.f32 %v4271, %v4422
        %v4571 = vadd.f32 %v4272, %v4424
        %v4572 = vadd.f32 %v4273, %v4534
        %v4573 = vadd.f32 %v4274, %v4428
        %v4574 = vadd.f32 %v4275, %v4430
        %v4575 = vadd.f32 %v4276, %v4539
        %v4576 = vadd.f32 %v4277, %v4434
        %v4577 = vadd.f32 %v4278, %v4436
        %v4578 = vadd.f32 %v4279, %v4544
        %v4579 = vadd.f32 %v4280, %v4440
        %v4580 = vadd.f32 %v4281, %v4442
        %v4581 = vadd.f32 %v4282, %v4549
        %v4582 = vadd.f32 %v4283, %v4446
        %v4583 = vadd.f32 %v4284, %v4448
        %v4584 = vadd.f32 %v4285, %v4554
        %v4585 = vadd.f32 %v4286, %v4452
        %v4586 = vadd.f32 %v4287, %v4454
        %v4587 = vadd.f32 %v4288, %v4559
        %v4588 = vadd.f32 %v4289, %v4458
        %v4589 = vadd.f32 %v4290, %v4460
        %v4590 = vadd.f32 %v4291, %v4564
        %v4591 = vld [vmem:[%s1002 + $0x4] sm:$0xff]
        %v4592 = vld [vmem:[%s1002 + $0xc] sm:$0xff]
        %v4593 = vld [vmem:[%s1002 + $0x14] sm:$0xff]
        %v4594 = vld [vmem:[%s1002 + $0x1c] sm:$0xff]
        %v4595 = vld [vmem:[%s1002 + $0x24] sm:$0xff]
        %v4596 = vld [vmem:[%s1002 + $0x2c] sm:$0xff]
        %v4597 = vld [vmem:[%s1002 + $0x34] sm:$0xff]
        %v4598 = vld [vmem:[%s1002 + $0x3c] sm:$0xf]
        %s4599 = scalar_lea.vmem [#allocation4], 2688
        %v4600 = vld [vmem:[%s4599] sm:$0xff]
        %v4601 = vld [vmem:[%s4599 + $0x8] sm:$0xff]
        %v4602 = vld [vmem:[%s4599 + $0x10] sm:$0xff]
        %v4603 = vld [vmem:[%s4599 + $0x18] sm:$0xff]
        %v4604 = vld [vmem:[%s4599 + $0x20] sm:$0xff]
        %v4605 = vld [vmem:[%s4599 + $0x28] sm:$0xff]
        %v4606 = vld [vmem:[%s4599 + $0x30] sm:$0xff]
        %v4607 = vld [vmem:[%s4599 + $0x38] sm:$0xff]
        %v4608 = vld [vmem:[%s4599 + $0x40] sm:$0xff]
        %v4609 = vld [vmem:[%s4599 + $0x48] sm:$0xff]
        %v4610 = vld [vmem:[%s4599 + $0x50] sm:$0xff]
        %v4611 = vld [vmem:[%s4599 + $0x58] sm:$0xff]
        %v4612 = vld [vmem:[%s4599 + $0x60] sm:$0xff]
        %v4613 = vld [vmem:[%s4599 + $0x68] sm:$0xff]
        %v4614 = vld [vmem:[%s4599 + $0x70] sm:$0xff]
        %v4615 = vld [vmem:[%s4599 + $0x78] sm:$0xff]
        %v4616 = vld [vmem:[%s4599 + $0x80] sm:$0xff]
        %v4617 = vld [vmem:[%s4599 + $0x88] sm:$0xff]
        %v4618 = vld [vmem:[%s4599 + $0x90] sm:$0xff]
        %v4619 = vld [vmem:[%s4599 + $0x98] sm:$0xff]
        %v4620 = vld [vmem:[%s4599 + $0xa0] sm:$0xff]
        %v4621 = vld [vmem:[%s4599 + $0xa8] sm:$0xff]
        %v4622 = vld [vmem:[%s4599 + $0xb0] sm:$0xff]
        %v4623 = vld [vmem:[%s4599 + $0xb8] sm:$0xff]
        %v4625 = vsel %vm517, %v4591, 0
        %v4628 = vsel %vm517, %v4592, 0
        %v4631 = vsel %vm517, %v4593, 0
        %v4634 = vsel %vm517, %v4594, 0
        %v4637 = vsel %vm517, %v4595, 0
        %v4640 = vsel %vm517, %v4596, 0
        %v4643 = vsel %vm517, %v4597, 0
        %v4646 = vsel %vm517, %v4598, 0
        %4648 = vmatprep.subr.mxu0 %v4601
        %4649 = vmatpush1.msra.mxu0 %v4600
        %4650 = vmatprep.subr.mxu0 %v4604
        %4651 = vmatpush1.msra.mxu0 %v4603
        %4652 = vmatprep.subr.mxu0 %v4607
        %4653 = vmatpush1.msra.mxu0 %v4606
        %4654 = vmatprep.subr.mxu0 %v4610
        %4655 = vmatpush1.msra.mxu0 %v4609
        %4656 = vmatprep.subr.mxu0 %v4613
        %4657 = vmatpush1.msra.mxu0 %v4612
        %4658 = vmatprep.subr.mxu0 %v4616
        %4659 = vmatpush1.msra.mxu0 %v4615
        %4660 = vmatprep.subr.mxu0 %v4619
        %4661 = vmatpush1.msra.mxu0 %v4618
        %4662 = vmatprep.subr.mxu0 %v4622
        %4663 = vmatpush1.msra.mxu0 %v4621
        %4664 = vmatprep.subr.mxu0 0.0
        %4665 = vmatpush1.msra.mxu0 0.0
        %4666 = vmatprep.subr.mxu0 0.0
        %4667 = vmatpush1.msra.mxu0 0.0
        %4668 = vmatprep.subr.mxu0 0.0
        %4669 = vmatpush1.msra.mxu0 0.0
        %4670 = vmatprep.subr.mxu0 0.0
        %4671 = vmatpush1.msra.mxu0 0.0
        %4672 = vmatprep.subr.mxu0 0.0
        %4673 = vmatpush1.msra.mxu0 0.0
        %4674 = vmatprep.subr.mxu0 0.0
        %4675 = vmatpush1.msra.mxu0 0.0
        %4676 = vmatprep.subr.mxu0 0.0
        %4677 = vmatpush1.msra.mxu0 0.0
        %4678 = vmatprep.subr.mxu0 0.0
        %4679 = vmatpush1.msra.mxu0 0.0
        %4680 = vmatprep.subr.mxu0 0.0
        %4681 = vmatpush1.msra.mxu0 0.0
        %4682 = vmatprep.subr.mxu0 0.0
        %4683 = vmatpush1.msra.mxu0 0.0
        %4684 = vmatprep.subr.mxu0 0.0
        %4685 = vmatpush1.msra.mxu0 0.0
        %4686 = vmatprep.subr.mxu0 0.0
        %4687 = vmatpush1.msra.mxu0 0.0
        %4688 = vmatprep.subr.mxu0 0.0
        %4689 = vmatpush1.msra.mxu0 0.0
        %4690 = vmatprep.subr.mxu0 0.0
        %4691 = vmatpush1.msra.mxu0 0.0
        %4692 = vmatprep.subr.mxu0 0.0
        %4693 = vmatpush1.msra.mxu0 0.0
        %4694 = vmatprep.subr.mxu0 0.0
        %4695 = vmatpush1.msra.mxu0 0.0
        %4696 = vmatprep.subr.mxu0 0.0
        %4697 = vmatpush1.msra.mxu0 0.0
        %4698 = vmatprep.subr.mxu0 0.0
        %4699 = vmatpush1.msra.mxu0 0.0
        %4700 = vmatprep.subr.mxu0 0.0
        %4701 = vmatpush1.msra.mxu0 0.0
        %4702 = vmatprep.subr.mxu0 0.0
        %4703 = vmatpush1.msra.mxu0 0.0
        %4704 = vmatprep.subr.mxu0 0.0
        %4705 = vmatpush1.msra.mxu0 0.0
        %4706 = vmatprep.subr.mxu0 0.0
        %4707 = vmatpush1.msra.mxu0 0.0
        %4708 = vmatprep.subr.mxu0 0.0
        %4709 = vmatpush1.msra.mxu0 0.0
        %4710 = vmatprep.subr.mxu0 0.0
        %4711 = vmatpush1.msra.mxu0 0.0
        %4712 = vmatprep.mubr.f32.mxu0 0.0
        %4713 = vmatmul.mubr.f32.gmra.mrb[0].mxu0 %v4625
        %v4714 = vpop.f32.mrb[0].mxu0
        %v4715 = vadd.f32 0.0, %v4714
        %v4716 = vpop.f32.mrb[0].mxu0
        %v4717 = vadd.f32 0.0, %v4716
        %4718 = vmatprep.mubr.f32.mxu0 0.0
        %4719 = vmatmul.mubr.f32.gmra.mrb[0].mxu0 %v4628
        %v4720 = vpop.f32.mrb[0].mxu0
        %v4721 = vadd.f32 0.0, %v4720
        %v4722 = vpop.f32.mrb[0].mxu0
        %v4723 = vadd.f32 0.0, %v4722
        %4724 = vmatprep.mubr.f32.mxu0 0.0
        %4725 = vmatmul.mubr.f32.gmra.mrb[0].mxu0 %v4631
        %v4726 = vpop.f32.mrb[0].mxu0
        %v4727 = vadd.f32 0.0, %v4726
        %v4728 = vpop.f32.mrb[0].mxu0
        %v4729 = vadd.f32 0.0, %v4728
        %4730 = vmatprep.mubr.f32.mxu0 0.0
        %4731 = vmatmul.mubr.f32.gmra.mrb[0].mxu0 %v4634
        %v4732 = vpop.f32.mrb[0].mxu0
        %v4733 = vadd.f32 0.0, %v4732
        %v4734 = vpop.f32.mrb[0].mxu0
        %v4735 = vadd.f32 0.0, %v4734
        %4736 = vmatprep.mubr.f32.mxu0 0.0
        %4737 = vmatmul.mubr.f32.gmra.mrb[0].mxu0 %v4637
        %v4738 = vpop.f32.mrb[0].mxu0
        %v4739 = vadd.f32 0.0, %v4738
        %v4740 = vpop.f32.mrb[0].mxu0
        %v4741 = vadd.f32 0.0, %v4740
        %4742 = vmatprep.mubr.f32.mxu0 0.0
        %4743 = vmatmul.mubr.f32.gmra.mrb[0].mxu0 %v4640
        %v4744 = vpop.f32.mrb[0].mxu0
        %v4745 = vadd.f32 0.0, %v4744
        %v4746 = vpop.f32.mrb[0].mxu0
        %v4747 = vadd.f32 0.0, %v4746
        %4748 = vmatprep.mubr.f32.mxu0 0.0
        %4749 = vmatmul.mubr.f32.gmra.mrb[0].mxu0 %v4643
        %v4750 = vpop.f32.mrb[0].mxu0
        %v4751 = vadd.f32 0.0, %v4750
        %v4752 = vpop.f32.mrb[0].mxu0
        %v4753 = vadd.f32 0.0, %v4752
        %4754 = vmatprep.mubr.f32.mxu0 0.0
        %4755 = vmatmul.mubr.f32.gmra.mrb[0].mxu0 %v4646
        %v4756 = vpop.f32.mrb[0].mxu0
        %v4757 = vadd.f32 0.0, %v4756
        %v4758 = vpop.f32.mrb[0].mxu0
        %v4759 = vadd.f32 0.0, %v4758
        %4760 = vdwg.mxu0
        %4761 = vmatprep.subr.mxu0 0.0
        %4762 = vmatpush1.msra.mxu0 %v4602
        %4763 = vmatprep.subr.mxu0 0.0
        %4764 = vmatpush1.msra.mxu0 %v4605
        %4765 = vmatprep.subr.mxu0 0.0
        %4766 = vmatpush1.msra.mxu0 %v4608
        %4767 = vmatprep.subr.mxu0 0.0
        %4768 = vmatpush1.msra.mxu0 %v4611
        %4769 = vmatprep.subr.mxu0 0.0
        %4770 = vmatpush1.msra.mxu0 %v4614
        %4771 = vmatprep.subr.mxu0 0.0
        %4772 = vmatpush1.msra.mxu0 %v4617
        %4773 = vmatprep.subr.mxu0 0.0
        %4774 = vmatpush1.msra.mxu0 %v4620
        %4775 = vmatprep.subr.mxu0 0.0
        %4776 = vmatpush1.msra.mxu0 %v4623
        %4777 = vmatprep.subr.mxu0 0.0
        %4778 = vmatpush1.msra.mxu0 0.0
        %4779 = vmatprep.subr.mxu0 0.0
        %4780 = vmatpush1.msra.mxu0 0.0
        %4781 = vmatprep.subr.mxu0 0.0
        %4782 = vmatpush1.msra.mxu0 0.0
        %4783 = vmatprep.subr.mxu0 0.0
        %4784 = vmatpush1.msra.mxu0 0.0
        %4785 = vmatprep.subr.mxu0 0.0
        %4786 = vmatpush1.msra.mxu0 0.0
        %4787 = vmatprep.subr.mxu0 0.0
        %4788 = vmatpush1.msra.mxu0 0.0
        %4789 = vmatprep.subr.mxu0 0.0
        %4790 = vmatpush1.msra.mxu0 0.0
        %4791 = vmatprep.subr.mxu0 0.0
        %4792 = vmatpush1.msra.mxu0 0.0
        %4793 = vmatprep.subr.mxu0 0.0
        %4794 = vmatpush1.msra.mxu0 0.0
        %4795 = vmatprep.subr.mxu0 0.0
        %4796 = vmatpush1.msra.mxu0 0.0
        %4797 = vmatprep.subr.mxu0 0.0
        %4798 = vmatpush1.msra.mxu0 0.0
        %4799 = vmatprep.subr.mxu0 0.0
        %4800 = vmatpush1.msra.mxu0 0.0
        %4801 = vmatprep.subr.mxu0 0.0
        %4802 = vmatpush1.msra.mxu0 0.0
        %4803 = vmatprep.subr.mxu0 0.0
        %4804 = vmatpush1.msra.mxu0 0.0
        %4805 = vmatprep.subr.mxu0 0.0
        %4806 = vmatpush1.msra.mxu0 0.0
        %4807 = vmatprep.subr.mxu0 0.0
        %4808 = vmatpush1.msra.mxu0 0.0
        %4809 = vmatprep.subr.mxu0 0.0
        %4810 = vmatpush1.msra.mxu0 0.0
        %4811 = vmatprep.subr.mxu0 0.0
        %4812 = vmatpush1.msra.mxu0 0.0
        %4813 = vmatprep.subr.mxu0 0.0
        %4814 = vmatpush1.msra.mxu0 0.0
        %4815 = vmatprep.subr.mxu0 0.0
        %4816 = vmatpush1.msra.mxu0 0.0
        %4817 = vmatprep.subr.mxu0 0.0
        %4818 = vmatpush1.msra.mxu0 0.0
        %4819 = vmatprep.subr.mxu0 0.0
        %4820 = vmatpush1.msra.mxu0 0.0
        %4821 = vmatprep.subr.mxu0 0.0
        %4822 = vmatpush1.msra.mxu0 0.0
        %4823 = vmatprep.subr.mxu0 0.0
        %4824 = vmatpush1.msra.mxu0 0.0
        %4825 = vmatprep.mubr.f32.mxu0 0.0
        %4826 = vmatmul.mubr.f32.gmra.mrb[0].mxu0 %v4625
        %v4827 = vpop.f32.mrb[0].mxu0
        %v4828 = vadd.f32 0.0, %v4827
        %v4829 = vpop.f32.mrb[0].mxu0
        %4830 = vmatprep.mubr.f32.mxu0 0.0
        %4831 = vmatmul.mubr.f32.gmra.mrb[0].mxu0 %v4628
        %v4832 = vpop.f32.mrb[0].mxu0
        %v4833 = vadd.f32 0.0, %v4832
        %v4834 = vpop.f32.mrb[0].mxu0
        %4835 = vmatprep.mubr.f32.mxu0 0.0
        %4836 = vmatmul.mubr.f32.gmra.mrb[0].mxu0 %v4631
        %v4837 = vpop.f32.mrb[0].mxu0
        %v4838 = vadd.f32 0.0, %v4837
        %v4839 = vpop.f32.mrb[0].mxu0
        %4840 = vmatprep.mubr.f32.mxu0 0.0
        %4841 = vmatmul.mubr.f32.gmra.mrb[0].mxu0 %v4634
        %v4842 = vpop.f32.mrb[0].mxu0
        %v4843 = vadd.f32 0.0, %v4842
        %v4844 = vpop.f32.mrb[0].mxu0
        %4845 = vmatprep.mubr.f32.mxu0 0.0
        %4846 = vmatmul.mubr.f32.gmra.mrb[0].mxu0 %v4637
        %v4847 = vpop.f32.mrb[0].mxu0
        %v4848 = vadd.f32 0.0, %v4847
        %v4849 = vpop.f32.mrb[0].mxu0
        %4850 = vmatprep.mubr.f32.mxu0 0.0
        %4851 = vmatmul.mubr.f32.gmra.mrb[0].mxu0 %v4640
        %v4852 = vpop.f32.mrb[0].mxu0
        %v4853 = vadd.f32 0.0, %v4852
        %v4854 = vpop.f32.mrb[0].mxu0
        %4855 = vmatprep.mubr.f32.mxu0 0.0
        %4856 = vmatmul.mubr.f32.gmra.mrb[0].mxu0 %v4643
        %v4857 = vpop.f32.mrb[0].mxu0
        %v4858 = vadd.f32 0.0, %v4857
        %v4859 = vpop.f32.mrb[0].mxu0
        %4860 = vmatprep.mubr.f32.mxu0 0.0
        %4861 = vmatmul.mubr.f32.gmra.mrb[0].mxu0 %v4646
        %v4862 = vpop.f32.mrb[0].mxu0
        %v4863 = vadd.f32 0.0, %v4862
        %v4864 = vpop.f32.mrb[0].mxu0
        %4865 = vdwg.mxu0
        %v4866 = vadd.f32 %v4567, %v4715
        %v4867 = vadd.f32 %v4568, %v4717
        %v4868 = vadd.f32 %v4569, %v4828
        %v4869 = vadd.f32 %v4570, %v4721
        %v4870 = vadd.f32 %v4571, %v4723
        %v4871 = vadd.f32 %v4572, %v4833
        %v4872 = vadd.f32 %v4573, %v4727
        %v4873 = vadd.f32 %v4574, %v4729
        %v4874 = vadd.f32 %v4575, %v4838
        %v4875 = vadd.f32 %v4576, %v4733
        %v4876 = vadd.f32 %v4577, %v4735
        %v4877 = vadd.f32 %v4578, %v4843
        %v4878 = vadd.f32 %v4579, %v4739
        %v4879 = vadd.f32 %v4580, %v4741
        %v4880 = vadd.f32 %v4581, %v4848
        %v4881 = vadd.f32 %v4582, %v4745
        %v4882 = vadd.f32 %v4583, %v4747
        %v4883 = vadd.f32 %v4584, %v4853
        %v4884 = vadd.f32 %v4585, %v4751
        %v4885 = vadd.f32 %v4586, %v4753
        %v4886 = vadd.f32 %v4587, %v4858
        %v4887 = vadd.f32 %v4588, %v4757
        %v4888 = vadd.f32 %v4589, %v4759
        %v4889 = vadd.f32 %v4590, %v4863
        %v4890 = vld [vmem:[#allocation6] sm:$0x7]
        %v4892 = vlaneseq
        %v4893 = vshrl.u32 %v4892, 7
        %v4894 = vsub.s32 0, %v4893
        %v4895 = vrot.slane %v4890, %v4894
        %v4896 = vlaneseq
        %v4897 = vshrl.u32 %v4896, 7
        %v4898 = vsub.s32 1, %v4897
        %v4899 = vrot.slane %v4890, %v4898
        %v4900 = vlaneseq
        %v4901 = vshrl.u32 %v4900, 7
        %v4902 = vsub.s32 2, %v4901
        %v4903 = vrot.slane %v4890, %v4902
        %v4907 = vadd.f32 %v4866, %v4895
        %v4908 = vadd.f32 %v4867, %v4899
        %v4909 = vadd.f32 %v4868, %v4903
        %v4910 = vadd.f32 %v4869, %v4895
        %v4911 = vadd.f32 %v4870, %v4899
        %v4912 = vadd.f32 %v4871, %v4903
        %v4913 = vadd.f32 %v4872, %v4895
        %v4914 = vadd.f32 %v4873, %v4899
        %v4915 = vadd.f32 %v4874, %v4903
        %v4916 = vadd.f32 %v4875, %v4895
        %v4917 = vadd.f32 %v4876, %v4899
        %v4918 = vadd.f32 %v4877, %v4903
        %v4919 = vadd.f32 %v4878, %v4895
        %v4920 = vadd.f32 %v4879, %v4899
        %v4921 = vadd.f32 %v4880, %v4903
        %v4922 = vadd.f32 %v4881, %v4895
        %v4923 = vadd.f32 %v4882, %v4899
        %v4924 = vadd.f32 %v4883, %v4903
        %v4925 = vadd.f32 %v4884, %v4895
        %v4926 = vadd.f32 %v4885, %v4899
        %v4927 = vadd.f32 %v4886, %v4903
        %v4928 = vadd.f32 %v4887, %v4895
        %v4929 = vadd.f32 %v4888, %v4899
        %v4930 = vadd.f32 %v4889, %v4903
        %v4931 = vmax.f32 %v4907, 0.0
        %v4932 = vmax.f32 %v4908, 0.0
        %v4933 = vmax.f32 %v4909, 0.0
        %v4934 = vmax.f32 %v4910, 0.0
        %v4935 = vmax.f32 %v4911, 0.0
        %v4936 = vmax.f32 %v4912, 0.0
        %v4937 = vmax.f32 %v4913, 0.0
        %v4938 = vmax.f32 %v4914, 0.0
        %v4939 = vmax.f32 %v4915, 0.0
        %v4940 = vmax.f32 %v4916, 0.0
        %v4941 = vmax.f32 %v4917, 0.0
        %v4942 = vmax.f32 %v4918, 0.0
        %v4943 = vmax.f32 %v4919, 0.0
        %v4944 = vmax.f32 %v4920, 0.0
        %v4945 = vmax.f32 %v4921, 0.0
        %v4946 = vmax.f32 %v4922, 0.0
        %v4947 = vmax.f32 %v4923, 0.0
        %v4948 = vmax.f32 %v4924, 0.0
        %v4949 = vmax.f32 %v4925, 0.0
        %v4950 = vmax.f32 %v4926, 0.0
        %v4951 = vmax.f32 %v4927, 0.0
        %v4952 = vmax.f32 %v4928, 0.0
        %v4953 = vmax.f32 %v4929, 0.0
        %v4954 = vmax.f32 %v4930, 0.0
        %4979 = vrot.lane.b32.xlu0 %v4931, 127
        %v4980 = vpop.permute.xlu0 %4979
        %4981 = vrot.lane.b32.xlu0 %v4932, 127
        %v4982 = vpop.permute.xlu0 %4981
        %4983 = vrot.lane.b32.xlu0 %v4933, 127
        %v4984 = vpop.permute.xlu0 %4983
        %4985 = vrot.lane.b32.xlu0 %v4934, 127
        %v4986 = vpop.permute.xlu0 %4985
        %4987 = vrot.lane.b32.xlu0 %v4935, 127
        %v4988 = vpop.permute.xlu0 %4987
        %4989 = vrot.lane.b32.xlu0 %v4936, 127
        %v4990 = vpop.permute.xlu0 %4989
        %4991 = vrot.lane.b32.xlu0 %v4937, 127
        %v4992 = vpop.permute.xlu0 %4991
        %4993 = vrot.lane.b32.xlu0 %v4938, 127
        %v4994 = vpop.permute.xlu0 %4993
        %4995 = vrot.lane.b32.xlu0 %v4939, 127
        %v4996 = vpop.permute.xlu0 %4995
        %4997 = vrot.lane.b32.xlu0 %v4940, 127
        %v4998 = vpop.permute.xlu0 %4997
        %4999 = vrot.lane.b32.xlu0 %v4941, 127
        %v5000 = vpop.permute.xlu0 %4999
        %5001 = vrot.lane.b32.xlu0 %v4942, 127
        %v5002 = vpop.permute.xlu0 %5001
        %5003 = vrot.lane.b32.xlu0 %v4943, 127
        %v5004 = vpop.permute.xlu0 %5003
        %5005 = vrot.lane.b32.xlu0 %v4944, 127
        %v5006 = vpop.permute.xlu0 %5005
        %5007 = vrot.lane.b32.xlu0 %v4945, 127
        %v5008 = vpop.permute.xlu0 %5007
        %5009 = vrot.lane.b32.xlu0 %v4946, 127
        %v5010 = vpop.permute.xlu0 %5009
        %5011 = vrot.lane.b32.xlu0 %v4947, 127
        %v5012 = vpop.permute.xlu0 %5011
        %5013 = vrot.lane.b32.xlu0 %v4948, 127
        %v5014 = vpop.permute.xlu0 %5013
        %5015 = vrot.lane.b32.xlu0 %v4949, 127
        %v5016 = vpop.permute.xlu0 %5015
        %5017 = vrot.lane.b32.xlu0 %v4950, 127
        %v5018 = vpop.permute.xlu0 %5017
        %5019 = vrot.lane.b32.xlu0 %v4951, 127
        %v5020 = vpop.permute.xlu0 %5019
        %5021 = vrot.lane.b32.xlu0 %v4952, 127
        %v5022 = vpop.permute.xlu0 %5021
        %5023 = vrot.lane.b32.xlu0 %v4953, 127
        %v5024 = vpop.permute.xlu0 %5023
        %5025 = vrot.lane.b32.xlu0 %v4954, 127
        %v5026 = vpop.permute.xlu0 %5025
        %vm5027 = vcmask 1039360
        %v5028 = vsel %vm5027, %v4980, %v4982
        %v5029 = vsel %vm5027, %v4982, %v4984
        %v5030 = vsel %vm5027, %v4986, %v4988
        %v5031 = vsel %vm5027, %v4988, %v4990
        %v5032 = vsel %vm5027, %v4992, %v4994
        %v5033 = vsel %vm5027, %v4994, %v4996
        %v5034 = vsel %vm5027, %v4998, %v5000
        %v5035 = vsel %vm5027, %v5000, %v5002
        %v5036 = vsel %vm5027, %v5004, %v5006
        %v5037 = vsel %vm5027, %v5006, %v5008
        %v5038 = vsel %vm5027, %v5010, %v5012
        %v5039 = vsel %vm5027, %v5012, %v5014
        %v5040 = vsel %vm5027, %v5016, %v5018
        %v5041 = vsel %vm5027, %v5018, %v5020
        %v5042 = vsel %vm5027, %v5022, %v5024
        %v5043 = vsel %vm5027, %v5024, %v5026
        %v5068 = vmax.f32 %v4931, %v5028
        %v5069 = vmax.f32 %v4932, %v5029
        %v5070 = vmax.f32 %v4933, %v4984
        %v5071 = vmax.f32 %v4934, %v5030
        %v5072 = vmax.f32 %v4935, %v5031
        %v5073 = vmax.f32 %v4936, %v4990
        %v5074 = vmax.f32 %v4937, %v5032
        %v5075 = vmax.f32 %v4938, %v5033
        %v5076 = vmax.f32 %v4939, %v4996
        %v5077 = vmax.f32 %v4940, %v5034
        %v5078 = vmax.f32 %v4941, %v5035
        %v5079 = vmax.f32 %v4942, %v5002
        %v5080 = vmax.f32 %v4943, %v5036
        %v5081 = vmax.f32 %v4944, %v5037
        %v5082 = vmax.f32 %v4945, %v5008
        %v5083 = vmax.f32 %v4946, %v5038
        %v5084 = vmax.f32 %v4947, %v5039
        %v5085 = vmax.f32 %v4948, %v5014
        %v5086 = vmax.f32 %v4949, %v5040
        %v5087 = vmax.f32 %v4950, %v5041
        %v5088 = vmax.f32 %v4951, %v5020
        %v5089 = vmax.f32 %v4952, %v5042
        %v5090 = vmax.f32 %v4953, %v5043
        %v5091 = vmax.f32 %v4954, %v5026
        %vm5116 = vcmask 1046528
        %v5117 = vrot.slane %v5068, 1
        %v5118 = vrot.slane %v5071, 1
        %v5119 = vsel %vm5116, %v5117, %v5118
        %v5120 = vrot.slane %v5069, 1
        %v5121 = vrot.slane %v5072, 1
        %v5122 = vsel %vm5116, %v5120, %v5121
        %v5123 = vrot.slane %v5070, 1
        %v5124 = vrot.slane %v5073, 1
        %v5125 = vsel %vm5116, %v5123, %v5124
        %v5126 = vrot.slane %v5074, 1
        %v5127 = vsel %vm5116, %v5118, %v5126
        %v5128 = vrot.slane %v5075, 1
        %v5129 = vsel %vm5116, %v5121, %v5128
        %v5130 = vrot.slane %v5076, 1
        %v5131 = vsel %vm5116, %v5124, %v5130
        %v5132 = vrot.slane %v5077, 1
        %v5133 = vsel %vm5116, %v5126, %v5132
        %v5134 = vrot.slane %v5078, 1
        %v5135 = vsel %vm5116, %v5128, %v5134
        %v5136 = vrot.slane %v5079, 1
        %v5137 = vsel %vm5116, %v5130, %v5136
        %v5138 = vrot.slane %v5080, 1
        %v5139 = vsel %vm5116, %v5132, %v5138
        %v5140 = vrot.slane %v5081, 1
        %v5141 = vsel %vm5116, %v5134, %v5140
        %v5142 = vrot.slane %v5082, 1
        %v5143 = vsel %vm5116, %v5136, %v5142
        %v5144 = vrot.slane %v5083, 1
        %v5145 = vsel %vm5116, %v5138, %v5144
        %v5146 = vrot.slane %v5084, 1
        %v5147 = vsel %vm5116, %v5140, %v5146
        %v5148 = vrot.slane %v5085, 1
        %v5149 = vsel %vm5116, %v5142, %v5148
        %v5150 = vrot.slane %v5086, 1
        %v5151 = vsel %vm5116, %v5144, %v5150
        %v5152 = vrot.slane %v5087, 1
        %v5153 = vsel %vm5116, %v5146, %v5152
        %v5154 = vrot.slane %v5088, 1
        %v5155 = vsel %vm5116, %v5148, %v5154
        %v5156 = vrot.slane %v5089, 1
        %v5157 = vsel %vm5116, %v5150, %v5156
        %v5158 = vrot.slane %v5090, 1
        %v5159 = vsel %vm5116, %v5152, %v5158
        %v5160 = vrot.slane %v5091, 1
        %v5161 = vsel %vm5116, %v5154, %v5160
        %v5186 = vmax.f32 %v5068, %v5119
        %v5187 = vmax.f32 %v5069, %v5122
        %v5188 = vmax.f32 %v5070, %v5125
        %v5189 = vmax.f32 %v5071, %v5127
        %v5190 = vmax.f32 %v5072, %v5129
        %v5191 = vmax.f32 %v5073, %v5131
        %v5192 = vmax.f32 %v5074, %v5133
        %v5193 = vmax.f32 %v5075, %v5135
        %v5194 = vmax.f32 %v5076, %v5137
        %v5195 = vmax.f32 %v5077, %v5139
        %v5196 = vmax.f32 %v5078, %v5141
        %v5197 = vmax.f32 %v5079, %v5143
        %v5198 = vmax.f32 %v5080, %v5145
        %v5199 = vmax.f32 %v5081, %v5147
        %v5200 = vmax.f32 %v5082, %v5149
        %v5201 = vmax.f32 %v5083, %v5151
        %v5202 = vmax.f32 %v5084, %v5153
        %v5203 = vmax.f32 %v5085, %v5155
        %v5204 = vmax.f32 %v5086, %v5157
        %v5205 = vmax.f32 %v5087, %v5159
        %v5206 = vmax.f32 %v5088, %v5161
        %v5207 = vmax.f32 %v5089, %v5156
        %v5208 = vmax.f32 %v5090, %v5158
        %v5209 = vmax.f32 %v5091, %v5160
        %v5210 = vld [vmem:[#allocation10] sm:$0xff]
        %v5211 = vld [vmem:[#allocation10 + $0x8] sm:$0xff]
        %v5212 = vld [vmem:[#allocation10 + $0x10] sm:$0xff]
        %v5213 = vld [vmem:[#allocation10 + $0x18] sm:$0x3f]
        %v5214 = vld [vmem:[%s5] sm:$0xff]
        %v5215 = vld [vmem:[%s5 + $0x8] sm:$0xff]
        %v5216 = vld [vmem:[%s5 + $0x10] sm:$0xff]
        %v5217 = vld [vmem:[%s5 + $0x18] sm:$0xff]
        %v5218 = vld [vmem:[%s5 + $0x20] sm:$0xff]
        %v5219 = vld [vmem:[%s5 + $0x28] sm:$0xff]
        %v5220 = vld [vmem:[%s5 + $0x30] sm:$0xff]
        %v5221 = vld [vmem:[%s5 + $0x38] sm:$0xff]
        %v5222 = vld [vmem:[%s5 + $0x40] sm:$0xff]
        %v5223 = vld [vmem:[%s5 + $0x48] sm:$0xff]
        %v5224 = vld [vmem:[%s5 + $0x50] sm:$0xff]
        %v5225 = vld [vmem:[%s5 + $0x58] sm:$0xff]
        %v5226 = vld [vmem:[%s5 + $0x60] sm:$0xff]
        %v5227 = vld [vmem:[%s5 + $0x68] sm:$0xff]
        %v5228 = vld [vmem:[%s5 + $0x70] sm:$0xff]
        %v5229 = vld [vmem:[%s5 + $0x78] sm:$0xff]
        %v5230 = vld [vmem:[%s5 + $0x80] sm:$0xff]
        %v5231 = vld [vmem:[%s5 + $0x88] sm:$0xff]
        %v5232 = vld [vmem:[%s5 + $0x90] sm:$0xff]
        %v5233 = vld [vmem:[%s5 + $0x98] sm:$0xff]
        %v5234 = vld [vmem:[%s5 + $0xa0] sm:$0xff]
        %v5235 = vld [vmem:[%s5 + $0xa8] sm:$0xff]
        %v5236 = vld [vmem:[%s5 + $0xb0] sm:$0xff]
        %v5237 = vld [vmem:[%s5 + $0xb8] sm:$0xff]
        %v5238 = vld [vmem:[%s5 + $0xc0] sm:$0xff]
        %v5239 = vld [vmem:[%s5 + $0xc8] sm:$0xff]
        %v5240 = vld [vmem:[%s5 + $0xd0] sm:$0xff]
        %v5241 = vld [vmem:[%s5 + $0xd8] sm:$0xff]
        %v5242 = vld [vmem:[%s5 + $0xe0] sm:$0xff]
        %v5243 = vld [vmem:[%s5 + $0xe8] sm:$0xff]
        %v5244 = vld [vmem:[%s5 + $0xf0] sm:$0xff]
        %v5245 = vld [vmem:[%s5 + $0xf8] sm:$0xff]
        %v5246 = vld [vmem:[%s5 + $0x100] sm:$0xff]
        %v5247 = vld [vmem:[%s5 + $0x108] sm:$0xff]
        %v5248 = vld [vmem:[%s5 + $0x110] sm:$0xff]
        %v5249 = vld [vmem:[%s5 + $0x118] sm:$0xff]
        %v5250 = vld [vmem:[%s5 + $0x120] sm:$0xff]
        %v5251 = vld [vmem:[%s5 + $0x128] sm:$0xff]
        %v5252 = vld [vmem:[%s5 + $0x130] sm:$0xff]
        %v5253 = vld [vmem:[%s5 + $0x138] sm:$0xff]
        %v5254 = vld [vmem:[%s5 + $0x140] sm:$0xff]
        %v5255 = vld [vmem:[%s5 + $0x148] sm:$0xff]
        %v5256 = vld [vmem:[%s5 + $0x150] sm:$0xff]
        %v5257 = vld [vmem:[%s5 + $0x158] sm:$0xff]
        %v5258 = vld [vmem:[%s5 + $0x160] sm:$0xff]
        %v5259 = vld [vmem:[%s5 + $0x168] sm:$0xff]
        %v5260 = vld [vmem:[%s5 + $0x170] sm:$0xff]
        %v5261 = vld [vmem:[%s5 + $0x178] sm:$0xff]
        %v5262 = vld [vmem:[%s5 + $0x180] sm:$0xff]
        %v5263 = vld [vmem:[%s5 + $0x188] sm:$0xff]
        %v5264 = vld [vmem:[%s5 + $0x190] sm:$0xff]
        %v5265 = vld [vmem:[%s5 + $0x198] sm:$0xff]
        %v5266 = vld [vmem:[%s5 + $0x1a0] sm:$0xff]
        %v5267 = vld [vmem:[%s5 + $0x1a8] sm:$0xff]
        %v5268 = vld [vmem:[%s5 + $0x1b0] sm:$0xff]
        %v5269 = vld [vmem:[%s5 + $0x1b8] sm:$0xff]
        %v5270 = vld [vmem:[%s5 + $0x1c0] sm:$0xff]
        %v5271 = vld [vmem:[%s5 + $0x1c8] sm:$0xff]
        %v5272 = vld [vmem:[%s5 + $0x1d0] sm:$0xff]
        %v5273 = vld [vmem:[%s5 + $0x1d8] sm:$0xff]
        %v5274 = vld [vmem:[%s5 + $0x1e0] sm:$0xff]
        %v5275 = vld [vmem:[%s5 + $0x1e8] sm:$0xff]
        %v5276 = vld [vmem:[%s5 + $0x1f0] sm:$0xff]
        %v5277 = vld [vmem:[%s5 + $0x1f8] sm:$0xff]
        %v5278 = vld [vmem:[%s5 + $0x200] sm:$0xff]
        %v5279 = vld [vmem:[%s5 + $0x208] sm:$0xff]
        %v5280 = vld [vmem:[%s5 + $0x210] sm:$0xff]
        %v5281 = vld [vmem:[%s5 + $0x218] sm:$0xff]
        %v5282 = vld [vmem:[%s5 + $0x220] sm:$0xff]
        %v5283 = vld [vmem:[%s5 + $0x228] sm:$0xff]
        %v5284 = vld [vmem:[%s5 + $0x230] sm:$0xff]
        %v5285 = vld [vmem:[%s5 + $0x238] sm:$0xff]
        %v5286 = vld [vmem:[%s5 + $0x240] sm:$0xff]
        %v5287 = vld [vmem:[%s5 + $0x248] sm:$0xff]
        %v5288 = vld [vmem:[%s5 + $0x250] sm:$0xff]
        %v5289 = vld [vmem:[%s5 + $0x258] sm:$0xff]
        %v5290 = vld [vmem:[%s5 + $0x260] sm:$0xff]
        %v5291 = vld [vmem:[%s5 + $0x268] sm:$0xff]
        %v5292 = vld [vmem:[%s5 + $0x270] sm:$0xff]
        %v5293 = vld [vmem:[%s5 + $0x278] sm:$0xff]
        %v5294 = vld [vmem:[%s5 + $0x280] sm:$0xff]
        %v5295 = vld [vmem:[%s5 + $0x288] sm:$0xff]
        %v5296 = vld [vmem:[%s5 + $0x290] sm:$0xff]
        %v5297 = vld [vmem:[%s5 + $0x298] sm:$0xff]
        %v5298 = vld [vmem:[%s5 + $0x2a0] sm:$0xff]
        %v5299 = vld [vmem:[%s5 + $0x2a8] sm:$0xff]
        %v5300 = vld [vmem:[%s5 + $0x2b0] sm:$0xff]
        %v5301 = vld [vmem:[%s5 + $0x2b8] sm:$0xff]
        %v5302 = vld [vmem:[%s5 + $0x2c0] sm:$0xff]
        %v5303 = vld [vmem:[%s5 + $0x2c8] sm:$0xff]
        %v5304 = vld [vmem:[%s5 + $0x2d0] sm:$0xff]
        %v5305 = vld [vmem:[%s5 + $0x2d8] sm:$0xff]
        %v5306 = vld [vmem:[%s5 + $0x2e0] sm:$0xff]
        %v5307 = vld [vmem:[%s5 + $0x2e8] sm:$0xff]
        %v5308 = vld [vmem:[%s5 + $0x2f0] sm:$0x7f]
        %v5309 = vld [vmem:[%s5 + $0x2f8] sm:$0x7f]
        %v5311 = vsel %vm5027, %v5188, 0
        %v5314 = vsel %vm5027, %v5191, 0
        %v5317 = vsel %vm5027, %v5194, 0
        %v5320 = vsel %vm5027, %v5197, 0
        %v5323 = vsel %vm5027, %v5200, 0
        %v5326 = vsel %vm5027, %v5203, 0
        %v5329 = vsel %vm5027, %v5206, 0
        %v5332 = vsel %vm5027, %v5209, 0
        %v5335 = vsel %vm5116, %v5308, 0
        %v5338 = vsel %vm5116, %v5309, 0
        %5340 = vmatprep.subr.mxu0 %v5215
        %5341 = vmatpush1.msra.mxu0 %v5214
        %5342 = vmatprep.subr.mxu0 %v5217
        %5343 = vmatpush1.msra.mxu0 %v5216
        %5344 = vmatprep.subr.mxu0 %v5219
        %5345 = vmatpush1.msra.mxu0 %v5218
        %5346 = vmatprep.subr.mxu0 %v5221
        %5347 = vmatpush1.msra.mxu0 %v5220
        %5348 = vmatprep.subr.mxu0 %v5223
        %5349 = vmatpush1.msra.mxu0 %v5222
        %5350 = vmatprep.subr.mxu0 %v5225
        %5351 = vmatpush1.msra.mxu0 %v5224
        %5352 = vmatprep.subr.mxu0 %v5227
        %5353 = vmatpush1.msra.mxu0 %v5226
        %5354 = vmatprep.subr.mxu0 %v5229
        %5355 = vmatpush1.msra.mxu0 %v5228
        %5356 = vmatprep.subr.mxu0 %v5231
        %5357 = vmatpush1.msra.mxu0 %v5230
        %5358 = vmatprep.subr.mxu0 %v5233
        %5359 = vmatpush1.msra.mxu0 %v5232
        %5360 = vmatprep.subr.mxu0 %v5235
        %5361 = vmatpush1.msra.mxu0 %v5234
        %5362 = vmatprep.subr.mxu0 %v5237
        %5363 = vmatpush1.msra.mxu0 %v5236
        %5364 = vmatprep.subr.mxu0 %v5239
        %5365 = vmatpush1.msra.mxu0 %v5238
        %5366 = vmatprep.subr.mxu0 %v5241
        %5367 = vmatpush1.msra.mxu0 %v5240
        %5368 = vmatprep.subr.mxu0 %v5243
        %5369 = vmatpush1.msra.mxu0 %v5242
        %5370 = vmatprep.subr.mxu0 %v5245
        %5371 = vmatpush1.msra.mxu0 %v5244
        %5372 = vmatprep.subr.mxu0 %v5247
        %5373 = vmatpush1.msra.mxu0 %v5246
        %5374 = vmatprep.subr.mxu0 %v5249
        %5375 = vmatpush1.msra.mxu0 %v5248
        %5376 = vmatprep.subr.mxu0 %v5251
        %5377 = vmatpush1.msra.mxu0 %v5250
        %5378 = vmatprep.subr.mxu0 %v5253
        %5379 = vmatpush1.msra.mxu0 %v5252
        %5380 = vmatprep.subr.mxu0 %v5255
        %5381 = vmatpush1.msra.mxu0 %v5254
        %5382 = vmatprep.subr.mxu0 %v5257
        %5383 = vmatpush1.msra.mxu0 %v5256
        %5384 = vmatprep.subr.mxu0 %v5259
        %5385 = vmatpush1.msra.mxu0 %v5258
        %5386 = vmatprep.subr.mxu0 %v5261
        %5387 = vmatpush1.msra.mxu0 %v5260
        %5388 = vmatprep.subr.mxu0 %v5263
        %5389 = vmatpush1.msra.mxu0 %v5262
        %5390 = vmatprep.subr.mxu0 %v5265
        %5391 = vmatpush1.msra.mxu0 %v5264
        %5392 = vmatprep.subr.mxu0 %v5267
        %5393 = vmatpush1.msra.mxu0 %v5266
        %5394 = vmatprep.subr.mxu0 %v5269
        %5395 = vmatpush1.msra.mxu0 %v5268
        %5396 = vmatprep.subr.mxu0 %v5271
        %5397 = vmatpush1.msra.mxu0 %v5270
        %5398 = vmatprep.subr.mxu0 %v5273
        %5399 = vmatpush1.msra.mxu0 %v5272
        %5400 = vmatprep.subr.mxu0 %v5275
        %5401 = vmatpush1.msra.mxu0 %v5274
        %5402 = vmatprep.subr.mxu0 %v5277
        %5403 = vmatpush1.msra.mxu0 %v5276
        %5404 = vmatprep.mubr.f32.mxu0 %v5187
        %5405 = vmatmul.mubr.f32.gmra.mrb[0].mxu0 %v5186
        %v5406 = vpop.f32.mrb[0].mxu0
        %v5407 = vadd.f32 0.0, %v5406
        %v5408 = vpop.f32.mrb[0].mxu0
        %v5409 = vadd.f32 0.0, %v5408
        %5410 = vmatprep.mubr.f32.mxu0 %v5190
        %5411 = vmatmul.mubr.f32.gmra.mrb[0].mxu0 %v5189
        %v5412 = vpop.f32.mrb[0].mxu0
        %v5413 = vadd.f32 0.0, %v5412
        %v5414 = vpop.f32.mrb[0].mxu0
        %v5415 = vadd.f32 0.0, %v5414
        %5416 = vmatprep.mubr.f32.mxu0 %v5193
        %5417 = vmatmul.mubr.f32.gmra.mrb[0].mxu0 %v5192
        %v5418 = vpop.f32.mrb[0].mxu0
        %v5419 = vadd.f32 0.0, %v5418
        %v5420 = vpop.f32.mrb[0].mxu0
        %v5421 = vadd.f32 0.0, %v5420
        %5422 = vmatprep.mubr.f32.mxu0 %v5196
        %5423 = vmatmul.mubr.f32.gmra.mrb[0].mxu0 %v5195
        %v5424 = vpop.f32.mrb[0].mxu0
        %v5425 = vadd.f32 0.0, %v5424
        %v5426 = vpop.f32.mrb[0].mxu0
        %v5427 = vadd.f32 0.0, %v5426
        %5428 = vmatprep.mubr.f32.mxu0 %v5199
        %5429 = vmatmul.mubr.f32.gmra.mrb[0].mxu0 %v5198
        %v5430 = vpop.f32.mrb[0].mxu0
        %v5431 = vadd.f32 0.0, %v5430
        %v5432 = vpop.f32.mrb[0].mxu0
        %v5433 = vadd.f32 0.0, %v5432
        %5434 = vmatprep.mubr.f32.mxu0 %v5202
        %5435 = vmatmul.mubr.f32.gmra.mrb[0].mxu0 %v5201
        %v5436 = vpop.f32.mrb[0].mxu0
        %v5437 = vadd.f32 0.0, %v5436
        %v5438 = vpop.f32.mrb[0].mxu0
        %v5439 = vadd.f32 0.0, %v5438
        %5440 = vmatprep.mubr.f32.mxu0 %v5205
        %5441 = vmatmul.mubr.f32.gmra.mrb[0].mxu0 %v5204
        %v5442 = vpop.f32.mrb[0].mxu0
        %v5443 = vadd.f32 0.0, %v5442
        %v5444 = vpop.f32.mrb[0].mxu0
        %v5445 = vadd.f32 0.0, %v5444
        %5446 = vmatprep.mubr.f32.mxu0 %v5208
        %5447 = vmatmul.mubr.f32.gmra.mrb[0].mxu0 %v5207
        %v5448 = vpop.f32.mrb[0].mxu0
        %v5449 = vadd.f32 0.0, %v5448
        %v5450 = vpop.f32.mrb[0].mxu0
        %v5451 = vadd.f32 0.0, %v5450
        %5452 = vdwg.mxu0
        %5453 = vmatprep.subr.mxu0 %v5279
        %5454 = vmatpush1.msra.mxu0 %v5278
        %5455 = vmatprep.subr.mxu0 %v5281
        %5456 = vmatpush1.msra.mxu0 %v5280
        %5457 = vmatprep.subr.mxu0 %v5283
        %5458 = vmatpush1.msra.mxu0 %v5282
        %5459 = vmatprep.subr.mxu0 %v5285
        %5460 = vmatpush1.msra.mxu0 %v5284
        %5461 = vmatprep.subr.mxu0 %v5287
        %5462 = vmatpush1.msra.mxu0 %v5286
        %5463 = vmatprep.subr.mxu0 %v5289
        %5464 = vmatpush1.msra.mxu0 %v5288
        %5465 = vmatprep.subr.mxu0 %v5291
        %5466 = vmatpush1.msra.mxu0 %v5290
        %5467 = vmatprep.subr.mxu0 %v5293
        %5468 = vmatpush1.msra.mxu0 %v5292
        %5469 = vmatprep.subr.mxu0 %v5295
        %5470 = vmatpush1.msra.mxu0 %v5294
        %5471 = vmatprep.subr.mxu0 %v5297
        %5472 = vmatpush1.msra.mxu0 %v5296
        %5473 = vmatprep.subr.mxu0 %v5299
        %5474 = vmatpush1.msra.mxu0 %v5298
        %5475 = vmatprep.subr.mxu0 %v5301
        %5476 = vmatpush1.msra.mxu0 %v5300
        %5477 = vmatprep.subr.mxu0 %v5303
        %5478 = vmatpush1.msra.mxu0 %v5302
        %5479 = vmatprep.subr.mxu0 %v5305
        %5480 = vmatpush1.msra.mxu0 %v5304
        %5481 = vmatprep.subr.mxu0 %v5307
        %5482 = vmatpush1.msra.mxu0 %v5306
        %5483 = vmatprep.subr.mxu0 %v5338
        %5484 = vmatpush1.msra.mxu0 %v5335
        %5485 = vmatprep.subr.mxu0 0.0
        %5486 = vmatpush1.msra.mxu0 0.0
        %5487 = vmatprep.subr.mxu0 0.0
        %5488 = vmatpush1.msra.mxu0 0.0
        %5489 = vmatprep.subr.mxu0 0.0
        %5490 = vmatpush1.msra.mxu0 0.0
        %5491 = vmatprep.subr.mxu0 0.0
        %5492 = vmatpush1.msra.mxu0 0.0
        %5493 = vmatprep.subr.mxu0 0.0
        %5494 = vmatpush1.msra.mxu0 0.0
        %5495 = vmatprep.subr.mxu0 0.0
        %5496 = vmatpush1.msra.mxu0 0.0
        %5497 = vmatprep.subr.mxu0 0.0
        %5498 = vmatpush1.msra.mxu0 0.0
        %5499 = vmatprep.subr.mxu0 0.0
        %5500 = vmatpush1.msra.mxu0 0.0
        %5501 = vmatprep.subr.mxu0 0.0
        %5502 = vmatpush1.msra.mxu0 0.0
        %5503 = vmatprep.subr.mxu0 0.0
        %5504 = vmatpush1.msra.mxu0 0.0
        %5505 = vmatprep.subr.mxu0 0.0
        %5506 = vmatpush1.msra.mxu0 0.0
        %5507 = vmatprep.subr.mxu0 0.0
        %5508 = vmatpush1.msra.mxu0 0.0
        %5509 = vmatprep.subr.mxu0 0.0
        %5510 = vmatpush1.msra.mxu0 0.0
        %5511 = vmatprep.subr.mxu0 0.0
        %5512 = vmatpush1.msra.mxu0 0.0
        %5513 = vmatprep.subr.mxu0 0.0
        %5514 = vmatpush1.msra.mxu0 0.0
        %5515 = vmatprep.subr.mxu0 0.0
        %5516 = vmatpush1.msra.mxu0 0.0
        %5517 = vmatprep.mubr.f32.mxu0 0.0
        %5518 = vmatmul.mubr.f32.gmra.mrb[0].mxu0 %v5311
        %v5519 = vpop.f32.mrb[0].mxu0
        %v5520 = vadd.f32 %v5407, %v5519
        %v5521 = vpop.f32.mrb[0].mxu0
        %v5522 = vadd.f32 %v5409, %v5521
        %5523 = vmatprep.mubr.f32.mxu0 0.0
        %5524 = vmatmul.mubr.f32.gmra.mrb[0].mxu0 %v5314
        %v5525 = vpop.f32.mrb[0].mxu0
        %v5526 = vadd.f32 %v5413, %v5525
        %v5527 = vpop.f32.mrb[0].mxu0
        %v5528 = vadd.f32 %v5415, %v5527
        %5529 = vmatprep.mubr.f32.mxu0 0.0
        %5530 = vmatmul.mubr.f32.gmra.mrb[0].mxu0 %v5317
        %v5531 = vpop.f32.mrb[0].mxu0
        %v5532 = vadd.f32 %v5419, %v5531
        %v5533 = vpop.f32.mrb[0].mxu0
        %v5534 = vadd.f32 %v5421, %v5533
        %5535 = vmatprep.mubr.f32.mxu0 0.0
        %5536 = vmatmul.mubr.f32.gmra.mrb[0].mxu0 %v5320
        %v5537 = vpop.f32.mrb[0].mxu0
        %v5538 = vadd.f32 %v5425, %v5537
        %v5539 = vpop.f32.mrb[0].mxu0
        %v5540 = vadd.f32 %v5427, %v5539
        %5541 = vmatprep.mubr.f32.mxu0 0.0
        %5542 = vmatmul.mubr.f32.gmra.mrb[0].mxu0 %v5323
        %v5543 = vpop.f32.mrb[0].mxu0
        %v5544 = vadd.f32 %v5431, %v5543
        %v5545 = vpop.f32.mrb[0].mxu0
        %v5546 = vadd.f32 %v5433, %v5545
        %5547 = vmatprep.mubr.f32.mxu0 0.0
        %5548 = vmatmul.mubr.f32.gmra.mrb[0].mxu0 %v5326
        %v5549 = vpop.f32.mrb[0].mxu0
        %v5550 = vadd.f32 %v5437, %v5549
        %v5551 = vpop.f32.mrb[0].mxu0
        %v5552 = vadd.f32 %v5439, %v5551
        %5553 = vmatprep.mubr.f32.mxu0 0.0
        %5554 = vmatmul.mubr.f32.gmra.mrb[0].mxu0 %v5329
        %v5555 = vpop.f32.mrb[0].mxu0
        %v5556 = vadd.f32 %v5443, %v5555
        %v5557 = vpop.f32.mrb[0].mxu0
        %v5558 = vadd.f32 %v5445, %v5557
        %5559 = vmatprep.mubr.f32.mxu0 0.0
        %5560 = vmatmul.mubr.f32.gmra.mrb[0].mxu0 %v5332
        %v5561 = vpop.f32.mrb[0].mxu0
        %v5562 = vadd.f32 %v5449, %v5561
        %v5563 = vpop.f32.mrb[0].mxu0
        %v5564 = vadd.f32 %v5451, %v5563
        %5565 = vdwg.mxu0
        %vm5566 = vcmask 482304
        %v5568 = vsel %vm5566, %v5210, 0
        %v5571 = vsel %vm5566, %v5211, 0
        %v5574 = vsel %vm5566, %v5212, 0
        %v5577 = vsel %vm5566, %v5213, 0
        %vm5579 = vcmask 1042432
        %v5581 = vsel %vm5579, %v5562, 0
        %v5584 = vsel %vm5579, %v5564, 0
        %5586 = vmatprep.subr.mxu0 %v5522
        %5587 = vmatpush1.msra.mxu0 %v5520
        %5588 = vmatprep.subr.mxu0 %v5528
        %5589 = vmatpush1.msra.mxu0 %v5526
        %5590 = vmatprep.subr.mxu0 %v5534
        %5591 = vmatpush1.msra.mxu0 %v5532
        %5592 = vmatprep.subr.mxu0 %v5540
        %5593 = vmatpush1.msra.mxu0 %v5538
        %5594 = vmatprep.subr.mxu0 %v5546
        %5595 = vmatpush1.msra.mxu0 %v5544
        %5596 = vmatprep.subr.mxu0 %v5552
        %5597 = vmatpush1.msra.mxu0 %v5550
        %5598 = vmatprep.subr.mxu0 %v5558
        %5599 = vmatpush1.msra.mxu0 %v5556
        %5600 = vmatprep.subr.mxu0 %v5584
        %5601 = vmatpush1.msra.mxu0 %v5581
        %5602 = vmatprep.subr.mxu0 0.0
        %5603 = vmatpush1.msra.mxu0 0.0
        %5604 = vmatprep.subr.mxu0 0.0
        %5605 = vmatpush1.msra.mxu0 0.0
        %5606 = vmatprep.subr.mxu0 0.0
        %5607 = vmatpush1.msra.mxu0 0.0
        %5608 = vmatprep.subr.mxu0 0.0
        %5609 = vmatpush1.msra.mxu0 0.0
        %5610 = vmatprep.subr.mxu0 0.0
        %5611 = vmatpush1.msra.mxu0 0.0
        %5612 = vmatprep.subr.mxu0 0.0
        %5613 = vmatpush1.msra.mxu0 0.0
        %5614 = vmatprep.subr.mxu0 0.0
        %5615 = vmatpush1.msra.mxu0 0.0
        %5616 = vmatprep.subr.mxu0 0.0
        %5617 = vmatpush1.msra.mxu0 0.0
        %5618 = vmatprep.subr.mxu0 0.0
        %5619 = vmatpush1.msra.mxu0 0.0
        %5620 = vmatprep.subr.mxu0 0.0
        %5621 = vmatpush1.msra.mxu0 0.0
        %5622 = vmatprep.subr.mxu0 0.0
        %5623 = vmatpush1.msra.mxu0 0.0
        %5624 = vmatprep.subr.mxu0 0.0
        %5625 = vmatpush1.msra.mxu0 0.0
        %5626 = vmatprep.subr.mxu0 0.0
        %5627 = vmatpush1.msra.mxu0 0.0
        %5628 = vmatprep.subr.mxu0 0.0
        %5629 = vmatpush1.msra.mxu0 0.0
        %5630 = vmatprep.subr.mxu0 0.0
        %5631 = vmatpush1.msra.mxu0 0.0
        %5632 = vmatprep.subr.mxu0 0.0
        %5633 = vmatpush1.msra.mxu0 0.0
        %5634 = vmatprep.subr.mxu0 0.0
        %5635 = vmatpush1.msra.mxu0 0.0
        %5636 = vmatprep.subr.mxu0 0.0
        %5637 = vmatpush1.msra.mxu0 0.0
        %5638 = vmatprep.subr.mxu0 0.0
        %5639 = vmatpush1.msra.mxu0 0.0
        %5640 = vmatprep.subr.mxu0 0.0
        %5641 = vmatpush1.msra.mxu0 0.0
        %5642 = vmatprep.subr.mxu0 0.0
        %5643 = vmatpush1.msra.mxu0 0.0
        %5644 = vmatprep.subr.mxu0 0.0
        %5645 = vmatpush1.msra.mxu0 0.0
        %5646 = vmatprep.subr.mxu0 0.0
        %5647 = vmatpush1.msra.mxu0 0.0
        %5648 = vmatprep.subr.mxu0 0.0
        %5649 = vmatpush1.msra.mxu0 0.0
        %5650 = vmatprep.mubr.f32.mxu0 0.0
        %5651 = vmatmul.mubr.f32.gmra.mrb[0].mxu0 %v5568
        %v5652 = vpop.f32.mrb[0].mxu0
        %v5653 = vadd.f32 0.0, %v5652
        %v5654 = vpop.f32.mrb[0].mxu0
        %v5655 = vadd.f32 0.0, %v5654
        %5656 = vmatprep.mubr.f32.mxu0 0.0
        %5657 = vmatmul.mubr.f32.gmra.mrb[0].mxu0 %v5571
        %v5658 = vpop.f32.mrb[0].mxu0
        %v5659 = vadd.f32 0.0, %v5658
        %v5660 = vpop.f32.mrb[0].mxu0
        %v5661 = vadd.f32 0.0, %v5660
        %5662 = vmatprep.mubr.f32.mxu0 0.0
        %5663 = vmatmul.mubr.f32.gmra.mrb[0].mxu0 %v5574
        %v5664 = vpop.f32.mrb[0].mxu0
        %v5665 = vadd.f32 0.0, %v5664
        %v5666 = vpop.f32.mrb[0].mxu0
        %v5667 = vadd.f32 0.0, %v5666
        %5668 = vmatprep.mubr.f32.mxu0 0.0
        %5669 = vmatmul.mubr.f32.gmra.mrb[0].mxu0 %v5577
        %v5670 = vpop.f32.mrb[0].mxu0
        %v5671 = vadd.f32 0.0, %v5670
        %v5672 = vpop.f32.mrb[0].mxu0
        %v5673 = vadd.f32 0.0, %v5672
        %5674 = vdwg.mxu0
        %v5675 = vld [vmem:[#allocation7] sm:$0xff]
        %v5676 = vld [vmem:[#allocation7 + $0x8] sm:$0xff]
        %v5677 = vld [vmem:[#allocation7 + $0x10] sm:$0xff]
        %v5678 = vld [vmem:[#allocation7 + $0x18] sm:$0xff]
        %v5679 = vld [vmem:[#allocation7 + $0x20] sm:$0xff]
        %v5680 = vld [vmem:[#allocation7 + $0x28] sm:$0xff]
        %v5681 = vld [vmem:[#allocation7 + $0x30] sm:$0xff]
        %v5682 = vld [vmem:[#allocation7 + $0x38] sm:$0xff]
        %v5683 = vld [vmem:[#allocation7 + $0x40] sm:$0xff]
        %v5684 = vld [vmem:[#allocation7 + $0x48] sm:$0xff]
        %v5685 = vld [vmem:[#allocation7 + $0x50] sm:$0xff]
        %v5686 = vld [vmem:[#allocation7 + $0x58] sm:$0xff]
        %v5687 = vld [vmem:[#allocation7 + $0x60] sm:$0xff]
        %v5688 = vld [vmem:[#allocation7 + $0x68] sm:$0xff]
        %v5689 = vld [vmem:[#allocation7 + $0x70] sm:$0xff]
        %v5690 = vld [vmem:[#allocation7 + $0x78] sm:$0xff]
        %v5691 = vld [vmem:[#allocation7 + $0x80] sm:$0xff]
        %v5692 = vld [vmem:[#allocation7 + $0x88] sm:$0xff]
        %v5693 = vld [vmem:[#allocation7 + $0x90] sm:$0xff]
        %v5694 = vld [vmem:[#allocation7 + $0x98] sm:$0xff]
        %v5695 = vld [vmem:[#allocation7 + $0xa0] sm:$0xff]
        %v5696 = vld [vmem:[#allocation7 + $0xa8] sm:$0xff]
        %v5697 = vld [vmem:[#allocation7 + $0xb0] sm:$0xff]
        %v5698 = vld [vmem:[#allocation7 + $0xb8] sm:$0xff]
        %v5699 = vld [vmem:[#allocation7 + $0xc0] sm:$0xff]
        %v5700 = vld [vmem:[#allocation7 + $0xc8] sm:$0xff]
        %v5701 = vld [vmem:[#allocation7 + $0xd0] sm:$0xff]
        %v5702 = vld [vmem:[#allocation7 + $0xd8] sm:$0xff]
        %v5703 = vld [vmem:[#allocation7 + $0xe0] sm:$0xff]
        %v5704 = vld [vmem:[#allocation7 + $0xe8] sm:$0xff]
        %v5705 = vld [vmem:[#allocation7 + $0xf0] sm:$0xff]
        %v5706 = vld [vmem:[#allocation7 + $0xf8] sm:$0xff]
        %v5707 = vld [vmem:[#allocation7 + $0x100] sm:$0xff]
        %v5708 = vld [vmem:[#allocation7 + $0x108] sm:$0xff]
        %v5709 = vld [vmem:[#allocation7 + $0x110] sm:$0xff]
        %v5710 = vld [vmem:[#allocation7 + $0x118] sm:$0xff]
        %v5711 = vld [vmem:[#allocation7 + $0x120] sm:$0xff]
        %v5712 = vld [vmem:[#allocation7 + $0x128] sm:$0xff]
        %v5713 = vld [vmem:[#allocation7 + $0x130] sm:$0xff]
        %v5714 = vld [vmem:[#allocation7 + $0x138] sm:$0xff]
        %v5715 = vld [vmem:[#allocation7 + $0x140] sm:$0xff]
        %v5716 = vld [vmem:[#allocation7 + $0x148] sm:$0xff]
        %v5717 = vld [vmem:[#allocation7 + $0x150] sm:$0xff]
        %v5718 = vld [vmem:[#allocation7 + $0x158] sm:$0xff]
        %v5719 = vld [vmem:[#allocation7 + $0x160] sm:$0xff]
        %v5720 = vld [vmem:[#allocation7 + $0x168] sm:$0xff]
        %v5721 = vld [vmem:[#allocation7 + $0x170] sm:$0xff]
        %v5722 = vld [vmem:[#allocation7 + $0x178] sm:$0xff]
        %v5723 = vld [vmem:[#allocation7 + $0x180] sm:$0xff]
        %v5724 = vld [vmem:[#allocation7 + $0x188] sm:$0xff]
        %v5725 = vld [vmem:[#allocation7 + $0x190] sm:$0xff]
        %v5726 = vld [vmem:[#allocation7 + $0x198] sm:$0xff]
        %v5727 = vld [vmem:[#allocation7 + $0x1a0] sm:$0xff]
        %v5728 = vld [vmem:[#allocation7 + $0x1a8] sm:$0xff]
        %v5729 = vld [vmem:[#allocation7 + $0x1b0] sm:$0xff]
        %v5730 = vld [vmem:[#allocation7 + $0x1b8] sm:$0xff]
        %v5731 = vld [vmem:[#allocation7 + $0x1c0] sm:$0xff]
        %v5732 = vld [vmem:[#allocation7 + $0x1c8] sm:$0xff]
        %v5733 = vld [vmem:[#allocation7 + $0x1d0] sm:$0xff]
        %v5734 = vld [vmem:[#allocation7 + $0x1d8] sm:$0xff]
        %v5735 = vld [vmem:[#allocation7 + $0x1e0] sm:$0xff]
        %v5736 = vld [vmem:[#allocation7 + $0x1e8] sm:$0xff]
        %v5737 = vld [vmem:[#allocation7 + $0x1f0] sm:$0xff]
        %v5738 = vld [vmem:[#allocation7 + $0x1f8] sm:$0xff]
        %v5739 = vld [vmem:[#allocation7 + $0x200] sm:$0xff]
        %v5740 = vld [vmem:[#allocation7 + $0x208] sm:$0xff]
        %v5741 = vld [vmem:[#allocation7 + $0x210] sm:$0xff]
        %v5742 = vld [vmem:[#allocation7 + $0x218] sm:$0xff]
        %v5743 = vld [vmem:[#allocation7 + $0x220] sm:$0xff]
        %v5744 = vld [vmem:[#allocation7 + $0x228] sm:$0xff]
        %v5745 = vld [vmem:[#allocation7 + $0x230] sm:$0xff]
        %v5746 = vld [vmem:[#allocation7 + $0x238] sm:$0xff]
        %v5747 = vld [vmem:[#allocation7 + $0x240] sm:$0xff]
        %v5748 = vld [vmem:[#allocation7 + $0x248] sm:$0xff]
        %v5749 = vld [vmem:[#allocation7 + $0x250] sm:$0xff]
        %v5750 = vld [vmem:[#allocation7 + $0x258] sm:$0xff]
        %v5751 = vld [vmem:[#allocation7 + $0x260] sm:$0xff]
        %v5752 = vld [vmem:[#allocation7 + $0x268] sm:$0xff]
        %v5753 = vld [vmem:[#allocation7 + $0x270] sm:$0xff]
        %v5754 = vld [vmem:[#allocation7 + $0x278] sm:$0xff]
        %v5755 = vld [vmem:[#allocation7 + $0x280] sm:$0xff]
        %v5756 = vld [vmem:[#allocation7 + $0x288] sm:$0xff]
        %v5757 = vld [vmem:[#allocation7 + $0x290] sm:$0xff]
        %v5758 = vld [vmem:[#allocation7 + $0x298] sm:$0xff]
        %v5759 = vld [vmem:[#allocation7 + $0x2a0] sm:$0xff]
        %v5760 = vld [vmem:[#allocation7 + $0x2a8] sm:$0xff]
        %v5761 = vld [vmem:[#allocation7 + $0x2b0] sm:$0xff]
        %v5762 = vld [vmem:[#allocation7 + $0x2b8] sm:$0xff]
        %v5763 = vld [vmem:[#allocation7 + $0x2c0] sm:$0xff]
        %v5764 = vld [vmem:[#allocation7 + $0x2c8] sm:$0xff]
        %v5765 = vld [vmem:[#allocation7 + $0x2d0] sm:$0xff]
        %v5766 = vld [vmem:[#allocation7 + $0x2d8] sm:$0xff]
        %v5767 = vld [vmem:[#allocation7 + $0x2e0] sm:$0xff]
        %v5768 = vld [vmem:[#allocation7 + $0x2e8] sm:$0xff]
        %v5769 = vld [vmem:[#allocation7 + $0x2f0] sm:$0xff]
        %v5770 = vld [vmem:[#allocation7 + $0x2f8] sm:$0xff]
        %s5771 = scalar_lea.vmem [#allocation7], 768
        %v5772 = vld [vmem:[%s5771] sm:$0xff]
        %v5773 = vld [vmem:[%s5771 + $0x8] sm:$0xff]
        %v5774 = vld [vmem:[%s5771 + $0x10] sm:$0xff]
        %v5775 = vld [vmem:[%s5771 + $0x18] sm:$0xff]
        %v5776 = vld [vmem:[%s5771 + $0x20] sm:$0xff]
        %v5777 = vld [vmem:[%s5771 + $0x28] sm:$0xff]
        %v5778 = vld [vmem:[%s5771 + $0x30] sm:$0xff]
        %v5779 = vld [vmem:[%s5771 + $0x38] sm:$0xff]
        %v5780 = vld [vmem:[%s5771 + $0x40] sm:$0xff]
        %v5781 = vld [vmem:[%s5771 + $0x48] sm:$0xff]
        %v5782 = vld [vmem:[%s5771 + $0x50] sm:$0xff]
        %v5783 = vld [vmem:[%s5771 + $0x58] sm:$0xff]
        %v5784 = vld [vmem:[%s5771 + $0x60] sm:$0xff]
        %v5785 = vld [vmem:[%s5771 + $0x68] sm:$0xff]
        %v5786 = vld [vmem:[%s5771 + $0x70] sm:$0xff]
        %v5787 = vld [vmem:[%s5771 + $0x78] sm:$0xff]
        %v5788 = vld [vmem:[%s5771 + $0x80] sm:$0xff]
        %v5789 = vld [vmem:[%s5771 + $0x88] sm:$0xff]
        %v5790 = vld [vmem:[%s5771 + $0x90] sm:$0xff]
        %v5791 = vld [vmem:[%s5771 + $0x98] sm:$0xff]
        %v5792 = vld [vmem:[%s5771 + $0xa0] sm:$0xff]
        %v5793 = vld [vmem:[%s5771 + $0xa8] sm:$0xff]
        %v5794 = vld [vmem:[%s5771 + $0xb0] sm:$0xff]
        %v5795 = vld [vmem:[%s5771 + $0xb8] sm:$0xff]
        %v5796 = vld [vmem:[%s5771 + $0xc0] sm:$0xff]
        %v5797 = vld [vmem:[%s5771 + $0xc8] sm:$0xff]
        %v5798 = vld [vmem:[%s5771 + $0xd0] sm:$0xff]
        %v5799 = vld [vmem:[%s5771 + $0xd8] sm:$0xff]
        %v5800 = vld [vmem:[%s5771 + $0xe0] sm:$0xff]
        %v5801 = vld [vmem:[%s5771 + $0xe8] sm:$0xff]
        %v5802 = vld [vmem:[%s5771 + $0xf0] sm:$0xff]
        %v5803 = vld [vmem:[%s5771 + $0xf8] sm:$0xff]
        %v5804 = vld [vmem:[%s5771 + $0x100] sm:$0xff]
        %v5805 = vld [vmem:[%s5771 + $0x108] sm:$0xff]
        %v5806 = vld [vmem:[%s5771 + $0x110] sm:$0xff]
        %v5807 = vld [vmem:[%s5771 + $0x118] sm:$0xff]
        %v5808 = vld [vmem:[%s5771 + $0x120] sm:$0xff]
        %v5809 = vld [vmem:[%s5771 + $0x128] sm:$0xff]
        %v5810 = vld [vmem:[%s5771 + $0x130] sm:$0xff]
        %v5811 = vld [vmem:[%s5771 + $0x138] sm:$0xff]
        %v5812 = vld [vmem:[%s5771 + $0x140] sm:$0xff]
        %v5813 = vld [vmem:[%s5771 + $0x148] sm:$0xff]
        %v5814 = vld [vmem:[%s5771 + $0x150] sm:$0xff]
        %v5815 = vld [vmem:[%s5771 + $0x158] sm:$0xff]
        %v5816 = vld [vmem:[%s5771 + $0x160] sm:$0xff]
        %v5817 = vld [vmem:[%s5771 + $0x168] sm:$0xff]
        %v5818 = vld [vmem:[%s5771 + $0x170] sm:$0xff]
        %v5819 = vld [vmem:[%s5771 + $0x178] sm:$0xff]
        %v5820 = vld [vmem:[%s5771 + $0x180] sm:$0xff]
        %v5821 = vld [vmem:[%s5771 + $0x188] sm:$0xff]
        %v5822 = vld [vmem:[%s5771 + $0x190] sm:$0xff]
        %v5823 = vld [vmem:[%s5771 + $0x198] sm:$0xff]
        %v5824 = vld [vmem:[%s5771 + $0x1a0] sm:$0xff]
        %v5825 = vld [vmem:[%s5771 + $0x1a8] sm:$0xff]
        %v5826 = vld [vmem:[%s5771 + $0x1b0] sm:$0xff]
        %v5827 = vld [vmem:[%s5771 + $0x1b8] sm:$0xff]
        %v5828 = vld [vmem:[%s5771 + $0x1c0] sm:$0xff]
        %v5829 = vld [vmem:[%s5771 + $0x1c8] sm:$0xff]
        %v5830 = vld [vmem:[%s5771 + $0x1d0] sm:$0xff]
        %v5831 = vld [vmem:[%s5771 + $0x1d8] sm:$0xff]
        %v5832 = vld [vmem:[%s5771 + $0x1e0] sm:$0xff]
        %v5833 = vld [vmem:[%s5771 + $0x1e8] sm:$0xff]
        %v5834 = vld [vmem:[%s5771 + $0x1f0] sm:$0xff]
        %v5835 = vld [vmem:[%s5771 + $0x1f8] sm:$0xff]
        %v5836 = vld [vmem:[%s5771 + $0x200] sm:$0xff]
        %v5837 = vld [vmem:[%s5771 + $0x208] sm:$0xff]
        %v5838 = vld [vmem:[%s5771 + $0x210] sm:$0xff]
        %v5839 = vld [vmem:[%s5771 + $0x218] sm:$0xff]
        %v5840 = vld [vmem:[%s5771 + $0x220] sm:$0xff]
        %v5841 = vld [vmem:[%s5771 + $0x228] sm:$0xff]
        %v5842 = vld [vmem:[%s5771 + $0x230] sm:$0xff]
        %v5843 = vld [vmem:[%s5771 + $0x238] sm:$0xff]
        %v5844 = vld [vmem:[%s5771 + $0x240] sm:$0xff]
        %v5845 = vld [vmem:[%s5771 + $0x248] sm:$0xff]
        %v5846 = vld [vmem:[%s5771 + $0x250] sm:$0xff]
        %v5847 = vld [vmem:[%s5771 + $0x258] sm:$0xff]
        %v5848 = vld [vmem:[%s5771 + $0x260] sm:$0xff]
        %v5849 = vld [vmem:[%s5771 + $0x268] sm:$0xff]
        %v5850 = vld [vmem:[%s5771 + $0x270] sm:$0xff]
        %v5851 = vld [vmem:[%s5771 + $0x278] sm:$0xff]
        %v5852 = vld [vmem:[%s5771 + $0x280] sm:$0xff]
        %v5853 = vld [vmem:[%s5771 + $0x288] sm:$0xff]
        %v5854 = vld [vmem:[%s5771 + $0x290] sm:$0xff]
        %v5855 = vld [vmem:[%s5771 + $0x298] sm:$0xff]
        %v5856 = vld [vmem:[%s5771 + $0x2a0] sm:$0xff]
        %v5857 = vld [vmem:[%s5771 + $0x2a8] sm:$0xff]
        %v5858 = vld [vmem:[%s5771 + $0x2b0] sm:$0xff]
        %v5859 = vld [vmem:[%s5771 + $0x2b8] sm:$0xff]
        %v5860 = vld [vmem:[%s5771 + $0x2c0] sm:$0xff]
        %v5861 = vld [vmem:[%s5771 + $0x2c8] sm:$0xff]
        %v5862 = vld [vmem:[%s5771 + $0x2d0] sm:$0xff]
        %v5863 = vld [vmem:[%s5771 + $0x2d8] sm:$0xff]
        %v5864 = vld [vmem:[%s5771 + $0x2e0] sm:$0xff]
        %v5865 = vld [vmem:[%s5771 + $0x2e8] sm:$0xff]
        %v5866 = vld [vmem:[%s5771 + $0x2f0] sm:$0xff]
        %v5867 = vld [vmem:[%s5771 + $0x2f8] sm:$0xff]
        %v5876 = vrot.slane %v5653, 1
        %v5877 = vrot.slane %v5659, 1
        %v5878 = vsel %vm5116, %v5876, %v5877
        %v5879 = vrot.slane %v5655, 1
        %v5880 = vrot.slane %v5661, 1
        %v5881 = vsel %vm5116, %v5879, %v5880
        %v5882 = vrot.slane %v5665, 1
        %v5883 = vsel %vm5116, %v5877, %v5882
        %v5884 = vrot.slane %v5667, 1
        %v5885 = vsel %vm5116, %v5880, %v5884
        %v5886 = vrot.slane %v5671, 1
        %v5887 = vsel %vm5116, %v5882, %v5886
        %v5888 = vrot.slane %v5673, 1
        %v5889 = vsel %vm5116, %v5884, %v5888
        %v5894 = vsel %vm517, %v5881, 0
        %v5896 = vsel %vm517, %v5885, 0
        %v5898 = vsel %vm517, %v5889, 0
        %v5900 = vsel %vm517, %v5888, 0
        %5902 = vmatprep.subr.mxu0 %v5773
        %5903 = vmatpush1.msra.mxu0 %v5772
        %5904 = vmatprep.subr.mxu0 %v5777
        %5905 = vmatpush1.msra.mxu0 %v5776
        %5906 = vmatprep.subr.mxu0 %v5781
        %5907 = vmatpush1.msra.mxu0 %v5780
        %5908 = vmatprep.subr.mxu0 %v5785
        %5909 = vmatpush1.msra.mxu0 %v5784
        %5910 = vmatprep.subr.mxu0 %v5789
        %5911 = vmatpush1.msra.mxu0 %v5788
        %5912 = vmatprep.subr.mxu0 %v5793
        %5913 = vmatpush1.msra.mxu0 %v5792
        %5914 = vmatprep.subr.mxu0 %v5797
        %5915 = vmatpush1.msra.mxu0 %v5796
        %5916 = vmatprep.subr.mxu0 %v5801
        %5917 = vmatpush1.msra.mxu0 %v5800
        %5918 = vmatprep.subr.mxu0 %v5805
        %5919 = vmatpush1.msra.mxu0 %v5804
        %5920 = vmatprep.subr.mxu0 %v5809
        %5921 = vmatpush1.msra.mxu0 %v5808
        %5922 = vmatprep.subr.mxu0 %v5813
        %5923 = vmatpush1.msra.mxu0 %v5812
        %5924 = vmatprep.subr.mxu0 %v5817
        %5925 = vmatpush1.msra.mxu0 %v5816
        %5926 = vmatprep.subr.mxu0 %v5821
        %5927 = vmatpush1.msra.mxu0 %v5820
        %5928 = vmatprep.subr.mxu0 %v5825
        %5929 = vmatpush1.msra.mxu0 %v5824
        %5930 = vmatprep.subr.mxu0 %v5829
        %5931 = vmatpush1.msra.mxu0 %v5828
        %5932 = vmatprep.subr.mxu0 %v5833
        %5933 = vmatpush1.msra.mxu0 %v5832
        %5934 = vmatprep.subr.mxu0 %v5837
        %5935 = vmatpush1.msra.mxu0 %v5836
        %5936 = vmatprep.subr.mxu0 %v5841
        %5937 = vmatpush1.msra.mxu0 %v5840
        %5938 = vmatprep.subr.mxu0 %v5845
        %5939 = vmatpush1.msra.mxu0 %v5844
        %5940 = vmatprep.subr.mxu0 %v5849
        %5941 = vmatpush1.msra.mxu0 %v5848
        %5942 = vmatprep.subr.mxu0 %v5853
        %5943 = vmatpush1.msra.mxu0 %v5852
        %5944 = vmatprep.subr.mxu0 %v5857
        %5945 = vmatpush1.msra.mxu0 %v5856
        %5946 = vmatprep.subr.mxu0 %v5861
        %5947 = vmatpush1.msra.mxu0 %v5860
        %5948 = vmatprep.subr.mxu0 %v5865
        %5949 = vmatpush1.msra.mxu0 %v5864
        %5950 = vmatprep.subr.mxu0 0.0
        %5951 = vmatpush1.msra.mxu0 0.0
        %5952 = vmatprep.subr.mxu0 0.0
        %5953 = vmatpush1.msra.mxu0 0.0
        %5954 = vmatprep.subr.mxu0 0.0
        %5955 = vmatpush1.msra.mxu0 0.0
        %5956 = vmatprep.subr.mxu0 0.0
        %5957 = vmatpush1.msra.mxu0 0.0
        %5958 = vmatprep.subr.mxu0 0.0
        %5959 = vmatpush1.msra.mxu0 0.0
        %5960 = vmatprep.subr.mxu0 0.0
        %5961 = vmatpush1.msra.mxu0 0.0
        %5962 = vmatprep.subr.mxu0 0.0
        %5963 = vmatpush1.msra.mxu0 0.0
        %5964 = vmatprep.subr.mxu0 0.0
        %5965 = vmatpush1.msra.mxu0 0.0
        %5966 = vmatprep.mubr.f32.mxu0 %v5894
        %5967 = vmatmul.mubr.f32.gmra.mrb[0].mxu0 %v5878
        %v5968 = vpop.f32.mrb[0].mxu0
        %v5969 = vadd.f32 0.0, %v5968
        %v5970 = vpop.f32.mrb[0].mxu0
        %v5971 = vadd.f32 0.0, %v5970
        %5972 = vmatprep.mubr.f32.mxu0 %v5896
        %5973 = vmatmul.mubr.f32.gmra.mrb[0].mxu0 %v5883
        %v5974 = vpop.f32.mrb[0].mxu0
        %v5975 = vadd.f32 0.0, %v5974
        %v5976 = vpop.f32.mrb[0].mxu0
        %v5977 = vadd.f32 0.0, %v5976
        %5978 = vmatprep.mubr.f32.mxu0 %v5898
        %5979 = vmatmul.mubr.f32.gmra.mrb[0].mxu0 %v5887
        %v5980 = vpop.f32.mrb[0].mxu0
        %v5981 = vadd.f32 0.0, %v5980
        %v5982 = vpop.f32.mrb[0].mxu0
        %v5983 = vadd.f32 0.0, %v5982
        %5984 = vmatprep.mubr.f32.mxu0 %v5900
        %5985 = vmatmul.mubr.f32.gmra.mrb[0].mxu0 %v5886
        %v5986 = vpop.f32.mrb[0].mxu0
        %v5987 = vadd.f32 0.0, %v5986
        %v5988 = vpop.f32.mrb[0].mxu0
        %v5989 = vadd.f32 0.0, %v5988
        %5990 = vdwg.mxu0
        %5991 = vmatprep.subr.mxu0 %v5775
        %5992 = vmatpush1.msra.mxu0 %v5774
        %5993 = vmatprep.subr.mxu0 %v5779
        %5994 = vmatpush1.msra.mxu0 %v5778
        %5995 = vmatprep.subr.mxu0 %v5783
        %5996 = vmatpush1.msra.mxu0 %v5782
        %5997 = vmatprep.subr.mxu0 %v5787
        %5998 = vmatpush1.msra.mxu0 %v5786
        %5999 = vmatprep.subr.mxu0 %v5791
        %6000 = vmatpush1.msra.mxu0 %v5790
        %6001 = vmatprep.subr.mxu0 %v5795
        %6002 = vmatpush1.msra.mxu0 %v5794
        %6003 = vmatprep.subr.mxu0 %v5799
        %6004 = vmatpush1.msra.mxu0 %v5798
        %6005 = vmatprep.subr.mxu0 %v5803
        %6006 = vmatpush1.msra.mxu0 %v5802
        %6007 = vmatprep.subr.mxu0 %v5807
        %6008 = vmatpush1.msra.mxu0 %v5806
        %6009 = vmatprep.subr.mxu0 %v5811
        %6010 = vmatpush1.msra.mxu0 %v5810
        %6011 = vmatprep.subr.mxu0 %v5815
        %6012 = vmatpush1.msra.mxu0 %v5814
        %6013 = vmatprep.subr.mxu0 %v5819
        %6014 = vmatpush1.msra.mxu0 %v5818
        %6015 = vmatprep.subr.mxu0 %v5823
        %6016 = vmatpush1.msra.mxu0 %v5822
        %6017 = vmatprep.subr.mxu0 %v5827
        %6018 = vmatpush1.msra.mxu0 %v5826
        %6019 = vmatprep.subr.mxu0 %v5831
        %6020 = vmatpush1.msra.mxu0 %v5830
        %6021 = vmatprep.subr.mxu0 %v5835
        %6022 = vmatpush1.msra.mxu0 %v5834
        %6023 = vmatprep.subr.mxu0 %v5839
        %6024 = vmatpush1.msra.mxu0 %v5838
        %6025 = vmatprep.subr.mxu0 %v5843
        %6026 = vmatpush1.msra.mxu0 %v5842
        %6027 = vmatprep.subr.mxu0 %v5847
        %6028 = vmatpush1.msra.mxu0 %v5846
        %6029 = vmatprep.subr.mxu0 %v5851
        %6030 = vmatpush1.msra.mxu0 %v5850
        %6031 = vmatprep.subr.mxu0 %v5855
        %6032 = vmatpush1.msra.mxu0 %v5854
        %6033 = vmatprep.subr.mxu0 %v5859
        %6034 = vmatpush1.msra.mxu0 %v5858
        %6035 = vmatprep.subr.mxu0 %v5863
        %6036 = vmatpush1.msra.mxu0 %v5862
        %6037 = vmatprep.subr.mxu0 %v5867
        %6038 = vmatpush1.msra.mxu0 %v5866
        %6039 = vmatprep.subr.mxu0 0.0
        %6040 = vmatpush1.msra.mxu0 0.0
        %6041 = vmatprep.subr.mxu0 0.0
        %6042 = vmatpush1.msra.mxu0 0.0
        %6043 = vmatprep.subr.mxu0 0.0
        %6044 = vmatpush1.msra.mxu0 0.0
        %6045 = vmatprep.subr.mxu0 0.0
        %6046 = vmatpush1.msra.mxu0 0.0
        %6047 = vmatprep.subr.mxu0 0.0
        %6048 = vmatpush1.msra.mxu0 0.0
        %6049 = vmatprep.subr.mxu0 0.0
        %6050 = vmatpush1.msra.mxu0 0.0
        %6051 = vmatprep.subr.mxu0 0.0
        %6052 = vmatpush1.msra.mxu0 0.0
        %6053 = vmatprep.subr.mxu0 0.0
        %6054 = vmatpush1.msra.mxu0 0.0
        %6055 = vmatprep.mubr.f32.mxu0 %v5894
        %6056 = vmatmul.mubr.f32.gmra.mrb[0].mxu0 %v5878
        %v6057 = vpop.f32.mrb[0].mxu0
        %v6058 = vadd.f32 0.0, %v6057
        %v6059 = vpop.f32.mrb[0].mxu0
        %v6060 = vadd.f32 0.0, %v6059
        %6061 = vmatprep.mubr.f32.mxu0 %v5896
        %6062 = vmatmul.mubr.f32.gmra.mrb[0].mxu0 %v5883
        %v6063 = vpop.f32.mrb[0].mxu0
        %v6064 = vadd.f32 0.0, %v6063
        %v6065 = vpop.f32.mrb[0].mxu0
        %v6066 = vadd.f32 0.0, %v6065
        %6067 = vmatprep.mubr.f32.mxu0 %v5898
        %6068 = vmatmul.mubr.f32.gmra.mrb[0].mxu0 %v5887
        %v6069 = vpop.f32.mrb[0].mxu0
        %v6070 = vadd.f32 0.0, %v6069
        %v6071 = vpop.f32.mrb[0].mxu0
        %v6072 = vadd.f32 0.0, %v6071
        %6073 = vmatprep.mubr.f32.mxu0 %v5900
        %6074 = vmatmul.mubr.f32.gmra.mrb[0].mxu0 %v5886
        %v6075 = vpop.f32.mrb[0].mxu0
        %v6076 = vadd.f32 0.0, %v6075
        %v6077 = vpop.f32.mrb[0].mxu0
        %v6078 = vadd.f32 0.0, %v6077
        %6079 = vdwg.mxu0
        %v6080 = vsel %vm517, %v5655, 0
        %v6082 = vsel %vm517, %v5661, 0
        %v6084 = vsel %vm517, %v5667, 0
        %v6086 = vsel %vm517, %v5673, 0
        %6088 = vmatprep.subr.mxu0 %v5676
        %6089 = vmatpush1.msra.mxu0 %v5675
        %6090 = vmatprep.subr.mxu0 %v5680
        %6091 = vmatpush1.msra.mxu0 %v5679
        %6092 = vmatprep.subr.mxu0 %v5684
        %6093 = vmatpush1.msra.mxu0 %v5683
        %6094 = vmatprep.subr.mxu0 %v5688
        %6095 = vmatpush1.msra.mxu0 %v5687
        %6096 = vmatprep.subr.mxu0 %v5692
        %6097 = vmatpush1.msra.mxu0 %v5691
        %6098 = vmatprep.subr.mxu0 %v5696
        %6099 = vmatpush1.msra.mxu0 %v5695
        %6100 = vmatprep.subr.mxu0 %v5700
        %6101 = vmatpush1.msra.mxu0 %v5699
        %6102 = vmatprep.subr.mxu0 %v5704
        %6103 = vmatpush1.msra.mxu0 %v5703
        %6104 = vmatprep.subr.mxu0 %v5708
        %6105 = vmatpush1.msra.mxu0 %v5707
        %6106 = vmatprep.subr.mxu0 %v5712
        %6107 = vmatpush1.msra.mxu0 %v5711
        %6108 = vmatprep.subr.mxu0 %v5716
        %6109 = vmatpush1.msra.mxu0 %v5715
        %6110 = vmatprep.subr.mxu0 %v5720
        %6111 = vmatpush1.msra.mxu0 %v5719
        %6112 = vmatprep.subr.mxu0 %v5724
        %6113 = vmatpush1.msra.mxu0 %v5723
        %6114 = vmatprep.subr.mxu0 %v5728
        %6115 = vmatpush1.msra.mxu0 %v5727
        %6116 = vmatprep.subr.mxu0 %v5732
        %6117 = vmatpush1.msra.mxu0 %v5731
        %6118 = vmatprep.subr.mxu0 %v5736
        %6119 = vmatpush1.msra.mxu0 %v5735
        %6120 = vmatprep.subr.mxu0 %v5740
        %6121 = vmatpush1.msra.mxu0 %v5739
        %6122 = vmatprep.subr.mxu0 %v5744
        %6123 = vmatpush1.msra.mxu0 %v5743
        %6124 = vmatprep.subr.mxu0 %v5748
        %6125 = vmatpush1.msra.mxu0 %v5747
        %6126 = vmatprep.subr.mxu0 %v5752
        %6127 = vmatpush1.msra.mxu0 %v5751
        %6128 = vmatprep.subr.mxu0 %v5756
        %6129 = vmatpush1.msra.mxu0 %v5755
        %6130 = vmatprep.subr.mxu0 %v5760
        %6131 = vmatpush1.msra.mxu0 %v5759
        %6132 = vmatprep.subr.mxu0 %v5764
        %6133 = vmatpush1.msra.mxu0 %v5763
        %6134 = vmatprep.subr.mxu0 %v5768
        %6135 = vmatpush1.msra.mxu0 %v5767
        %6136 = vmatprep.subr.mxu0 0.0
        %6137 = vmatpush1.msra.mxu0 0.0
        %6138 = vmatprep.subr.mxu0 0.0
        %6139 = vmatpush1.msra.mxu0 0.0
        %6140 = vmatprep.subr.mxu0 0.0
        %6141 = vmatpush1.msra.mxu0 0.0
        %6142 = vmatprep.subr.mxu0 0.0
        %6143 = vmatpush1.msra.mxu0 0.0
        %6144 = vmatprep.subr.mxu0 0.0
        %6145 = vmatpush1.msra.mxu0 0.0
        %6146 = vmatprep.subr.mxu0 0.0
        %6147 = vmatpush1.msra.mxu0 0.0
        %6148 = vmatprep.subr.mxu0 0.0
        %6149 = vmatpush1.msra.mxu0 0.0
        %6150 = vmatprep.subr.mxu0 0.0
        %6151 = vmatpush1.msra.mxu0 0.0
        %6152 = vmatprep.mubr.f32.mxu0 %v6080
        %6153 = vmatmul.mubr.f32.gmra.mrb[0].mxu0 %v5653
        %v6154 = vpop.f32.mrb[0].mxu0
        %v6155 = vadd.f32 %v5969, %v6154
        %v6156 = vpop.f32.mrb[0].mxu0
        %v6157 = vadd.f32 %v5971, %v6156
        %6158 = vmatprep.mubr.f32.mxu0 %v6082
        %6159 = vmatmul.mubr.f32.gmra.mrb[0].mxu0 %v5659
        %v6160 = vpop.f32.mrb[0].mxu0
        %v6161 = vadd.f32 %v5975, %v6160
        %v6162 = vpop.f32.mrb[0].mxu0
        %v6163 = vadd.f32 %v5977, %v6162
        %6164 = vmatprep.mubr.f32.mxu0 %v6084
        %6165 = vmatmul.mubr.f32.gmra.mrb[0].mxu0 %v5665
        %v6166 = vpop.f32.mrb[0].mxu0
        %v6167 = vadd.f32 %v5981, %v6166
        %v6168 = vpop.f32.mrb[0].mxu0
        %v6169 = vadd.f32 %v5983, %v6168
        %6170 = vmatprep.mubr.f32.mxu0 %v6086
        %6171 = vmatmul.mubr.f32.gmra.mrb[0].mxu0 %v5671
        %v6172 = vpop.f32.mrb[0].mxu0
        %v6173 = vadd.f32 %v5987, %v6172
        %v6174 = vpop.f32.mrb[0].mxu0
        %v6175 = vadd.f32 %v5989, %v6174
        %6176 = vdwg.mxu0
        %6177 = vmatprep.subr.mxu0 %v5678
        %6178 = vmatpush1.msra.mxu0 %v5677
        %6179 = vmatprep.subr.mxu0 %v5682
        %6180 = vmatpush1.msra.mxu0 %v5681
        %6181 = vmatprep.subr.mxu0 %v5686
        %6182 = vmatpush1.msra.mxu0 %v5685
        %6183 = vmatprep.subr.mxu0 %v5690
        %6184 = vmatpush1.msra.mxu0 %v5689
        %6185 = vmatprep.subr.mxu0 %v5694
        %6186 = vmatpush1.msra.mxu0 %v5693
        %6187 = vmatprep.subr.mxu0 %v5698
        %6188 = vmatpush1.msra.mxu0 %v5697
        %6189 = vmatprep.subr.mxu0 %v5702
        %6190 = vmatpush1.msra.mxu0 %v5701
        %6191 = vmatprep.subr.mxu0 %v5706
        %6192 = vmatpush1.msra.mxu0 %v5705
        %6193 = vmatprep.subr.mxu0 %v5710
        %6194 = vmatpush1.msra.mxu0 %v5709
        %6195 = vmatprep.subr.mxu0 %v5714
        %6196 = vmatpush1.msra.mxu0 %v5713
        %6197 = vmatprep.subr.mxu0 %v5718
        %6198 = vmatpush1.msra.mxu0 %v5717
        %6199 = vmatprep.subr.mxu0 %v5722
        %6200 = vmatpush1.msra.mxu0 %v5721
        %6201 = vmatprep.subr.mxu0 %v5726
        %6202 = vmatpush1.msra.mxu0 %v5725
        %6203 = vmatprep.subr.mxu0 %v5730
        %6204 = vmatpush1.msra.mxu0 %v5729
        %6205 = vmatprep.subr.mxu0 %v5734
        %6206 = vmatpush1.msra.mxu0 %v5733
        %6207 = vmatprep.subr.mxu0 %v5738
        %6208 = vmatpush1.msra.mxu0 %v5737
        %6209 = vmatprep.subr.mxu0 %v5742
        %6210 = vmatpush1.msra.mxu0 %v5741
        %6211 = vmatprep.subr.mxu0 %v5746
        %6212 = vmatpush1.msra.mxu0 %v5745
        %6213 = vmatprep.subr.mxu0 %v5750
        %6214 = vmatpush1.msra.mxu0 %v5749
        %6215 = vmatprep.subr.mxu0 %v5754
        %6216 = vmatpush1.msra.mxu0 %v5753
        %6217 = vmatprep.subr.mxu0 %v5758
        %6218 = vmatpush1.msra.mxu0 %v5757
        %6219 = vmatprep.subr.mxu0 %v5762
        %6220 = vmatpush1.msra.mxu0 %v5761
        %6221 = vmatprep.subr.mxu0 %v5766
        %6222 = vmatpush1.msra.mxu0 %v5765
        %6223 = vmatprep.subr.mxu0 %v5770
        %6224 = vmatpush1.msra.mxu0 %v5769
        %6225 = vmatprep.subr.mxu0 0.0
        %6226 = vmatpush1.msra.mxu0 0.0
        %6227 = vmatprep.subr.mxu0 0.0
        %6228 = vmatpush1.msra.mxu0 0.0
        %6229 = vmatprep.subr.mxu0 0.0
        %6230 = vmatpush1.msra.mxu0 0.0
        %6231 = vmatprep.subr.mxu0 0.0
        %6232 = vmatpush1.msra.mxu0 0.0
        %6233 = vmatprep.subr.mxu0 0.0
        %6234 = vmatpush1.msra.mxu0 0.0
        %6235 = vmatprep.subr.mxu0 0.0
        %6236 = vmatpush1.msra.mxu0 0.0
        %6237 = vmatprep.subr.mxu0 0.0
        %6238 = vmatpush1.msra.mxu0 0.0
        %6239 = vmatprep.subr.mxu0 0.0
        %6240 = vmatpush1.msra.mxu0 0.0
        %6241 = vmatprep.mubr.f32.mxu0 %v6080
        %6242 = vmatmul.mubr.f32.gmra.mrb[0].mxu0 %v5653
        %v6243 = vpop.f32.mrb[0].mxu0
        %v6244 = vadd.f32 %v6058, %v6243
        %v6245 = vpop.f32.mrb[0].mxu0
        %v6246 = vadd.f32 %v6060, %v6245
        %6247 = vmatprep.mubr.f32.mxu0 %v6082
        %6248 = vmatmul.mubr.f32.gmra.mrb[0].mxu0 %v5659
        %v6249 = vpop.f32.mrb[0].mxu0
        %v6250 = vadd.f32 %v6064, %v6249
        %v6251 = vpop.f32.mrb[0].mxu0
        %v6252 = vadd.f32 %v6066, %v6251
        %6253 = vmatprep.mubr.f32.mxu0 %v6084
        %6254 = vmatmul.mubr.f32.gmra.mrb[0].mxu0 %v5665
        %v6255 = vpop.f32.mrb[0].mxu0
        %v6256 = vadd.f32 %v6070, %v6255
        %v6257 = vpop.f32.mrb[0].mxu0
        %v6258 = vadd.f32 %v6072, %v6257
        %6259 = vmatprep.mubr.f32.mxu0 %v6086
        %6260 = vmatmul.mubr.f32.gmra.mrb[0].mxu0 %v5671
        %v6261 = vpop.f32.mrb[0].mxu0
        %v6262 = vadd.f32 %v6076, %v6261
        %v6263 = vpop.f32.mrb[0].mxu0
        %v6264 = vadd.f32 %v6078, %v6263
        %6265 = vdwg.mxu0
        %s6266 = scalar_lea.vmem [#allocation7], 1536
        %v6267 = vld [vmem:[%s6266] sm:$0xff]
        %v6268 = vld [vmem:[%s6266 + $0x8] sm:$0xff]
        %v6269 = vld [vmem:[%s6266 + $0x10] sm:$0xff]
        %v6270 = vld [vmem:[%s6266 + $0x18] sm:$0xff]
        %v6271 = vld [vmem:[%s6266 + $0x20] sm:$0xff]
        %v6272 = vld [vmem:[%s6266 + $0x28] sm:$0xff]
        %v6273 = vld [vmem:[%s6266 + $0x30] sm:$0xff]
        %v6274 = vld [vmem:[%s6266 + $0x38] sm:$0xff]
        %v6275 = vld [vmem:[%s6266 + $0x40] sm:$0xff]
        %v6276 = vld [vmem:[%s6266 + $0x48] sm:$0xff]
        %v6277 = vld [vmem:[%s6266 + $0x50] sm:$0xff]
        %v6278 = vld [vmem:[%s6266 + $0x58] sm:$0xff]
        %v6279 = vld [vmem:[%s6266 + $0x60] sm:$0xff]
        %v6280 = vld [vmem:[%s6266 + $0x68] sm:$0xff]
        %v6281 = vld [vmem:[%s6266 + $0x70] sm:$0xff]
        %v6282 = vld [vmem:[%s6266 + $0x78] sm:$0xff]
        %v6283 = vld [vmem:[%s6266 + $0x80] sm:$0xff]
        %v6284 = vld [vmem:[%s6266 + $0x88] sm:$0xff]
        %v6285 = vld [vmem:[%s6266 + $0x90] sm:$0xff]
        %v6286 = vld [vmem:[%s6266 + $0x98] sm:$0xff]
        %v6287 = vld [vmem:[%s6266 + $0xa0] sm:$0xff]
        %v6288 = vld [vmem:[%s6266 + $0xa8] sm:$0xff]
        %v6289 = vld [vmem:[%s6266 + $0xb0] sm:$0xff]
        %v6290 = vld [vmem:[%s6266 + $0xb8] sm:$0xff]
        %v6291 = vld [vmem:[%s6266 + $0xc0] sm:$0xff]
        %v6292 = vld [vmem:[%s6266 + $0xc8] sm:$0xff]
        %v6293 = vld [vmem:[%s6266 + $0xd0] sm:$0xff]
        %v6294 = vld [vmem:[%s6266 + $0xd8] sm:$0xff]
        %v6295 = vld [vmem:[%s6266 + $0xe0] sm:$0xff]
        %v6296 = vld [vmem:[%s6266 + $0xe8] sm:$0xff]
        %v6297 = vld [vmem:[%s6266 + $0xf0] sm:$0xff]
        %v6298 = vld [vmem:[%s6266 + $0xf8] sm:$0xff]
        %v6299 = vld [vmem:[%s6266 + $0x100] sm:$0xff]
        %v6300 = vld [vmem:[%s6266 + $0x108] sm:$0xff]
        %v6301 = vld [vmem:[%s6266 + $0x110] sm:$0xff]
        %v6302 = vld [vmem:[%s6266 + $0x118] sm:$0xff]
        %v6303 = vld [vmem:[%s6266 + $0x120] sm:$0xff]
        %v6304 = vld [vmem:[%s6266 + $0x128] sm:$0xff]
        %v6305 = vld [vmem:[%s6266 + $0x130] sm:$0xff]
        %v6306 = vld [vmem:[%s6266 + $0x138] sm:$0xff]
        %v6307 = vld [vmem:[%s6266 + $0x140] sm:$0xff]
        %v6308 = vld [vmem:[%s6266 + $0x148] sm:$0xff]
        %v6309 = vld [vmem:[%s6266 + $0x150] sm:$0xff]
        %v6310 = vld [vmem:[%s6266 + $0x158] sm:$0xff]
        %v6311 = vld [vmem:[%s6266 + $0x160] sm:$0xff]
        %v6312 = vld [vmem:[%s6266 + $0x168] sm:$0xff]
        %v6313 = vld [vmem:[%s6266 + $0x170] sm:$0xff]
        %v6314 = vld [vmem:[%s6266 + $0x178] sm:$0xff]
        %v6315 = vld [vmem:[%s6266 + $0x180] sm:$0xff]
        %v6316 = vld [vmem:[%s6266 + $0x188] sm:$0xff]
        %v6317 = vld [vmem:[%s6266 + $0x190] sm:$0xff]
        %v6318 = vld [vmem:[%s6266 + $0x198] sm:$0xff]
        %v6319 = vld [vmem:[%s6266 + $0x1a0] sm:$0xff]
        %v6320 = vld [vmem:[%s6266 + $0x1a8] sm:$0xff]
        %v6321 = vld [vmem:[%s6266 + $0x1b0] sm:$0xff]
        %v6322 = vld [vmem:[%s6266 + $0x1b8] sm:$0xff]
        %v6323 = vld [vmem:[%s6266 + $0x1c0] sm:$0xff]
        %v6324 = vld [vmem:[%s6266 + $0x1c8] sm:$0xff]
        %v6325 = vld [vmem:[%s6266 + $0x1d0] sm:$0xff]
        %v6326 = vld [vmem:[%s6266 + $0x1d8] sm:$0xff]
        %v6327 = vld [vmem:[%s6266 + $0x1e0] sm:$0xff]
        %v6328 = vld [vmem:[%s6266 + $0x1e8] sm:$0xff]
        %v6329 = vld [vmem:[%s6266 + $0x1f0] sm:$0xff]
        %v6330 = vld [vmem:[%s6266 + $0x1f8] sm:$0xff]
        %v6331 = vld [vmem:[%s6266 + $0x200] sm:$0xff]
        %v6332 = vld [vmem:[%s6266 + $0x208] sm:$0xff]
        %v6333 = vld [vmem:[%s6266 + $0x210] sm:$0xff]
        %v6334 = vld [vmem:[%s6266 + $0x218] sm:$0xff]
        %v6335 = vld [vmem:[%s6266 + $0x220] sm:$0xff]
        %v6336 = vld [vmem:[%s6266 + $0x228] sm:$0xff]
        %v6337 = vld [vmem:[%s6266 + $0x230] sm:$0xff]
        %v6338 = vld [vmem:[%s6266 + $0x238] sm:$0xff]
        %v6339 = vld [vmem:[%s6266 + $0x240] sm:$0xff]
        %v6340 = vld [vmem:[%s6266 + $0x248] sm:$0xff]
        %v6341 = vld [vmem:[%s6266 + $0x250] sm:$0xff]
        %v6342 = vld [vmem:[%s6266 + $0x258] sm:$0xff]
        %v6343 = vld [vmem:[%s6266 + $0x260] sm:$0xff]
        %v6344 = vld [vmem:[%s6266 + $0x268] sm:$0xff]
        %v6345 = vld [vmem:[%s6266 + $0x270] sm:$0xff]
        %v6346 = vld [vmem:[%s6266 + $0x278] sm:$0xff]
        %v6347 = vld [vmem:[%s6266 + $0x280] sm:$0xff]
        %v6348 = vld [vmem:[%s6266 + $0x288] sm:$0xff]
        %v6349 = vld [vmem:[%s6266 + $0x290] sm:$0xff]
        %v6350 = vld [vmem:[%s6266 + $0x298] sm:$0xff]
        %v6351 = vld [vmem:[%s6266 + $0x2a0] sm:$0xff]
        %v6352 = vld [vmem:[%s6266 + $0x2a8] sm:$0xff]
        %v6353 = vld [vmem:[%s6266 + $0x2b0] sm:$0xff]
        %v6354 = vld [vmem:[%s6266 + $0x2b8] sm:$0xff]
        %v6355 = vld [vmem:[%s6266 + $0x2c0] sm:$0xff]
        %v6356 = vld [vmem:[%s6266 + $0x2c8] sm:$0xff]
        %v6357 = vld [vmem:[%s6266 + $0x2d0] sm:$0xff]
        %v6358 = vld [vmem:[%s6266 + $0x2d8] sm:$0xff]
        %v6359 = vld [vmem:[%s6266 + $0x2e0] sm:$0xff]
        %v6360 = vld [vmem:[%s6266 + $0x2e8] sm:$0xff]
        %v6361 = vld [vmem:[%s6266 + $0x2f0] sm:$0xff]
        %v6362 = vld [vmem:[%s6266 + $0x2f8] sm:$0xff]
        %vm6363 = vcmask 1045504
        %v6364 = vrot.slane %v5653, 2
        %v6365 = vrot.slane %v5659, 2
        %v6366 = vsel %vm6363, %v6364, %v6365
        %v6367 = vrot.slane %v5655, 2
        %v6368 = vrot.slane %v5661, 2
        %v6369 = vsel %vm6363, %v6367, %v6368
        %v6370 = vrot.slane %v5665, 2
        %v6371 = vsel %vm6363, %v6365, %v6370
        %v6372 = vrot.slane %v5667, 2
        %v6373 = vsel %vm6363, %v6368, %v6372
        %v6374 = vrot.slane %v5671, 2
        %v6375 = vsel %vm6363, %v6370, %v6374
        %v6376 = vrot.slane %v5673, 2
        %v6377 = vsel %vm6363, %v6372, %v6376
        %v6382 = vsel %vm517, %v6369, 0
        %v6384 = vsel %vm517, %v6373, 0
        %v6386 = vsel %vm517, %v6377, 0
        %v6388 = vsel %vm517, %v6376, 0
        %6390 = vmatprep.subr.mxu0 %v6268
        %6391 = vmatpush1.msra.mxu0 %v6267
        %6392 = vmatprep.subr.mxu0 %v6272
        %6393 = vmatpush1.msra.mxu0 %v6271
        %6394 = vmatprep.subr.mxu0 %v6276
        %6395 = vmatpush1.msra.mxu0 %v6275
        %6396 = vmatprep.subr.mxu0 %v6280
        %6397 = vmatpush1.msra.mxu0 %v6279
        %6398 = vmatprep.subr.mxu0 %v6284
        %6399 = vmatpush1.msra.mxu0 %v6283
        %6400 = vmatprep.subr.mxu0 %v6288
        %6401 = vmatpush1.msra.mxu0 %v6287
        %6402 = vmatprep.subr.mxu0 %v6292
        %6403 = vmatpush1.msra.mxu0 %v6291
        %6404 = vmatprep.subr.mxu0 %v6296
        %6405 = vmatpush1.msra.mxu0 %v6295
        %6406 = vmatprep.subr.mxu0 %v6300
        %6407 = vmatpush1.msra.mxu0 %v6299
        %6408 = vmatprep.subr.mxu0 %v6304
        %6409 = vmatpush1.msra.mxu0 %v6303
        %6410 = vmatprep.subr.mxu0 %v6308
        %6411 = vmatpush1.msra.mxu0 %v6307
        %6412 = vmatprep.subr.mxu0 %v6312
        %6413 = vmatpush1.msra.mxu0 %v6311
        %6414 = vmatprep.subr.mxu0 %v6316
        %6415 = vmatpush1.msra.mxu0 %v6315
        %6416 = vmatprep.subr.mxu0 %v6320
        %6417 = vmatpush1.msra.mxu0 %v6319
        %6418 = vmatprep.subr.mxu0 %v6324
        %6419 = vmatpush1.msra.mxu0 %v6323
        %6420 = vmatprep.subr.mxu0 %v6328
        %6421 = vmatpush1.msra.mxu0 %v6327
        %6422 = vmatprep.subr.mxu0 %v6332
        %6423 = vmatpush1.msra.mxu0 %v6331
        %6424 = vmatprep.subr.mxu0 %v6336
        %6425 = vmatpush1.msra.mxu0 %v6335
        %6426 = vmatprep.subr.mxu0 %v6340
        %6427 = vmatpush1.msra.mxu0 %v6339
        %6428 = vmatprep.subr.mxu0 %v6344
        %6429 = vmatpush1.msra.mxu0 %v6343
        %6430 = vmatprep.subr.mxu0 %v6348
        %6431 = vmatpush1.msra.mxu0 %v6347
        %6432 = vmatprep.subr.mxu0 %v6352
        %6433 = vmatpush1.msra.mxu0 %v6351
        %6434 = vmatprep.subr.mxu0 %v6356
        %6435 = vmatpush1.msra.mxu0 %v6355
        %6436 = vmatprep.subr.mxu0 %v6360
        %6437 = vmatpush1.msra.mxu0 %v6359
        %6438 = vmatprep.subr.mxu0 0.0
        %6439 = vmatpush1.msra.mxu0 0.0
        %6440 = vmatprep.subr.mxu0 0.0
        %6441 = vmatpush1.msra.mxu0 0.0
        %6442 = vmatprep.subr.mxu0 0.0
        %6443 = vmatpush1.msra.mxu0 0.0
        %6444 = vmatprep.subr.mxu0 0.0
        %6445 = vmatpush1.msra.mxu0 0.0
        %6446 = vmatprep.subr.mxu0 0.0
        %6447 = vmatpush1.msra.mxu0 0.0
        %6448 = vmatprep.subr.mxu0 0.0
        %6449 = vmatpush1.msra.mxu0 0.0
        %6450 = vmatprep.subr.mxu0 0.0
        %6451 = vmatpush1.msra.mxu0 0.0
        %6452 = vmatprep.subr.mxu0 0.0
        %6453 = vmatpush1.msra.mxu0 0.0
        %6454 = vmatprep.mubr.f32.mxu0 %v6382
        %6455 = vmatmul.mubr.f32.gmra.mrb[0].mxu0 %v6366
        %v6456 = vpop.f32.mrb[0].mxu0
        %v6457 = vadd.f32 0.0, %v6456
        %v6458 = vpop.f32.mrb[0].mxu0
        %v6459 = vadd.f32 0.0, %v6458
        %6460 = vmatprep.mubr.f32.mxu0 %v6384
        %6461 = vmatmul.mubr.f32.gmra.mrb[0].mxu0 %v6371
        %v6462 = vpop.f32.mrb[0].mxu0
        %v6463 = vadd.f32 0.0, %v6462
        %v6464 = vpop.f32.mrb[0].mxu0
        %v6465 = vadd.f32 0.0, %v6464
        %6466 = vmatprep.mubr.f32.mxu0 %v6386
        %6467 = vmatmul.mubr.f32.gmra.mrb[0].mxu0 %v6375
        %v6468 = vpop.f32.mrb[0].mxu0
        %v6469 = vadd.f32 0.0, %v6468
        %v6470 = vpop.f32.mrb[0].mxu0
        %v6471 = vadd.f32 0.0, %v6470
        %6472 = vmatprep.mubr.f32.mxu0 %v6388
        %6473 = vmatmul.mubr.f32.gmra.mrb[0].mxu0 %v6374
        %v6474 = vpop.f32.mrb[0].mxu0
        %v6475 = vadd.f32 0.0, %v6474
        %v6476 = vpop.f32.mrb[0].mxu0
        %v6477 = vadd.f32 0.0, %v6476
        %6478 = vdwg.mxu0
        %6479 = vmatprep.subr.mxu0 %v6270
        %6480 = vmatpush1.msra.mxu0 %v6269
        %6481 = vmatprep.subr.mxu0 %v6274
        %6482 = vmatpush1.msra.mxu0 %v6273
        %6483 = vmatprep.subr.mxu0 %v6278
        %6484 = vmatpush1.msra.mxu0 %v6277
        %6485 = vmatprep.subr.mxu0 %v6282
        %6486 = vmatpush1.msra.mxu0 %v6281
        %6487 = vmatprep.subr.mxu0 %v6286
        %6488 = vmatpush1.msra.mxu0 %v6285
        %6489 = vmatprep.subr.mxu0 %v6290
        %6490 = vmatpush1.msra.mxu0 %v6289
        %6491 = vmatprep.subr.mxu0 %v6294
        %6492 = vmatpush1.msra.mxu0 %v6293
        %6493 = vmatprep.subr.mxu0 %v6298
        %6494 = vmatpush1.msra.mxu0 %v6297
        %6495 = vmatprep.subr.mxu0 %v6302
        %6496 = vmatpush1.msra.mxu0 %v6301
        %6497 = vmatprep.subr.mxu0 %v6306
        %6498 = vmatpush1.msra.mxu0 %v6305
        %6499 = vmatprep.subr.mxu0 %v6310
        %6500 = vmatpush1.msra.mxu0 %v6309
        %6501 = vmatprep.subr.mxu0 %v6314
        %6502 = vmatpush1.msra.mxu0 %v6313
        %6503 = vmatprep.subr.mxu0 %v6318
        %6504 = vmatpush1.msra.mxu0 %v6317
        %6505 = vmatprep.subr.mxu0 %v6322
        %6506 = vmatpush1.msra.mxu0 %v6321
        %6507 = vmatprep.subr.mxu0 %v6326
        %6508 = vmatpush1.msra.mxu0 %v6325
        %6509 = vmatprep.subr.mxu0 %v6330
        %6510 = vmatpush1.msra.mxu0 %v6329
        %6511 = vmatprep.subr.mxu0 %v6334
        %6512 = vmatpush1.msra.mxu0 %v6333
        %6513 = vmatprep.subr.mxu0 %v6338
        %6514 = vmatpush1.msra.mxu0 %v6337
        %6515 = vmatprep.subr.mxu0 %v6342
        %6516 = vmatpush1.msra.mxu0 %v6341
        %6517 = vmatprep.subr.mxu0 %v6346
        %6518 = vmatpush1.msra.mxu0 %v6345
        %6519 = vmatprep.subr.mxu0 %v6350
        %6520 = vmatpush1.msra.mxu0 %v6349
        %6521 = vmatprep.subr.mxu0 %v6354
        %6522 = vmatpush1.msra.mxu0 %v6353
        %6523 = vmatprep.subr.mxu0 %v6358
        %6524 = vmatpush1.msra.mxu0 %v6357
        %6525 = vmatprep.subr.mxu0 %v6362
        %6526 = vmatpush1.msra.mxu0 %v6361
        %6527 = vmatprep.subr.mxu0 0.0
        %6528 = vmatpush1.msra.mxu0 0.0
        %6529 = vmatprep.subr.mxu0 0.0
        %6530 = vmatpush1.msra.mxu0 0.0
        %6531 = vmatprep.subr.mxu0 0.0
        %6532 = vmatpush1.msra.mxu0 0.0
        %6533 = vmatprep.subr.mxu0 0.0
        %6534 = vmatpush1.msra.mxu0 0.0
        %6535 = vmatprep.subr.mxu0 0.0
        %6536 = vmatpush1.msra.mxu0 0.0
        %6537 = vmatprep.subr.mxu0 0.0
        %6538 = vmatpush1.msra.mxu0 0.0
        %6539 = vmatprep.subr.mxu0 0.0
        %6540 = vmatpush1.msra.mxu0 0.0
        %6541 = vmatprep.subr.mxu0 0.0
        %6542 = vmatpush1.msra.mxu0 0.0
        %6543 = vmatprep.mubr.f32.mxu0 %v6382
        %6544 = vmatmul.mubr.f32.gmra.mrb[0].mxu0 %v6366
        %v6545 = vpop.f32.mrb[0].mxu0
        %v6546 = vadd.f32 0.0, %v6545
        %v6547 = vpop.f32.mrb[0].mxu0
        %v6548 = vadd.f32 0.0, %v6547
        %6549 = vmatprep.mubr.f32.mxu0 %v6384
        %6550 = vmatmul.mubr.f32.gmra.mrb[0].mxu0 %v6371
        %v6551 = vpop.f32.mrb[0].mxu0
        %v6552 = vadd.f32 0.0, %v6551
        %v6553 = vpop.f32.mrb[0].mxu0
        %v6554 = vadd.f32 0.0, %v6553
        %6555 = vmatprep.mubr.f32.mxu0 %v6386
        %6556 = vmatmul.mubr.f32.gmra.mrb[0].mxu0 %v6375
        %v6557 = vpop.f32.mrb[0].mxu0
        %v6558 = vadd.f32 0.0, %v6557
        %v6559 = vpop.f32.mrb[0].mxu0
        %v6560 = vadd.f32 0.0, %v6559
        %6561 = vmatprep.mubr.f32.mxu0 %v6388
        %6562 = vmatmul.mubr.f32.gmra.mrb[0].mxu0 %v6374
        %v6563 = vpop.f32.mrb[0].mxu0
        %v6564 = vadd.f32 0.0, %v6563
        %v6565 = vpop.f32.mrb[0].mxu0
        %v6566 = vadd.f32 0.0, %v6565
        %6567 = vdwg.mxu0
        %v6568 = vadd.f32 %v6155, %v6457
        %v6569 = vadd.f32 %v6157, %v6459
        %v6570 = vadd.f32 %v6244, %v6546
        %v6571 = vadd.f32 %v6246, %v6548
        %v6572 = vadd.f32 %v6161, %v6463
        %v6573 = vadd.f32 %v6163, %v6465
        %v6574 = vadd.f32 %v6250, %v6552
        %v6575 = vadd.f32 %v6252, %v6554
        %v6576 = vadd.f32 %v6167, %v6469
        %v6577 = vadd.f32 %v6169, %v6471
        %v6578 = vadd.f32 %v6256, %v6558
        %v6579 = vadd.f32 %v6258, %v6560
        %v6580 = vadd.f32 %v6173, %v6475
        %v6581 = vadd.f32 %v6175, %v6477
        %v6582 = vadd.f32 %v6262, %v6564
        %v6583 = vadd.f32 %v6264, %v6566
        %s6584 = scalar_lea.vmem [#allocation7], 2304
        %v6585 = vld [vmem:[%s6584] sm:$0xff]
        %v6586 = vld [vmem:[%s6584 + $0x8] sm:$0xff]
        %v6587 = vld [vmem:[%s6584 + $0x10] sm:$0xff]
        %v6588 = vld [vmem:[%s6584 + $0x18] sm:$0xff]
        %v6589 = vld [vmem:[%s6584 + $0x20] sm:$0xff]
        %v6590 = vld [vmem:[%s6584 + $0x28] sm:$0xff]
        %v6591 = vld [vmem:[%s6584 + $0x30] sm:$0xff]
        %v6592 = vld [vmem:[%s6584 + $0x38] sm:$0xff]
        %v6593 = vld [vmem:[%s6584 + $0x40] sm:$0xff]
        %v6594 = vld [vmem:[%s6584 + $0x48] sm:$0xff]
        %v6595 = vld [vmem:[%s6584 + $0x50] sm:$0xff]
        %v6596 = vld [vmem:[%s6584 + $0x58] sm:$0xff]
        %v6597 = vld [vmem:[%s6584 + $0x60] sm:$0xff]
        %v6598 = vld [vmem:[%s6584 + $0x68] sm:$0xff]
        %v6599 = vld [vmem:[%s6584 + $0x70] sm:$0xff]
        %v6600 = vld [vmem:[%s6584 + $0x78] sm:$0xff]
        %v6601 = vld [vmem:[%s6584 + $0x80] sm:$0xff]
        %v6602 = vld [vmem:[%s6584 + $0x88] sm:$0xff]
        %v6603 = vld [vmem:[%s6584 + $0x90] sm:$0xff]
        %v6604 = vld [vmem:[%s6584 + $0x98] sm:$0xff]
        %v6605 = vld [vmem:[%s6584 + $0xa0] sm:$0xff]
        %v6606 = vld [vmem:[%s6584 + $0xa8] sm:$0xff]
        %v6607 = vld [vmem:[%s6584 + $0xb0] sm:$0xff]
        %v6608 = vld [vmem:[%s6584 + $0xb8] sm:$0xff]
        %v6609 = vld [vmem:[%s6584 + $0xc0] sm:$0xff]
        %v6610 = vld [vmem:[%s6584 + $0xc8] sm:$0xff]
        %v6611 = vld [vmem:[%s6584 + $0xd0] sm:$0xff]
        %v6612 = vld [vmem:[%s6584 + $0xd8] sm:$0xff]
        %v6613 = vld [vmem:[%s6584 + $0xe0] sm:$0xff]
        %v6614 = vld [vmem:[%s6584 + $0xe8] sm:$0xff]
        %v6615 = vld [vmem:[%s6584 + $0xf0] sm:$0xff]
        %v6616 = vld [vmem:[%s6584 + $0xf8] sm:$0xff]
        %v6617 = vld [vmem:[%s6584 + $0x100] sm:$0xff]
        %v6618 = vld [vmem:[%s6584 + $0x108] sm:$0xff]
        %v6619 = vld [vmem:[%s6584 + $0x110] sm:$0xff]
        %v6620 = vld [vmem:[%s6584 + $0x118] sm:$0xff]
        %v6621 = vld [vmem:[%s6584 + $0x120] sm:$0xff]
        %v6622 = vld [vmem:[%s6584 + $0x128] sm:$0xff]
        %v6623 = vld [vmem:[%s6584 + $0x130] sm:$0xff]
        %v6624 = vld [vmem:[%s6584 + $0x138] sm:$0xff]
        %v6625 = vld [vmem:[%s6584 + $0x140] sm:$0xff]
        %v6626 = vld [vmem:[%s6584 + $0x148] sm:$0xff]
        %v6627 = vld [vmem:[%s6584 + $0x150] sm:$0xff]
        %v6628 = vld [vmem:[%s6584 + $0x158] sm:$0xff]
        %v6629 = vld [vmem:[%s6584 + $0x160] sm:$0xff]
        %v6630 = vld [vmem:[%s6584 + $0x168] sm:$0xff]
        %v6631 = vld [vmem:[%s6584 + $0x170] sm:$0xff]
        %v6632 = vld [vmem:[%s6584 + $0x178] sm:$0xff]
        %v6633 = vld [vmem:[%s6584 + $0x180] sm:$0xff]
        %v6634 = vld [vmem:[%s6584 + $0x188] sm:$0xff]
        %v6635 = vld [vmem:[%s6584 + $0x190] sm:$0xff]
        %v6636 = vld [vmem:[%s6584 + $0x198] sm:$0xff]
        %v6637 = vld [vmem:[%s6584 + $0x1a0] sm:$0xff]
        %v6638 = vld [vmem:[%s6584 + $0x1a8] sm:$0xff]
        %v6639 = vld [vmem:[%s6584 + $0x1b0] sm:$0xff]
        %v6640 = vld [vmem:[%s6584 + $0x1b8] sm:$0xff]
        %v6641 = vld [vmem:[%s6584 + $0x1c0] sm:$0xff]
        %v6642 = vld [vmem:[%s6584 + $0x1c8] sm:$0xff]
        %v6643 = vld [vmem:[%s6584 + $0x1d0] sm:$0xff]
        %v6644 = vld [vmem:[%s6584 + $0x1d8] sm:$0xff]
        %v6645 = vld [vmem:[%s6584 + $0x1e0] sm:$0xff]
        %v6646 = vld [vmem:[%s6584 + $0x1e8] sm:$0xff]
        %v6647 = vld [vmem:[%s6584 + $0x1f0] sm:$0xff]
        %v6648 = vld [vmem:[%s6584 + $0x1f8] sm:$0xff]
        %v6649 = vld [vmem:[%s6584 + $0x200] sm:$0xff]
        %v6650 = vld [vmem:[%s6584 + $0x208] sm:$0xff]
        %v6651 = vld [vmem:[%s6584 + $0x210] sm:$0xff]
        %v6652 = vld [vmem:[%s6584 + $0x218] sm:$0xff]
        %v6653 = vld [vmem:[%s6584 + $0x220] sm:$0xff]
        %v6654 = vld [vmem:[%s6584 + $0x228] sm:$0xff]
        %v6655 = vld [vmem:[%s6584 + $0x230] sm:$0xff]
        %v6656 = vld [vmem:[%s6584 + $0x238] sm:$0xff]
        %v6657 = vld [vmem:[%s6584 + $0x240] sm:$0xff]
        %v6658 = vld [vmem:[%s6584 + $0x248] sm:$0xff]
        %v6659 = vld [vmem:[%s6584 + $0x250] sm:$0xff]
        %v6660 = vld [vmem:[%s6584 + $0x258] sm:$0xff]
        %v6661 = vld [vmem:[%s6584 + $0x260] sm:$0xff]
        %v6662 = vld [vmem:[%s6584 + $0x268] sm:$0xff]
        %v6663 = vld [vmem:[%s6584 + $0x270] sm:$0xff]
        %v6664 = vld [vmem:[%s6584 + $0x278] sm:$0xff]
        %v6665 = vld [vmem:[%s6584 + $0x280] sm:$0xff]
        %v6666 = vld [vmem:[%s6584 + $0x288] sm:$0xff]
        %v6667 = vld [vmem:[%s6584 + $0x290] sm:$0xff]
        %v6668 = vld [vmem:[%s6584 + $0x298] sm:$0xff]
        %v6669 = vld [vmem:[%s6584 + $0x2a0] sm:$0xff]
        %v6670 = vld [vmem:[%s6584 + $0x2a8] sm:$0xff]
        %v6671 = vld [vmem:[%s6584 + $0x2b0] sm:$0xff]
        %v6672 = vld [vmem:[%s6584 + $0x2b8] sm:$0xff]
        %v6673 = vld [vmem:[%s6584 + $0x2c0] sm:$0xff]
        %v6674 = vld [vmem:[%s6584 + $0x2c8] sm:$0xff]
        %v6675 = vld [vmem:[%s6584 + $0x2d0] sm:$0xff]
        %v6676 = vld [vmem:[%s6584 + $0x2d8] sm:$0xff]
        %v6677 = vld [vmem:[%s6584 + $0x2e0] sm:$0xff]
        %v6678 = vld [vmem:[%s6584 + $0x2e8] sm:$0xff]
        %v6679 = vld [vmem:[%s6584 + $0x2f0] sm:$0xff]
        %v6680 = vld [vmem:[%s6584 + $0x2f8] sm:$0xff]
        %vm6681 = vcmask 1044480
        %v6682 = vrot.slane %v5653, 3
        %v6683 = vrot.slane %v5659, 3
        %v6684 = vsel %vm6681, %v6682, %v6683
        %v6685 = vrot.slane %v5655, 3
        %v6686 = vrot.slane %v5661, 3
        %v6687 = vsel %vm6681, %v6685, %v6686
        %v6688 = vrot.slane %v5665, 3
        %v6689 = vsel %vm6681, %v6683, %v6688
        %v6690 = vrot.slane %v5667, 3
        %v6691 = vsel %vm6681, %v6686, %v6690
        %v6692 = vrot.slane %v5671, 3
        %v6693 = vsel %vm6681, %v6688, %v6692
        %v6694 = vrot.slane %v5673, 3
        %v6695 = vsel %vm6681, %v6690, %v6694
        %v6700 = vsel %vm517, %v6687, 0
        %v6702 = vsel %vm517, %v6691, 0
        %v6704 = vsel %vm517, %v6695, 0
        %v6706 = vsel %vm517, %v6694, 0
        %6708 = vmatprep.subr.mxu0 %v6586
        %6709 = vmatpush1.msra.mxu0 %v6585
        %6710 = vmatprep.subr.mxu0 %v6590
        %6711 = vmatpush1.msra.mxu0 %v6589
        %6712 = vmatprep.subr.mxu0 %v6594
        %6713 = vmatpush1.msra.mxu0 %v6593
        %6714 = vmatprep.subr.mxu0 %v6598
        %6715 = vmatpush1.msra.mxu0 %v6597
        %6716 = vmatprep.subr.mxu0 %v6602
        %6717 = vmatpush1.msra.mxu0 %v6601
        %6718 = vmatprep.subr.mxu0 %v6606
        %6719 = vmatpush1.msra.mxu0 %v6605
        %6720 = vmatprep.subr.mxu0 %v6610
        %6721 = vmatpush1.msra.mxu0 %v6609
        %6722 = vmatprep.subr.mxu0 %v6614
        %6723 = vmatpush1.msra.mxu0 %v6613
        %6724 = vmatprep.subr.mxu0 %v6618
        %6725 = vmatpush1.msra.mxu0 %v6617
        %6726 = vmatprep.subr.mxu0 %v6622
        %6727 = vmatpush1.msra.mxu0 %v6621
        %6728 = vmatprep.subr.mxu0 %v6626
        %6729 = vmatpush1.msra.mxu0 %v6625
        %6730 = vmatprep.subr.mxu0 %v6630
        %6731 = vmatpush1.msra.mxu0 %v6629
        %6732 = vmatprep.subr.mxu0 %v6634
        %6733 = vmatpush1.msra.mxu0 %v6633
        %6734 = vmatprep.subr.mxu0 %v6638
        %6735 = vmatpush1.msra.mxu0 %v6637
        %6736 = vmatprep.subr.mxu0 %v6642
        %6737 = vmatpush1.msra.mxu0 %v6641
        %6738 = vmatprep.subr.mxu0 %v6646
        %6739 = vmatpush1.msra.mxu0 %v6645
        %6740 = vmatprep.subr.mxu0 %v6650
        %6741 = vmatpush1.msra.mxu0 %v6649
        %6742 = vmatprep.subr.mxu0 %v6654
        %6743 = vmatpush1.msra.mxu0 %v6653
        %6744 = vmatprep.subr.mxu0 %v6658
        %6745 = vmatpush1.msra.mxu0 %v6657
        %6746 = vmatprep.subr.mxu0 %v6662
        %6747 = vmatpush1.msra.mxu0 %v6661
        %6748 = vmatprep.subr.mxu0 %v6666
        %6749 = vmatpush1.msra.mxu0 %v6665
        %6750 = vmatprep.subr.mxu0 %v6670
        %6751 = vmatpush1.msra.mxu0 %v6669
        %6752 = vmatprep.subr.mxu0 %v6674
        %6753 = vmatpush1.msra.mxu0 %v6673
        %6754 = vmatprep.subr.mxu0 %v6678
        %6755 = vmatpush1.msra.mxu0 %v6677
        %6756 = vmatprep.subr.mxu0 0.0
        %6757 = vmatpush1.msra.mxu0 0.0
        %6758 = vmatprep.subr.mxu0 0.0
        %6759 = vmatpush1.msra.mxu0 0.0
        %6760 = vmatprep.subr.mxu0 0.0
        %6761 = vmatpush1.msra.mxu0 0.0
        %6762 = vmatprep.subr.mxu0 0.0
        %6763 = vmatpush1.msra.mxu0 0.0
        %6764 = vmatprep.subr.mxu0 0.0
        %6765 = vmatpush1.msra.mxu0 0.0
        %6766 = vmatprep.subr.mxu0 0.0
        %6767 = vmatpush1.msra.mxu0 0.0
        %6768 = vmatprep.subr.mxu0 0.0
        %6769 = vmatpush1.msra.mxu0 0.0
        %6770 = vmatprep.subr.mxu0 0.0
        %6771 = vmatpush1.msra.mxu0 0.0
        %6772 = vmatprep.mubr.f32.mxu0 %v6700
        %6773 = vmatmul.mubr.f32.gmra.mrb[0].mxu0 %v6684
        %v6774 = vpop.f32.mrb[0].mxu0
        %v6775 = vadd.f32 0.0, %v6774
        %v6776 = vpop.f32.mrb[0].mxu0
        %v6777 = vadd.f32 0.0, %v6776
        %6778 = vmatprep.mubr.f32.mxu0 %v6702
        %6779 = vmatmul.mubr.f32.gmra.mrb[0].mxu0 %v6689
        %v6780 = vpop.f32.mrb[0].mxu0
        %v6781 = vadd.f32 0.0, %v6780
        %v6782 = vpop.f32.mrb[0].mxu0
        %v6783 = vadd.f32 0.0, %v6782
        %6784 = vmatprep.mubr.f32.mxu0 %v6704
        %6785 = vmatmul.mubr.f32.gmra.mrb[0].mxu0 %v6693
        %v6786 = vpop.f32.mrb[0].mxu0
        %v6787 = vadd.f32 0.0, %v6786
        %v6788 = vpop.f32.mrb[0].mxu0
        %v6789 = vadd.f32 0.0, %v6788
        %6790 = vmatprep.mubr.f32.mxu0 %v6706
        %6791 = vmatmul.mubr.f32.gmra.mrb[0].mxu0 %v6692
        %v6792 = vpop.f32.mrb[0].mxu0
        %v6793 = vadd.f32 0.0, %v6792
        %v6794 = vpop.f32.mrb[0].mxu0
        %v6795 = vadd.f32 0.0, %v6794
        %6796 = vdwg.mxu0
        %6797 = vmatprep.subr.mxu0 %v6588
        %6798 = vmatpush1.msra.mxu0 %v6587
        %6799 = vmatprep.subr.mxu0 %v6592
        %6800 = vmatpush1.msra.mxu0 %v6591
        %6801 = vmatprep.subr.mxu0 %v6596
        %6802 = vmatpush1.msra.mxu0 %v6595
        %6803 = vmatprep.subr.mxu0 %v6600
        %6804 = vmatpush1.msra.mxu0 %v6599
        %6805 = vmatprep.subr.mxu0 %v6604
        %6806 = vmatpush1.msra.mxu0 %v6603
        %6807 = vmatprep.subr.mxu0 %v6608
        %6808 = vmatpush1.msra.mxu0 %v6607
        %6809 = vmatprep.subr.mxu0 %v6612
        %6810 = vmatpush1.msra.mxu0 %v6611
        %6811 = vmatprep.subr.mxu0 %v6616
        %6812 = vmatpush1.msra.mxu0 %v6615
        %6813 = vmatprep.subr.mxu0 %v6620
        %6814 = vmatpush1.msra.mxu0 %v6619
        %6815 = vmatprep.subr.mxu0 %v6624
        %6816 = vmatpush1.msra.mxu0 %v6623
        %6817 = vmatprep.subr.mxu0 %v6628
        %6818 = vmatpush1.msra.mxu0 %v6627
        %6819 = vmatprep.subr.mxu0 %v6632
        %6820 = vmatpush1.msra.mxu0 %v6631
        %6821 = vmatprep.subr.mxu0 %v6636
        %6822 = vmatpush1.msra.mxu0 %v6635
        %6823 = vmatprep.subr.mxu0 %v6640
        %6824 = vmatpush1.msra.mxu0 %v6639
        %6825 = vmatprep.subr.mxu0 %v6644
        %6826 = vmatpush1.msra.mxu0 %v6643
        %6827 = vmatprep.subr.mxu0 %v6648
        %6828 = vmatpush1.msra.mxu0 %v6647
        %6829 = vmatprep.subr.mxu0 %v6652
        %6830 = vmatpush1.msra.mxu0 %v6651
        %6831 = vmatprep.subr.mxu0 %v6656
        %6832 = vmatpush1.msra.mxu0 %v6655
        %6833 = vmatprep.subr.mxu0 %v6660
        %6834 = vmatpush1.msra.mxu0 %v6659
        %6835 = vmatprep.subr.mxu0 %v6664
        %6836 = vmatpush1.msra.mxu0 %v6663
        %6837 = vmatprep.subr.mxu0 %v6668
        %6838 = vmatpush1.msra.mxu0 %v6667
        %6839 = vmatprep.subr.mxu0 %v6672
        %6840 = vmatpush1.msra.mxu0 %v6671
        %6841 = vmatprep.subr.mxu0 %v6676
        %6842 = vmatpush1.msra.mxu0 %v6675
        %6843 = vmatprep.subr.mxu0 %v6680
        %6844 = vmatpush1.msra.mxu0 %v6679
        %6845 = vmatprep.subr.mxu0 0.0
        %6846 = vmatpush1.msra.mxu0 0.0
        %6847 = vmatprep.subr.mxu0 0.0
        %6848 = vmatpush1.msra.mxu0 0.0
        %6849 = vmatprep.subr.mxu0 0.0
        %6850 = vmatpush1.msra.mxu0 0.0
        %6851 = vmatprep.subr.mxu0 0.0
        %6852 = vmatpush1.msra.mxu0 0.0
        %6853 = vmatprep.subr.mxu0 0.0
        %6854 = vmatpush1.msra.mxu0 0.0
        %6855 = vmatprep.subr.mxu0 0.0
        %6856 = vmatpush1.msra.mxu0 0.0
        %6857 = vmatprep.subr.mxu0 0.0
        %6858 = vmatpush1.msra.mxu0 0.0
        %6859 = vmatprep.subr.mxu0 0.0
        %6860 = vmatpush1.msra.mxu0 0.0
        %6861 = vmatprep.mubr.f32.mxu0 %v6700
        %6862 = vmatmul.mubr.f32.gmra.mrb[0].mxu0 %v6684
        %v6863 = vpop.f32.mrb[0].mxu0
        %v6864 = vadd.f32 0.0, %v6863
        %v6865 = vpop.f32.mrb[0].mxu0
        %v6866 = vadd.f32 0.0, %v6865
        %6867 = vmatprep.mubr.f32.mxu0 %v6702
        %6868 = vmatmul.mubr.f32.gmra.mrb[0].mxu0 %v6689
        %v6869 = vpop.f32.mrb[0].mxu0
        %v6870 = vadd.f32 0.0, %v6869
        %v6871 = vpop.f32.mrb[0].mxu0
        %v6872 = vadd.f32 0.0, %v6871
        %6873 = vmatprep.mubr.f32.mxu0 %v6704
        %6874 = vmatmul.mubr.f32.gmra.mrb[0].mxu0 %v6693
        %v6875 = vpop.f32.mrb[0].mxu0
        %v6876 = vadd.f32 0.0, %v6875
        %v6877 = vpop.f32.mrb[0].mxu0
        %v6878 = vadd.f32 0.0, %v6877
        %6879 = vmatprep.mubr.f32.mxu0 %v6706
        %6880 = vmatmul.mubr.f32.gmra.mrb[0].mxu0 %v6692
        %v6881 = vpop.f32.mrb[0].mxu0
        %v6882 = vadd.f32 0.0, %v6881
        %v6883 = vpop.f32.mrb[0].mxu0
        %v6884 = vadd.f32 0.0, %v6883
        %6885 = vdwg.mxu0
        %v6886 = vadd.f32 %v6568, %v6775
        %v6887 = vadd.f32 %v6569, %v6777
        %v6888 = vadd.f32 %v6570, %v6864
        %v6889 = vadd.f32 %v6571, %v6866
        %v6890 = vadd.f32 %v6572, %v6781
        %v6891 = vadd.f32 %v6573, %v6783
        %v6892 = vadd.f32 %v6574, %v6870
        %v6893 = vadd.f32 %v6575, %v6872
        %v6894 = vadd.f32 %v6576, %v6787
        %v6895 = vadd.f32 %v6577, %v6789
        %v6896 = vadd.f32 %v6578, %v6876
        %v6897 = vadd.f32 %v6579, %v6878
        %v6898 = vadd.f32 %v6580, %v6793
        %v6899 = vadd.f32 %v6581, %v6795
        %v6900 = vadd.f32 %v6582, %v6882
        %v6901 = vadd.f32 %v6583, %v6884
        %s6902 = scalar_lea.vmem [#allocation7], 3072
        %v6903 = vld [vmem:[%s6902] sm:$0xff]
        %v6904 = vld [vmem:[%s6902 + $0x8] sm:$0xff]
        %v6905 = vld [vmem:[%s6902 + $0x10] sm:$0xff]
        %v6906 = vld [vmem:[%s6902 + $0x18] sm:$0xff]
        %v6907 = vld [vmem:[%s6902 + $0x20] sm:$0xff]
        %v6908 = vld [vmem:[%s6902 + $0x28] sm:$0xff]
        %v6909 = vld [vmem:[%s6902 + $0x30] sm:$0xff]
        %v6910 = vld [vmem:[%s6902 + $0x38] sm:$0xff]
        %v6911 = vld [vmem:[%s6902 + $0x40] sm:$0xff]
        %v6912 = vld [vmem:[%s6902 + $0x48] sm:$0xff]
        %v6913 = vld [vmem:[%s6902 + $0x50] sm:$0xff]
        %v6914 = vld [vmem:[%s6902 + $0x58] sm:$0xff]
        %v6915 = vld [vmem:[%s6902 + $0x60] sm:$0xff]
        %v6916 = vld [vmem:[%s6902 + $0x68] sm:$0xff]
        %v6917 = vld [vmem:[%s6902 + $0x70] sm:$0xff]
        %v6918 = vld [vmem:[%s6902 + $0x78] sm:$0xff]
        %v6919 = vld [vmem:[%s6902 + $0x80] sm:$0xff]
        %v6920 = vld [vmem:[%s6902 + $0x88] sm:$0xff]
        %v6921 = vld [vmem:[%s6902 + $0x90] sm:$0xff]
        %v6922 = vld [vmem:[%s6902 + $0x98] sm:$0xff]
        %v6923 = vld [vmem:[%s6902 + $0xa0] sm:$0xff]
        %v6924 = vld [vmem:[%s6902 + $0xa8] sm:$0xff]
        %v6925 = vld [vmem:[%s6902 + $0xb0] sm:$0xff]
        %v6926 = vld [vmem:[%s6902 + $0xb8] sm:$0xff]
        %v6927 = vld [vmem:[%s6902 + $0xc0] sm:$0xff]
        %v6928 = vld [vmem:[%s6902 + $0xc8] sm:$0xff]
        %v6929 = vld [vmem:[%s6902 + $0xd0] sm:$0xff]
        %v6930 = vld [vmem:[%s6902 + $0xd8] sm:$0xff]
        %v6931 = vld [vmem:[%s6902 + $0xe0] sm:$0xff]
        %v6932 = vld [vmem:[%s6902 + $0xe8] sm:$0xff]
        %v6933 = vld [vmem:[%s6902 + $0xf0] sm:$0xff]
        %v6934 = vld [vmem:[%s6902 + $0xf8] sm:$0xff]
        %v6935 = vld [vmem:[%s6902 + $0x100] sm:$0xff]
        %v6936 = vld [vmem:[%s6902 + $0x108] sm:$0xff]
        %v6937 = vld [vmem:[%s6902 + $0x110] sm:$0xff]
        %v6938 = vld [vmem:[%s6902 + $0x118] sm:$0xff]
        %v6939 = vld [vmem:[%s6902 + $0x120] sm:$0xff]
        %v6940 = vld [vmem:[%s6902 + $0x128] sm:$0xff]
        %v6941 = vld [vmem:[%s6902 + $0x130] sm:$0xff]
        %v6942 = vld [vmem:[%s6902 + $0x138] sm:$0xff]
        %v6943 = vld [vmem:[%s6902 + $0x140] sm:$0xff]
        %v6944 = vld [vmem:[%s6902 + $0x148] sm:$0xff]
        %v6945 = vld [vmem:[%s6902 + $0x150] sm:$0xff]
        %v6946 = vld [vmem:[%s6902 + $0x158] sm:$0xff]
        %v6947 = vld [vmem:[%s6902 + $0x160] sm:$0xff]
        %v6948 = vld [vmem:[%s6902 + $0x168] sm:$0xff]
        %v6949 = vld [vmem:[%s6902 + $0x170] sm:$0xff]
        %v6950 = vld [vmem:[%s6902 + $0x178] sm:$0xff]
        %v6951 = vld [vmem:[%s6902 + $0x180] sm:$0xff]
        %v6952 = vld [vmem:[%s6902 + $0x188] sm:$0xff]
        %v6953 = vld [vmem:[%s6902 + $0x190] sm:$0xff]
        %v6954 = vld [vmem:[%s6902 + $0x198] sm:$0xff]
        %v6955 = vld [vmem:[%s6902 + $0x1a0] sm:$0xff]
        %v6956 = vld [vmem:[%s6902 + $0x1a8] sm:$0xff]
        %v6957 = vld [vmem:[%s6902 + $0x1b0] sm:$0xff]
        %v6958 = vld [vmem:[%s6902 + $0x1b8] sm:$0xff]
        %v6959 = vld [vmem:[%s6902 + $0x1c0] sm:$0xff]
        %v6960 = vld [vmem:[%s6902 + $0x1c8] sm:$0xff]
        %v6961 = vld [vmem:[%s6902 + $0x1d0] sm:$0xff]
        %v6962 = vld [vmem:[%s6902 + $0x1d8] sm:$0xff]
        %v6963 = vld [vmem:[%s6902 + $0x1e0] sm:$0xff]
        %v6964 = vld [vmem:[%s6902 + $0x1e8] sm:$0xff]
        %v6965 = vld [vmem:[%s6902 + $0x1f0] sm:$0xff]
        %v6966 = vld [vmem:[%s6902 + $0x1f8] sm:$0xff]
        %v6967 = vld [vmem:[%s6902 + $0x200] sm:$0xff]
        %v6968 = vld [vmem:[%s6902 + $0x208] sm:$0xff]
        %v6969 = vld [vmem:[%s6902 + $0x210] sm:$0xff]
        %v6970 = vld [vmem:[%s6902 + $0x218] sm:$0xff]
        %v6971 = vld [vmem:[%s6902 + $0x220] sm:$0xff]
        %v6972 = vld [vmem:[%s6902 + $0x228] sm:$0xff]
        %v6973 = vld [vmem:[%s6902 + $0x230] sm:$0xff]
        %v6974 = vld [vmem:[%s6902 + $0x238] sm:$0xff]
        %v6975 = vld [vmem:[%s6902 + $0x240] sm:$0xff]
        %v6976 = vld [vmem:[%s6902 + $0x248] sm:$0xff]
        %v6977 = vld [vmem:[%s6902 + $0x250] sm:$0xff]
        %v6978 = vld [vmem:[%s6902 + $0x258] sm:$0xff]
        %v6979 = vld [vmem:[%s6902 + $0x260] sm:$0xff]
        %v6980 = vld [vmem:[%s6902 + $0x268] sm:$0xff]
        %v6981 = vld [vmem:[%s6902 + $0x270] sm:$0xff]
        %v6982 = vld [vmem:[%s6902 + $0x278] sm:$0xff]
        %v6983 = vld [vmem:[%s6902 + $0x280] sm:$0xff]
        %v6984 = vld [vmem:[%s6902 + $0x288] sm:$0xff]
        %v6985 = vld [vmem:[%s6902 + $0x290] sm:$0xff]
        %v6986 = vld [vmem:[%s6902 + $0x298] sm:$0xff]
        %v6987 = vld [vmem:[%s6902 + $0x2a0] sm:$0xff]
        %v6988 = vld [vmem:[%s6902 + $0x2a8] sm:$0xff]
        %v6989 = vld [vmem:[%s6902 + $0x2b0] sm:$0xff]
        %v6990 = vld [vmem:[%s6902 + $0x2b8] sm:$0xff]
        %v6991 = vld [vmem:[%s6902 + $0x2c0] sm:$0xff]
        %v6992 = vld [vmem:[%s6902 + $0x2c8] sm:$0xff]
        %v6993 = vld [vmem:[%s6902 + $0x2d0] sm:$0xff]
        %v6994 = vld [vmem:[%s6902 + $0x2d8] sm:$0xff]
        %v6995 = vld [vmem:[%s6902 + $0x2e0] sm:$0xff]
        %v6996 = vld [vmem:[%s6902 + $0x2e8] sm:$0xff]
        %v6997 = vld [vmem:[%s6902 + $0x2f0] sm:$0xff]
        %v6998 = vld [vmem:[%s6902 + $0x2f8] sm:$0xff]
        %vm6999 = vcmask 1043456
        %v7000 = vrot.slane %v5653, 4
        %v7001 = vrot.slane %v5659, 4
        %v7002 = vsel %vm6999, %v7000, %v7001
        %v7003 = vrot.slane %v5655, 4
        %v7004 = vrot.slane %v5661, 4
        %v7005 = vsel %vm6999, %v7003, %v7004
        %v7006 = vrot.slane %v5665, 4
        %v7007 = vsel %vm6999, %v7001, %v7006
        %v7008 = vrot.slane %v5667, 4
        %v7009 = vsel %vm6999, %v7004, %v7008
        %v7010 = vrot.slane %v5671, 4
        %v7011 = vsel %vm6999, %v7006, %v7010
        %v7012 = vrot.slane %v5673, 4
        %v7013 = vsel %vm6999, %v7008, %v7012
        %v7018 = vsel %vm517, %v7005, 0
        %v7020 = vsel %vm517, %v7009, 0
        %v7022 = vsel %vm517, %v7013, 0
        %v7024 = vsel %vm517, %v7012, 0
        %7026 = vmatprep.subr.mxu0 %v6904
        %7027 = vmatpush1.msra.mxu0 %v6903
        %7028 = vmatprep.subr.mxu0 %v6908
        %7029 = vmatpush1.msra.mxu0 %v6907
        %7030 = vmatprep.subr.mxu0 %v6912
        %7031 = vmatpush1.msra.mxu0 %v6911
        %7032 = vmatprep.subr.mxu0 %v6916
        %7033 = vmatpush1.msra.mxu0 %v6915
        %7034 = vmatprep.subr.mxu0 %v6920
        %7035 = vmatpush1.msra.mxu0 %v6919
        %7036 = vmatprep.subr.mxu0 %v6924
        %7037 = vmatpush1.msra.mxu0 %v6923
        %7038 = vmatprep.subr.mxu0 %v6928
        %7039 = vmatpush1.msra.mxu0 %v6927
        %7040 = vmatprep.subr.mxu0 %v6932
        %7041 = vmatpush1.msra.mxu0 %v6931
        %7042 = vmatprep.subr.mxu0 %v6936
        %7043 = vmatpush1.msra.mxu0 %v6935
        %7044 = vmatprep.subr.mxu0 %v6940
        %7045 = vmatpush1.msra.mxu0 %v6939
        %7046 = vmatprep.subr.mxu0 %v6944
        %7047 = vmatpush1.msra.mxu0 %v6943
        %7048 = vmatprep.subr.mxu0 %v6948
        %7049 = vmatpush1.msra.mxu0 %v6947
        %7050 = vmatprep.subr.mxu0 %v6952
        %7051 = vmatpush1.msra.mxu0 %v6951
        %7052 = vmatprep.subr.mxu0 %v6956
        %7053 = vmatpush1.msra.mxu0 %v6955
        %7054 = vmatprep.subr.mxu0 %v6960
        %7055 = vmatpush1.msra.mxu0 %v6959
        %7056 = vmatprep.subr.mxu0 %v6964
        %7057 = vmatpush1.msra.mxu0 %v6963
        %7058 = vmatprep.subr.mxu0 %v6968
        %7059 = vmatpush1.msra.mxu0 %v6967
        %7060 = vmatprep.subr.mxu0 %v6972
        %7061 = vmatpush1.msra.mxu0 %v6971
        %7062 = vmatprep.subr.mxu0 %v6976
        %7063 = vmatpush1.msra.mxu0 %v6975
        %7064 = vmatprep.subr.mxu0 %v6980
        %7065 = vmatpush1.msra.mxu0 %v6979
        %7066 = vmatprep.subr.mxu0 %v6984
        %7067 = vmatpush1.msra.mxu0 %v6983
        %7068 = vmatprep.subr.mxu0 %v6988
        %7069 = vmatpush1.msra.mxu0 %v6987
        %7070 = vmatprep.subr.mxu0 %v6992
        %7071 = vmatpush1.msra.mxu0 %v6991
        %7072 = vmatprep.subr.mxu0 %v6996
        %7073 = vmatpush1.msra.mxu0 %v6995
        %7074 = vmatprep.subr.mxu0 0.0
        %7075 = vmatpush1.msra.mxu0 0.0
        %7076 = vmatprep.subr.mxu0 0.0
        %7077 = vmatpush1.msra.mxu0 0.0
        %7078 = vmatprep.subr.mxu0 0.0
        %7079 = vmatpush1.msra.mxu0 0.0
        %7080 = vmatprep.subr.mxu0 0.0
        %7081 = vmatpush1.msra.mxu0 0.0
        %7082 = vmatprep.subr.mxu0 0.0
        %7083 = vmatpush1.msra.mxu0 0.0
        %7084 = vmatprep.subr.mxu0 0.0
        %7085 = vmatpush1.msra.mxu0 0.0
        %7086 = vmatprep.subr.mxu0 0.0
        %7087 = vmatpush1.msra.mxu0 0.0
        %7088 = vmatprep.subr.mxu0 0.0
        %7089 = vmatpush1.msra.mxu0 0.0
        %7090 = vmatprep.mubr.f32.mxu0 %v7018
        %7091 = vmatmul.mubr.f32.gmra.mrb[0].mxu0 %v7002
        %v7092 = vpop.f32.mrb[0].mxu0
        %v7093 = vadd.f32 0.0, %v7092
        %v7094 = vpop.f32.mrb[0].mxu0
        %v7095 = vadd.f32 0.0, %v7094
        %7096 = vmatprep.mubr.f32.mxu0 %v7020
        %7097 = vmatmul.mubr.f32.gmra.mrb[0].mxu0 %v7007
        %v7098 = vpop.f32.mrb[0].mxu0
        %v7099 = vadd.f32 0.0, %v7098
        %v7100 = vpop.f32.mrb[0].mxu0
        %v7101 = vadd.f32 0.0, %v7100
        %7102 = vmatprep.mubr.f32.mxu0 %v7022
        %7103 = vmatmul.mubr.f32.gmra.mrb[0].mxu0 %v7011
        %v7104 = vpop.f32.mrb[0].mxu0
        %v7105 = vadd.f32 0.0, %v7104
        %v7106 = vpop.f32.mrb[0].mxu0
        %v7107 = vadd.f32 0.0, %v7106
        %7108 = vmatprep.mubr.f32.mxu0 %v7024
        %7109 = vmatmul.mubr.f32.gmra.mrb[0].mxu0 %v7010
        %v7110 = vpop.f32.mrb[0].mxu0
        %v7111 = vadd.f32 0.0, %v7110
        %v7112 = vpop.f32.mrb[0].mxu0
        %v7113 = vadd.f32 0.0, %v7112
        %7114 = vdwg.mxu0
        %7115 = vmatprep.subr.mxu0 %v6906
        %7116 = vmatpush1.msra.mxu0 %v6905
        %7117 = vmatprep.subr.mxu0 %v6910
        %7118 = vmatpush1.msra.mxu0 %v6909
        %7119 = vmatprep.subr.mxu0 %v6914
        %7120 = vmatpush1.msra.mxu0 %v6913
        %7121 = vmatprep.subr.mxu0 %v6918
        %7122 = vmatpush1.msra.mxu0 %v6917
        %7123 = vmatprep.subr.mxu0 %v6922
        %7124 = vmatpush1.msra.mxu0 %v6921
        %7125 = vmatprep.subr.mxu0 %v6926
        %7126 = vmatpush1.msra.mxu0 %v6925
        %7127 = vmatprep.subr.mxu0 %v6930
        %7128 = vmatpush1.msra.mxu0 %v6929
        %7129 = vmatprep.subr.mxu0 %v6934
        %7130 = vmatpush1.msra.mxu0 %v6933
        %7131 = vmatprep.subr.mxu0 %v6938
        %7132 = vmatpush1.msra.mxu0 %v6937
        %7133 = vmatprep.subr.mxu0 %v6942
        %7134 = vmatpush1.msra.mxu0 %v6941
        %7135 = vmatprep.subr.mxu0 %v6946
        %7136 = vmatpush1.msra.mxu0 %v6945
        %7137 = vmatprep.subr.mxu0 %v6950
        %7138 = vmatpush1.msra.mxu0 %v6949
        %7139 = vmatprep.subr.mxu0 %v6954
        %7140 = vmatpush1.msra.mxu0 %v6953
        %7141 = vmatprep.subr.mxu0 %v6958
        %7142 = vmatpush1.msra.mxu0 %v6957
        %7143 = vmatprep.subr.mxu0 %v6962
        %7144 = vmatpush1.msra.mxu0 %v6961
        %7145 = vmatprep.subr.mxu0 %v6966
        %7146 = vmatpush1.msra.mxu0 %v6965
        %7147 = vmatprep.subr.mxu0 %v6970
        %7148 = vmatpush1.msra.mxu0 %v6969
        %7149 = vmatprep.subr.mxu0 %v6974
        %7150 = vmatpush1.msra.mxu0 %v6973
        %7151 = vmatprep.subr.mxu0 %v6978
        %7152 = vmatpush1.msra.mxu0 %v6977
        %7153 = vmatprep.subr.mxu0 %v6982
        %7154 = vmatpush1.msra.mxu0 %v6981
        %7155 = vmatprep.subr.mxu0 %v6986
        %7156 = vmatpush1.msra.mxu0 %v6985
        %7157 = vmatprep.subr.mxu0 %v6990
        %7158 = vmatpush1.msra.mxu0 %v6989
        %7159 = vmatprep.subr.mxu0 %v6994
        %7160 = vmatpush1.msra.mxu0 %v6993
        %7161 = vmatprep.subr.mxu0 %v6998
        %7162 = vmatpush1.msra.mxu0 %v6997
        %7163 = vmatprep.subr.mxu0 0.0
        %7164 = vmatpush1.msra.mxu0 0.0
        %7165 = vmatprep.subr.mxu0 0.0
        %7166 = vmatpush1.msra.mxu0 0.0
        %7167 = vmatprep.subr.mxu0 0.0
        %7168 = vmatpush1.msra.mxu0 0.0
        %7169 = vmatprep.subr.mxu0 0.0
        %7170 = vmatpush1.msra.mxu0 0.0
        %7171 = vmatprep.subr.mxu0 0.0
        %7172 = vmatpush1.msra.mxu0 0.0
        %7173 = vmatprep.subr.mxu0 0.0
        %7174 = vmatpush1.msra.mxu0 0.0
        %7175 = vmatprep.subr.mxu0 0.0
        %7176 = vmatpush1.msra.mxu0 0.0
        %7177 = vmatprep.subr.mxu0 0.0
        %7178 = vmatpush1.msra.mxu0 0.0
        %7179 = vmatprep.mubr.f32.mxu0 %v7018
        %7180 = vmatmul.mubr.f32.gmra.mrb[0].mxu0 %v7002
        %v7181 = vpop.f32.mrb[0].mxu0
        %v7182 = vadd.f32 0.0, %v7181
        %v7183 = vpop.f32.mrb[0].mxu0
        %v7184 = vadd.f32 0.0, %v7183
        %7185 = vmatprep.mubr.f32.mxu0 %v7020
        %7186 = vmatmul.mubr.f32.gmra.mrb[0].mxu0 %v7007
        %v7187 = vpop.f32.mrb[0].mxu0
        %v7188 = vadd.f32 0.0, %v7187
        %v7189 = vpop.f32.mrb[0].mxu0
        %v7190 = vadd.f32 0.0, %v7189
        %7191 = vmatprep.mubr.f32.mxu0 %v7022
        %7192 = vmatmul.mubr.f32.gmra.mrb[0].mxu0 %v7011
        %v7193 = vpop.f32.mrb[0].mxu0
        %v7194 = vadd.f32 0.0, %v7193
        %v7195 = vpop.f32.mrb[0].mxu0
        %v7196 = vadd.f32 0.0, %v7195
        %7197 = vmatprep.mubr.f32.mxu0 %v7024
        %7198 = vmatmul.mubr.f32.gmra.mrb[0].mxu0 %v7010
        %v7199 = vpop.f32.mrb[0].mxu0
        %v7200 = vadd.f32 0.0, %v7199
        %v7201 = vpop.f32.mrb[0].mxu0
        %v7202 = vadd.f32 0.0, %v7201
        %7203 = vdwg.mxu0
        %v7204 = vadd.f32 %v6886, %v7093
        %v7205 = vadd.f32 %v6887, %v7095
        %v7206 = vadd.f32 %v6888, %v7182
        %v7207 = vadd.f32 %v6889, %v7184
        %v7208 = vadd.f32 %v6890, %v7099
        %v7209 = vadd.f32 %v6891, %v7101
        %v7210 = vadd.f32 %v6892, %v7188
        %v7211 = vadd.f32 %v6893, %v7190
        %v7212 = vadd.f32 %v6894, %v7105
        %v7213 = vadd.f32 %v6895, %v7107
        %v7214 = vadd.f32 %v6896, %v7194
        %v7215 = vadd.f32 %v6897, %v7196
        %v7216 = vadd.f32 %v6898, %v7111
        %v7217 = vadd.f32 %v6899, %v7113
        %v7218 = vadd.f32 %v6900, %v7200
        %v7219 = vadd.f32 %v6901, %v7202
        %v7220 = vld [vmem:[#allocation9] sm:$0xf]
        %v7222 = vlaneseq
        %v7223 = vshrl.u32 %v7222, 7
        %v7224 = vsub.s32 0, %v7223
        %v7225 = vrot.slane %v7220, %v7224
        %v7226 = vlaneseq
        %v7227 = vshrl.u32 %v7226, 7
        %v7228 = vsub.s32 1, %v7227
        %v7229 = vrot.slane %v7220, %v7228
        %v7230 = vlaneseq
        %v7231 = vshrl.u32 %v7230, 7
        %v7232 = vsub.s32 2, %v7231
        %v7233 = vrot.slane %v7220, %v7232
        %v7234 = vlaneseq
        %v7235 = vshrl.u32 %v7234, 7
        %v7236 = vsub.s32 3, %v7235
        %v7237 = vrot.slane %v7220, %v7236
        %v7242 = vadd.f32 %v7204, %v7225
        %v7243 = vadd.f32 %v7205, %v7229
        %v7244 = vadd.f32 %v7206, %v7233
        %v7245 = vadd.f32 %v7207, %v7237
        %v7246 = vadd.f32 %v7208, %v7225
        %v7247 = vadd.f32 %v7209, %v7229
        %v7248 = vadd.f32 %v7210, %v7233
        %v7249 = vadd.f32 %v7211, %v7237
        %v7250 = vadd.f32 %v7212, %v7225
        %v7251 = vadd.f32 %v7213, %v7229
        %v7252 = vadd.f32 %v7214, %v7233
        %v7253 = vadd.f32 %v7215, %v7237
        %v7254 = vadd.f32 %v7216, %v7225
        %v7255 = vadd.f32 %v7217, %v7229
        %v7256 = vadd.f32 %v7218, %v7233
        %v7257 = vadd.f32 %v7219, %v7237
        %v7258 = vmax.f32 %v7242, 0.0
        %v7259 = vmax.f32 %v7243, 0.0
        %v7260 = vmax.f32 %v7244, 0.0
        %v7261 = vmax.f32 %v7245, 0.0
        %v7262 = vmax.f32 %v7246, 0.0
        %v7263 = vmax.f32 %v7247, 0.0
        %v7264 = vmax.f32 %v7248, 0.0
        %v7265 = vmax.f32 %v7249, 0.0
        %v7266 = vmax.f32 %v7250, 0.0
        %v7267 = vmax.f32 %v7251, 0.0
        %v7268 = vmax.f32 %v7252, 0.0
        %v7269 = vmax.f32 %v7253, 0.0
        %v7270 = vmax.f32 %v7254, 0.0
        %v7271 = vmax.f32 %v7255, 0.0
        %v7272 = vmax.f32 %v7256, 0.0
        %v7273 = vmax.f32 %v7257, 0.0
        %7290 = vrot.lane.b32.xlu0 %v7258, 127
        %v7291 = vpop.permute.xlu0 %7290
        %7292 = vrot.lane.b32.xlu0 %v7259, 127
        %v7293 = vpop.permute.xlu0 %7292
        %7294 = vrot.lane.b32.xlu0 %v7260, 127
        %v7295 = vpop.permute.xlu0 %7294
        %7296 = vrot.lane.b32.xlu0 %v7261, 127
        %v7297 = vpop.permute.xlu0 %7296
        %7298 = vrot.lane.b32.xlu0 %v7262, 127
        %v7299 = vpop.permute.xlu0 %7298
        %7300 = vrot.lane.b32.xlu0 %v7263, 127
        %v7301 = vpop.permute.xlu0 %7300
        %7302 = vrot.lane.b32.xlu0 %v7264, 127
        %v7303 = vpop.permute.xlu0 %7302
        %7304 = vrot.lane.b32.xlu0 %v7265, 127
        %v7305 = vpop.permute.xlu0 %7304
        %7306 = vrot.lane.b32.xlu0 %v7266, 127
        %v7307 = vpop.permute.xlu0 %7306
        %7308 = vrot.lane.b32.xlu0 %v7267, 127
        %v7309 = vpop.permute.xlu0 %7308
        %7310 = vrot.lane.b32.xlu0 %v7268, 127
        %v7311 = vpop.permute.xlu0 %7310
        %7312 = vrot.lane.b32.xlu0 %v7269, 127
        %v7313 = vpop.permute.xlu0 %7312
        %7314 = vrot.lane.b32.xlu0 %v7270, 127
        %v7315 = vpop.permute.xlu0 %7314
        %7316 = vrot.lane.b32.xlu0 %v7271, 127
        %v7317 = vpop.permute.xlu0 %7316
        %7318 = vrot.lane.b32.xlu0 %v7272, 127
        %v7319 = vpop.permute.xlu0 %7318
        %7320 = vrot.lane.b32.xlu0 %v7273, 127
        %v7321 = vpop.permute.xlu0 %7320
        %v7322 = vsel %vm5027, %v7291, %v7293
        %v7323 = vsel %vm5027, %v7293, %v7295
        %v7324 = vsel %vm5027, %v7295, %v7297
        %v7325 = vsel %vm5027, %v7299, %v7301
        %v7326 = vsel %vm5027, %v7301, %v7303
        %v7327 = vsel %vm5027, %v7303, %v7305
        %v7328 = vsel %vm5027, %v7307, %v7309
        %v7329 = vsel %vm5027, %v7309, %v7311
        %v7330 = vsel %vm5027, %v7311, %v7313
        %v7331 = vsel %vm5027, %v7315, %v7317
        %v7332 = vsel %vm5027, %v7317, %v7319
        %v7333 = vsel %vm5027, %v7319, %v7321
        %v7350 = vmax.f32 %v7258, %v7322
        %v7351 = vmax.f32 %v7259, %v7323
        %v7352 = vmax.f32 %v7260, %v7324
        %v7353 = vmax.f32 %v7261, %v7297
        %v7354 = vmax.f32 %v7262, %v7325
        %v7355 = vmax.f32 %v7263, %v7326
        %v7356 = vmax.f32 %v7264, %v7327
        %v7357 = vmax.f32 %v7265, %v7305
        %v7358 = vmax.f32 %v7266, %v7328
        %v7359 = vmax.f32 %v7267, %v7329
        %v7360 = vmax.f32 %v7268, %v7330
        %v7361 = vmax.f32 %v7269, %v7313
        %v7362 = vmax.f32 %v7270, %v7331
        %v7363 = vmax.f32 %v7271, %v7332
        %v7364 = vmax.f32 %v7272, %v7333
        %v7365 = vmax.f32 %v7273, %v7321
        %v7382 = vrot.slane %v7350, 1
        %v7383 = vrot.slane %v7354, 1
        %v7384 = vsel %vm5116, %v7382, %v7383
        %v7385 = vrot.slane %v7351, 1
        %v7386 = vrot.slane %v7355, 1
        %v7387 = vsel %vm5116, %v7385, %v7386
        %v7388 = vrot.slane %v7352, 1
        %v7389 = vrot.slane %v7356, 1
        %v7390 = vsel %vm5116, %v7388, %v7389
        %v7391 = vrot.slane %v7353, 1
        %v7392 = vrot.slane %v7357, 1
        %v7393 = vsel %vm5116, %v7391, %v7392
        %v7394 = vrot.slane %v7358, 1
        %v7395 = vsel %vm5116, %v7383, %v7394
        %v7396 = vrot.slane %v7359, 1
        %v7397 = vsel %vm5116, %v7386, %v7396
        %v7398 = vrot.slane %v7360, 1
        %v7399 = vsel %vm5116, %v7389, %v7398
        %v7400 = vrot.slane %v7361, 1
        %v7401 = vsel %vm5116, %v7392, %v7400
        %v7402 = vrot.slane %v7362, 1
        %v7403 = vsel %vm5116, %v7394, %v7402
        %v7404 = vrot.slane %v7363, 1
        %v7405 = vsel %vm5116, %v7396, %v7404
        %v7406 = vrot.slane %v7364, 1
        %v7407 = vsel %vm5116, %v7398, %v7406
        %v7408 = vrot.slane %v7365, 1
        %v7409 = vsel %vm5116, %v7400, %v7408
        %v7426 = vmax.f32 %v7350, %v7384
        %v7427 = vmax.f32 %v7351, %v7387
        %v7428 = vmax.f32 %v7352, %v7390
        %v7429 = vmax.f32 %v7353, %v7393
        %v7430 = vmax.f32 %v7354, %v7395
        %v7431 = vmax.f32 %v7355, %v7397
        %v7432 = vmax.f32 %v7356, %v7399
        %v7433 = vmax.f32 %v7357, %v7401
        %v7434 = vmax.f32 %v7358, %v7403
        %v7435 = vmax.f32 %v7359, %v7405
        %v7436 = vmax.f32 %v7360, %v7407
        %v7437 = vmax.f32 %v7361, %v7409
        %v7438 = vmax.f32 %v7362, %v7402
        %v7439 = vmax.f32 %v7363, %v7404
        %v7440 = vmax.f32 %v7364, %v7406
        %v7441 = vmax.f32 %v7365, %v7408
        %v7442 = vld [vmem:[#allocation13] sm:$0xff]
        %v7443 = vld [vmem:[#allocation13 + $0x8] sm:$0x1f]
        %v7444 = vld [vmem:[#allocation12] sm:$0xff]
        %v7445 = vld [vmem:[#allocation12 + $0x8] sm:$0xff]
        %v7446 = vld [vmem:[#allocation12 + $0x10] sm:$0xff]
        %v7447 = vld [vmem:[#allocation12 + $0x18] sm:$0xff]
        %v7448 = vld [vmem:[#allocation12 + $0x20] sm:$0xff]
        %v7449 = vld [vmem:[#allocation12 + $0x28] sm:$0xff]
        %v7450 = vld [vmem:[#allocation12 + $0x30] sm:$0xff]
        %v7451 = vld [vmem:[#allocation12 + $0x38] sm:$0xff]
        %v7452 = vld [vmem:[#allocation12 + $0x40] sm:$0xff]
        %v7453 = vld [vmem:[#allocation12 + $0x48] sm:$0xff]
        %v7454 = vld [vmem:[#allocation12 + $0x50] sm:$0xff]
        %v7455 = vld [vmem:[#allocation12 + $0x58] sm:$0xff]
        %v7456 = vld [vmem:[#allocation12 + $0x60] sm:$0xff]
        %v7457 = vld [vmem:[#allocation12 + $0x68] sm:$0xff]
        %v7458 = vld [vmem:[#allocation12 + $0x70] sm:$0xff]
        %v7459 = vld [vmem:[#allocation12 + $0x78] sm:$0xff]
        %v7460 = vld [vmem:[#allocation12 + $0x80] sm:$0xff]
        %v7461 = vld [vmem:[#allocation12 + $0x88] sm:$0xff]
        %v7462 = vld [vmem:[#allocation12 + $0x90] sm:$0xff]
        %v7463 = vld [vmem:[#allocation12 + $0x98] sm:$0xff]
        %v7464 = vld [vmem:[#allocation12 + $0xa0] sm:$0xff]
        %v7465 = vld [vmem:[#allocation12 + $0xa8] sm:$0xff]
        %v7466 = vld [vmem:[#allocation12 + $0xb0] sm:$0xff]
        %v7467 = vld [vmem:[#allocation12 + $0xb8] sm:$0xff]
        %v7468 = vld [vmem:[#allocation12 + $0xc0] sm:$0xff]
        %v7469 = vld [vmem:[#allocation12 + $0xc8] sm:$0xff]
        %v7470 = vld [vmem:[#allocation12 + $0xd0] sm:$0xff]
        %v7471 = vld [vmem:[#allocation12 + $0xd8] sm:$0xff]
        %v7472 = vld [vmem:[#allocation12 + $0xe0] sm:$0xff]
        %v7473 = vld [vmem:[#allocation12 + $0xe8] sm:$0xff]
        %v7474 = vld [vmem:[#allocation12 + $0xf0] sm:$0xff]
        %v7475 = vld [vmem:[#allocation12 + $0xf8] sm:$0xff]
        %v7476 = vld [vmem:[#allocation12 + $0x100] sm:$0xff]
        %v7477 = vld [vmem:[#allocation12 + $0x108] sm:$0xff]
        %v7478 = vld [vmem:[#allocation12 + $0x110] sm:$0xff]
        %v7479 = vld [vmem:[#allocation12 + $0x118] sm:$0xff]
        %v7480 = vld [vmem:[#allocation12 + $0x120] sm:$0xff]
        %v7481 = vld [vmem:[#allocation12 + $0x128] sm:$0xff]
        %v7482 = vld [vmem:[#allocation12 + $0x130] sm:$0xff]
        %v7483 = vld [vmem:[#allocation12 + $0x138] sm:$0xff]
        %v7484 = vld [vmem:[#allocation12 + $0x140] sm:$0xff]
        %v7485 = vld [vmem:[#allocation12 + $0x148] sm:$0xff]
        %v7486 = vld [vmem:[#allocation12 + $0x150] sm:$0xff]
        %v7487 = vld [vmem:[#allocation12 + $0x158] sm:$0xff]
        %v7488 = vld [vmem:[#allocation12 + $0x160] sm:$0xff]
        %v7489 = vld [vmem:[#allocation12 + $0x168] sm:$0xff]
        %v7490 = vld [vmem:[#allocation12 + $0x170] sm:$0xff]
        %v7491 = vld [vmem:[#allocation12 + $0x178] sm:$0xff]
        %v7492 = vld [vmem:[#allocation12 + $0x180] sm:$0xff]
        %v7493 = vld [vmem:[#allocation12 + $0x188] sm:$0xff]
        %v7494 = vld [vmem:[#allocation12 + $0x190] sm:$0xff]
        %v7495 = vld [vmem:[#allocation12 + $0x198] sm:$0xff]
        %v7496 = vld [vmem:[#allocation12 + $0x1a0] sm:$0xff]
        %v7497 = vld [vmem:[#allocation12 + $0x1a8] sm:$0xff]
        %v7498 = vld [vmem:[#allocation12 + $0x1b0] sm:$0xff]
        %v7499 = vld [vmem:[#allocation12 + $0x1b8] sm:$0xff]
        %v7500 = vld [vmem:[#allocation12 + $0x1c0] sm:$0xff]
        %v7501 = vld [vmem:[#allocation12 + $0x1c8] sm:$0xff]
        %v7502 = vld [vmem:[#allocation12 + $0x1d0] sm:$0xff]
        %v7503 = vld [vmem:[#allocation12 + $0x1d8] sm:$0xff]
        %v7504 = vld [vmem:[#allocation12 + $0x1e0] sm:$0xff]
        %v7505 = vld [vmem:[#allocation12 + $0x1e8] sm:$0xff]
        %v7506 = vld [vmem:[#allocation12 + $0x1f0] sm:$0xff]
        %v7507 = vld [vmem:[#allocation12 + $0x1f8] sm:$0xff]
        %v7508 = vld [vmem:[#allocation12 + $0x200] sm:$0xff]
        %v7509 = vld [vmem:[#allocation12 + $0x208] sm:$0xff]
        %v7510 = vld [vmem:[#allocation12 + $0x210] sm:$0xff]
        %v7511 = vld [vmem:[#allocation12 + $0x218] sm:$0xff]
        %v7512 = vld [vmem:[#allocation12 + $0x220] sm:$0xff]
        %v7513 = vld [vmem:[#allocation12 + $0x228] sm:$0xff]
        %v7514 = vld [vmem:[#allocation12 + $0x230] sm:$0xff]
        %v7515 = vld [vmem:[#allocation12 + $0x238] sm:$0xff]
        %v7516 = vld [vmem:[#allocation12 + $0x240] sm:$0xff]
        %v7517 = vld [vmem:[#allocation12 + $0x248] sm:$0xff]
        %v7518 = vld [vmem:[#allocation12 + $0x250] sm:$0xff]
        %v7519 = vld [vmem:[#allocation12 + $0x258] sm:$0xff]
        %v7520 = vld [vmem:[#allocation12 + $0x260] sm:$0xff]
        %v7521 = vld [vmem:[#allocation12 + $0x268] sm:$0xff]
        %v7522 = vld [vmem:[#allocation12 + $0x270] sm:$0xff]
        %v7523 = vld [vmem:[#allocation12 + $0x278] sm:$0xff]
        %v7524 = vld [vmem:[#allocation12 + $0x280] sm:$0xff]
        %v7525 = vld [vmem:[#allocation12 + $0x288] sm:$0xff]
        %v7526 = vld [vmem:[#allocation12 + $0x290] sm:$0xff]
        %v7527 = vld [vmem:[#allocation12 + $0x298] sm:$0xff]
        %v7528 = vld [vmem:[#allocation12 + $0x2a0] sm:$0xff]
        %v7529 = vld [vmem:[#allocation12 + $0x2a8] sm:$0xff]
        %v7530 = vld [vmem:[#allocation12 + $0x2b0] sm:$0xff]
        %v7531 = vld [vmem:[#allocation12 + $0x2b8] sm:$0xff]
        %v7532 = vld [vmem:[#allocation12 + $0x2c0] sm:$0xff]
        %v7533 = vld [vmem:[#allocation12 + $0x2c8] sm:$0xff]
        %v7534 = vld [vmem:[#allocation12 + $0x2d0] sm:$0xff]
        %v7535 = vld [vmem:[#allocation12 + $0x2d8] sm:$0xff]
        %v7536 = vld [vmem:[#allocation12 + $0x2e0] sm:$0xff]
        %v7537 = vld [vmem:[#allocation12 + $0x2e8] sm:$0xff]
        %v7538 = vld [vmem:[#allocation12 + $0x2f0] sm:$0xff]
        %v7539 = vld [vmem:[#allocation12 + $0x2f8] sm:$0xff]
        %v7540 = vld [vmem:[#allocation12 + $0x300] sm:$0xff]
        %v7541 = vld [vmem:[#allocation12 + $0x308] sm:$0xff]
        %v7542 = vld [vmem:[#allocation12 + $0x310] sm:$0xff]
        %v7543 = vld [vmem:[#allocation12 + $0x318] sm:$0xff]
        %v7544 = vld [vmem:[#allocation12 + $0x320] sm:$0xff]
        %v7545 = vld [vmem:[#allocation12 + $0x328] sm:$0xff]
        %v7546 = vld [vmem:[#allocation12 + $0x330] sm:$0xff]
        %v7547 = vld [vmem:[#allocation12 + $0x338] sm:$0xff]
        %v7548 = vld [vmem:[#allocation12 + $0x340] sm:$0xff]
        %v7549 = vld [vmem:[#allocation12 + $0x348] sm:$0xff]
        %v7550 = vld [vmem:[#allocation12 + $0x350] sm:$0xff]
        %v7551 = vld [vmem:[#allocation12 + $0x358] sm:$0xff]
        %v7552 = vld [vmem:[#allocation12 + $0x360] sm:$0xff]
        %v7553 = vld [vmem:[#allocation12 + $0x368] sm:$0xff]
        %v7554 = vld [vmem:[#allocation12 + $0x370] sm:$0xff]
        %v7555 = vld [vmem:[#allocation12 + $0x378] sm:$0xff]
        %v7556 = vld [vmem:[#allocation12 + $0x380] sm:$0xff]
        %v7557 = vld [vmem:[#allocation12 + $0x388] sm:$0xff]
        %v7558 = vld [vmem:[#allocation12 + $0x390] sm:$0xff]
        %v7559 = vld [vmem:[#allocation12 + $0x398] sm:$0xff]
        %v7560 = vld [vmem:[#allocation12 + $0x3a0] sm:$0xff]
        %v7561 = vld [vmem:[#allocation12 + $0x3a8] sm:$0xff]
        %v7562 = vld [vmem:[#allocation12 + $0x3b0] sm:$0xff]
        %v7563 = vld [vmem:[#allocation12 + $0x3b8] sm:$0xff]
        %v7564 = vld [vmem:[#allocation12 + $0x3c0] sm:$0xff]
        %v7565 = vld [vmem:[#allocation12 + $0x3c8] sm:$0xff]
        %v7566 = vld [vmem:[#allocation12 + $0x3d0] sm:$0xff]
        %v7567 = vld [vmem:[#allocation12 + $0x3d8] sm:$0xff]
        %v7568 = vld [vmem:[#allocation12 + $0x3e0] sm:$0xff]
        %v7569 = vld [vmem:[#allocation12 + $0x3e8] sm:$0xff]
        %v7570 = vld [vmem:[#allocation12 + $0x3f0] sm:$0x7f]
        %v7571 = vld [vmem:[#allocation12 + $0x3f8] sm:$0x7f]
        %v7573 = vsel %vm5027, %v7429, 0
        %v7576 = vsel %vm5027, %v7433, 0
        %v7579 = vsel %vm5027, %v7437, 0
        %v7582 = vsel %vm5027, %v7441, 0
        %v7585 = vsel %vm5116, %v7570, 0
        %v7588 = vsel %vm5116, %v7571, 0
        %7590 = vmatprep.subr.mxu0 %v7445
        %7591 = vmatpush1.msra.mxu0 %v7444
        %7592 = vmatprep.subr.mxu0 %v7447
        %7593 = vmatpush1.msra.mxu0 %v7446
        %7594 = vmatprep.subr.mxu0 %v7449
        %7595 = vmatpush1.msra.mxu0 %v7448
        %7596 = vmatprep.subr.mxu0 %v7451
        %7597 = vmatpush1.msra.mxu0 %v7450
        %7598 = vmatprep.subr.mxu0 %v7453
        %7599 = vmatpush1.msra.mxu0 %v7452
        %7600 = vmatprep.subr.mxu0 %v7455
        %7601 = vmatpush1.msra.mxu0 %v7454
        %7602 = vmatprep.subr.mxu0 %v7457
        %7603 = vmatpush1.msra.mxu0 %v7456
        %7604 = vmatprep.subr.mxu0 %v7459
        %7605 = vmatpush1.msra.mxu0 %v7458
        %7606 = vmatprep.subr.mxu0 %v7461
        %7607 = vmatpush1.msra.mxu0 %v7460
        %7608 = vmatprep.subr.mxu0 %v7463
        %7609 = vmatpush1.msra.mxu0 %v7462
        %7610 = vmatprep.subr.mxu0 %v7465
        %7611 = vmatpush1.msra.mxu0 %v7464
        %7612 = vmatprep.subr.mxu0 %v7467
        %7613 = vmatpush1.msra.mxu0 %v7466
        %7614 = vmatprep.subr.mxu0 %v7469
        %7615 = vmatpush1.msra.mxu0 %v7468
        %7616 = vmatprep.subr.mxu0 %v7471
        %7617 = vmatpush1.msra.mxu0 %v7470
        %7618 = vmatprep.subr.mxu0 %v7473
        %7619 = vmatpush1.msra.mxu0 %v7472
        %7620 = vmatprep.subr.mxu0 %v7475
        %7621 = vmatpush1.msra.mxu0 %v7474
        %7622 = vmatprep.subr.mxu0 %v7477
        %7623 = vmatpush1.msra.mxu0 %v7476
        %7624 = vmatprep.subr.mxu0 %v7479
        %7625 = vmatpush1.msra.mxu0 %v7478
        %7626 = vmatprep.subr.mxu0 %v7481
        %7627 = vmatpush1.msra.mxu0 %v7480
        %7628 = vmatprep.subr.mxu0 %v7483
        %7629 = vmatpush1.msra.mxu0 %v7482
        %7630 = vmatprep.subr.mxu0 %v7485
        %7631 = vmatpush1.msra.mxu0 %v7484
        %7632 = vmatprep.subr.mxu0 %v7487
        %7633 = vmatpush1.msra.mxu0 %v7486
        %7634 = vmatprep.subr.mxu0 %v7489
        %7635 = vmatpush1.msra.mxu0 %v7488
        %7636 = vmatprep.subr.mxu0 %v7491
        %7637 = vmatpush1.msra.mxu0 %v7490
        %7638 = vmatprep.subr.mxu0 %v7493
        %7639 = vmatpush1.msra.mxu0 %v7492
        %7640 = vmatprep.subr.mxu0 %v7495
        %7641 = vmatpush1.msra.mxu0 %v7494
        %7642 = vmatprep.subr.mxu0 %v7497
        %7643 = vmatpush1.msra.mxu0 %v7496
        %7644 = vmatprep.subr.mxu0 %v7499
        %7645 = vmatpush1.msra.mxu0 %v7498
        %7646 = vmatprep.subr.mxu0 %v7501
        %7647 = vmatpush1.msra.mxu0 %v7500
        %7648 = vmatprep.subr.mxu0 %v7503
        %7649 = vmatpush1.msra.mxu0 %v7502
        %7650 = vmatprep.subr.mxu0 %v7505
        %7651 = vmatpush1.msra.mxu0 %v7504
        %7652 = vmatprep.subr.mxu0 %v7507
        %7653 = vmatpush1.msra.mxu0 %v7506
        %7654 = vmatprep.mubr.f32.mxu0 %v7427
        %7655 = vmatmul.mubr.f32.gmra.mrb[0].mxu0 %v7426
        %v7656 = vpop.f32.mrb[0].mxu0
        %v7657 = vadd.f32 0.0, %v7656
        %v7658 = vpop.f32.mrb[0].mxu0
        %v7659 = vadd.f32 0.0, %v7658
        %7660 = vmatprep.mubr.f32.mxu0 %v7431
        %7661 = vmatmul.mubr.f32.gmra.mrb[0].mxu0 %v7430
        %v7662 = vpop.f32.mrb[0].mxu0
        %v7663 = vadd.f32 0.0, %v7662
        %v7664 = vpop.f32.mrb[0].mxu0
        %v7665 = vadd.f32 0.0, %v7664
        %7666 = vmatprep.mubr.f32.mxu0 %v7435
        %7667 = vmatmul.mubr.f32.gmra.mrb[0].mxu0 %v7434
        %v7668 = vpop.f32.mrb[0].mxu0
        %v7669 = vadd.f32 0.0, %v7668
        %v7670 = vpop.f32.mrb[0].mxu0
        %v7671 = vadd.f32 0.0, %v7670
        %7672 = vmatprep.mubr.f32.mxu0 %v7439
        %7673 = vmatmul.mubr.f32.gmra.mrb[0].mxu0 %v7438
        %v7674 = vpop.f32.mrb[0].mxu0
        %v7675 = vadd.f32 0.0, %v7674
        %v7676 = vpop.f32.mrb[0].mxu0
        %v7677 = vadd.f32 0.0, %v7676
        %7678 = vdwg.mxu0
        %7679 = vmatprep.subr.mxu0 %v7509
        %7680 = vmatpush1.msra.mxu0 %v7508
        %7681 = vmatprep.subr.mxu0 %v7511
        %7682 = vmatpush1.msra.mxu0 %v7510
        %7683 = vmatprep.subr.mxu0 %v7513
        %7684 = vmatpush1.msra.mxu0 %v7512
        %7685 = vmatprep.subr.mxu0 %v7515
        %7686 = vmatpush1.msra.mxu0 %v7514
        %7687 = vmatprep.subr.mxu0 %v7517
        %7688 = vmatpush1.msra.mxu0 %v7516
        %7689 = vmatprep.subr.mxu0 %v7519
        %7690 = vmatpush1.msra.mxu0 %v7518
        %7691 = vmatprep.subr.mxu0 %v7521
        %7692 = vmatpush1.msra.mxu0 %v7520
        %7693 = vmatprep.subr.mxu0 %v7523
        %7694 = vmatpush1.msra.mxu0 %v7522
        %7695 = vmatprep.subr.mxu0 %v7525
        %7696 = vmatpush1.msra.mxu0 %v7524
        %7697 = vmatprep.subr.mxu0 %v7527
        %7698 = vmatpush1.msra.mxu0 %v7526
        %7699 = vmatprep.subr.mxu0 %v7529
        %7700 = vmatpush1.msra.mxu0 %v7528
        %7701 = vmatprep.subr.mxu0 %v7531
        %7702 = vmatpush1.msra.mxu0 %v7530
        %7703 = vmatprep.subr.mxu0 %v7533
        %7704 = vmatpush1.msra.mxu0 %v7532
        %7705 = vmatprep.subr.mxu0 %v7535
        %7706 = vmatpush1.msra.mxu0 %v7534
        %7707 = vmatprep.subr.mxu0 %v7537
        %7708 = vmatpush1.msra.mxu0 %v7536
        %7709 = vmatprep.subr.mxu0 %v7539
        %7710 = vmatpush1.msra.mxu0 %v7538
        %7711 = vmatprep.subr.mxu0 %v7541
        %7712 = vmatpush1.msra.mxu0 %v7540
        %7713 = vmatprep.subr.mxu0 %v7543
        %7714 = vmatpush1.msra.mxu0 %v7542
        %7715 = vmatprep.subr.mxu0 %v7545
        %7716 = vmatpush1.msra.mxu0 %v7544
        %7717 = vmatprep.subr.mxu0 %v7547
        %7718 = vmatpush1.msra.mxu0 %v7546
        %7719 = vmatprep.subr.mxu0 %v7549
        %7720 = vmatpush1.msra.mxu0 %v7548
        %7721 = vmatprep.subr.mxu0 %v7551
        %7722 = vmatpush1.msra.mxu0 %v7550
        %7723 = vmatprep.subr.mxu0 %v7553
        %7724 = vmatpush1.msra.mxu0 %v7552
        %7725 = vmatprep.subr.mxu0 %v7555
        %7726 = vmatpush1.msra.mxu0 %v7554
        %7727 = vmatprep.subr.mxu0 %v7557
        %7728 = vmatpush1.msra.mxu0 %v7556
        %7729 = vmatprep.subr.mxu0 %v7559
        %7730 = vmatpush1.msra.mxu0 %v7558
        %7731 = vmatprep.subr.mxu0 %v7561
        %7732 = vmatpush1.msra.mxu0 %v7560
        %7733 = vmatprep.subr.mxu0 %v7563
        %7734 = vmatpush1.msra.mxu0 %v7562
        %7735 = vmatprep.subr.mxu0 %v7565
        %7736 = vmatpush1.msra.mxu0 %v7564
        %7737 = vmatprep.subr.mxu0 %v7567
        %7738 = vmatpush1.msra.mxu0 %v7566
        %7739 = vmatprep.subr.mxu0 %v7569
        %7740 = vmatpush1.msra.mxu0 %v7568
        %7741 = vmatprep.subr.mxu0 %v7588
        %7742 = vmatpush1.msra.mxu0 %v7585
        %7743 = vmatprep.mubr.f32.mxu0 %v7573
        %7744 = vmatmul.mubr.f32.gmra.mrb[0].mxu0 %v7428
        %v7745 = vpop.f32.mrb[0].mxu0
        %v7746 = vadd.f32 %v7657, %v7745
        %v7747 = vpop.f32.mrb[0].mxu0
        %v7748 = vadd.f32 %v7659, %v7747
        %7749 = vmatprep.mubr.f32.mxu0 %v7576
        %7750 = vmatmul.mubr.f32.gmra.mrb[0].mxu0 %v7432
        %v7751 = vpop.f32.mrb[0].mxu0
        %v7752 = vadd.f32 %v7663, %v7751
        %v7753 = vpop.f32.mrb[0].mxu0
        %v7754 = vadd.f32 %v7665, %v7753
        %7755 = vmatprep.mubr.f32.mxu0 %v7579
        %7756 = vmatmul.mubr.f32.gmra.mrb[0].mxu0 %v7436
        %v7757 = vpop.f32.mrb[0].mxu0
        %v7758 = vadd.f32 %v7669, %v7757
        %v7759 = vpop.f32.mrb[0].mxu0
        %v7760 = vadd.f32 %v7671, %v7759
        %7761 = vmatprep.mubr.f32.mxu0 %v7582
        %7762 = vmatmul.mubr.f32.gmra.mrb[0].mxu0 %v7440
        %v7763 = vpop.f32.mrb[0].mxu0
        %v7764 = vadd.f32 %v7675, %v7763
        %v7765 = vpop.f32.mrb[0].mxu0
        %v7766 = vadd.f32 %v7677, %v7765
        %7767 = vdwg.mxu0
        %vm7768 = vcmask 203776
        %v7770 = vsel %vm7768, %v7442, 0
        %v7773 = vsel %vm7768, %v7443, 0
        %vm7775 = vcmask 1040384
        %v7777 = vsel %vm7775, %v7764, 0
        %v7780 = vsel %vm7775, %v7766, 0
        %7782 = vmatprep.subr.mxu0 %v7748
        %7783 = vmatpush1.msra.mxu0 %v7746
        %7784 = vmatprep.subr.mxu0 %v7754
        %7785 = vmatpush1.msra.mxu0 %v7752
        %7786 = vmatprep.subr.mxu0 %v7760
        %7787 = vmatpush1.msra.mxu0 %v7758
        %7788 = vmatprep.subr.mxu0 %v7780
        %7789 = vmatpush1.msra.mxu0 %v7777
        %7790 = vmatprep.subr.mxu0 0.0
        %7791 = vmatpush1.msra.mxu0 0.0
        %7792 = vmatprep.subr.mxu0 0.0
        %7793 = vmatpush1.msra.mxu0 0.0
        %7794 = vmatprep.subr.mxu0 0.0
        %7795 = vmatpush1.msra.mxu0 0.0
        %7796 = vmatprep.subr.mxu0 0.0
        %7797 = vmatpush1.msra.mxu0 0.0
        %7798 = vmatprep.subr.mxu0 0.0
        %7799 = vmatpush1.msra.mxu0 0.0
        %7800 = vmatprep.subr.mxu0 0.0
        %7801 = vmatpush1.msra.mxu0 0.0
        %7802 = vmatprep.subr.mxu0 0.0
        %7803 = vmatpush1.msra.mxu0 0.0
        %7804 = vmatprep.subr.mxu0 0.0
        %7805 = vmatpush1.msra.mxu0 0.0
        %7806 = vmatprep.subr.mxu0 0.0
        %7807 = vmatpush1.msra.mxu0 0.0
        %7808 = vmatprep.subr.mxu0 0.0
        %7809 = vmatpush1.msra.mxu0 0.0
        %7810 = vmatprep.subr.mxu0 0.0
        %7811 = vmatpush1.msra.mxu0 0.0
        %7812 = vmatprep.subr.mxu0 0.0
        %7813 = vmatpush1.msra.mxu0 0.0
        %7814 = vmatprep.subr.mxu0 0.0
        %7815 = vmatpush1.msra.mxu0 0.0
        %7816 = vmatprep.subr.mxu0 0.0
        %7817 = vmatpush1.msra.mxu0 0.0
        %7818 = vmatprep.subr.mxu0 0.0
        %7819 = vmatpush1.msra.mxu0 0.0
        %7820 = vmatprep.subr.mxu0 0.0
        %7821 = vmatpush1.msra.mxu0 0.0
        %7822 = vmatprep.subr.mxu0 0.0
        %7823 = vmatpush1.msra.mxu0 0.0
        %7824 = vmatprep.subr.mxu0 0.0
        %7825 = vmatpush1.msra.mxu0 0.0
        %7826 = vmatprep.subr.mxu0 0.0
        %7827 = vmatpush1.msra.mxu0 0.0
        %7828 = vmatprep.subr.mxu0 0.0
        %7829 = vmatpush1.msra.mxu0 0.0
        %7830 = vmatprep.subr.mxu0 0.0
        %7831 = vmatpush1.msra.mxu0 0.0
        %7832 = vmatprep.subr.mxu0 0.0
        %7833 = vmatpush1.msra.mxu0 0.0
        %7834 = vmatprep.subr.mxu0 0.0
        %7835 = vmatpush1.msra.mxu0 0.0
        %7836 = vmatprep.subr.mxu0 0.0
        %7837 = vmatpush1.msra.mxu0 0.0
        %7838 = vmatprep.subr.mxu0 0.0
        %7839 = vmatpush1.msra.mxu0 0.0
        %7840 = vmatprep.subr.mxu0 0.0
        %7841 = vmatpush1.msra.mxu0 0.0
        %7842 = vmatprep.subr.mxu0 0.0
        %7843 = vmatpush1.msra.mxu0 0.0
        %7844 = vmatprep.subr.mxu0 0.0
        %7845 = vmatpush1.msra.mxu0 0.0
        %7846 = vmatprep.mubr.f32.mxu0 0.0
        %7847 = vmatmul.mubr.f32.gmra.mrb[0].mxu0 %v7770
        %v7848 = vpop.f32.mrb[0].mxu0
        %v7849 = vadd.f32 0.0, %v7848
        %v7850 = vpop.f32.mrb[0].mxu0
        %v7851 = vadd.f32 0.0, %v7850
        %7852 = vmatprep.mubr.f32.mxu0 0.0
        %7853 = vmatmul.mubr.f32.gmra.mrb[0].mxu0 %v7773
        %v7854 = vpop.f32.mrb[0].mxu0
        %v7855 = vadd.f32 0.0, %v7854
        %v7856 = vpop.f32.mrb[0].mxu0
        %v7857 = vadd.f32 0.0, %v7856
        %7858 = vdwg.mxu0
        %vm7859 = vcmask 105472
        %7860 = vst.msk [vmem:[%s450] sm:$0xff] %vm7859, %v7849
        %vm7861 = vcmask 102400
        %7862 = vst.msk [vmem:[%s450 + $0x8] sm:$0x1f] %vm7861, %v7855
        %7865 = vrot.lane.b32.xlu0 %v7849, 112
        %v7866 = vpop.permute.xlu0 %7865
        %7867 = vrot.lane.b32.xlu0 %v7855, 112
        %v7868 = vpop.permute.xlu0 %7867
        %s7871 = scalar_lea.vmem %s450, 16
        %7872 = vst.msk [vmem:[%s7871] sm:$0xff] %vm7859, %v7866
        %7873 = vst.msk [vmem:[%s7871 + $0x8] sm:$0x1f] %vm7861, %v7868
        %7874 = vrot.lane.b32.xlu0 %v7849, 96
        %v7875 = vpop.permute.xlu0 %7874
        %7876 = vrot.lane.b32.xlu0 %v7855, 96
        %v7877 = vpop.permute.xlu0 %7876
        %s7880 = scalar_lea.vmem %s450, 32
        %7881 = vst.msk [vmem:[%s7880] sm:$0xff] %vm7859, %v7875
        %7882 = vst.msk [vmem:[%s7880 + $0x8] sm:$0x1f] %vm7861, %v7877
        %7883 = vrot.lane.b32.xlu0 %v7849, 80
        %v7884 = vpop.permute.xlu0 %7883
        %7885 = vrot.lane.b32.xlu0 %v7855, 80
        %v7886 = vpop.permute.xlu0 %7885
        %s7889 = scalar_lea.vmem %s450, 48
        %7890 = vst.msk [vmem:[%s7889] sm:$0xff] %vm7859, %v7884
        %7891 = vst.msk [vmem:[%s7889 + $0x8] sm:$0x1f] %vm7861, %v7886
        %7892 = vrot.lane.b32.xlu0 %v7849, 64
        %v7893 = vpop.permute.xlu0 %7892
        %7894 = vrot.lane.b32.xlu0 %v7855, 64
        %v7895 = vpop.permute.xlu0 %7894
        %s7898 = scalar_lea.vmem %s450, 64
        %7899 = vst.msk [vmem:[%s7898] sm:$0xff] %vm7859, %v7893
        %7900 = vst.msk [vmem:[%s7898 + $0x8] sm:$0x1f] %vm7861, %v7895
        %7901 = vrot.lane.b32.xlu0 %v7849, 48
        %v7902 = vpop.permute.xlu0 %7901
        %7903 = vrot.lane.b32.xlu0 %v7855, 48
        %v7904 = vpop.permute.xlu0 %7903
        %s7907 = scalar_lea.vmem %s450, 80
        %7908 = vst.msk [vmem:[%s7907] sm:$0xff] %vm7859, %v7902
        %7909 = vst.msk [vmem:[%s7907 + $0x8] sm:$0x1f] %vm7861, %v7904
        %7910 = vrot.lane.b32.xlu0 %v7849, 32
        %v7911 = vpop.permute.xlu0 %7910
        %7912 = vrot.lane.b32.xlu0 %v7855, 32
        %v7913 = vpop.permute.xlu0 %7912
        %s7916 = scalar_lea.vmem %s450, 96
        %7917 = vst.msk [vmem:[%s7916] sm:$0xff] %vm7859, %v7911
        %7918 = vst.msk [vmem:[%s7916 + $0x8] sm:$0x1f] %vm7861, %v7913
        %7919 = vrot.lane.b32.xlu0 %v7849, 16
        %v7920 = vpop.permute.xlu0 %7919
        %7921 = vrot.lane.b32.xlu0 %v7855, 16
        %v7922 = vpop.permute.xlu0 %7921
        %s7925 = scalar_lea.vmem %s450, 112
        %7926 = vst.msk [vmem:[%s7925] sm:$0xff] %vm7859, %v7920
        %7927 = vst.msk [vmem:[%s7925 + $0x8] sm:$0x1f] %vm7861, %v7922
        %s7928 = scalar_lea.vmem %s450, 128
        %7929 = vst.msk [vmem:[%s7928] sm:$0xff] %vm7859, %v7851
        %7930 = vst.msk [vmem:[%s7928 + $0x8] sm:$0x1f] %vm7861, %v7857
        %7933 = vrot.lane.b32.xlu0 %v7851, 112
        %v7934 = vpop.permute.xlu0 %7933
        %7935 = vrot.lane.b32.xlu0 %v7857, 112
        %v7936 = vpop.permute.xlu0 %7935
        %s7939 = scalar_lea.vmem %s450, 144
        %7940 = vst.msk [vmem:[%s7939] sm:$0xff] %vm7859, %v7934
        %7941 = vst.msk [vmem:[%s7939 + $0x8] sm:$0x1f] %vm7861, %v7936
        %7942 = vrot.lane.b32.xlu0 %v7851, 96
        %v7943 = vpop.permute.xlu0 %7942
        %7944 = vrot.lane.b32.xlu0 %v7857, 96
        %v7945 = vpop.permute.xlu0 %7944
        %s7948 = scalar_lea.vmem %s450, 160
        %7949 = vst.msk [vmem:[%s7948] sm:$0xff] %vm7859, %v7943
        %7950 = vst.msk [vmem:[%s7948 + $0x8] sm:$0x1f] %vm7861, %v7945
        %7951 = vrot.lane.b32.xlu0 %v7851, 80
        %v7952 = vpop.permute.xlu0 %7951
        %7953 = vrot.lane.b32.xlu0 %v7857, 80
        %v7954 = vpop.permute.xlu0 %7953
        %s7957 = scalar_lea.vmem %s450, 176
        %7958 = vst.msk [vmem:[%s7957] sm:$0xff] %vm7859, %v7952
        %7959 = vst.msk [vmem:[%s7957 + $0x8] sm:$0x1f] %vm7861, %v7954
        %7960 = vrot.lane.b32.xlu0 %v7851, 64
        %v7961 = vpop.permute.xlu0 %7960
        %7962 = vrot.lane.b32.xlu0 %v7857, 64
        %v7963 = vpop.permute.xlu0 %7962
        %s7966 = scalar_lea.vmem %s450, 192
        %7967 = vst.msk [vmem:[%s7966] sm:$0xff] %vm7859, %v7961
        %7968 = vst.msk [vmem:[%s7966 + $0x8] sm:$0x1f] %vm7861, %v7963
        %7969 = vrot.lane.b32.xlu0 %v7851, 48
        %v7970 = vpop.permute.xlu0 %7969
        %7971 = vrot.lane.b32.xlu0 %v7857, 48
        %v7972 = vpop.permute.xlu0 %7971
        %s7975 = scalar_lea.vmem %s450, 208
        %7976 = vst.msk [vmem:[%s7975] sm:$0xff] %vm7859, %v7970
        %7977 = vst.msk [vmem:[%s7975 + $0x8] sm:$0x1f] %vm7861, %v7972
        %7978 = vrot.lane.b32.xlu0 %v7851, 32
        %v7979 = vpop.permute.xlu0 %7978
        %7980 = vrot.lane.b32.xlu0 %v7857, 32
        %v7981 = vpop.permute.xlu0 %7980
        %s7984 = scalar_lea.vmem %s450, 224
        %7985 = vst.msk [vmem:[%s7984] sm:$0xff] %vm7859, %v7979
        %7986 = vst.msk [vmem:[%s7984 + $0x8] sm:$0x1f] %vm7861, %v7981
        %7987 = vrot.lane.b32.xlu0 %v7851, 16
        %v7988 = vpop.permute.xlu0 %7987
        %7989 = vrot.lane.b32.xlu0 %v7857, 16
        %v7990 = vpop.permute.xlu0 %7989
        %s7993 = scalar_lea.vmem %s450, 240
        %7994 = vst.msk [vmem:[%s7993] sm:$0xff] %vm7859, %v7988
        %7995 = vst.msk [vmem:[%s7993 + $0x8] sm:$0x1f] %vm7861, %v7990
        %p7996 = scmp.lt.s32.totalorder %s27, 1
        %s7997 = scalar_select %p7996, %s27, 1
        %s7998 = smul.addr %s7997, 32
        %s7999 = smul.addr %s7998, 8
        %s8000 = scalar_lea.vmem %s9, %s7999
        // Predicated region
        $region89: #{net_forward.2} parent=55 // pred_check
          %p8001 = pneg %p239
        $region90: #{net_forward.2} parent=55 // pred_check_branch
          %8003 = sbr.rel (%p8001) target = $region92
        $region91: #{net_forward.2} parent=55 // pred_region
          _
        $region92: #{net_forward.2} parent=55 // pred_fallthru
          _
      $region56: #{net_forward.2} parent=5 // pred_fallthru
        _
      %p8004 = scmp.le.s32.totalorder 2, %s22
      // Predicated region
      $region93: #{net_forward.2} parent=5 // pred_check
        %p8005 = pneg %p8004
      $region94: #{net_forward.2} parent=5 // pred_check_branch
        %8007 = sbr.rel (%p8005) target = $region96
      $region95: #{net_forward.2} parent=5 // pred_region
        %s8008 = ssub.s32 %s22, 2
        // Predicated region
        $region97: #{net_forward.2} parent=95 // pred_check
          %p8009 = pneg %p245
        $region98: #{net_forward.2} parent=95 // pred_check_branch
          %8011 = sbr.rel (%p8009) target = $region100
        $region99: #{net_forward.2} parent=95 // pred_region
          %p8012 = scmp.lt.s32.totalorder %s28, 1
          %s8013 = scalar_select %p8012, %s28, 1
          %s8014 = smul.addr %s8013, 32
          %s8015 = smul.addr %s8014, 8
          %s8016 = scalar_lea.vmem %s9, %s8015
        $region100: #{net_forward.2} parent=95 // pred_fallthru
          _
      $region96: #{net_forward.2} parent=5 // pred_fallthru
        _
    $region6: #{net_forward.2} parent=1 // loop_footer
      %s26 = sadd.s32 1, %s22
    $region7: #{net_forward.2} parent=1 // loop_footer_branch
      %21 = sbr.rel target = $region3
    $region8: #{net_forward.2} parent=1 // loop_exit
      _
    %8017 = vsyncpa [#allocation3], 1
    %s8018 = scalar_lea.sflag [#allocation3], 1
    %8019 = vsyncpa %s8018, 1
    %8020 = vsyncpa [#allocation5], 1
    %8021 = vsyncpa [#allocation8], 1
    %8022 = vsyncpa [#allocation11], 1
    %8023 = vsyncpa [#allocation14], 1

</llo_original>
